<compile_context>
chip_gen: v7x
topology: tpu7x:2x2x1
jax: 0.10.0
libtpu: 0.0.40
codegen_flags: <defaults>
</compile_context>

<pallas_src>
import jax
import jax.numpy as jnp
import numpy as np
from jax.experimental import pallas as pl
from jax.experimental.pallas import tpu as pltpu

KH = KW = 5
PAD = 2
EPS = 1e-3            # BatchNorm2d eps=0.001
LANES = 128
SUBLANES = 8
CH_TILE = SUBLANES * LANES   # 1024 channels per (8, 128) vreg tile


def dwconv_bn_kernel(x_ref, w_ref, gamma_ref, beta_ref, o_ref):
    # x_ref:     (N, H+4, W+4, SB, 128)   zero-padded input, channels on (sublane, lane)
    # w_ref:     (KH, KW, SB, 128)        depthwise filter taps
    # gamma_ref: (SB, 128), beta_ref: (SB, 128)   BN affine params
    # o_ref:     (N, H, W, SB, 128)
    N, Ho, Wo, SB, _ = o_ref.shape
    inv_cnt = 1.0 / float(N * Ho * Wo)   # true per-channel count (no padded output positions)

    for g in range(SB // SUBLANES):      # 1024-channel (8-sublane) groups in this block
        cs = slice(g * SUBLANES, (g + 1) * SUBLANES)
        w_tile = w_ref[:, :, cs, :]      # (KH, KW, 8, 128): 25 vregs, reused for every row
        s1 = jnp.zeros((SUBLANES, LANES), jnp.float32)
        s2 = jnp.zeros((SUBLANES, LANES), jnp.float32)

        # Pass 1: depthwise conv one output row at a time (row accumulator stays in
        # vregs); both BN sums are accumulated in the same traversal.
        for n in range(N):
            for h in range(Ho):
                acc = jnp.zeros((Wo, SUBLANES, LANES), jnp.float32)
                for kh in range(KH):
                    # Aligned load: only outer dims are indexed; minor (8,128) is whole.
                    xrow = x_ref[n, h + kh, :, cs, :]          # (W+4, 8, 128)
                    for kw in range(KW):
                        acc = acc + xrow[kw:kw + Wo] * w_tile[kh, kw]
                o_ref[n, h, :, cs, :] = acc                    # unnormalized; rescaled in pass 2
                s1 = s1 + jnp.sum(acc, axis=0)
                s2 = s2 + jnp.sum(acc * acc, axis=0)

        # BatchNorm (training mode): per-channel batch mean / biased variance folded
        # into a single scale/shift.  Single-pass variance, clamped at 0.
        mean = s1 * inv_cnt
        var = jnp.maximum(s2 * inv_cnt - mean * mean, 0.0)
        scale = jax.lax.rsqrt(var + EPS) * gamma_ref[cs, :]
        shift = beta_ref[cs, :] - mean * scale

        # Pass 2: rescale the stored conv output in place (dense aligned VMEM traffic).
        for n in range(N):
            for h in range(Ho):
                o_ref[n, h, :, cs, :] = o_ref[n, h, :, cs, :] * scale + shift
    # TODO(synk): BatchNorm running_mean/running_var updates (momentum=0.01,
    # unbiased variance) are not produced; only the training-mode forward output is.


def _channel_groups_per_block(total_groups):
    """1024-channel groups handled per grid step.

    Single-TensorCore chips (v5e/v6e): one block covering everything -- a longer
    grid is just a serial loop plus per-step overhead there.  Multi-core parts
    (v7x, v4/v5p megacore) or unknown devices: one group per "parallel" step so
    the groups are sharded across TensorCores.
    """
    try:
        kind = jax.devices()[0].device_kind.lower()
    except Exception:
        kind = ""
    single_tc = any(t in kind for t in
                    ("v5e", "v5 lite", "v5lite", "v6e", "v6 lite", "v6lite"))
    return total_groups if single_tc else 1


@jax.jit
def depthwise_conv_bn(x_nchw, w_dw, gamma, beta):
    """x_nchw: (N, C, H, W); w_dw: (C, 1, KH, KW); gamma/beta: (C,) -> (N, C, H, W)."""
    N, C, H, W = x_nchw.shape
    n_groups = -(-C // CH_TILE)                 # number of 1024-channel groups (2064 -> 3)
    c_pad = n_groups * CH_TILE
    S = c_pad // LANES                          # sublane rows of channels
    Hp, Wp = H + 2 * PAD, W + 2 * PAD

    # NCHW -> channels-last, pad channels and the 2px spatial halo once, in HBM,
    # so every in-kernel access is dense and aligned.
    # TODO(synk): in a full model keep activations in this layout end-to-end so
    # these relayouts (comparable to the kernel cost at this size) disappear.
    x = jnp.transpose(x_nchw, (0, 2, 3, 1)).astype(jnp.float32)
    x = jnp.pad(x, ((0, 0), (PAD, PAD), (PAD, PAD), (0, c_pad - C)))
    x = x.reshape(N, Hp, Wp, S, LANES)          # channel c -> (c // 128, c % 128)

    w_kc = jnp.transpose(w_dw.reshape(C, KH * KW), (1, 0)).astype(jnp.float32)
    w_kc = jnp.pad(w_kc, ((0, 0), (0, c_pad - C))).reshape(KH, KW, S, LANES)
    gamma_p = jnp.pad(gamma.astype(jnp.float32), (0, c_pad - C),
                      constant_values=1.0).reshape(S, LANES)
    beta_p = jnp.pad(beta.astype(jnp.float32), (0, c_pad - C)).reshape(S, LANES)

    sb = _channel_groups_per_block(n_groups) * SUBLANES   # sublane rows per grid step
    grid = (S // sb,)

    out = pl.pallas_call(
        dwconv_bn_kernel,
        out_shape=jax.ShapeDtypeStruct((N, H, W, S, LANES), jnp.float32),
        grid_spec=pltpu.PrefetchScalarGridSpec(
            num_scalar_prefetch=0,
            grid=grid,
            in_specs=[
                pl.BlockSpec((N, Hp, Wp, sb, LANES), lambda g: (0, 0, 0, g, 0)),
                pl.BlockSpec((KH, KW, sb, LANES), lambda g: (0, 0, g, 0)),
                pl.BlockSpec((sb, LANES), lambda g: (g, 0)),
                pl.BlockSpec((sb, LANES), lambda g: (g, 0)),
            ],
            out_specs=pl.BlockSpec((N, H, W, sb, LANES), lambda g: (0, 0, 0, g, 0)),
        ),
        compiler_params=pltpu.CompilerParams(
            dimension_semantics=("parallel",)),
    )(x, w_kc, gamma_p, beta_p)

    out = out.reshape(N, H, W, c_pad)[..., :C]  # drop padded channels
    return jnp.transpose(out, (0, 3, 1, 2))     # back to NCHW


def reference(x_nchw, w_dw, gamma, beta):
    """Pure-JAX reference (conv_general_dilated + training-mode BN)."""
    N, C, H, W = x_nchw.shape
    x_nhwc = jnp.transpose(x_nchw, (0, 2, 3, 1)).astype(jnp.float32)
    w_hwio = jnp.transpose(w_dw.reshape(C, KH, KW), (1, 2, 0)).reshape(KH, KW, 1, C)
    y = jax.lax.conv_general_dilated(
        x_nhwc, w_hwio.astype(jnp.float32), window_strides=(1, 1),
        padding=((PAD, PAD), (PAD, PAD)),
        dimension_numbers=("NHWC", "HWIO", "NHWC"),
        feature_group_count=C)
    mean = jnp.mean(y, axis=(0, 1, 2), keepdims=True)
    var = jnp.mean((y - mean) ** 2, axis=(0, 1, 2), keepdims=True)
    y = (y - mean) * jax.lax.rsqrt(var + EPS) \
        * gamma.reshape(1, 1, 1, C) + beta.reshape(1, 1, 1, C)
    return jnp.transpose(y, (0, 3, 1, 2))


if __name__ == "__main__":
    # Exact module shape: Conv2d(2064, 2064, 5x5, groups=2064) on (1, 2064, 7, 7).
    N, C, H, W = 1, 2064, 7, 7

    key = jax.random.PRNGKey(0)
    kx, kwt, kg, kb = jax.random.split(key, 4)
    x = jax.random.normal(kx, (N, C, H, W), dtype=jnp.float32)

    # Conv2d depthwise weight: (C, 1, 5, 5), PyTorch-style uniform init (fan_in=25).
    bound = 1.0 / np.sqrt(KH * KW)
    w_dw = jax.random.uniform(kwt, (C, 1, KH, KW), minval=-bound, maxval=bound,
                              dtype=jnp.float32)
    # BN affine params (random to exercise the folded scale/shift path).
    gamma = jax.random.uniform(kg, (C,), minval=0.5, maxval=1.5, dtype=jnp.float32)
    beta = jax.random.normal(kb, (C,), dtype=jnp.float32) * 0.1

    out = jax.block_until_ready(depthwise_conv_bn(x, w_dw, gamma, beta))
    ref = jax.block_until_ready(reference(x, w_dw, gamma, beta))
    np.testing.assert_allclose(np.asarray(out), np.asarray(ref),
                               rtol=1e-4, atol=1e-4)

    print("KERNEL_OK")
</pallas_src>

<mosaic_0001>
module attributes {stable_mosaic.version = 11 : i64} {
  func.func @dwconv_bn_kernel(%arg0: i32, %arg1: memref<1x11x11x8x128xf32, #tpu.memory_space<vmem>>, %arg2: memref<5x5x8x128xf32, #tpu.memory_space<vmem>>, %arg3: memref<8x128xf32, #tpu.memory_space<vmem>>, %arg4: memref<8x128xf32, #tpu.memory_space<vmem>>, %arg5: memref<1x7x7x8x128xf32, #tpu.memory_space<vmem>>) attributes {dimension_semantics = [#tpu.dimension_semantics<parallel>], iteration_bounds = array<i64: 3>, scalar_prefetch = 0 : i64, scratch_operands = 0 : i64, tpu.core_type = #tpu.core_type<tc>, window_params = [{transform_indices = @transform_0, window_bounds = array<i64: 1, 11, 11, 8, 128>}, {transform_indices = @transform_1, window_bounds = array<i64: 5, 5, 8, 128>}, {transform_indices = @transform_2, window_bounds = array<i64: 8, 128>}, {transform_indices = @transform_3, window_bounds = array<i64: 8, 128>}, {transform_indices = @transform_4, window_bounds = array<i64: 1, 7, 7, 8, 128>}]} {
    %c0 = arith.constant 0 : index
    %c0_0 = arith.constant 0 : index
    %c0_1 = arith.constant 0 : index
    %c0_2 = arith.constant 0 : index
    %0 = vector.load %arg2[%c0, %c0_0, %c0_1, %c0_2] : memref<5x5x8x128xf32, #tpu.memory_space<vmem>>, vector<5x5x8x128xf32>
    %cst = arith.constant 0.000000e+00 : f32
    %1 = vector.broadcast %cst : f32 to vector<8x128xf32>
    %cst_3 = arith.constant 0.000000e+00 : f32
    %2 = vector.broadcast %cst_3 : f32 to vector<8x128xf32>
    %cst_4 = arith.constant 0.000000e+00 : f32
    %3 = vector.broadcast %cst_4 : f32 to vector<7x8x128xf32>
    %c0_5 = arith.constant 0 : index
    %c0_6 = arith.constant 0 : index
    %c0_7 = arith.constant 0 : index
    %c0_8 = arith.constant 0 : index
    %c0_9 = arith.constant 0 : index
    %4 = vector.load %arg1[%c0_5, %c0_6, %c0_7, %c0_8, %c0_9] : memref<1x11x11x8x128xf32, #tpu.memory_space<vmem>>, vector<1x1x11x8x128xf32>
    %5 = vector.shape_cast %4 : vector<1x1x11x8x128xf32> to vector<11x8x128xf32>
    %6 = vector.extract_strided_slice %5 {offsets = [0, 0, 0], sizes = [7, 8, 128], strides = [1, 1, 1]} : vector<11x8x128xf32> to vector<7x8x128xf32>
    %7 = vector.extract_strided_slice %0 {offsets = [0, 0, 0, 0], sizes = [1, 1, 8, 128], strides = [1, 1, 1, 1]} : vector<5x5x8x128xf32> to vector<1x1x8x128xf32>
    %8 = vector.shape_cast %7 : vector<1x1x8x128xf32> to vector<8x128xf32>
    %9 = vector.shape_cast %8 : vector<8x128xf32> to vector<1x8x128xf32>
    %10 = vector.broadcast %9 : vector<1x8x128xf32> to vector<7x8x128xf32>
    %11 = arith.mulf %6, %10 : vector<7x8x128xf32>
    %12 = arith.addf %3, %11 : vector<7x8x128xf32>
    %13 = vector.extract_strided_slice %5 {offsets = [1, 0, 0], sizes = [7, 8, 128], strides = [1, 1, 1]} : vector<11x8x128xf32> to vector<7x8x128xf32>
    %14 = vector.extract_strided_slice %0 {offsets = [0, 1, 0, 0], sizes = [1, 1, 8, 128], strides = [1, 1, 1, 1]} : vector<5x5x8x128xf32> to vector<1x1x8x128xf32>
    %15 = vector.shape_cast %14 : vector<1x1x8x128xf32> to vector<8x128xf32>
    %16 = vector.shape_cast %15 : vector<8x128xf32> to vector<1x8x128xf32>
    %17 = vector.broadcast %16 : vector<1x8x128xf32> to vector<7x8x128xf32>
    %18 = arith.mulf %13, %17 : vector<7x8x128xf32>
    %19 = arith.addf %12, %18 : vector<7x8x128xf32>
    %20 = vector.extract_strided_slice %5 {offsets = [2, 0, 0], sizes = [7, 8, 128], strides = [1, 1, 1]} : vector<11x8x128xf32> to vector<7x8x128xf32>
    %21 = vector.extract_strided_slice %0 {offsets = [0, 2, 0, 0], sizes = [1, 1, 8, 128], strides = [1, 1, 1, 1]} : vector<5x5x8x128xf32> to vector<1x1x8x128xf32>
    %22 = vector.shape_cast %21 : vector<1x1x8x128xf32> to vector<8x128xf32>
    %23 = vector.shape_cast %22 : vector<8x128xf32> to vector<1x8x128xf32>
    %24 = vector.broadcast %23 : vector<1x8x128xf32> to vector<7x8x128xf32>
    %25 = arith.mulf %20, %24 : vector<7x8x128xf32>
    %26 = arith.addf %19, %25 : vector<7x8x128xf32>
    %27 = vector.extract_strided_slice %5 {offsets = [3, 0, 0], sizes = [7, 8, 128], strides = [1, 1, 1]} : vector<11x8x128xf32> to vector<7x8x128xf32>
    %28 = vector.extract_strided_slice %0 {offsets = [0, 3, 0, 0], sizes = [1, 1, 8, 128], strides = [1, 1, 1, 1]} : vector<5x5x8x128xf32> to vector<1x1x8x128xf32>
    %29 = vector.shape_cast %28 : vector<1x1x8x128xf32> to vector<8x128xf32>
    %30 = vector.shape_cast %29 : vector<8x128xf32> to vector<1x8x128xf32>
    %31 = vector.broadcast %30 : vector<1x8x128xf32> to vector<7x8x128xf32>
    %32 = arith.mulf %27, %31 : vector<7x8x128xf32>
    %33 = arith.addf %26, %32 : vector<7x8x128xf32>
    %34 = vector.extract_strided_slice %5 {offsets = [4, 0, 0], sizes = [7, 8, 128], strides = [1, 1, 1]} : vector<11x8x128xf32> to vector<7x8x128xf32>
    %35 = vector.extract_strided_slice %0 {offsets = [0, 4, 0, 0], sizes = [1, 1, 8, 128], strides = [1, 1, 1, 1]} : vector<5x5x8x128xf32> to vector<1x1x8x128xf32>
    %36 = vector.shape_cast %35 : vector<1x1x8x128xf32> to vector<8x128xf32>
    %37 = vector.shape_cast %36 : vector<8x128xf32> to vector<1x8x128xf32>
    %38 = vector.broadcast %37 : vector<1x8x128xf32> to vector<7x8x128xf32>
    %39 = arith.mulf %34, %38 : vector<7x8x128xf32>
    %40 = arith.addf %33, %39 : vector<7x8x128xf32>
    %c0_10 = arith.constant 0 : index
    %c1 = arith.constant 1 : index
    %c0_11 = arith.constant 0 : index
    %c0_12 = arith.constant 0 : index
    %c0_13 = arith.constant 0 : index
    %41 = vector.load %arg1[%c0_10, %c1, %c0_11, %c0_12, %c0_13] : memref<1x11x11x8x128xf32, #tpu.memory_space<vmem>>, vector<1x1x11x8x128xf32>
    %42 = vector.shape_cast %41 : vector<1x1x11x8x128xf32> to vector<11x8x128xf32>
    %43 = vector.extract_strided_slice %42 {offsets = [0, 0, 0], sizes = [7, 8, 128], strides = [1, 1, 1]} : vector<11x8x128xf32> to vector<7x8x128xf32>
    %44 = vector.extract_strided_slice %0 {offsets = [1, 0, 0, 0], sizes = [1, 1, 8, 128], strides = [1, 1, 1, 1]} : vector<5x5x8x128xf32> to vector<1x1x8x128xf32>
    %45 = vector.shape_cast %44 : vector<1x1x8x128xf32> to vector<8x128xf32>
    %46 = vector.shape_cast %45 : vector<8x128xf32> to vector<1x8x128xf32>
    %47 = vector.broadcast %46 : vector<1x8x128xf32> to vector<7x8x128xf32>
    %48 = arith.mulf %43, %47 : vector<7x8x128xf32>
    %49 = arith.addf %40, %48 : vector<7x8x128xf32>
    %50 = vector.extract_strided_slice %42 {offsets = [1, 0, 0], sizes = [7, 8, 128], strides = [1, 1, 1]} : vector<11x8x128xf32> to vector<7x8x128xf32>
    %51 = vector.extract_strided_slice %0 {offsets = [1, 1, 0, 0], sizes = [1, 1, 8, 128], strides = [1, 1, 1, 1]} : vector<5x5x8x128xf32> to vector<1x1x8x128xf32>
    %52 = vector.shape_cast %51 : vector<1x1x8x128xf32> to vector<8x128xf32>
    %53 = vector.shape_cast %52 : vector<8x128xf32> to vector<1x8x128xf32>
    %54 = vector.broadcast %53 : vector<1x8x128xf32> to vector<7x8x128xf32>
    %55 = arith.mulf %50, %54 : vector<7x8x128xf32>
    %56 = arith.addf %49, %55 : vector<7x8x128xf32>
    %57 = vector.extract_strided_slice %42 {offsets = [2, 0, 0], sizes = [7, 8, 128], strides = [1, 1, 1]} : vector<11x8x128xf32> to vector<7x8x128xf32>
    %58 = vector.extract_strided_slice %0 {offsets = [1, 2, 0, 0], sizes = [1, 1, 8, 128], strides = [1, 1, 1, 1]} : vector<5x5x8x128xf32> to vector<1x1x8x128xf32>
    %59 = vector.shape_cast %58 : vector<1x1x8x128xf32> to vector<8x128xf32>
    %60 = vector.shape_cast %59 : vector<8x128xf32> to vector<1x8x128xf32>
    %61 = vector.broadcast %60 : vector<1x8x128xf32> to vector<7x8x128xf32>
    %62 = arith.mulf %57, %61 : vector<7x8x128xf32>
    %63 = arith.addf %56, %62 : vector<7x8x128xf32>
    %64 = vector.extract_strided_slice %42 {offsets = [3, 0, 0], sizes = [7, 8, 128], strides = [1, 1, 1]} : vector<11x8x128xf32> to vector<7x8x128xf32>
    %65 = vector.extract_strided_slice %0 {offsets = [1, 3, 0, 0], sizes = [1, 1, 8, 128], strides = [1, 1, 1, 1]} : vector<5x5x8x128xf32> to vector<1x1x8x128xf32>
    %66 = vector.shape_cast %65 : vector<1x1x8x128xf32> to vector<8x128xf32>
    %67 = vector.shape_cast %66 : vector<8x128xf32> to vector<1x8x128xf32>
    %68 = vector.broadcast %67 : vector<1x8x128xf32> to vector<7x8x128xf32>
    %69 = arith.mulf %64, %68 : vector<7x8x128xf32>
    %70 = arith.addf %63, %69 : vector<7x8x128xf32>
    %71 = vector.extract_strided_slice %42 {offsets = [4, 0, 0], sizes = [7, 8, 128], strides = [1, 1, 1]} : vector<11x8x128xf32> to vector<7x8x128xf32>
    %72 = vector.extract_strided_slice %0 {offsets = [1, 4, 0, 0], sizes = [1, 1, 8, 128], strides = [1, 1, 1, 1]} : vector<5x5x8x128xf32> to vector<1x1x8x128xf32>
    %73 = vector.shape_cast %72 : vector<1x1x8x128xf32> to vector<8x128xf32>
    %74 = vector.shape_cast %73 : vector<8x128xf32> to vector<1x8x128xf32>
    %75 = vector.broadcast %74 : vector<1x8x128xf32> to vector<7x8x128xf32>
    %76 = arith.mulf %71, %75 : vector<7x8x128xf32>
    %77 = arith.addf %70, %76 : vector<7x8x128xf32>
    %c0_14 = arith.constant 0 : index
    %c2 = arith.constant 2 : index
    %c0_15 = arith.constant 0 : index
    %c0_16 = arith.constant 0 : index
    %c0_17 = arith.constant 0 : index
    %78 = vector.load %arg1[%c0_14, %c2, %c0_15, %c0_16, %c0_17] : memref<1x11x11x8x128xf32, #tpu.memory_space<vmem>>, vector<1x1x11x8x128xf32>
    %79 = vector.shape_cast %78 : vector<1x1x11x8x128xf32> to vector<11x8x128xf32>
    %80 = vector.extract_strided_slice %79 {offsets = [0, 0, 0], sizes = [7, 8, 128], strides = [1, 1, 1]} : vector<11x8x128xf32> to vector<7x8x128xf32>
    %81 = vector.extract_strided_slice %0 {offsets = [2, 0, 0, 0], sizes = [1, 1, 8, 128], strides = [1, 1, 1, 1]} : vector<5x5x8x128xf32> to vector<1x1x8x128xf32>
    %82 = vector.shape_cast %81 : vector<1x1x8x128xf32> to vector<8x128xf32>
    %83 = vector.shape_cast %82 : vector<8x128xf32> to vector<1x8x128xf32>
    %84 = vector.broadcast %83 : vector<1x8x128xf32> to vector<7x8x128xf32>
    %85 = arith.mulf %80, %84 : vector<7x8x128xf32>
    %86 = arith.addf %77, %85 : vector<7x8x128xf32>
    %87 = vector.extract_strided_slice %79 {offsets = [1, 0, 0], sizes = [7, 8, 128], strides = [1, 1, 1]} : vector<11x8x128xf32> to vector<7x8x128xf32>
    %88 = vector.extract_strided_slice %0 {offsets = [2, 1, 0, 0], sizes = [1, 1, 8, 128], strides = [1, 1, 1, 1]} : vector<5x5x8x128xf32> to vector<1x1x8x128xf32>
    %89 = vector.shape_cast %88 : vector<1x1x8x128xf32> to vector<8x128xf32>
    %90 = vector.shape_cast %89 : vector<8x128xf32> to vector<1x8x128xf32>
    %91 = vector.broadcast %90 : vector<1x8x128xf32> to vector<7x8x128xf32>
    %92 = arith.mulf %87, %91 : vector<7x8x128xf32>
    %93 = arith.addf %86, %92 : vector<7x8x128xf32>
    %94 = vector.extract_strided_slice %79 {offsets = [2, 0, 0], sizes = [7, 8, 128], strides = [1, 1, 1]} : vector<11x8x128xf32> to vector<7x8x128xf32>
    %95 = vector.extract_strided_slice %0 {offsets = [2, 2, 0, 0], sizes = [1, 1, 8, 128], strides = [1, 1, 1, 1]} : vector<5x5x8x128xf32> to vector<1x1x8x128xf32>
    %96 = vector.shape_cast %95 : vector<1x1x8x128xf32> to vector<8x128xf32>
    %97 = vector.shape_cast %96 : vector<8x128xf32> to vector<1x8x128xf32>
    %98 = vector.broadcast %97 : vector<1x8x128xf32> to vector<7x8x128xf32>
    %99 = arith.mulf %94, %98 : vector<7x8x128xf32>
    %100 = arith.addf %93, %99 : vector<7x8x128xf32>
    %101 = vector.extract_strided_slice %79 {offsets = [3, 0, 0], sizes = [7, 8, 128], strides = [1, 1, 1]} : vector<11x8x128xf32> to vector<7x8x128xf32>
    %102 = vector.extract_strided_slice %0 {offsets = [2, 3, 0, 0], sizes = [1, 1, 8, 128], strides = [1, 1, 1, 1]} : vector<5x5x8x128xf32> to vector<1x1x8x128xf32>
    %103 = vector.shape_cast %102 : vector<1x1x8x128xf32> to vector<8x128xf32>
    %104 = vector.shape_cast %103 : vector<8x128xf32> to vector<1x8x128xf32>
    %105 = vector.broadcast %104 : vector<1x8x128xf32> to vector<7x8x128xf32>
    %106 = arith.mulf %101, %105 : vector<7x8x128xf32>
    %107 = arith.addf %100, %106 : vector<7x8x128xf32>
    %108 = vector.extract_strided_slice %79 {offsets = [4, 0, 0], sizes = [7, 8, 128], strides = [1, 1, 1]} : vector<11x8x128xf32> to vector<7x8x128xf32>
    %109 = vector.extract_strided_slice %0 {offsets = [2, 4, 0, 0], sizes = [1, 1, 8, 128], strides = [1, 1, 1, 1]} : vector<5x5x8x128xf32> to vector<1x1x8x128xf32>
    %110 = vector.shape_cast %109 : vector<1x1x8x128xf32> to vector<8x128xf32>
    %111 = vector.shape_cast %110 : vector<8x128xf32> to vector<1x8x128xf32>
    %112 = vector.broadcast %111 : vector<1x8x128xf32> to vector<7x8x128xf32>
    %113 = arith.mulf %108, %112 : vector<7x8x128xf32>
    %114 = arith.addf %107, %113 : vector<7x8x128xf32>
    %c0_18 = arith.constant 0 : index
    %c3 = arith.constant 3 : index
    %c0_19 = arith.constant 0 : index
    %c0_20 = arith.constant 0 : index
    %c0_21 = arith.constant 0 : index
    %115 = vector.load %arg1[%c0_18, %c3, %c0_19, %c0_20, %c0_21] : memref<1x11x11x8x128xf32, #tpu.memory_space<vmem>>, vector<1x1x11x8x128xf32>
    %116 = vector.shape_cast %115 : vector<1x1x11x8x128xf32> to vector<11x8x128xf32>
    %117 = vector.extract_strided_slice %116 {offsets = [0, 0, 0], sizes = [7, 8, 128], strides = [1, 1, 1]} : vector<11x8x128xf32> to vector<7x8x128xf32>
    %118 = vector.extract_strided_slice %0 {offsets = [3, 0, 0, 0], sizes = [1, 1, 8, 128], strides = [1, 1, 1, 1]} : vector<5x5x8x128xf32> to vector<1x1x8x128xf32>
    %119 = vector.shape_cast %118 : vector<1x1x8x128xf32> to vector<8x128xf32>
    %120 = vector.shape_cast %119 : vector<8x128xf32> to vector<1x8x128xf32>
    %121 = vector.broadcast %120 : vector<1x8x128xf32> to vector<7x8x128xf32>
    %122 = arith.mulf %117, %121 : vector<7x8x128xf32>
    %123 = arith.addf %114, %122 : vector<7x8x128xf32>
    %124 = vector.extract_strided_slice %116 {offsets = [1, 0, 0], sizes = [7, 8, 128], strides = [1, 1, 1]} : vector<11x8x128xf32> to vector<7x8x128xf32>
    %125 = vector.extract_strided_slice %0 {offsets = [3, 1, 0, 0], sizes = [1, 1, 8, 128], strides = [1, 1, 1, 1]} : vector<5x5x8x128xf32> to vector<1x1x8x128xf32>
    %126 = vector.shape_cast %125 : vector<1x1x8x128xf32> to vector<8x128xf32>
    %127 = vector.shape_cast %126 : vector<8x128xf32> to vector<1x8x128xf32>
    %128 = vector.broadcast %127 : vector<1x8x128xf32> to vector<7x8x128xf32>
    %129 = arith.mulf %124, %128 : vector<7x8x128xf32>
    %130 = arith.addf %123, %129 : vector<7x8x128xf32>
    %131 = vector.extract_strided_slice %116 {offsets = [2, 0, 0], sizes = [7, 8, 128], strides = [1, 1, 1]} : vector<11x8x128xf32> to vector<7x8x128xf32>
    %132 = vector.extract_strided_slice %0 {offsets = [3, 2, 0, 0], sizes = [1, 1, 8, 128], strides = [1, 1, 1, 1]} : vector<5x5x8x128xf32> to vector<1x1x8x128xf32>
    %133 = vector.shape_cast %132 : vector<1x1x8x128xf32> to vector<8x128xf32>
    %134 = vector.shape_cast %133 : vector<8x128xf32> to vector<1x8x128xf32>
    %135 = vector.broadcast %134 : vector<1x8x128xf32> to vector<7x8x128xf32>
    %136 = arith.mulf %131, %135 : vector<7x8x128xf32>
    %137 = arith.addf %130, %136 : vector<7x8x128xf32>
    %138 = vector.extract_strided_slice %116 {offsets = [3, 0, 0], sizes = [7, 8, 128], strides = [1, 1, 1]} : vector<11x8x128xf32> to vector<7x8x128xf32>
    %139 = vector.extract_strided_slice %0 {offsets = [3, 3, 0, 0], sizes = [1, 1, 8, 128], strides = [1, 1, 1, 1]} : vector<5x5x8x128xf32> to vector<1x1x8x128xf32>
    %140 = vector.shape_cast %139 : vector<1x1x8x128xf32> to vector<8x128xf32>
    %141 = vector.shape_cast %140 : vector<8x128xf32> to vector<1x8x128xf32>
    %142 = vector.broadcast %141 : vector<1x8x128xf32> to vector<7x8x128xf32>
    %143 = arith.mulf %138, %142 : vector<7x8x128xf32>
    %144 = arith.addf %137, %143 : vector<7x8x128xf32>
    %145 = vector.extract_strided_slice %116 {offsets = [4, 0, 0], sizes = [7, 8, 128], strides = [1, 1, 1]} : vector<11x8x128xf32> to vector<7x8x128xf32>
    %146 = vector.extract_strided_slice %0 {offsets = [3, 4, 0, 0], sizes = [1, 1, 8, 128], strides = [1, 1, 1, 1]} : vector<5x5x8x128xf32> to vector<1x1x8x128xf32>
    %147 = vector.shape_cast %146 : vector<1x1x8x128xf32> to vector<8x128xf32>
    %148 = vector.shape_cast %147 : vector<8x128xf32> to vector<1x8x128xf32>
    %149 = vector.broadcast %148 : vector<1x8x128xf32> to vector<7x8x128xf32>
    %150 = arith.mulf %145, %149 : vector<7x8x128xf32>
    %151 = arith.addf %144, %150 : vector<7x8x128xf32>
    %c0_22 = arith.constant 0 : index
    %c4 = arith.constant 4 : index
    %c0_23 = arith.constant 0 : index
    %c0_24 = arith.constant 0 : index
    %c0_25 = arith.constant 0 : index
    %152 = vector.load %arg1[%c0_22, %c4, %c0_23, %c0_24, %c0_25] : memref<1x11x11x8x128xf32, #tpu.memory_space<vmem>>, vector<1x1x11x8x128xf32>
    %153 = vector.shape_cast %152 : vector<1x1x11x8x128xf32> to vector<11x8x128xf32>
    %154 = vector.extract_strided_slice %153 {offsets = [0, 0, 0], sizes = [7, 8, 128], strides = [1, 1, 1]} : vector<11x8x128xf32> to vector<7x8x128xf32>
    %155 = vector.extract_strided_slice %0 {offsets = [4, 0, 0, 0], sizes = [1, 1, 8, 128], strides = [1, 1, 1, 1]} : vector<5x5x8x128xf32> to vector<1x1x8x128xf32>
    %156 = vector.shape_cast %155 : vector<1x1x8x128xf32> to vector<8x128xf32>
    %157 = vector.shape_cast %156 : vector<8x128xf32> to vector<1x8x128xf32>
    %158 = vector.broadcast %157 : vector<1x8x128xf32> to vector<7x8x128xf32>
    %159 = arith.mulf %154, %158 : vector<7x8x128xf32>
    %160 = arith.addf %151, %159 : vector<7x8x128xf32>
    %161 = vector.extract_strided_slice %153 {offsets = [1, 0, 0], sizes = [7, 8, 128], strides = [1, 1, 1]} : vector<11x8x128xf32> to vector<7x8x128xf32>
    %162 = vector.extract_strided_slice %0 {offsets = [4, 1, 0, 0], sizes = [1, 1, 8, 128], strides = [1, 1, 1, 1]} : vector<5x5x8x128xf32> to vector<1x1x8x128xf32>
    %163 = vector.shape_cast %162 : vector<1x1x8x128xf32> to vector<8x128xf32>
    %164 = vector.shape_cast %163 : vector<8x128xf32> to vector<1x8x128xf32>
    %165 = vector.broadcast %164 : vector<1x8x128xf32> to vector<7x8x128xf32>
    %166 = arith.mulf %161, %165 : vector<7x8x128xf32>
    %167 = arith.addf %160, %166 : vector<7x8x128xf32>
    %168 = vector.extract_strided_slice %153 {offsets = [2, 0, 0], sizes = [7, 8, 128], strides = [1, 1, 1]} : vector<11x8x128xf32> to vector<7x8x128xf32>
    %169 = vector.extract_strided_slice %0 {offsets = [4, 2, 0, 0], sizes = [1, 1, 8, 128], strides = [1, 1, 1, 1]} : vector<5x5x8x128xf32> to vector<1x1x8x128xf32>
    %170 = vector.shape_cast %169 : vector<1x1x8x128xf32> to vector<8x128xf32>
    %171 = vector.shape_cast %170 : vector<8x128xf32> to vector<1x8x128xf32>
    %172 = vector.broadcast %171 : vector<1x8x128xf32> to vector<7x8x128xf32>
    %173 = arith.mulf %168, %172 : vector<7x8x128xf32>
    %174 = arith.addf %167, %173 : vector<7x8x128xf32>
    %175 = vector.extract_strided_slice %153 {offsets = [3, 0, 0], sizes = [7, 8, 128], strides = [1, 1, 1]} : vector<11x8x128xf32> to vector<7x8x128xf32>
    %176 = vector.extract_strided_slice %0 {offsets = [4, 3, 0, 0], sizes = [1, 1, 8, 128], strides = [1, 1, 1, 1]} : vector<5x5x8x128xf32> to vector<1x1x8x128xf32>
    %177 = vector.shape_cast %176 : vector<1x1x8x128xf32> to vector<8x128xf32>
    %178 = vector.shape_cast %177 : vector<8x128xf32> to vector<1x8x128xf32>
    %179 = vector.broadcast %178 : vector<1x8x128xf32> to vector<7x8x128xf32>
    %180 = arith.mulf %175, %179 : vector<7x8x128xf32>
    %181 = arith.addf %174, %180 : vector<7x8x128xf32>
    %182 = vector.extract_strided_slice %153 {offsets = [4, 0, 0], sizes = [7, 8, 128], strides = [1, 1, 1]} : vector<11x8x128xf32> to vector<7x8x128xf32>
    %183 = vector.extract_strided_slice %0 {offsets = [4, 4, 0, 0], sizes = [1, 1, 8, 128], strides = [1, 1, 1, 1]} : vector<5x5x8x128xf32> to vector<1x1x8x128xf32>
    %184 = vector.shape_cast %183 : vector<1x1x8x128xf32> to vector<8x128xf32>
    %185 = vector.shape_cast %184 : vector<8x128xf32> to vector<1x8x128xf32>
    %186 = vector.broadcast %185 : vector<1x8x128xf32> to vector<7x8x128xf32>
    %187 = arith.mulf %182, %186 : vector<7x8x128xf32>
    %188 = arith.addf %181, %187 : vector<7x8x128xf32>
    %c0_26 = arith.constant 0 : index
    %c0_27 = arith.constant 0 : index
    %c0_28 = arith.constant 0 : index
    %c0_29 = arith.constant 0 : index
    %c0_30 = arith.constant 0 : index
    %189 = vector.load %arg5[%c0_26, %c0_27, %c0_28, %c0_29, %c0_30] : memref<1x7x7x8x128xf32, #tpu.memory_space<vmem>>, vector<1x1x7x8x128xf32>
    %190 = vector.shape_cast %189 : vector<1x1x7x8x128xf32> to vector<7x8x128xf32>
    %191 = vector.shape_cast %188 : vector<7x8x128xf32> to vector<1x1x7x8x128xf32>
    tpu.vector_store %arg5[%c0_26, %c0_27, %c0_28, %c0_29, %c0_30], %191 {strides = array<i32>} : memref<1x7x7x8x128xf32, #tpu.memory_space<vmem>>, vector<1x1x7x8x128xf32>,
    %cst_31 = arith.constant dense<0.000000e+00> : vector<8x128xf32>
    %192 = vector.multi_reduction <add>, %188, %cst_31 [0] : vector<7x8x128xf32> to vector<8x128xf32>
    %193 = arith.addf %1, %192 : vector<8x128xf32>
    %194 = arith.mulf %188, %188 : vector<7x8x128xf32>
    %cst_32 = arith.constant dense<0.000000e+00> : vector<8x128xf32>
    %195 = vector.multi_reduction <add>, %194, %cst_32 [0] : vector<7x8x128xf32> to vector<8x128xf32>
    %196 = arith.addf %2, %195 : vector<8x128xf32>
    %cst_33 = arith.constant 0.000000e+00 : f32
    %197 = vector.broadcast %cst_33 : f32 to vector<7x8x128xf32>
    %c0_34 = arith.constant 0 : index
    %c1_35 = arith.constant 1 : index
    %c0_36 = arith.constant 0 : index
    %c0_37 = arith.constant 0 : index
    %c0_38 = arith.constant 0 : index
    %198 = vector.load %arg1[%c0_34, %c1_35, %c0_36, %c0_37, %c0_38] : memref<1x11x11x8x128xf32, #tpu.memory_space<vmem>>, vector<1x1x11x8x128xf32>
    %199 = vector.shape_cast %198 : vector<1x1x11x8x128xf32> to vector<11x8x128xf32>
    %200 = vector.extract_strided_slice %199 {offsets = [0, 0, 0], sizes = [7, 8, 128], strides = [1, 1, 1]} : vector<11x8x128xf32> to vector<7x8x128xf32>
    %201 = vector.extract_strided_slice %0 {offsets = [0, 0, 0, 0], sizes = [1, 1, 8, 128], strides = [1, 1, 1, 1]} : vector<5x5x8x128xf32> to vector<1x1x8x128xf32>
    %202 = vector.shape_cast %201 : vector<1x1x8x128xf32> to vector<8x128xf32>
    %203 = vector.shape_cast %202 : vector<8x128xf32> to vector<1x8x128xf32>
    %204 = vector.broadcast %203 : vector<1x8x128xf32> to vector<7x8x128xf32>
    %205 = arith.mulf %200, %204 : vector<7x8x128xf32>
    %206 = arith.addf %197, %205 : vector<7x8x128xf32>
    %207 = vector.extract_strided_slice %199 {offsets = [1, 0, 0], sizes = [7, 8, 128], strides = [1, 1, 1]} : vector<11x8x128xf32> to vector<7x8x128xf32>
    %208 = vector.extract_strided_slice %0 {offsets = [0, 1, 0, 0], sizes = [1, 1, 8, 128], strides = [1, 1, 1, 1]} : vector<5x5x8x128xf32> to vector<1x1x8x128xf32>
    %209 = vector.shape_cast %208 : vector<1x1x8x128xf32> to vector<8x128xf32>
    %210 = vector.shape_cast %209 : vector<8x128xf32> to vector<1x8x128xf32>
    %211 = vector.broadcast %210 : vector<1x8x128xf32> to vector<7x8x128xf32>
    %212 = arith.mulf %207, %211 : vector<7x8x128xf32>
    %213 = arith.addf %206, %212 : vector<7x8x128xf32>
    %214 = vector.extract_strided_slice %199 {offsets = [2, 0, 0], sizes = [7, 8, 128], strides = [1, 1, 1]} : vector<11x8x128xf32> to vector<7x8x128xf32>
    %215 = vector.extract_strided_slice %0 {offsets = [0, 2, 0, 0], sizes = [1, 1, 8, 128], strides = [1, 1, 1, 1]} : vector<5x5x8x128xf32> to vector<1x1x8x128xf32>
    %216 = vector.shape_cast %215 : vector<1x1x8x128xf32> to vector<8x128xf32>
    %217 = vector.shape_cast %216 : vector<8x128xf32> to vector<1x8x128xf32>
    %218 = vector.broadcast %217 : vector<1x8x128xf32> to vector<7x8x128xf32>
    %219 = arith.mulf %214, %218 : vector<7x8x128xf32>
    %220 = arith.addf %213, %219 : vector<7x8x128xf32>
    %221 = vector.extract_strided_slice %199 {offsets = [3, 0, 0], sizes = [7, 8, 128], strides = [1, 1, 1]} : vector<11x8x128xf32> to vector<7x8x128xf32>
    %222 = vector.extract_strided_slice %0 {offsets = [0, 3, 0, 0], sizes = [1, 1, 8, 128], strides = [1, 1, 1, 1]} : vector<5x5x8x128xf32> to vector<1x1x8x128xf32>
    %223 = vector.shape_cast %222 : vector<1x1x8x128xf32> to vector<8x128xf32>
    %224 = vector.shape_cast %223 : vector<8x128xf32> to vector<1x8x128xf32>
    %225 = vector.broadcast %224 : vector<1x8x128xf32> to vector<7x8x128xf32>
    %226 = arith.mulf %221, %225 : vector<7x8x128xf32>
    %227 = arith.addf %220, %226 : vector<7x8x128xf32>
    %228 = vector.extract_strided_slice %199 {offsets = [4, 0, 0], sizes = [7, 8, 128], strides = [1, 1, 1]} : vector<11x8x128xf32> to vector<7x8x128xf32>
    %229 = vector.extract_strided_slice %0 {offsets = [0, 4, 0, 0], sizes = [1, 1, 8, 128], strides = [1, 1, 1, 1]} : vector<5x5x8x128xf32> to vector<1x1x8x128xf32>
    %230 = vector.shape_cast %229 : vector<1x1x8x128xf32> to vector<8x128xf32>
    %231 = vector.shape_cast %230 : vector<8x128xf32> to vector<1x8x128xf32>
    %232 = vector.broadcast %231 : vector<1x8x128xf32> to vector<7x8x128xf32>
    %233 = arith.mulf %228, %232 : vector<7x8x128xf32>
    %234 = arith.addf %227, %233 : vector<7x8x128xf32>
    %c0_39 = arith.constant 0 : index
    %c2_40 = arith.constant 2 : index
    %c0_41 = arith.constant 0 : index
    %c0_42 = arith.constant 0 : index
    %c0_43 = arith.constant 0 : index
    %235 = vector.load %arg1[%c0_39, %c2_40, %c0_41, %c0_42, %c0_43] : memref<1x11x11x8x128xf32, #tpu.memory_space<vmem>>, vector<1x1x11x8x128xf32>
    %236 = vector.shape_cast %235 : vector<1x1x11x8x128xf32> to vector<11x8x128xf32>
    %237 = vector.extract_strided_slice %236 {offsets = [0, 0, 0], sizes = [7, 8, 128], strides = [1, 1, 1]} : vector<11x8x128xf32> to vector<7x8x128xf32>
    %238 = vector.extract_strided_slice %0 {offsets = [1, 0, 0, 0], sizes = [1, 1, 8, 128], strides = [1, 1, 1, 1]} : vector<5x5x8x128xf32> to vector<1x1x8x128xf32>
    %239 = vector.shape_cast %238 : vector<1x1x8x128xf32> to vector<8x128xf32>
    %240 = vector.shape_cast %239 : vector<8x128xf32> to vector<1x8x128xf32>
    %241 = vector.broadcast %240 : vector<1x8x128xf32> to vector<7x8x128xf32>
    %242 = arith.mulf %237, %241 : vector<7x8x128xf32>
    %243 = arith.addf %234, %242 : vector<7x8x128xf32>
    %244 = vector.extract_strided_slice %236 {offsets = [1, 0, 0], sizes = [7, 8, 128], strides = [1, 1, 1]} : vector<11x8x128xf32> to vector<7x8x128xf32>
    %245 = vector.extract_strided_slice %0 {offsets = [1, 1, 0, 0], sizes = [1, 1, 8, 128], strides = [1, 1, 1, 1]} : vector<5x5x8x128xf32> to vector<1x1x8x128xf32>
    %246 = vector.shape_cast %245 : vector<1x1x8x128xf32> to vector<8x128xf32>
    %247 = vector.shape_cast %246 : vector<8x128xf32> to vector<1x8x128xf32>
    %248 = vector.broadcast %247 : vector<1x8x128xf32> to vector<7x8x128xf32>
    %249 = arith.mulf %244, %248 : vector<7x8x128xf32>
    %250 = arith.addf %243, %249 : vector<7x8x128xf32>
    %251 = vector.extract_strided_slice %236 {offsets = [2, 0, 0], sizes = [7, 8, 128], strides = [1, 1, 1]} : vector<11x8x128xf32> to vector<7x8x128xf32>
    %252 = vector.extract_strided_slice %0 {offsets = [1, 2, 0, 0], sizes = [1, 1, 8, 128], strides = [1, 1, 1, 1]} : vector<5x5x8x128xf32> to vector<1x1x8x128xf32>
    %253 = vector.shape_cast %252 : vector<1x1x8x128xf32> to vector<8x128xf32>
    %254 = vector.shape_cast %253 : vector<8x128xf32> to vector<1x8x128xf32>
    %255 = vector.broadcast %254 : vector<1x8x128xf32> to vector<7x8x128xf32>
    %256 = arith.mulf %251, %255 : vector<7x8x128xf32>
    %257 = arith.addf %250, %256 : vector<7x8x128xf32>
    %258 = vector.extract_strided_slice %236 {offsets = [3, 0, 0], sizes = [7, 8, 128], strides = [1, 1, 1]} : vector<11x8x128xf32> to vector<7x8x128xf32>
    %259 = vector.extract_strided_slice %0 {offsets = [1, 3, 0, 0], sizes = [1, 1, 8, 128], strides = [1, 1, 1, 1]} : vector<5x5x8x128xf32> to vector<1x1x8x128xf32>
    %260 = vector.shape_cast %259 : vector<1x1x8x128xf32> to vector<8x128xf32>
    %261 = vector.shape_cast %260 : vector<8x128xf32> to vector<1x8x128xf32>
    %262 = vector.broadcast %261 : vector<1x8x128xf32> to vector<7x8x128xf32>
    %263 = arith.mulf %258, %262 : vector<7x8x128xf32>
    %264 = arith.addf %257, %263 : vector<7x8x128xf32>
    %265 = vector.extract_strided_slice %236 {offsets = [4, 0, 0], sizes = [7, 8, 128], strides = [1, 1, 1]} : vector<11x8x128xf32> to vector<7x8x128xf32>
    %266 = vector.extract_strided_slice %0 {offsets = [1, 4, 0, 0], sizes = [1, 1, 8, 128], strides = [1, 1, 1, 1]} : vector<5x5x8x128xf32> to vector<1x1x8x128xf32>
    %267 = vector.shape_cast %266 : vector<1x1x8x128xf32> to vector<8x128xf32>
    %268 = vector.shape_cast %267 : vector<8x128xf32> to vector<1x8x128xf32>
    %269 = vector.broadcast %268 : vector<1x8x128xf32> to vector<7x8x128xf32>
    %270 = arith.mulf %265, %269 : vector<7x8x128xf32>
    %271 = arith.addf %264, %270 : vector<7x8x128xf32>
    %c0_44 = arith.constant 0 : index
    %c3_45 = arith.constant 3 : index
    %c0_46 = arith.constant 0 : index
    %c0_47 = arith.constant 0 : index
    %c0_48 = arith.constant 0 : index
    %272 = vector.load %arg1[%c0_44, %c3_45, %c0_46, %c0_47, %c0_48] : memref<1x11x11x8x128xf32, #tpu.memory_space<vmem>>, vector<1x1x11x8x128xf32>
    %273 = vector.shape_cast %272 : vector<1x1x11x8x128xf32> to vector<11x8x128xf32>
    %274 = vector.extract_strided_slice %273 {offsets = [0, 0, 0], sizes = [7, 8, 128], strides = [1, 1, 1]} : vector<11x8x128xf32> to vector<7x8x128xf32>
    %275 = vector.extract_strided_slice %0 {offsets = [2, 0, 0, 0], sizes = [1, 1, 8, 128], strides = [1, 1, 1, 1]} : vector<5x5x8x128xf32> to vector<1x1x8x128xf32>
    %276 = vector.shape_cast %275 : vector<1x1x8x128xf32> to vector<8x128xf32>
    %277 = vector.shape_cast %276 : vector<8x128xf32> to vector<1x8x128xf32>
    %278 = vector.broadcast %277 : vector<1x8x128xf32> to vector<7x8x128xf32>
    %279 = arith.mulf %274, %278 : vector<7x8x128xf32>
    %280 = arith.addf %271, %279 : vector<7x8x128xf32>
    %281 = vector.extract_strided_slice %273 {offsets = [1, 0, 0], sizes = [7, 8, 128], strides = [1, 1, 1]} : vector<11x8x128xf32> to vector<7x8x128xf32>
    %282 = vector.extract_strided_slice %0 {offsets = [2, 1, 0, 0], sizes = [1, 1, 8, 128], strides = [1, 1, 1, 1]} : vector<5x5x8x128xf32> to vector<1x1x8x128xf32>
    %283 = vector.shape_cast %282 : vector<1x1x8x128xf32> to vector<8x128xf32>
    %284 = vector.shape_cast %283 : vector<8x128xf32> to vector<1x8x128xf32>
    %285 = vector.broadcast %284 : vector<1x8x128xf32> to vector<7x8x128xf32>
    %286 = arith.mulf %281, %285 : vector<7x8x128xf32>
    %287 = arith.addf %280, %286 : vector<7x8x128xf32>
    %288 = vector.extract_strided_slice %273 {offsets = [2, 0, 0], sizes = [7, 8, 128], strides = [1, 1, 1]} : vector<11x8x128xf32> to vector<7x8x128xf32>
    %289 = vector.extract_strided_slice %0 {offsets = [2, 2, 0, 0], sizes = [1, 1, 8, 128], strides = [1, 1, 1, 1]} : vector<5x5x8x128xf32> to vector<1x1x8x128xf32>
    %290 = vector.shape_cast %289 : vector<1x1x8x128xf32> to vector<8x128xf32>
    %291 = vector.shape_cast %290 : vector<8x128xf32> to vector<1x8x128xf32>
    %292 = vector.broadcast %291 : vector<1x8x128xf32> to vector<7x8x128xf32>
    %293 = arith.mulf %288, %292 : vector<7x8x128xf32>
    %294 = arith.addf %287, %293 : vector<7x8x128xf32>
    %295 = vector.extract_strided_slice %273 {offsets = [3, 0, 0], sizes = [7, 8, 128], strides = [1, 1, 1]} : vector<11x8x128xf32> to vector<7x8x128xf32>
    %296 = vector.extract_strided_slice %0 {offsets = [2, 3, 0, 0], sizes = [1, 1, 8, 128], strides = [1, 1, 1, 1]} : vector<5x5x8x128xf32> to vector<1x1x8x128xf32>
    %297 = vector.shape_cast %296 : vector<1x1x8x128xf32> to vector<8x128xf32>
    %298 = vector.shape_cast %297 : vector<8x128xf32> to vector<1x8x128xf32>
    %299 = vector.broadcast %298 : vector<1x8x128xf32> to vector<7x8x128xf32>
    %300 = arith.mulf %295, %299 : vector<7x8x128xf32>
    %301 = arith.addf %294, %300 : vector<7x8x128xf32>
    %302 = vector.extract_strided_slice %273 {offsets = [4, 0, 0], sizes = [7, 8, 128], strides = [1, 1, 1]} : vector<11x8x128xf32> to vector<7x8x128xf32>
    %303 = vector.extract_strided_slice %0 {offsets = [2, 4, 0, 0], sizes = [1, 1, 8, 128], strides = [1, 1, 1, 1]} : vector<5x5x8x128xf32> to vector<1x1x8x128xf32>
    %304 = vector.shape_cast %303 : vector<1x1x8x128xf32> to vector<8x128xf32>
    %305 = vector.shape_cast %304 : vector<8x128xf32> to vector<1x8x128xf32>
    %306 = vector.broadcast %305 : vector<1x8x128xf32> to vector<7x8x128xf32>
    %307 = arith.mulf %302, %306 : vector<7x8x128xf32>
    %308 = arith.addf %301, %307 : vector<7x8x128xf32>
    %c0_49 = arith.constant 0 : index
    %c4_50 = arith.constant 4 : index
    %c0_51 = arith.constant 0 : index
    %c0_52 = arith.constant 0 : index
    %c0_53 = arith.constant 0 : index
    %309 = vector.load %arg1[%c0_49, %c4_50, %c0_51, %c0_52, %c0_53] : memref<1x11x11x8x128xf32, #tpu.memory_space<vmem>>, vector<1x1x11x8x128xf32>
    %310 = vector.shape_cast %309 : vector<1x1x11x8x128xf32> to vector<11x8x128xf32>
    %311 = vector.extract_strided_slice %310 {offsets = [0, 0, 0], sizes = [7, 8, 128], strides = [1, 1, 1]} : vector<11x8x128xf32> to vector<7x8x128xf32>
    %312 = vector.extract_strided_slice %0 {offsets = [3, 0, 0, 0], sizes = [1, 1, 8, 128], strides = [1, 1, 1, 1]} : vector<5x5x8x128xf32> to vector<1x1x8x128xf32>
    %313 = vector.shape_cast %312 : vector<1x1x8x128xf32> to vector<8x128xf32>
    %314 = vector.shape_cast %313 : vector<8x128xf32> to vector<1x8x128xf32>
    %315 = vector.broadcast %314 : vector<1x8x128xf32> to vector<7x8x128xf32>
    %316 = arith.mulf %311, %315 : vector<7x8x128xf32>
    %317 = arith.addf %308, %316 : vector<7x8x128xf32>
    %318 = vector.extract_strided_slice %310 {offsets = [1, 0, 0], sizes = [7, 8, 128], strides = [1, 1, 1]} : vector<11x8x128xf32> to vector<7x8x128xf32>
    %319 = vector.extract_strided_slice %0 {offsets = [3, 1, 0, 0], sizes = [1, 1, 8, 128], strides = [1, 1, 1, 1]} : vector<5x5x8x128xf32> to vector<1x1x8x128xf32>
    %320 = vector.shape_cast %319 : vector<1x1x8x128xf32> to vector<8x128xf32>
    %321 = vector.shape_cast %320 : vector<8x128xf32> to vector<1x8x128xf32>
    %322 = vector.broadcast %321 : vector<1x8x128xf32> to vector<7x8x128xf32>
    %323 = arith.mulf %318, %322 : vector<7x8x128xf32>
    %324 = arith.addf %317, %323 : vector<7x8x128xf32>
    %325 = vector.extract_strided_slice %310 {offsets = [2, 0, 0], sizes = [7, 8, 128], strides = [1, 1, 1]} : vector<11x8x128xf32> to vector<7x8x128xf32>
    %326 = vector.extract_strided_slice %0 {offsets = [3, 2, 0, 0], sizes = [1, 1, 8, 128], strides = [1, 1, 1, 1]} : vector<5x5x8x128xf32> to vector<1x1x8x128xf32>
    %327 = vector.shape_cast %326 : vector<1x1x8x128xf32> to vector<8x128xf32>
    %328 = vector.shape_cast %327 : vector<8x128xf32> to vector<1x8x128xf32>
    %329 = vector.broadcast %328 : vector<1x8x128xf32> to vector<7x8x128xf32>
    %330 = arith.mulf %325, %329 : vector<7x8x128xf32>
    %331 = arith.addf %324, %330 : vector<7x8x128xf32>
    %332 = vector.extract_strided_slice %310 {offsets = [3, 0, 0], sizes = [7, 8, 128], strides = [1, 1, 1]} : vector<11x8x128xf32> to vector<7x8x128xf32>
    %333 = vector.extract_strided_slice %0 {offsets = [3, 3, 0, 0], sizes = [1, 1, 8, 128], strides = [1, 1, 1, 1]} : vector<5x5x8x128xf32> to vector<1x1x8x128xf32>
    %334 = vector.shape_cast %333 : vector<1x1x8x128xf32> to vector<8x128xf32>
    %335 = vector.shape_cast %334 : vector<8x128xf32> to vector<1x8x128xf32>
    %336 = vector.broadcast %335 : vector<1x8x128xf32> to vector<7x8x128xf32>
    %337 = arith.mulf %332, %336 : vector<7x8x128xf32>
    %338 = arith.addf %331, %337 : vector<7x8x128xf32>
    %339 = vector.extract_strided_slice %310 {offsets = [4, 0, 0], sizes = [7, 8, 128], strides = [1, 1, 1]} : vector<11x8x128xf32> to vector<7x8x128xf32>
    %340 = vector.extract_strided_slice %0 {offsets = [3, 4, 0, 0], sizes = [1, 1, 8, 128], strides = [1, 1, 1, 1]} : vector<5x5x8x128xf32> to vector<1x1x8x128xf32>
    %341 = vector.shape_cast %340 : vector<1x1x8x128xf32> to vector<8x128xf32>
    %342 = vector.shape_cast %341 : vector<8x128xf32> to vector<1x8x128xf32>
    %343 = vector.broadcast %342 : vector<1x8x128xf32> to vector<7x8x128xf32>
    %344 = arith.mulf %339, %343 : vector<7x8x128xf32>
    %345 = arith.addf %338, %344 : vector<7x8x128xf32>
    %c0_54 = arith.constant 0 : index
    %c5 = arith.constant 5 : index
    %c0_55 = arith.constant 0 : index
    %c0_56 = arith.constant 0 : index
    %c0_57 = arith.constant 0 : index
    %346 = vector.load %arg1[%c0_54, %c5, %c0_55, %c0_56, %c0_57] : memref<1x11x11x8x128xf32, #tpu.memory_space<vmem>>, vector<1x1x11x8x128xf32>
    %347 = vector.shape_cast %346 : vector<1x1x11x8x128xf32> to vector<11x8x128xf32>
    %348 = vector.extract_strided_slice %347 {offsets = [0, 0, 0], sizes = [7, 8, 128], strides = [1, 1, 1]} : vector<11x8x128xf32> to vector<7x8x128xf32>
    %349 = vector.extract_strided_slice %0 {offsets = [4, 0, 0, 0], sizes = [1, 1, 8, 128], strides = [1, 1, 1, 1]} : vector<5x5x8x128xf32> to vector<1x1x8x128xf32>
    %350 = vector.shape_cast %349 : vector<1x1x8x128xf32> to vector<8x128xf32>
    %351 = vector.shape_cast %350 : vector<8x128xf32> to vector<1x8x128xf32>
    %352 = vector.broadcast %351 : vector<1x8x128xf32> to vector<7x8x128xf32>
    %353 = arith.mulf %348, %352 : vector<7x8x128xf32>
    %354 = arith.addf %345, %353 : vector<7x8x128xf32>
    %355 = vector.extract_strided_slice %347 {offsets = [1, 0, 0], sizes = [7, 8, 128], strides = [1, 1, 1]} : vector<11x8x128xf32> to vector<7x8x128xf32>
    %356 = vector.extract_strided_slice %0 {offsets = [4, 1, 0, 0], sizes = [1, 1, 8, 128], strides = [1, 1, 1, 1]} : vector<5x5x8x128xf32> to vector<1x1x8x128xf32>
    %357 = vector.shape_cast %356 : vector<1x1x8x128xf32> to vector<8x128xf32>
    %358 = vector.shape_cast %357 : vector<8x128xf32> to vector<1x8x128xf32>
    %359 = vector.broadcast %358 : vector<1x8x128xf32> to vector<7x8x128xf32>
    %360 = arith.mulf %355, %359 : vector<7x8x128xf32>
    %361 = arith.addf %354, %360 : vector<7x8x128xf32>
    %362 = vector.extract_strided_slice %347 {offsets = [2, 0, 0], sizes = [7, 8, 128], strides = [1, 1, 1]} : vector<11x8x128xf32> to vector<7x8x128xf32>
    %363 = vector.extract_strided_slice %0 {offsets = [4, 2, 0, 0], sizes = [1, 1, 8, 128], strides = [1, 1, 1, 1]} : vector<5x5x8x128xf32> to vector<1x1x8x128xf32>
    %364 = vector.shape_cast %363 : vector<1x1x8x128xf32> to vector<8x128xf32>
    %365 = vector.shape_cast %364 : vector<8x128xf32> to vector<1x8x128xf32>
    %366 = vector.broadcast %365 : vector<1x8x128xf32> to vector<7x8x128xf32>
    %367 = arith.mulf %362, %366 : vector<7x8x128xf32>
    %368 = arith.addf %361, %367 : vector<7x8x128xf32>
    %369 = vector.extract_strided_slice %347 {offsets = [3, 0, 0], sizes = [7, 8, 128], strides = [1, 1, 1]} : vector<11x8x128xf32> to vector<7x8x128xf32>
    %370 = vector.extract_strided_slice %0 {offsets = [4, 3, 0, 0], sizes = [1, 1, 8, 128], strides = [1, 1, 1, 1]} : vector<5x5x8x128xf32> to vector<1x1x8x128xf32>
    %371 = vector.shape_cast %370 : vector<1x1x8x128xf32> to vector<8x128xf32>
    %372 = vector.shape_cast %371 : vector<8x128xf32> to vector<1x8x128xf32>
    %373 = vector.broadcast %372 : vector<1x8x128xf32> to vector<7x8x128xf32>
    %374 = arith.mulf %369, %373 : vector<7x8x128xf32>
    %375 = arith.addf %368, %374 : vector<7x8x128xf32>
    %376 = vector.extract_strided_slice %347 {offsets = [4, 0, 0], sizes = [7, 8, 128], strides = [1, 1, 1]} : vector<11x8x128xf32> to vector<7x8x128xf32>
    %377 = vector.extract_strided_slice %0 {offsets = [4, 4, 0, 0], sizes = [1, 1, 8, 128], strides = [1, 1, 1, 1]} : vector<5x5x8x128xf32> to vector<1x1x8x128xf32>
    %378 = vector.shape_cast %377 : vector<1x1x8x128xf32> to vector<8x128xf32>
    %379 = vector.shape_cast %378 : vector<8x128xf32> to vector<1x8x128xf32>
    %380 = vector.broadcast %379 : vector<1x8x128xf32> to vector<7x8x128xf32>
    %381 = arith.mulf %376, %380 : vector<7x8x128xf32>
    %382 = arith.addf %375, %381 : vector<7x8x128xf32>
    %c0_58 = arith.constant 0 : index
    %c1_59 = arith.constant 1 : index
    %c0_60 = arith.constant 0 : index
    %c0_61 = arith.constant 0 : index
    %c0_62 = arith.constant 0 : index
    %383 = vector.load %arg5[%c0_58, %c1_59, %c0_60, %c0_61, %c0_62] : memref<1x7x7x8x128xf32, #tpu.memory_space<vmem>>, vector<1x1x7x8x128xf32>
    %384 = vector.shape_cast %383 : vector<1x1x7x8x128xf32> to vector<7x8x128xf32>
    %385 = vector.shape_cast %382 : vector<7x8x128xf32> to vector<1x1x7x8x128xf32>
    tpu.vector_store %arg5[%c0_58, %c1_59, %c0_60, %c0_61, %c0_62], %385 {strides = array<i32>} : memref<1x7x7x8x128xf32, #tpu.memory_space<vmem>>, vector<1x1x7x8x128xf32>,
    %cst_63 = arith.constant dense<0.000000e+00> : vector<8x128xf32>
    %386 = vector.multi_reduction <add>, %382, %cst_63 [0] : vector<7x8x128xf32> to vector<8x128xf32>
    %387 = arith.addf %193, %386 : vector<8x128xf32>
    %388 = arith.mulf %382, %382 : vector<7x8x128xf32>
    %cst_64 = arith.constant dense<0.000000e+00> : vector<8x128xf32>
    %389 = vector.multi_reduction <add>, %388, %cst_64 [0] : vector<7x8x128xf32> to vector<8x128xf32>
    %390 = arith.addf %196, %389 : vector<8x128xf32>
    %cst_65 = arith.constant 0.000000e+00 : f32
    %391 = vector.broadcast %cst_65 : f32 to vector<7x8x128xf32>
    %c0_66 = arith.constant 0 : index
    %c2_67 = arith.constant 2 : index
    %c0_68 = arith.constant 0 : index
    %c0_69 = arith.constant 0 : index
    %c0_70 = arith.constant 0 : index
    %392 = vector.load %arg1[%c0_66, %c2_67, %c0_68, %c0_69, %c0_70] : memref<1x11x11x8x128xf32, #tpu.memory_space<vmem>>, vector<1x1x11x8x128xf32>
    %393 = vector.shape_cast %392 : vector<1x1x11x8x128xf32> to vector<11x8x128xf32>
    %394 = vector.extract_strided_slice %393 {offsets = [0, 0, 0], sizes = [7, 8, 128], strides = [1, 1, 1]} : vector<11x8x128xf32> to vector<7x8x128xf32>
    %395 = vector.extract_strided_slice %0 {offsets = [0, 0, 0, 0], sizes = [1, 1, 8, 128], strides = [1, 1, 1, 1]} : vector<5x5x8x128xf32> to vector<1x1x8x128xf32>
    %396 = vector.shape_cast %395 : vector<1x1x8x128xf32> to vector<8x128xf32>
    %397 = vector.shape_cast %396 : vector<8x128xf32> to vector<1x8x128xf32>
    %398 = vector.broadcast %397 : vector<1x8x128xf32> to vector<7x8x128xf32>
    %399 = arith.mulf %394, %398 : vector<7x8x128xf32>
    %400 = arith.addf %391, %399 : vector<7x8x128xf32>
    %401 = vector.extract_strided_slice %393 {offsets = [1, 0, 0], sizes = [7, 8, 128], strides = [1, 1, 1]} : vector<11x8x128xf32> to vector<7x8x128xf32>
    %402 = vector.extract_strided_slice %0 {offsets = [0, 1, 0, 0], sizes = [1, 1, 8, 128], strides = [1, 1, 1, 1]} : vector<5x5x8x128xf32> to vector<1x1x8x128xf32>
    %403 = vector.shape_cast %402 : vector<1x1x8x128xf32> to vector<8x128xf32>
    %404 = vector.shape_cast %403 : vector<8x128xf32> to vector<1x8x128xf32>
    %405 = vector.broadcast %404 : vector<1x8x128xf32> to vector<7x8x128xf32>
    %406 = arith.mulf %401, %405 : vector<7x8x128xf32>
    %407 = arith.addf %400, %406 : vector<7x8x128xf32>
    %408 = vector.extract_strided_slice %393 {offsets = [2, 0, 0], sizes = [7, 8, 128], strides = [1, 1, 1]} : vector<11x8x128xf32> to vector<7x8x128xf32>
    %409 = vector.extract_strided_slice %0 {offsets = [0, 2, 0, 0], sizes = [1, 1, 8, 128], strides = [1, 1, 1, 1]} : vector<5x5x8x128xf32> to vector<1x1x8x128xf32>
    %410 = vector.shape_cast %409 : vector<1x1x8x128xf32> to vector<8x128xf32>
    %411 = vector.shape_cast %410 : vector<8x128xf32> to vector<1x8x128xf32>
    %412 = vector.broadcast %411 : vector<1x8x128xf32> to vector<7x8x128xf32>
    %413 = arith.mulf %408, %412 : vector<7x8x128xf32>
    %414 = arith.addf %407, %413 : vector<7x8x128xf32>
    %415 = vector.extract_strided_slice %393 {offsets = [3, 0, 0], sizes = [7, 8, 128], strides = [1, 1, 1]} : vector<11x8x128xf32> to vector<7x8x128xf32>
    %416 = vector.extract_strided_slice %0 {offsets = [0, 3, 0, 0], sizes = [1, 1, 8, 128], strides = [1, 1, 1, 1]} : vector<5x5x8x128xf32> to vector<1x1x8x128xf32>
    %417 = vector.shape_cast %416 : vector<1x1x8x128xf32> to vector<8x128xf32>
    %418 = vector.shape_cast %417 : vector<8x128xf32> to vector<1x8x128xf32>
    %419 = vector.broadcast %418 : vector<1x8x128xf32> to vector<7x8x128xf32>
    %420 = arith.mulf %415, %419 : vector<7x8x128xf32>
    %421 = arith.addf %414, %420 : vector<7x8x128xf32>
    %422 = vector.extract_strided_slice %393 {offsets = [4, 0, 0], sizes = [7, 8, 128], strides = [1, 1, 1]} : vector<11x8x128xf32> to vector<7x8x128xf32>
    %423 = vector.extract_strided_slice %0 {offsets = [0, 4, 0, 0], sizes = [1, 1, 8, 128], strides = [1, 1, 1, 1]} : vector<5x5x8x128xf32> to vector<1x1x8x128xf32>
    %424 = vector.shape_cast %423 : vector<1x1x8x128xf32> to vector<8x128xf32>
    %425 = vector.shape_cast %424 : vector<8x128xf32> to vector<1x8x128xf32>
    %426 = vector.broadcast %425 : vector<1x8x128xf32> to vector<7x8x128xf32>
    %427 = arith.mulf %422, %426 : vector<7x8x128xf32>
    %428 = arith.addf %421, %427 : vector<7x8x128xf32>
    %c0_71 = arith.constant 0 : index
    %c3_72 = arith.constant 3 : index
    %c0_73 = arith.constant 0 : index
    %c0_74 = arith.constant 0 : index
    %c0_75 = arith.constant 0 : index
    %429 = vector.load %arg1[%c0_71, %c3_72, %c0_73, %c0_74, %c0_75] : memref<1x11x11x8x128xf32, #tpu.memory_space<vmem>>, vector<1x1x11x8x128xf32>
    %430 = vector.shape_cast %429 : vector<1x1x11x8x128xf32> to vector<11x8x128xf32>
    %431 = vector.extract_strided_slice %430 {offsets = [0, 0, 0], sizes = [7, 8, 128], strides = [1, 1, 1]} : vector<11x8x128xf32> to vector<7x8x128xf32>
    %432 = vector.extract_strided_slice %0 {offsets = [1, 0, 0, 0], sizes = [1, 1, 8, 128], strides = [1, 1, 1, 1]} : vector<5x5x8x128xf32> to vector<1x1x8x128xf32>
    %433 = vector.shape_cast %432 : vector<1x1x8x128xf32> to vector<8x128xf32>
    %434 = vector.shape_cast %433 : vector<8x128xf32> to vector<1x8x128xf32>
    %435 = vector.broadcast %434 : vector<1x8x128xf32> to vector<7x8x128xf32>
    %436 = arith.mulf %431, %435 : vector<7x8x128xf32>
    %437 = arith.addf %428, %436 : vector<7x8x128xf32>
    %438 = vector.extract_strided_slice %430 {offsets = [1, 0, 0], sizes = [7, 8, 128], strides = [1, 1, 1]} : vector<11x8x128xf32> to vector<7x8x128xf32>
    %439 = vector.extract_strided_slice %0 {offsets = [1, 1, 0, 0], sizes = [1, 1, 8, 128], strides = [1, 1, 1, 1]} : vector<5x5x8x128xf32> to vector<1x1x8x128xf32>
    %440 = vector.shape_cast %439 : vector<1x1x8x128xf32> to vector<8x128xf32>
    %441 = vector.shape_cast %440 : vector<8x128xf32> to vector<1x8x128xf32>
    %442 = vector.broadcast %441 : vector<1x8x128xf32> to vector<7x8x128xf32>
    %443 = arith.mulf %438, %442 : vector<7x8x128xf32>
    %444 = arith.addf %437, %443 : vector<7x8x128xf32>
    %445 = vector.extract_strided_slice %430 {offsets = [2, 0, 0], sizes = [7, 8, 128], strides = [1, 1, 1]} : vector<11x8x128xf32> to vector<7x8x128xf32>
    %446 = vector.extract_strided_slice %0 {offsets = [1, 2, 0, 0], sizes = [1, 1, 8, 128], strides = [1, 1, 1, 1]} : vector<5x5x8x128xf32> to vector<1x1x8x128xf32>
    %447 = vector.shape_cast %446 : vector<1x1x8x128xf32> to vector<8x128xf32>
    %448 = vector.shape_cast %447 : vector<8x128xf32> to vector<1x8x128xf32>
    %449 = vector.broadcast %448 : vector<1x8x128xf32> to vector<7x8x128xf32>
    %450 = arith.mulf %445, %449 : vector<7x8x128xf32>
    %451 = arith.addf %444, %450 : vector<7x8x128xf32>
    %452 = vector.extract_strided_slice %430 {offsets = [3, 0, 0], sizes = [7, 8, 128], strides = [1, 1, 1]} : vector<11x8x128xf32> to vector<7x8x128xf32>
    %453 = vector.extract_strided_slice %0 {offsets = [1, 3, 0, 0], sizes = [1, 1, 8, 128], strides = [1, 1, 1, 1]} : vector<5x5x8x128xf32> to vector<1x1x8x128xf32>
    %454 = vector.shape_cast %453 : vector<1x1x8x128xf32> to vector<8x128xf32>
    %455 = vector.shape_cast %454 : vector<8x128xf32> to vector<1x8x128xf32>
    %456 = vector.broadcast %455 : vector<1x8x128xf32> to vector<7x8x128xf32>
    %457 = arith.mulf %452, %456 : vector<7x8x128xf32>
    %458 = arith.addf %451, %457 : vector<7x8x128xf32>
    %459 = vector.extract_strided_slice %430 {offsets = [4, 0, 0], sizes = [7, 8, 128], strides = [1, 1, 1]} : vector<11x8x128xf32> to vector<7x8x128xf32>
    %460 = vector.extract_strided_slice %0 {offsets = [1, 4, 0, 0], sizes = [1, 1, 8, 128], strides = [1, 1, 1, 1]} : vector<5x5x8x128xf32> to vector<1x1x8x128xf32>
    %461 = vector.shape_cast %460 : vector<1x1x8x128xf32> to vector<8x128xf32>
    %462 = vector.shape_cast %461 : vector<8x128xf32> to vector<1x8x128xf32>
    %463 = vector.broadcast %462 : vector<1x8x128xf32> to vector<7x8x128xf32>
    %464 = arith.mulf %459, %463 : vector<7x8x128xf32>
    %465 = arith.addf %458, %464 : vector<7x8x128xf32>
    %c0_76 = arith.constant 0 : index
    %c4_77 = arith.constant 4 : index
    %c0_78 = arith.constant 0 : index
    %c0_79 = arith.constant 0 : index
    %c0_80 = arith.constant 0 : index
    %466 = vector.load %arg1[%c0_76, %c4_77, %c0_78, %c0_79, %c0_80] : memref<1x11x11x8x128xf32, #tpu.memory_space<vmem>>, vector<1x1x11x8x128xf32>
    %467 = vector.shape_cast %466 : vector<1x1x11x8x128xf32> to vector<11x8x128xf32>
    %468 = vector.extract_strided_slice %467 {offsets = [0, 0, 0], sizes = [7, 8, 128], strides = [1, 1, 1]} : vector<11x8x128xf32> to vector<7x8x128xf32>
    %469 = vector.extract_strided_slice %0 {offsets = [2, 0, 0, 0], sizes = [1, 1, 8, 128], strides = [1, 1, 1, 1]} : vector<5x5x8x128xf32> to vector<1x1x8x128xf32>
    %470 = vector.shape_cast %469 : vector<1x1x8x128xf32> to vector<8x128xf32>
    %471 = vector.shape_cast %470 : vector<8x128xf32> to vector<1x8x128xf32>
    %472 = vector.broadcast %471 : vector<1x8x128xf32> to vector<7x8x128xf32>
    %473 = arith.mulf %468, %472 : vector<7x8x128xf32>
    %474 = arith.addf %465, %473 : vector<7x8x128xf32>
    %475 = vector.extract_strided_slice %467 {offsets = [1, 0, 0], sizes = [7, 8, 128], strides = [1, 1, 1]} : vector<11x8x128xf32> to vector<7x8x128xf32>
    %476 = vector.extract_strided_slice %0 {offsets = [2, 1, 0, 0], sizes = [1, 1, 8, 128], strides = [1, 1, 1, 1]} : vector<5x5x8x128xf32> to vector<1x1x8x128xf32>
    %477 = vector.shape_cast %476 : vector<1x1x8x128xf32> to vector<8x128xf32>
    %478 = vector.shape_cast %477 : vector<8x128xf32> to vector<1x8x128xf32>
    %479 = vector.broadcast %478 : vector<1x8x128xf32> to vector<7x8x128xf32>
    %480 = arith.mulf %475, %479 : vector<7x8x128xf32>
    %481 = arith.addf %474, %480 : vector<7x8x128xf32>
    %482 = vector.extract_strided_slice %467 {offsets = [2, 0, 0], sizes = [7, 8, 128], strides = [1, 1, 1]} : vector<11x8x128xf32> to vector<7x8x128xf32>
    %483 = vector.extract_strided_slice %0 {offsets = [2, 2, 0, 0], sizes = [1, 1, 8, 128], strides = [1, 1, 1, 1]} : vector<5x5x8x128xf32> to vector<1x1x8x128xf32>
    %484 = vector.shape_cast %483 : vector<1x1x8x128xf32> to vector<8x128xf32>
    %485 = vector.shape_cast %484 : vector<8x128xf32> to vector<1x8x128xf32>
    %486 = vector.broadcast %485 : vector<1x8x128xf32> to vector<7x8x128xf32>
    %487 = arith.mulf %482, %486 : vector<7x8x128xf32>
    %488 = arith.addf %481, %487 : vector<7x8x128xf32>
    %489 = vector.extract_strided_slice %467 {offsets = [3, 0, 0], sizes = [7, 8, 128], strides = [1, 1, 1]} : vector<11x8x128xf32> to vector<7x8x128xf32>
    %490 = vector.extract_strided_slice %0 {offsets = [2, 3, 0, 0], sizes = [1, 1, 8, 128], strides = [1, 1, 1, 1]} : vector<5x5x8x128xf32> to vector<1x1x8x128xf32>
    %491 = vector.shape_cast %490 : vector<1x1x8x128xf32> to vector<8x128xf32>
    %492 = vector.shape_cast %491 : vector<8x128xf32> to vector<1x8x128xf32>
    %493 = vector.broadcast %492 : vector<1x8x128xf32> to vector<7x8x128xf32>
    %494 = arith.mulf %489, %493 : vector<7x8x128xf32>
    %495 = arith.addf %488, %494 : vector<7x8x128xf32>
    %496 = vector.extract_strided_slice %467 {offsets = [4, 0, 0], sizes = [7, 8, 128], strides = [1, 1, 1]} : vector<11x8x128xf32> to vector<7x8x128xf32>
    %497 = vector.extract_strided_slice %0 {offsets = [2, 4, 0, 0], sizes = [1, 1, 8, 128], strides = [1, 1, 1, 1]} : vector<5x5x8x128xf32> to vector<1x1x8x128xf32>
    %498 = vector.shape_cast %497 : vector<1x1x8x128xf32> to vector<8x128xf32>
    %499 = vector.shape_cast %498 : vector<8x128xf32> to vector<1x8x128xf32>
    %500 = vector.broadcast %499 : vector<1x8x128xf32> to vector<7x8x128xf32>
    %501 = arith.mulf %496, %500 : vector<7x8x128xf32>
    %502 = arith.addf %495, %501 : vector<7x8x128xf32>
    %c0_81 = arith.constant 0 : index
    %c5_82 = arith.constant 5 : index
    %c0_83 = arith.constant 0 : index
    %c0_84 = arith.constant 0 : index
    %c0_85 = arith.constant 0 : index
    %503 = vector.load %arg1[%c0_81, %c5_82, %c0_83, %c0_84, %c0_85] : memref<1x11x11x8x128xf32, #tpu.memory_space<vmem>>, vector<1x1x11x8x128xf32>
    %504 = vector.shape_cast %503 : vector<1x1x11x8x128xf32> to vector<11x8x128xf32>
    %505 = vector.extract_strided_slice %504 {offsets = [0, 0, 0], sizes = [7, 8, 128], strides = [1, 1, 1]} : vector<11x8x128xf32> to vector<7x8x128xf32>
    %506 = vector.extract_strided_slice %0 {offsets = [3, 0, 0, 0], sizes = [1, 1, 8, 128], strides = [1, 1, 1, 1]} : vector<5x5x8x128xf32> to vector<1x1x8x128xf32>
    %507 = vector.shape_cast %506 : vector<1x1x8x128xf32> to vector<8x128xf32>
    %508 = vector.shape_cast %507 : vector<8x128xf32> to vector<1x8x128xf32>
    %509 = vector.broadcast %508 : vector<1x8x128xf32> to vector<7x8x128xf32>
    %510 = arith.mulf %505, %509 : vector<7x8x128xf32>
    %511 = arith.addf %502, %510 : vector<7x8x128xf32>
    %512 = vector.extract_strided_slice %504 {offsets = [1, 0, 0], sizes = [7, 8, 128], strides = [1, 1, 1]} : vector<11x8x128xf32> to vector<7x8x128xf32>
    %513 = vector.extract_strided_slice %0 {offsets = [3, 1, 0, 0], sizes = [1, 1, 8, 128], strides = [1, 1, 1, 1]} : vector<5x5x8x128xf32> to vector<1x1x8x128xf32>
    %514 = vector.shape_cast %513 : vector<1x1x8x128xf32> to vector<8x128xf32>
    %515 = vector.shape_cast %514 : vector<8x128xf32> to vector<1x8x128xf32>
    %516 = vector.broadcast %515 : vector<1x8x128xf32> to vector<7x8x128xf32>
    %517 = arith.mulf %512, %516 : vector<7x8x128xf32>
    %518 = arith.addf %511, %517 : vector<7x8x128xf32>
    %519 = vector.extract_strided_slice %504 {offsets = [2, 0, 0], sizes = [7, 8, 128], strides = [1, 1, 1]} : vector<11x8x128xf32> to vector<7x8x128xf32>
    %520 = vector.extract_strided_slice %0 {offsets = [3, 2, 0, 0], sizes = [1, 1, 8, 128], strides = [1, 1, 1, 1]} : vector<5x5x8x128xf32> to vector<1x1x8x128xf32>
    %521 = vector.shape_cast %520 : vector<1x1x8x128xf32> to vector<8x128xf32>
    %522 = vector.shape_cast %521 : vector<8x128xf32> to vector<1x8x128xf32>
    %523 = vector.broadcast %522 : vector<1x8x128xf32> to vector<7x8x128xf32>
    %524 = arith.mulf %519, %523 : vector<7x8x128xf32>
    %525 = arith.addf %518, %524 : vector<7x8x128xf32>
    %526 = vector.extract_strided_slice %504 {offsets = [3, 0, 0], sizes = [7, 8, 128], strides = [1, 1, 1]} : vector<11x8x128xf32> to vector<7x8x128xf32>
    %527 = vector.extract_strided_slice %0 {offsets = [3, 3, 0, 0], sizes = [1, 1, 8, 128], strides = [1, 1, 1, 1]} : vector<5x5x8x128xf32> to vector<1x1x8x128xf32>
    %528 = vector.shape_cast %527 : vector<1x1x8x128xf32> to vector<8x128xf32>
    %529 = vector.shape_cast %528 : vector<8x128xf32> to vector<1x8x128xf32>
    %530 = vector.broadcast %529 : vector<1x8x128xf32> to vector<7x8x128xf32>
    %531 = arith.mulf %526, %530 : vector<7x8x128xf32>
    %532 = arith.addf %525, %531 : vector<7x8x128xf32>
    %533 = vector.extract_strided_slice %504 {offsets = [4, 0, 0], sizes = [7, 8, 128], strides = [1, 1, 1]} : vector<11x8x128xf32> to vector<7x8x128xf32>
    %534 = vector.extract_strided_slice %0 {offsets = [3, 4, 0, 0], sizes = [1, 1, 8, 128], strides = [1, 1, 1, 1]} : vector<5x5x8x128xf32> to vector<1x1x8x128xf32>
    %535 = vector.shape_cast %534 : vector<1x1x8x128xf32> to vector<8x128xf32>
    %536 = vector.shape_cast %535 : vector<8x128xf32> to vector<1x8x128xf32>
    %537 = vector.broadcast %536 : vector<1x8x128xf32> to vector<7x8x128xf32>
    %538 = arith.mulf %533, %537 : vector<7x8x128xf32>
    %539 = arith.addf %532, %538 : vector<7x8x128xf32>
    %c0_86 = arith.constant 0 : index
    %c6 = arith.constant 6 : index
    %c0_87 = arith.constant 0 : index
    %c0_88 = arith.constant 0 : index
    %c0_89 = arith.constant 0 : index
    %540 = vector.load %arg1[%c0_86, %c6, %c0_87, %c0_88, %c0_89] : memref<1x11x11x8x128xf32, #tpu.memory_space<vmem>>, vector<1x1x11x8x128xf32>
    %541 = vector.shape_cast %540 : vector<1x1x11x8x128xf32> to vector<11x8x128xf32>
    %542 = vector.extract_strided_slice %541 {offsets = [0, 0, 0], sizes = [7, 8, 128], strides = [1, 1, 1]} : vector<11x8x128xf32> to vector<7x8x128xf32>
    %543 = vector.extract_strided_slice %0 {offsets = [4, 0, 0, 0], sizes = [1, 1, 8, 128], strides = [1, 1, 1, 1]} : vector<5x5x8x128xf32> to vector<1x1x8x128xf32>
    %544 = vector.shape_cast %543 : vector<1x1x8x128xf32> to vector<8x128xf32>
    %545 = vector.shape_cast %544 : vector<8x128xf32> to vector<1x8x128xf32>
    %546 = vector.broadcast %545 : vector<1x8x128xf32> to vector<7x8x128xf32>
    %547 = arith.mulf %542, %546 : vector<7x8x128xf32>
    %548 = arith.addf %539, %547 : vector<7x8x128xf32>
    %549 = vector.extract_strided_slice %541 {offsets = [1, 0, 0], sizes = [7, 8, 128], strides = [1, 1, 1]} : vector<11x8x128xf32> to vector<7x8x128xf32>
    %550 = vector.extract_strided_slice %0 {offsets = [4, 1, 0, 0], sizes = [1, 1, 8, 128], strides = [1, 1, 1, 1]} : vector<5x5x8x128xf32> to vector<1x1x8x128xf32>
    %551 = vector.shape_cast %550 : vector<1x1x8x128xf32> to vector<8x128xf32>
    %552 = vector.shape_cast %551 : vector<8x128xf32> to vector<1x8x128xf32>
    %553 = vector.broadcast %552 : vector<1x8x128xf32> to vector<7x8x128xf32>
    %554 = arith.mulf %549, %553 : vector<7x8x128xf32>
    %555 = arith.addf %548, %554 : vector<7x8x128xf32>
    %556 = vector.extract_strided_slice %541 {offsets = [2, 0, 0], sizes = [7, 8, 128], strides = [1, 1, 1]} : vector<11x8x128xf32> to vector<7x8x128xf32>
    %557 = vector.extract_strided_slice %0 {offsets = [4, 2, 0, 0], sizes = [1, 1, 8, 128], strides = [1, 1, 1, 1]} : vector<5x5x8x128xf32> to vector<1x1x8x128xf32>
    %558 = vector.shape_cast %557 : vector<1x1x8x128xf32> to vector<8x128xf32>
    %559 = vector.shape_cast %558 : vector<8x128xf32> to vector<1x8x128xf32>
    %560 = vector.broadcast %559 : vector<1x8x128xf32> to vector<7x8x128xf32>
    %561 = arith.mulf %556, %560 : vector<7x8x128xf32>
    %562 = arith.addf %555, %561 : vector<7x8x128xf32>
    %563 = vector.extract_strided_slice %541 {offsets = [3, 0, 0], sizes = [7, 8, 128], strides = [1, 1, 1]} : vector<11x8x128xf32> to vector<7x8x128xf32>
    %564 = vector.extract_strided_slice %0 {offsets = [4, 3, 0, 0], sizes = [1, 1, 8, 128], strides = [1, 1, 1, 1]} : vector<5x5x8x128xf32> to vector<1x1x8x128xf32>
    %565 = vector.shape_cast %564 : vector<1x1x8x128xf32> to vector<8x128xf32>
    %566 = vector.shape_cast %565 : vector<8x128xf32> to vector<1x8x128xf32>
    %567 = vector.broadcast %566 : vector<1x8x128xf32> to vector<7x8x128xf32>
    %568 = arith.mulf %563, %567 : vector<7x8x128xf32>
    %569 = arith.addf %562, %568 : vector<7x8x128xf32>
    %570 = vector.extract_strided_slice %541 {offsets = [4, 0, 0], sizes = [7, 8, 128], strides = [1, 1, 1]} : vector<11x8x128xf32> to vector<7x8x128xf32>
    %571 = vector.extract_strided_slice %0 {offsets = [4, 4, 0, 0], sizes = [1, 1, 8, 128], strides = [1, 1, 1, 1]} : vector<5x5x8x128xf32> to vector<1x1x8x128xf32>
    %572 = vector.shape_cast %571 : vector<1x1x8x128xf32> to vector<8x128xf32>
    %573 = vector.shape_cast %572 : vector<8x128xf32> to vector<1x8x128xf32>
    %574 = vector.broadcast %573 : vector<1x8x128xf32> to vector<7x8x128xf32>
    %575 = arith.mulf %570, %574 : vector<7x8x128xf32>
    %576 = arith.addf %569, %575 : vector<7x8x128xf32>
    %c0_90 = arith.constant 0 : index
    %c2_91 = arith.constant 2 : index
    %c0_92 = arith.constant 0 : index
    %c0_93 = arith.constant 0 : index
    %c0_94 = arith.constant 0 : index
    %577 = vector.load %arg5[%c0_90, %c2_91, %c0_92, %c0_93, %c0_94] : memref<1x7x7x8x128xf32, #tpu.memory_space<vmem>>, vector<1x1x7x8x128xf32>
    %578 = vector.shape_cast %577 : vector<1x1x7x8x128xf32> to vector<7x8x128xf32>
    %579 = vector.shape_cast %576 : vector<7x8x128xf32> to vector<1x1x7x8x128xf32>
    tpu.vector_store %arg5[%c0_90, %c2_91, %c0_92, %c0_93, %c0_94], %579 {strides = array<i32>} : memref<1x7x7x8x128xf32, #tpu.memory_space<vmem>>, vector<1x1x7x8x128xf32>,
    %cst_95 = arith.constant dense<0.000000e+00> : vector<8x128xf32>
    %580 = vector.multi_reduction <add>, %576, %cst_95 [0] : vector<7x8x128xf32> to vector<8x128xf32>
    %581 = arith.addf %387, %580 : vector<8x128xf32>
    %582 = arith.mulf %576, %576 : vector<7x8x128xf32>
    %cst_96 = arith.constant dense<0.000000e+00> : vector<8x128xf32>
    %583 = vector.multi_reduction <add>, %582, %cst_96 [0] : vector<7x8x128xf32> to vector<8x128xf32>
    %584 = arith.addf %390, %583 : vector<8x128xf32>
    %cst_97 = arith.constant 0.000000e+00 : f32
    %585 = vector.broadcast %cst_97 : f32 to vector<7x8x128xf32>
    %c0_98 = arith.constant 0 : index
    %c3_99 = arith.constant 3 : index
    %c0_100 = arith.constant 0 : index
    %c0_101 = arith.constant 0 : index
    %c0_102 = arith.constant 0 : index
    %586 = vector.load %arg1[%c0_98, %c3_99, %c0_100, %c0_101, %c0_102] : memref<1x11x11x8x128xf32, #tpu.memory_space<vmem>>, vector<1x1x11x8x128xf32>
    %587 = vector.shape_cast %586 : vector<1x1x11x8x128xf32> to vector<11x8x128xf32>
    %588 = vector.extract_strided_slice %587 {offsets = [0, 0, 0], sizes = [7, 8, 128], strides = [1, 1, 1]} : vector<11x8x128xf32> to vector<7x8x128xf32>
    %589 = vector.extract_strided_slice %0 {offsets = [0, 0, 0, 0], sizes = [1, 1, 8, 128], strides = [1, 1, 1, 1]} : vector<5x5x8x128xf32> to vector<1x1x8x128xf32>
    %590 = vector.shape_cast %589 : vector<1x1x8x128xf32> to vector<8x128xf32>
    %591 = vector.shape_cast %590 : vector<8x128xf32> to vector<1x8x128xf32>
    %592 = vector.broadcast %591 : vector<1x8x128xf32> to vector<7x8x128xf32>
    %593 = arith.mulf %588, %592 : vector<7x8x128xf32>
    %594 = arith.addf %585, %593 : vector<7x8x128xf32>
    %595 = vector.extract_strided_slice %587 {offsets = [1, 0, 0], sizes = [7, 8, 128], strides = [1, 1, 1]} : vector<11x8x128xf32> to vector<7x8x128xf32>
    %596 = vector.extract_strided_slice %0 {offsets = [0, 1, 0, 0], sizes = [1, 1, 8, 128], strides = [1, 1, 1, 1]} : vector<5x5x8x128xf32> to vector<1x1x8x128xf32>
    %597 = vector.shape_cast %596 : vector<1x1x8x128xf32> to vector<8x128xf32>
    %598 = vector.shape_cast %597 : vector<8x128xf32> to vector<1x8x128xf32>
    %599 = vector.broadcast %598 : vector<1x8x128xf32> to vector<7x8x128xf32>
    %600 = arith.mulf %595, %599 : vector<7x8x128xf32>
    %601 = arith.addf %594, %600 : vector<7x8x128xf32>
    %602 = vector.extract_strided_slice %587 {offsets = [2, 0, 0], sizes = [7, 8, 128], strides = [1, 1, 1]} : vector<11x8x128xf32> to vector<7x8x128xf32>
    %603 = vector.extract_strided_slice %0 {offsets = [0, 2, 0, 0], sizes = [1, 1, 8, 128], strides = [1, 1, 1, 1]} : vector<5x5x8x128xf32> to vector<1x1x8x128xf32>
    %604 = vector.shape_cast %603 : vector<1x1x8x128xf32> to vector<8x128xf32>
    %605 = vector.shape_cast %604 : vector<8x128xf32> to vector<1x8x128xf32>
    %606 = vector.broadcast %605 : vector<1x8x128xf32> to vector<7x8x128xf32>
    %607 = arith.mulf %602, %606 : vector<7x8x128xf32>
    %608 = arith.addf %601, %607 : vector<7x8x128xf32>
    %609 = vector.extract_strided_slice %587 {offsets = [3, 0, 0], sizes = [7, 8, 128], strides = [1, 1, 1]} : vector<11x8x128xf32> to vector<7x8x128xf32>
    %610 = vector.extract_strided_slice %0 {offsets = [0, 3, 0, 0], sizes = [1, 1, 8, 128], strides = [1, 1, 1, 1]} : vector<5x5x8x128xf32> to vector<1x1x8x128xf32>
    %611 = vector.shape_cast %610 : vector<1x1x8x128xf32> to vector<8x128xf32>
    %612 = vector.shape_cast %611 : vector<8x128xf32> to vector<1x8x128xf32>
    %613 = vector.broadcast %612 : vector<1x8x128xf32> to vector<7x8x128xf32>
    %614 = arith.mulf %609, %613 : vector<7x8x128xf32>
    %615 = arith.addf %608, %614 : vector<7x8x128xf32>
    %616 = vector.extract_strided_slice %587 {offsets = [4, 0, 0], sizes = [7, 8, 128], strides = [1, 1, 1]} : vector<11x8x128xf32> to vector<7x8x128xf32>
    %617 = vector.extract_strided_slice %0 {offsets = [0, 4, 0, 0], sizes = [1, 1, 8, 128], strides = [1, 1, 1, 1]} : vector<5x5x8x128xf32> to vector<1x1x8x128xf32>
    %618 = vector.shape_cast %617 : vector<1x1x8x128xf32> to vector<8x128xf32>
    %619 = vector.shape_cast %618 : vector<8x128xf32> to vector<1x8x128xf32>
    %620 = vector.broadcast %619 : vector<1x8x128xf32> to vector<7x8x128xf32>
    %621 = arith.mulf %616, %620 : vector<7x8x128xf32>
    %622 = arith.addf %615, %621 : vector<7x8x128xf32>
    %c0_103 = arith.constant 0 : index
    %c4_104 = arith.constant 4 : index
    %c0_105 = arith.constant 0 : index
    %c0_106 = arith.constant 0 : index
    %c0_107 = arith.constant 0 : index
    %623 = vector.load %arg1[%c0_103, %c4_104, %c0_105, %c0_106, %c0_107] : memref<1x11x11x8x128xf32, #tpu.memory_space<vmem>>, vector<1x1x11x8x128xf32>
    %624 = vector.shape_cast %623 : vector<1x1x11x8x128xf32> to vector<11x8x128xf32>
    %625 = vector.extract_strided_slice %624 {offsets = [0, 0, 0], sizes = [7, 8, 128], strides = [1, 1, 1]} : vector<11x8x128xf32> to vector<7x8x128xf32>
    %626 = vector.extract_strided_slice %0 {offsets = [1, 0, 0, 0], sizes = [1, 1, 8, 128], strides = [1, 1, 1, 1]} : vector<5x5x8x128xf32> to vector<1x1x8x128xf32>
    %627 = vector.shape_cast %626 : vector<1x1x8x128xf32> to vector<8x128xf32>
    %628 = vector.shape_cast %627 : vector<8x128xf32> to vector<1x8x128xf32>
    %629 = vector.broadcast %628 : vector<1x8x128xf32> to vector<7x8x128xf32>
    %630 = arith.mulf %625, %629 : vector<7x8x128xf32>
    %631 = arith.addf %622, %630 : vector<7x8x128xf32>
    %632 = vector.extract_strided_slice %624 {offsets = [1, 0, 0], sizes = [7, 8, 128], strides = [1, 1, 1]} : vector<11x8x128xf32> to vector<7x8x128xf32>
    %633 = vector.extract_strided_slice %0 {offsets = [1, 1, 0, 0], sizes = [1, 1, 8, 128], strides = [1, 1, 1, 1]} : vector<5x5x8x128xf32> to vector<1x1x8x128xf32>
    %634 = vector.shape_cast %633 : vector<1x1x8x128xf32> to vector<8x128xf32>
    %635 = vector.shape_cast %634 : vector<8x128xf32> to vector<1x8x128xf32>
    %636 = vector.broadcast %635 : vector<1x8x128xf32> to vector<7x8x128xf32>
    %637 = arith.mulf %632, %636 : vector<7x8x128xf32>
    %638 = arith.addf %631, %637 : vector<7x8x128xf32>
    %639 = vector.extract_strided_slice %624 {offsets = [2, 0, 0], sizes = [7, 8, 128], strides = [1, 1, 1]} : vector<11x8x128xf32> to vector<7x8x128xf32>
    %640 = vector.extract_strided_slice %0 {offsets = [1, 2, 0, 0], sizes = [1, 1, 8, 128], strides = [1, 1, 1, 1]} : vector<5x5x8x128xf32> to vector<1x1x8x128xf32>
    %641 = vector.shape_cast %640 : vector<1x1x8x128xf32> to vector<8x128xf32>
    %642 = vector.shape_cast %641 : vector<8x128xf32> to vector<1x8x128xf32>
    %643 = vector.broadcast %642 : vector<1x8x128xf32> to vector<7x8x128xf32>
    %644 = arith.mulf %639, %643 : vector<7x8x128xf32>
    %645 = arith.addf %638, %644 : vector<7x8x128xf32>
    %646 = vector.extract_strided_slice %624 {offsets = [3, 0, 0], sizes = [7, 8, 128], strides = [1, 1, 1]} : vector<11x8x128xf32> to vector<7x8x128xf32>
    %647 = vector.extract_strided_slice %0 {offsets = [1, 3, 0, 0], sizes = [1, 1, 8, 128], strides = [1, 1, 1, 1]} : vector<5x5x8x128xf32> to vector<1x1x8x128xf32>
    %648 = vector.shape_cast %647 : vector<1x1x8x128xf32> to vector<8x128xf32>
    %649 = vector.shape_cast %648 : vector<8x128xf32> to vector<1x8x128xf32>
    %650 = vector.broadcast %649 : vector<1x8x128xf32> to vector<7x8x128xf32>
    %651 = arith.mulf %646, %650 : vector<7x8x128xf32>
    %652 = arith.addf %645, %651 : vector<7x8x128xf32>
    %653 = vector.extract_strided_slice %624 {offsets = [4, 0, 0], sizes = [7, 8, 128], strides = [1, 1, 1]} : vector<11x8x128xf32> to vector<7x8x128xf32>
    %654 = vector.extract_strided_slice %0 {offsets = [1, 4, 0, 0], sizes = [1, 1, 8, 128], strides = [1, 1, 1, 1]} : vector<5x5x8x128xf32> to vector<1x1x8x128xf32>
    %655 = vector.shape_cast %654 : vector<1x1x8x128xf32> to vector<8x128xf32>
    %656 = vector.shape_cast %655 : vector<8x128xf32> to vector<1x8x128xf32>
    %657 = vector.broadcast %656 : vector<1x8x128xf32> to vector<7x8x128xf32>
    %658 = arith.mulf %653, %657 : vector<7x8x128xf32>
    %659 = arith.addf %652, %658 : vector<7x8x128xf32>
    %c0_108 = arith.constant 0 : index
    %c5_109 = arith.constant 5 : index
    %c0_110 = arith.constant 0 : index
    %c0_111 = arith.constant 0 : index
    %c0_112 = arith.constant 0 : index
    %660 = vector.load %arg1[%c0_108, %c5_109, %c0_110, %c0_111, %c0_112] : memref<1x11x11x8x128xf32, #tpu.memory_space<vmem>>, vector<1x1x11x8x128xf32>
    %661 = vector.shape_cast %660 : vector<1x1x11x8x128xf32> to vector<11x8x128xf32>
    %662 = vector.extract_strided_slice %661 {offsets = [0, 0, 0], sizes = [7, 8, 128], strides = [1, 1, 1]} : vector<11x8x128xf32> to vector<7x8x128xf32>
    %663 = vector.extract_strided_slice %0 {offsets = [2, 0, 0, 0], sizes = [1, 1, 8, 128], strides = [1, 1, 1, 1]} : vector<5x5x8x128xf32> to vector<1x1x8x128xf32>
    %664 = vector.shape_cast %663 : vector<1x1x8x128xf32> to vector<8x128xf32>
    %665 = vector.shape_cast %664 : vector<8x128xf32> to vector<1x8x128xf32>
    %666 = vector.broadcast %665 : vector<1x8x128xf32> to vector<7x8x128xf32>
    %667 = arith.mulf %662, %666 : vector<7x8x128xf32>
    %668 = arith.addf %659, %667 : vector<7x8x128xf32>
    %669 = vector.extract_strided_slice %661 {offsets = [1, 0, 0], sizes = [7, 8, 128], strides = [1, 1, 1]} : vector<11x8x128xf32> to vector<7x8x128xf32>
    %670 = vector.extract_strided_slice %0 {offsets = [2, 1, 0, 0], sizes = [1, 1, 8, 128], strides = [1, 1, 1, 1]} : vector<5x5x8x128xf32> to vector<1x1x8x128xf32>
    %671 = vector.shape_cast %670 : vector<1x1x8x128xf32> to vector<8x128xf32>
    %672 = vector.shape_cast %671 : vector<8x128xf32> to vector<1x8x128xf32>
    %673 = vector.broadcast %672 : vector<1x8x128xf32> to vector<7x8x128xf32>
    %674 = arith.mulf %669, %673 : vector<7x8x128xf32>
    %675 = arith.addf %668, %674 : vector<7x8x128xf32>
    %676 = vector.extract_strided_slice %661 {offsets = [2, 0, 0], sizes = [7, 8, 128], strides = [1, 1, 1]} : vector<11x8x128xf32> to vector<7x8x128xf32>
    %677 = vector.extract_strided_slice %0 {offsets = [2, 2, 0, 0], sizes = [1, 1, 8, 128], strides = [1, 1, 1, 1]} : vector<5x5x8x128xf32> to vector<1x1x8x128xf32>
    %678 = vector.shape_cast %677 : vector<1x1x8x128xf32> to vector<8x128xf32>
    %679 = vector.shape_cast %678 : vector<8x128xf32> to vector<1x8x128xf32>
    %680 = vector.broadcast %679 : vector<1x8x128xf32> to vector<7x8x128xf32>
    %681 = arith.mulf %676, %680 : vector<7x8x128xf32>
    %682 = arith.addf %675, %681 : vector<7x8x128xf32>
    %683 = vector.extract_strided_slice %661 {offsets = [3, 0, 0], sizes = [7, 8, 128], strides = [1, 1, 1]} : vector<11x8x128xf32> to vector<7x8x128xf32>
    %684 = vector.extract_strided_slice %0 {offsets = [2, 3, 0, 0], sizes = [1, 1, 8, 128], strides = [1, 1, 1, 1]} : vector<5x5x8x128xf32> to vector<1x1x8x128xf32>
    %685 = vector.shape_cast %684 : vector<1x1x8x128xf32> to vector<8x128xf32>
    %686 = vector.shape_cast %685 : vector<8x128xf32> to vector<1x8x128xf32>
    %687 = vector.broadcast %686 : vector<1x8x128xf32> to vector<7x8x128xf32>
    %688 = arith.mulf %683, %687 : vector<7x8x128xf32>
    %689 = arith.addf %682, %688 : vector<7x8x128xf32>
    %690 = vector.extract_strided_slice %661 {offsets = [4, 0, 0], sizes = [7, 8, 128], strides = [1, 1, 1]} : vector<11x8x128xf32> to vector<7x8x128xf32>
    %691 = vector.extract_strided_slice %0 {offsets = [2, 4, 0, 0], sizes = [1, 1, 8, 128], strides = [1, 1, 1, 1]} : vector<5x5x8x128xf32> to vector<1x1x8x128xf32>
    %692 = vector.shape_cast %691 : vector<1x1x8x128xf32> to vector<8x128xf32>
    %693 = vector.shape_cast %692 : vector<8x128xf32> to vector<1x8x128xf32>
    %694 = vector.broadcast %693 : vector<1x8x128xf32> to vector<7x8x128xf32>
    %695 = arith.mulf %690, %694 : vector<7x8x128xf32>
    %696 = arith.addf %689, %695 : vector<7x8x128xf32>
    %c0_113 = arith.constant 0 : index
    %c6_114 = arith.constant 6 : index
    %c0_115 = arith.constant 0 : index
    %c0_116 = arith.constant 0 : index
    %c0_117 = arith.constant 0 : index
    %697 = vector.load %arg1[%c0_113, %c6_114, %c0_115, %c0_116, %c0_117] : memref<1x11x11x8x128xf32, #tpu.memory_space<vmem>>, vector<1x1x11x8x128xf32>
    %698 = vector.shape_cast %697 : vector<1x1x11x8x128xf32> to vector<11x8x128xf32>
    %699 = vector.extract_strided_slice %698 {offsets = [0, 0, 0], sizes = [7, 8, 128], strides = [1, 1, 1]} : vector<11x8x128xf32> to vector<7x8x128xf32>
    %700 = vector.extract_strided_slice %0 {offsets = [3, 0, 0, 0], sizes = [1, 1, 8, 128], strides = [1, 1, 1, 1]} : vector<5x5x8x128xf32> to vector<1x1x8x128xf32>
    %701 = vector.shape_cast %700 : vector<1x1x8x128xf32> to vector<8x128xf32>
    %702 = vector.shape_cast %701 : vector<8x128xf32> to vector<1x8x128xf32>
    %703 = vector.broadcast %702 : vector<1x8x128xf32> to vector<7x8x128xf32>
    %704 = arith.mulf %699, %703 : vector<7x8x128xf32>
    %705 = arith.addf %696, %704 : vector<7x8x128xf32>
    %706 = vector.extract_strided_slice %698 {offsets = [1, 0, 0], sizes = [7, 8, 128], strides = [1, 1, 1]} : vector<11x8x128xf32> to vector<7x8x128xf32>
    %707 = vector.extract_strided_slice %0 {offsets = [3, 1, 0, 0], sizes = [1, 1, 8, 128], strides = [1, 1, 1, 1]} : vector<5x5x8x128xf32> to vector<1x1x8x128xf32>
    %708 = vector.shape_cast %707 : vector<1x1x8x128xf32> to vector<8x128xf32>
    %709 = vector.shape_cast %708 : vector<8x128xf32> to vector<1x8x128xf32>
    %710 = vector.broadcast %709 : vector<1x8x128xf32> to vector<7x8x128xf32>
    %711 = arith.mulf %706, %710 : vector<7x8x128xf32>
    %712 = arith.addf %705, %711 : vector<7x8x128xf32>
    %713 = vector.extract_strided_slice %698 {offsets = [2, 0, 0], sizes = [7, 8, 128], strides = [1, 1, 1]} : vector<11x8x128xf32> to vector<7x8x128xf32>
    %714 = vector.extract_strided_slice %0 {offsets = [3, 2, 0, 0], sizes = [1, 1, 8, 128], strides = [1, 1, 1, 1]} : vector<5x5x8x128xf32> to vector<1x1x8x128xf32>
    %715 = vector.shape_cast %714 : vector<1x1x8x128xf32> to vector<8x128xf32>
    %716 = vector.shape_cast %715 : vector<8x128xf32> to vector<1x8x128xf32>
    %717 = vector.broadcast %716 : vector<1x8x128xf32> to vector<7x8x128xf32>
    %718 = arith.mulf %713, %717 : vector<7x8x128xf32>
    %719 = arith.addf %712, %718 : vector<7x8x128xf32>
    %720 = vector.extract_strided_slice %698 {offsets = [3, 0, 0], sizes = [7, 8, 128], strides = [1, 1, 1]} : vector<11x8x128xf32> to vector<7x8x128xf32>
    %721 = vector.extract_strided_slice %0 {offsets = [3, 3, 0, 0], sizes = [1, 1, 8, 128], strides = [1, 1, 1, 1]} : vector<5x5x8x128xf32> to vector<1x1x8x128xf32>
    %722 = vector.shape_cast %721 : vector<1x1x8x128xf32> to vector<8x128xf32>
    %723 = vector.shape_cast %722 : vector<8x128xf32> to vector<1x8x128xf32>
    %724 = vector.broadcast %723 : vector<1x8x128xf32> to vector<7x8x128xf32>
    %725 = arith.mulf %720, %724 : vector<7x8x128xf32>
    %726 = arith.addf %719, %725 : vector<7x8x128xf32>
    %727 = vector.extract_strided_slice %698 {offsets = [4, 0, 0], sizes = [7, 8, 128], strides = [1, 1, 1]} : vector<11x8x128xf32> to vector<7x8x128xf32>
    %728 = vector.extract_strided_slice %0 {offsets = [3, 4, 0, 0], sizes = [1, 1, 8, 128], strides = [1, 1, 1, 1]} : vector<5x5x8x128xf32> to vector<1x1x8x128xf32>
    %729 = vector.shape_cast %728 : vector<1x1x8x128xf32> to vector<8x128xf32>
    %730 = vector.shape_cast %729 : vector<8x128xf32> to vector<1x8x128xf32>
    %731 = vector.broadcast %730 : vector<1x8x128xf32> to vector<7x8x128xf32>
    %732 = arith.mulf %727, %731 : vector<7x8x128xf32>
    %733 = arith.addf %726, %732 : vector<7x8x128xf32>
    %c0_118 = arith.constant 0 : index
    %c7 = arith.constant 7 : index
    %c0_119 = arith.constant 0 : index
    %c0_120 = arith.constant 0 : index
    %c0_121 = arith.constant 0 : index
    %734 = vector.load %arg1[%c0_118, %c7, %c0_119, %c0_120, %c0_121] : memref<1x11x11x8x128xf32, #tpu.memory_space<vmem>>, vector<1x1x11x8x128xf32>
    %735 = vector.shape_cast %734 : vector<1x1x11x8x128xf32> to vector<11x8x128xf32>
    %736 = vector.extract_strided_slice %735 {offsets = [0, 0, 0], sizes = [7, 8, 128], strides = [1, 1, 1]} : vector<11x8x128xf32> to vector<7x8x128xf32>
    %737 = vector.extract_strided_slice %0 {offsets = [4, 0, 0, 0], sizes = [1, 1, 8, 128], strides = [1, 1, 1, 1]} : vector<5x5x8x128xf32> to vector<1x1x8x128xf32>
    %738 = vector.shape_cast %737 : vector<1x1x8x128xf32> to vector<8x128xf32>
    %739 = vector.shape_cast %738 : vector<8x128xf32> to vector<1x8x128xf32>
    %740 = vector.broadcast %739 : vector<1x8x128xf32> to vector<7x8x128xf32>
    %741 = arith.mulf %736, %740 : vector<7x8x128xf32>
    %742 = arith.addf %733, %741 : vector<7x8x128xf32>
    %743 = vector.extract_strided_slice %735 {offsets = [1, 0, 0], sizes = [7, 8, 128], strides = [1, 1, 1]} : vector<11x8x128xf32> to vector<7x8x128xf32>
    %744 = vector.extract_strided_slice %0 {offsets = [4, 1, 0, 0], sizes = [1, 1, 8, 128], strides = [1, 1, 1, 1]} : vector<5x5x8x128xf32> to vector<1x1x8x128xf32>
    %745 = vector.shape_cast %744 : vector<1x1x8x128xf32> to vector<8x128xf32>
    %746 = vector.shape_cast %745 : vector<8x128xf32> to vector<1x8x128xf32>
    %747 = vector.broadcast %746 : vector<1x8x128xf32> to vector<7x8x128xf32>
    %748 = arith.mulf %743, %747 : vector<7x8x128xf32>
    %749 = arith.addf %742, %748 : vector<7x8x128xf32>
    %750 = vector.extract_strided_slice %735 {offsets = [2, 0, 0], sizes = [7, 8, 128], strides = [1, 1, 1]} : vector<11x8x128xf32> to vector<7x8x128xf32>
    %751 = vector.extract_strided_slice %0 {offsets = [4, 2, 0, 0], sizes = [1, 1, 8, 128], strides = [1, 1, 1, 1]} : vector<5x5x8x128xf32> to vector<1x1x8x128xf32>
    %752 = vector.shape_cast %751 : vector<1x1x8x128xf32> to vector<8x128xf32>
    %753 = vector.shape_cast %752 : vector<8x128xf32> to vector<1x8x128xf32>
    %754 = vector.broadcast %753 : vector<1x8x128xf32> to vector<7x8x128xf32>
    %755 = arith.mulf %750, %754 : vector<7x8x128xf32>
    %756 = arith.addf %749, %755 : vector<7x8x128xf32>
    %757 = vector.extract_strided_slice %735 {offsets = [3, 0, 0], sizes = [7, 8, 128], strides = [1, 1, 1]} : vector<11x8x128xf32> to vector<7x8x128xf32>
    %758 = vector.extract_strided_slice %0 {offsets = [4, 3, 0, 0], sizes = [1, 1, 8, 128], strides = [1, 1, 1, 1]} : vector<5x5x8x128xf32> to vector<1x1x8x128xf32>
    %759 = vector.shape_cast %758 : vector<1x1x8x128xf32> to vector<8x128xf32>
    %760 = vector.shape_cast %759 : vector<8x128xf32> to vector<1x8x128xf32>
    %761 = vector.broadcast %760 : vector<1x8x128xf32> to vector<7x8x128xf32>
    %762 = arith.mulf %757, %761 : vector<7x8x128xf32>
    %763 = arith.addf %756, %762 : vector<7x8x128xf32>
    %764 = vector.extract_strided_slice %735 {offsets = [4, 0, 0], sizes = [7, 8, 128], strides = [1, 1, 1]} : vector<11x8x128xf32> to vector<7x8x128xf32>
    %765 = vector.extract_strided_slice %0 {offsets = [4, 4, 0, 0], sizes = [1, 1, 8, 128], strides = [1, 1, 1, 1]} : vector<5x5x8x128xf32> to vector<1x1x8x128xf32>
    %766 = vector.shape_cast %765 : vector<1x1x8x128xf32> to vector<8x128xf32>
    %767 = vector.shape_cast %766 : vector<8x128xf32> to vector<1x8x128xf32>
    %768 = vector.broadcast %767 : vector<1x8x128xf32> to vector<7x8x128xf32>
    %769 = arith.mulf %764, %768 : vector<7x8x128xf32>
    %770 = arith.addf %763, %769 : vector<7x8x128xf32>
    %c0_122 = arith.constant 0 : index
    %c3_123 = arith.constant 3 : index
    %c0_124 = arith.constant 0 : index
    %c0_125 = arith.constant 0 : index
    %c0_126 = arith.constant 0 : index
    %771 = vector.load %arg5[%c0_122, %c3_123, %c0_124, %c0_125, %c0_126] : memref<1x7x7x8x128xf32, #tpu.memory_space<vmem>>, vector<1x1x7x8x128xf32>
    %772 = vector.shape_cast %771 : vector<1x1x7x8x128xf32> to vector<7x8x128xf32>
    %773 = vector.shape_cast %770 : vector<7x8x128xf32> to vector<1x1x7x8x128xf32>
    tpu.vector_store %arg5[%c0_122, %c3_123, %c0_124, %c0_125, %c0_126], %773 {strides = array<i32>} : memref<1x7x7x8x128xf32, #tpu.memory_space<vmem>>, vector<1x1x7x8x128xf32>,
    %cst_127 = arith.constant dense<0.000000e+00> : vector<8x128xf32>
    %774 = vector.multi_reduction <add>, %770, %cst_127 [0] : vector<7x8x128xf32> to vector<8x128xf32>
    %775 = arith.addf %581, %774 : vector<8x128xf32>
    %776 = arith.mulf %770, %770 : vector<7x8x128xf32>
    %cst_128 = arith.constant dense<0.000000e+00> : vector<8x128xf32>
    %777 = vector.multi_reduction <add>, %776, %cst_128 [0] : vector<7x8x128xf32> to vector<8x128xf32>
    %778 = arith.addf %584, %777 : vector<8x128xf32>
    %cst_129 = arith.constant 0.000000e+00 : f32
    %779 = vector.broadcast %cst_129 : f32 to vector<7x8x128xf32>
    %c0_130 = arith.constant 0 : index
    %c4_131 = arith.constant 4 : index
    %c0_132 = arith.constant 0 : index
    %c0_133 = arith.constant 0 : index
    %c0_134 = arith.constant 0 : index
    %780 = vector.load %arg1[%c0_130, %c4_131, %c0_132, %c0_133, %c0_134] : memref<1x11x11x8x128xf32, #tpu.memory_space<vmem>>, vector<1x1x11x8x128xf32>
    %781 = vector.shape_cast %780 : vector<1x1x11x8x128xf32> to vector<11x8x128xf32>
    %782 = vector.extract_strided_slice %781 {offsets = [0, 0, 0], sizes = [7, 8, 128], strides = [1, 1, 1]} : vector<11x8x128xf32> to vector<7x8x128xf32>
    %783 = vector.extract_strided_slice %0 {offsets = [0, 0, 0, 0], sizes = [1, 1, 8, 128], strides = [1, 1, 1, 1]} : vector<5x5x8x128xf32> to vector<1x1x8x128xf32>
    %784 = vector.shape_cast %783 : vector<1x1x8x128xf32> to vector<8x128xf32>
    %785 = vector.shape_cast %784 : vector<8x128xf32> to vector<1x8x128xf32>
    %786 = vector.broadcast %785 : vector<1x8x128xf32> to vector<7x8x128xf32>
    %787 = arith.mulf %782, %786 : vector<7x8x128xf32>
    %788 = arith.addf %779, %787 : vector<7x8x128xf32>
    %789 = vector.extract_strided_slice %781 {offsets = [1, 0, 0], sizes = [7, 8, 128], strides = [1, 1, 1]} : vector<11x8x128xf32> to vector<7x8x128xf32>
    %790 = vector.extract_strided_slice %0 {offsets = [0, 1, 0, 0], sizes = [1, 1, 8, 128], strides = [1, 1, 1, 1]} : vector<5x5x8x128xf32> to vector<1x1x8x128xf32>
    %791 = vector.shape_cast %790 : vector<1x1x8x128xf32> to vector<8x128xf32>
    %792 = vector.shape_cast %791 : vector<8x128xf32> to vector<1x8x128xf32>
    %793 = vector.broadcast %792 : vector<1x8x128xf32> to vector<7x8x128xf32>
    %794 = arith.mulf %789, %793 : vector<7x8x128xf32>
    %795 = arith.addf %788, %794 : vector<7x8x128xf32>
    %796 = vector.extract_strided_slice %781 {offsets = [2, 0, 0], sizes = [7, 8, 128], strides = [1, 1, 1]} : vector<11x8x128xf32> to vector<7x8x128xf32>
    %797 = vector.extract_strided_slice %0 {offsets = [0, 2, 0, 0], sizes = [1, 1, 8, 128], strides = [1, 1, 1, 1]} : vector<5x5x8x128xf32> to vector<1x1x8x128xf32>
    %798 = vector.shape_cast %797 : vector<1x1x8x128xf32> to vector<8x128xf32>
    %799 = vector.shape_cast %798 : vector<8x128xf32> to vector<1x8x128xf32>
    %800 = vector.broadcast %799 : vector<1x8x128xf32> to vector<7x8x128xf32>
    %801 = arith.mulf %796, %800 : vector<7x8x128xf32>
    %802 = arith.addf %795, %801 : vector<7x8x128xf32>
    %803 = vector.extract_strided_slice %781 {offsets = [3, 0, 0], sizes = [7, 8, 128], strides = [1, 1, 1]} : vector<11x8x128xf32> to vector<7x8x128xf32>
    %804 = vector.extract_strided_slice %0 {offsets = [0, 3, 0, 0], sizes = [1, 1, 8, 128], strides = [1, 1, 1, 1]} : vector<5x5x8x128xf32> to vector<1x1x8x128xf32>
    %805 = vector.shape_cast %804 : vector<1x1x8x128xf32> to vector<8x128xf32>
    %806 = vector.shape_cast %805 : vector<8x128xf32> to vector<1x8x128xf32>
    %807 = vector.broadcast %806 : vector<1x8x128xf32> to vector<7x8x128xf32>
    %808 = arith.mulf %803, %807 : vector<7x8x128xf32>
    %809 = arith.addf %802, %808 : vector<7x8x128xf32>
    %810 = vector.extract_strided_slice %781 {offsets = [4, 0, 0], sizes = [7, 8, 128], strides = [1, 1, 1]} : vector<11x8x128xf32> to vector<7x8x128xf32>
    %811 = vector.extract_strided_slice %0 {offsets = [0, 4, 0, 0], sizes = [1, 1, 8, 128], strides = [1, 1, 1, 1]} : vector<5x5x8x128xf32> to vector<1x1x8x128xf32>
    %812 = vector.shape_cast %811 : vector<1x1x8x128xf32> to vector<8x128xf32>
    %813 = vector.shape_cast %812 : vector<8x128xf32> to vector<1x8x128xf32>
    %814 = vector.broadcast %813 : vector<1x8x128xf32> to vector<7x8x128xf32>
    %815 = arith.mulf %810, %814 : vector<7x8x128xf32>
    %816 = arith.addf %809, %815 : vector<7x8x128xf32>
    %c0_135 = arith.constant 0 : index
    %c5_136 = arith.constant 5 : index
    %c0_137 = arith.constant 0 : index
    %c0_138 = arith.constant 0 : index
    %c0_139 = arith.constant 0 : index
    %817 = vector.load %arg1[%c0_135, %c5_136, %c0_137, %c0_138, %c0_139] : memref<1x11x11x8x128xf32, #tpu.memory_space<vmem>>, vector<1x1x11x8x128xf32>
    %818 = vector.shape_cast %817 : vector<1x1x11x8x128xf32> to vector<11x8x128xf32>
    %819 = vector.extract_strided_slice %818 {offsets = [0, 0, 0], sizes = [7, 8, 128], strides = [1, 1, 1]} : vector<11x8x128xf32> to vector<7x8x128xf32>
    %820 = vector.extract_strided_slice %0 {offsets = [1, 0, 0, 0], sizes = [1, 1, 8, 128], strides = [1, 1, 1, 1]} : vector<5x5x8x128xf32> to vector<1x1x8x128xf32>
    %821 = vector.shape_cast %820 : vector<1x1x8x128xf32> to vector<8x128xf32>
    %822 = vector.shape_cast %821 : vector<8x128xf32> to vector<1x8x128xf32>
    %823 = vector.broadcast %822 : vector<1x8x128xf32> to vector<7x8x128xf32>
    %824 = arith.mulf %819, %823 : vector<7x8x128xf32>
    %825 = arith.addf %816, %824 : vector<7x8x128xf32>
    %826 = vector.extract_strided_slice %818 {offsets = [1, 0, 0], sizes = [7, 8, 128], strides = [1, 1, 1]} : vector<11x8x128xf32> to vector<7x8x128xf32>
    %827 = vector.extract_strided_slice %0 {offsets = [1, 1, 0, 0], sizes = [1, 1, 8, 128], strides = [1, 1, 1, 1]} : vector<5x5x8x128xf32> to vector<1x1x8x128xf32>
    %828 = vector.shape_cast %827 : vector<1x1x8x128xf32> to vector<8x128xf32>
    %829 = vector.shape_cast %828 : vector<8x128xf32> to vector<1x8x128xf32>
    %830 = vector.broadcast %829 : vector<1x8x128xf32> to vector<7x8x128xf32>
    %831 = arith.mulf %826, %830 : vector<7x8x128xf32>
    %832 = arith.addf %825, %831 : vector<7x8x128xf32>
    %833 = vector.extract_strided_slice %818 {offsets = [2, 0, 0], sizes = [7, 8, 128], strides = [1, 1, 1]} : vector<11x8x128xf32> to vector<7x8x128xf32>
    %834 = vector.extract_strided_slice %0 {offsets = [1, 2, 0, 0], sizes = [1, 1, 8, 128], strides = [1, 1, 1, 1]} : vector<5x5x8x128xf32> to vector<1x1x8x128xf32>
    %835 = vector.shape_cast %834 : vector<1x1x8x128xf32> to vector<8x128xf32>
    %836 = vector.shape_cast %835 : vector<8x128xf32> to vector<1x8x128xf32>
    %837 = vector.broadcast %836 : vector<1x8x128xf32> to vector<7x8x128xf32>
    %838 = arith.mulf %833, %837 : vector<7x8x128xf32>
    %839 = arith.addf %832, %838 : vector<7x8x128xf32>
    %840 = vector.extract_strided_slice %818 {offsets = [3, 0, 0], sizes = [7, 8, 128], strides = [1, 1, 1]} : vector<11x8x128xf32> to vector<7x8x128xf32>
    %841 = vector.extract_strided_slice %0 {offsets = [1, 3, 0, 0], sizes = [1, 1, 8, 128], strides = [1, 1, 1, 1]} : vector<5x5x8x128xf32> to vector<1x1x8x128xf32>
    %842 = vector.shape_cast %841 : vector<1x1x8x128xf32> to vector<8x128xf32>
    %843 = vector.shape_cast %842 : vector<8x128xf32> to vector<1x8x128xf32>
    %844 = vector.broadcast %843 : vector<1x8x128xf32> to vector<7x8x128xf32>
    %845 = arith.mulf %840, %844 : vector<7x8x128xf32>
    %846 = arith.addf %839, %845 : vector<7x8x128xf32>
    %847 = vector.extract_strided_slice %818 {offsets = [4, 0, 0], sizes = [7, 8, 128], strides = [1, 1, 1]} : vector<11x8x128xf32> to vector<7x8x128xf32>
    %848 = vector.extract_strided_slice %0 {offsets = [1, 4, 0, 0], sizes = [1, 1, 8, 128], strides = [1, 1, 1, 1]} : vector<5x5x8x128xf32> to vector<1x1x8x128xf32>
    %849 = vector.shape_cast %848 : vector<1x1x8x128xf32> to vector<8x128xf32>
    %850 = vector.shape_cast %849 : vector<8x128xf32> to vector<1x8x128xf32>
    %851 = vector.broadcast %850 : vector<1x8x128xf32> to vector<7x8x128xf32>
    %852 = arith.mulf %847, %851 : vector<7x8x128xf32>
    %853 = arith.addf %846, %852 : vector<7x8x128xf32>
    %c0_140 = arith.constant 0 : index
    %c6_141 = arith.constant 6 : index
    %c0_142 = arith.constant 0 : index
    %c0_143 = arith.constant 0 : index
    %c0_144 = arith.constant 0 : index
    %854 = vector.load %arg1[%c0_140, %c6_141, %c0_142, %c0_143, %c0_144] : memref<1x11x11x8x128xf32, #tpu.memory_space<vmem>>, vector<1x1x11x8x128xf32>
    %855 = vector.shape_cast %854 : vector<1x1x11x8x128xf32> to vector<11x8x128xf32>
    %856 = vector.extract_strided_slice %855 {offsets = [0, 0, 0], sizes = [7, 8, 128], strides = [1, 1, 1]} : vector<11x8x128xf32> to vector<7x8x128xf32>
    %857 = vector.extract_strided_slice %0 {offsets = [2, 0, 0, 0], sizes = [1, 1, 8, 128], strides = [1, 1, 1, 1]} : vector<5x5x8x128xf32> to vector<1x1x8x128xf32>
    %858 = vector.shape_cast %857 : vector<1x1x8x128xf32> to vector<8x128xf32>
    %859 = vector.shape_cast %858 : vector<8x128xf32> to vector<1x8x128xf32>
    %860 = vector.broadcast %859 : vector<1x8x128xf32> to vector<7x8x128xf32>
    %861 = arith.mulf %856, %860 : vector<7x8x128xf32>
    %862 = arith.addf %853, %861 : vector<7x8x128xf32>
    %863 = vector.extract_strided_slice %855 {offsets = [1, 0, 0], sizes = [7, 8, 128], strides = [1, 1, 1]} : vector<11x8x128xf32> to vector<7x8x128xf32>
    %864 = vector.extract_strided_slice %0 {offsets = [2, 1, 0, 0], sizes = [1, 1, 8, 128], strides = [1, 1, 1, 1]} : vector<5x5x8x128xf32> to vector<1x1x8x128xf32>
    %865 = vector.shape_cast %864 : vector<1x1x8x128xf32> to vector<8x128xf32>
    %866 = vector.shape_cast %865 : vector<8x128xf32> to vector<1x8x128xf32>
    %867 = vector.broadcast %866 : vector<1x8x128xf32> to vector<7x8x128xf32>
    %868 = arith.mulf %863, %867 : vector<7x8x128xf32>
    %869 = arith.addf %862, %868 : vector<7x8x128xf32>
    %870 = vector.extract_strided_slice %855 {offsets = [2, 0, 0], sizes = [7, 8, 128], strides = [1, 1, 1]} : vector<11x8x128xf32> to vector<7x8x128xf32>
    %871 = vector.extract_strided_slice %0 {offsets = [2, 2, 0, 0], sizes = [1, 1, 8, 128], strides = [1, 1, 1, 1]} : vector<5x5x8x128xf32> to vector<1x1x8x128xf32>
    %872 = vector.shape_cast %871 : vector<1x1x8x128xf32> to vector<8x128xf32>
    %873 = vector.shape_cast %872 : vector<8x128xf32> to vector<1x8x128xf32>
    %874 = vector.broadcast %873 : vector<1x8x128xf32> to vector<7x8x128xf32>
    %875 = arith.mulf %870, %874 : vector<7x8x128xf32>
    %876 = arith.addf %869, %875 : vector<7x8x128xf32>
    %877 = vector.extract_strided_slice %855 {offsets = [3, 0, 0], sizes = [7, 8, 128], strides = [1, 1, 1]} : vector<11x8x128xf32> to vector<7x8x128xf32>
    %878 = vector.extract_strided_slice %0 {offsets = [2, 3, 0, 0], sizes = [1, 1, 8, 128], strides = [1, 1, 1, 1]} : vector<5x5x8x128xf32> to vector<1x1x8x128xf32>
    %879 = vector.shape_cast %878 : vector<1x1x8x128xf32> to vector<8x128xf32>
    %880 = vector.shape_cast %879 : vector<8x128xf32> to vector<1x8x128xf32>
    %881 = vector.broadcast %880 : vector<1x8x128xf32> to vector<7x8x128xf32>
    %882 = arith.mulf %877, %881 : vector<7x8x128xf32>
    %883 = arith.addf %876, %882 : vector<7x8x128xf32>
    %884 = vector.extract_strided_slice %855 {offsets = [4, 0, 0], sizes = [7, 8, 128], strides = [1, 1, 1]} : vector<11x8x128xf32> to vector<7x8x128xf32>
    %885 = vector.extract_strided_slice %0 {offsets = [2, 4, 0, 0], sizes = [1, 1, 8, 128], strides = [1, 1, 1, 1]} : vector<5x5x8x128xf32> to vector<1x1x8x128xf32>
    %886 = vector.shape_cast %885 : vector<1x1x8x128xf32> to vector<8x128xf32>
    %887 = vector.shape_cast %886 : vector<8x128xf32> to vector<1x8x128xf32>
    %888 = vector.broadcast %887 : vector<1x8x128xf32> to vector<7x8x128xf32>
    %889 = arith.mulf %884, %888 : vector<7x8x128xf32>
    %890 = arith.addf %883, %889 : vector<7x8x128xf32>
    %c0_145 = arith.constant 0 : index
    %c7_146 = arith.constant 7 : index
    %c0_147 = arith.constant 0 : index
    %c0_148 = arith.constant 0 : index
    %c0_149 = arith.constant 0 : index
    %891 = vector.load %arg1[%c0_145, %c7_146, %c0_147, %c0_148, %c0_149] : memref<1x11x11x8x128xf32, #tpu.memory_space<vmem>>, vector<1x1x11x8x128xf32>
    %892 = vector.shape_cast %891 : vector<1x1x11x8x128xf32> to vector<11x8x128xf32>
    %893 = vector.extract_strided_slice %892 {offsets = [0, 0, 0], sizes = [7, 8, 128], strides = [1, 1, 1]} : vector<11x8x128xf32> to vector<7x8x128xf32>
    %894 = vector.extract_strided_slice %0 {offsets = [3, 0, 0, 0], sizes = [1, 1, 8, 128], strides = [1, 1, 1, 1]} : vector<5x5x8x128xf32> to vector<1x1x8x128xf32>
    %895 = vector.shape_cast %894 : vector<1x1x8x128xf32> to vector<8x128xf32>
    %896 = vector.shape_cast %895 : vector<8x128xf32> to vector<1x8x128xf32>
    %897 = vector.broadcast %896 : vector<1x8x128xf32> to vector<7x8x128xf32>
    %898 = arith.mulf %893, %897 : vector<7x8x128xf32>
    %899 = arith.addf %890, %898 : vector<7x8x128xf32>
    %900 = vector.extract_strided_slice %892 {offsets = [1, 0, 0], sizes = [7, 8, 128], strides = [1, 1, 1]} : vector<11x8x128xf32> to vector<7x8x128xf32>
    %901 = vector.extract_strided_slice %0 {offsets = [3, 1, 0, 0], sizes = [1, 1, 8, 128], strides = [1, 1, 1, 1]} : vector<5x5x8x128xf32> to vector<1x1x8x128xf32>
    %902 = vector.shape_cast %901 : vector<1x1x8x128xf32> to vector<8x128xf32>
    %903 = vector.shape_cast %902 : vector<8x128xf32> to vector<1x8x128xf32>
    %904 = vector.broadcast %903 : vector<1x8x128xf32> to vector<7x8x128xf32>
    %905 = arith.mulf %900, %904 : vector<7x8x128xf32>
    %906 = arith.addf %899, %905 : vector<7x8x128xf32>
    %907 = vector.extract_strided_slice %892 {offsets = [2, 0, 0], sizes = [7, 8, 128], strides = [1, 1, 1]} : vector<11x8x128xf32> to vector<7x8x128xf32>
    %908 = vector.extract_strided_slice %0 {offsets = [3, 2, 0, 0], sizes = [1, 1, 8, 128], strides = [1, 1, 1, 1]} : vector<5x5x8x128xf32> to vector<1x1x8x128xf32>
    %909 = vector.shape_cast %908 : vector<1x1x8x128xf32> to vector<8x128xf32>
    %910 = vector.shape_cast %909 : vector<8x128xf32> to vector<1x8x128xf32>
    %911 = vector.broadcast %910 : vector<1x8x128xf32> to vector<7x8x128xf32>
    %912 = arith.mulf %907, %911 : vector<7x8x128xf32>
    %913 = arith.addf %906, %912 : vector<7x8x128xf32>
    %914 = vector.extract_strided_slice %892 {offsets = [3, 0, 0], sizes = [7, 8, 128], strides = [1, 1, 1]} : vector<11x8x128xf32> to vector<7x8x128xf32>
    %915 = vector.extract_strided_slice %0 {offsets = [3, 3, 0, 0], sizes = [1, 1, 8, 128], strides = [1, 1, 1, 1]} : vector<5x5x8x128xf32> to vector<1x1x8x128xf32>
    %916 = vector.shape_cast %915 : vector<1x1x8x128xf32> to vector<8x128xf32>
    %917 = vector.shape_cast %916 : vector<8x128xf32> to vector<1x8x128xf32>
    %918 = vector.broadcast %917 : vector<1x8x128xf32> to vector<7x8x128xf32>
    %919 = arith.mulf %914, %918 : vector<7x8x128xf32>
    %920 = arith.addf %913, %919 : vector<7x8x128xf32>
    %921 = vector.extract_strided_slice %892 {offsets = [4, 0, 0], sizes = [7, 8, 128], strides = [1, 1, 1]} : vector<11x8x128xf32> to vector<7x8x128xf32>
    %922 = vector.extract_strided_slice %0 {offsets = [3, 4, 0, 0], sizes = [1, 1, 8, 128], strides = [1, 1, 1, 1]} : vector<5x5x8x128xf32> to vector<1x1x8x128xf32>
    %923 = vector.shape_cast %922 : vector<1x1x8x128xf32> to vector<8x128xf32>
    %924 = vector.shape_cast %923 : vector<8x128xf32> to vector<1x8x128xf32>
    %925 = vector.broadcast %924 : vector<1x8x128xf32> to vector<7x8x128xf32>
    %926 = arith.mulf %921, %925 : vector<7x8x128xf32>
    %927 = arith.addf %920, %926 : vector<7x8x128xf32>
    %c0_150 = arith.constant 0 : index
    %c8 = arith.constant 8 : index
    %c0_151 = arith.constant 0 : index
    %c0_152 = arith.constant 0 : index
    %c0_153 = arith.constant 0 : index
    %928 = vector.load %arg1[%c0_150, %c8, %c0_151, %c0_152, %c0_153] : memref<1x11x11x8x128xf32, #tpu.memory_space<vmem>>, vector<1x1x11x8x128xf32>
    %929 = vector.shape_cast %928 : vector<1x1x11x8x128xf32> to vector<11x8x128xf32>
    %930 = vector.extract_strided_slice %929 {offsets = [0, 0, 0], sizes = [7, 8, 128], strides = [1, 1, 1]} : vector<11x8x128xf32> to vector<7x8x128xf32>
    %931 = vector.extract_strided_slice %0 {offsets = [4, 0, 0, 0], sizes = [1, 1, 8, 128], strides = [1, 1, 1, 1]} : vector<5x5x8x128xf32> to vector<1x1x8x128xf32>
    %932 = vector.shape_cast %931 : vector<1x1x8x128xf32> to vector<8x128xf32>
    %933 = vector.shape_cast %932 : vector<8x128xf32> to vector<1x8x128xf32>
    %934 = vector.broadcast %933 : vector<1x8x128xf32> to vector<7x8x128xf32>
    %935 = arith.mulf %930, %934 : vector<7x8x128xf32>
    %936 = arith.addf %927, %935 : vector<7x8x128xf32>
    %937 = vector.extract_strided_slice %929 {offsets = [1, 0, 0], sizes = [7, 8, 128], strides = [1, 1, 1]} : vector<11x8x128xf32> to vector<7x8x128xf32>
    %938 = vector.extract_strided_slice %0 {offsets = [4, 1, 0, 0], sizes = [1, 1, 8, 128], strides = [1, 1, 1, 1]} : vector<5x5x8x128xf32> to vector<1x1x8x128xf32>
    %939 = vector.shape_cast %938 : vector<1x1x8x128xf32> to vector<8x128xf32>
    %940 = vector.shape_cast %939 : vector<8x128xf32> to vector<1x8x128xf32>
    %941 = vector.broadcast %940 : vector<1x8x128xf32> to vector<7x8x128xf32>
    %942 = arith.mulf %937, %941 : vector<7x8x128xf32>
    %943 = arith.addf %936, %942 : vector<7x8x128xf32>
    %944 = vector.extract_strided_slice %929 {offsets = [2, 0, 0], sizes = [7, 8, 128], strides = [1, 1, 1]} : vector<11x8x128xf32> to vector<7x8x128xf32>
    %945 = vector.extract_strided_slice %0 {offsets = [4, 2, 0, 0], sizes = [1, 1, 8, 128], strides = [1, 1, 1, 1]} : vector<5x5x8x128xf32> to vector<1x1x8x128xf32>
    %946 = vector.shape_cast %945 : vector<1x1x8x128xf32> to vector<8x128xf32>
    %947 = vector.shape_cast %946 : vector<8x128xf32> to vector<1x8x128xf32>
    %948 = vector.broadcast %947 : vector<1x8x128xf32> to vector<7x8x128xf32>
    %949 = arith.mulf %944, %948 : vector<7x8x128xf32>
    %950 = arith.addf %943, %949 : vector<7x8x128xf32>
    %951 = vector.extract_strided_slice %929 {offsets = [3, 0, 0], sizes = [7, 8, 128], strides = [1, 1, 1]} : vector<11x8x128xf32> to vector<7x8x128xf32>
    %952 = vector.extract_strided_slice %0 {offsets = [4, 3, 0, 0], sizes = [1, 1, 8, 128], strides = [1, 1, 1, 1]} : vector<5x5x8x128xf32> to vector<1x1x8x128xf32>
    %953 = vector.shape_cast %952 : vector<1x1x8x128xf32> to vector<8x128xf32>
    %954 = vector.shape_cast %953 : vector<8x128xf32> to vector<1x8x128xf32>
    %955 = vector.broadcast %954 : vector<1x8x128xf32> to vector<7x8x128xf32>
    %956 = arith.mulf %951, %955 : vector<7x8x128xf32>
    %957 = arith.addf %950, %956 : vector<7x8x128xf32>
    %958 = vector.extract_strided_slice %929 {offsets = [4, 0, 0], sizes = [7, 8, 128], strides = [1, 1, 1]} : vector<11x8x128xf32> to vector<7x8x128xf32>
    %959 = vector.extract_strided_slice %0 {offsets = [4, 4, 0, 0], sizes = [1, 1, 8, 128], strides = [1, 1, 1, 1]} : vector<5x5x8x128xf32> to vector<1x1x8x128xf32>
    %960 = vector.shape_cast %959 : vector<1x1x8x128xf32> to vector<8x128xf32>
    %961 = vector.shape_cast %960 : vector<8x128xf32> to vector<1x8x128xf32>
    %962 = vector.broadcast %961 : vector<1x8x128xf32> to vector<7x8x128xf32>
    %963 = arith.mulf %958, %962 : vector<7x8x128xf32>
    %964 = arith.addf %957, %963 : vector<7x8x128xf32>
    %c0_154 = arith.constant 0 : index
    %c4_155 = arith.constant 4 : index
    %c0_156 = arith.constant 0 : index
    %c0_157 = arith.constant 0 : index
    %c0_158 = arith.constant 0 : index
    %965 = vector.load %arg5[%c0_154, %c4_155, %c0_156, %c0_157, %c0_158] : memref<1x7x7x8x128xf32, #tpu.memory_space<vmem>>, vector<1x1x7x8x128xf32>
    %966 = vector.shape_cast %965 : vector<1x1x7x8x128xf32> to vector<7x8x128xf32>
    %967 = vector.shape_cast %964 : vector<7x8x128xf32> to vector<1x1x7x8x128xf32>
    tpu.vector_store %arg5[%c0_154, %c4_155, %c0_156, %c0_157, %c0_158], %967 {strides = array<i32>} : memref<1x7x7x8x128xf32, #tpu.memory_space<vmem>>, vector<1x1x7x8x128xf32>,
    %cst_159 = arith.constant dense<0.000000e+00> : vector<8x128xf32>
    %968 = vector.multi_reduction <add>, %964, %cst_159 [0] : vector<7x8x128xf32> to vector<8x128xf32>
    %969 = arith.addf %775, %968 : vector<8x128xf32>
    %970 = arith.mulf %964, %964 : vector<7x8x128xf32>
    %cst_160 = arith.constant dense<0.000000e+00> : vector<8x128xf32>
    %971 = vector.multi_reduction <add>, %970, %cst_160 [0] : vector<7x8x128xf32> to vector<8x128xf32>
    %972 = arith.addf %778, %971 : vector<8x128xf32>
    %cst_161 = arith.constant 0.000000e+00 : f32
    %973 = vector.broadcast %cst_161 : f32 to vector<7x8x128xf32>
    %c0_162 = arith.constant 0 : index
    %c5_163 = arith.constant 5 : index
    %c0_164 = arith.constant 0 : index
    %c0_165 = arith.constant 0 : index
    %c0_166 = arith.constant 0 : index
    %974 = vector.load %arg1[%c0_162, %c5_163, %c0_164, %c0_165, %c0_166] : memref<1x11x11x8x128xf32, #tpu.memory_space<vmem>>, vector<1x1x11x8x128xf32>
    %975 = vector.shape_cast %974 : vector<1x1x11x8x128xf32> to vector<11x8x128xf32>
    %976 = vector.extract_strided_slice %975 {offsets = [0, 0, 0], sizes = [7, 8, 128], strides = [1, 1, 1]} : vector<11x8x128xf32> to vector<7x8x128xf32>
    %977 = vector.extract_strided_slice %0 {offsets = [0, 0, 0, 0], sizes = [1, 1, 8, 128], strides = [1, 1, 1, 1]} : vector<5x5x8x128xf32> to vector<1x1x8x128xf32>
    %978 = vector.shape_cast %977 : vector<1x1x8x128xf32> to vector<8x128xf32>
    %979 = vector.shape_cast %978 : vector<8x128xf32> to vector<1x8x128xf32>
    %980 = vector.broadcast %979 : vector<1x8x128xf32> to vector<7x8x128xf32>
    %981 = arith.mulf %976, %980 : vector<7x8x128xf32>
    %982 = arith.addf %973, %981 : vector<7x8x128xf32>
    %983 = vector.extract_strided_slice %975 {offsets = [1, 0, 0], sizes = [7, 8, 128], strides = [1, 1, 1]} : vector<11x8x128xf32> to vector<7x8x128xf32>
    %984 = vector.extract_strided_slice %0 {offsets = [0, 1, 0, 0], sizes = [1, 1, 8, 128], strides = [1, 1, 1, 1]} : vector<5x5x8x128xf32> to vector<1x1x8x128xf32>
    %985 = vector.shape_cast %984 : vector<1x1x8x128xf32> to vector<8x128xf32>
    %986 = vector.shape_cast %985 : vector<8x128xf32> to vector<1x8x128xf32>
    %987 = vector.broadcast %986 : vector<1x8x128xf32> to vector<7x8x128xf32>
    %988 = arith.mulf %983, %987 : vector<7x8x128xf32>
    %989 = arith.addf %982, %988 : vector<7x8x128xf32>
    %990 = vector.extract_strided_slice %975 {offsets = [2, 0, 0], sizes = [7, 8, 128], strides = [1, 1, 1]} : vector<11x8x128xf32> to vector<7x8x128xf32>
    %991 = vector.extract_strided_slice %0 {offsets = [0, 2, 0, 0], sizes = [1, 1, 8, 128], strides = [1, 1, 1, 1]} : vector<5x5x8x128xf32> to vector<1x1x8x128xf32>
    %992 = vector.shape_cast %991 : vector<1x1x8x128xf32> to vector<8x128xf32>
    %993 = vector.shape_cast %992 : vector<8x128xf32> to vector<1x8x128xf32>
    %994 = vector.broadcast %993 : vector<1x8x128xf32> to vector<7x8x128xf32>
    %995 = arith.mulf %990, %994 : vector<7x8x128xf32>
    %996 = arith.addf %989, %995 : vector<7x8x128xf32>
    %997 = vector.extract_strided_slice %975 {offsets = [3, 0, 0], sizes = [7, 8, 128], strides = [1, 1, 1]} : vector<11x8x128xf32> to vector<7x8x128xf32>
    %998 = vector.extract_strided_slice %0 {offsets = [0, 3, 0, 0], sizes = [1, 1, 8, 128], strides = [1, 1, 1, 1]} : vector<5x5x8x128xf32> to vector<1x1x8x128xf32>
    %999 = vector.shape_cast %998 : vector<1x1x8x128xf32> to vector<8x128xf32>
    %1000 = vector.shape_cast %999 : vector<8x128xf32> to vector<1x8x128xf32>
    %1001 = vector.broadcast %1000 : vector<1x8x128xf32> to vector<7x8x128xf32>
    %1002 = arith.mulf %997, %1001 : vector<7x8x128xf32>
    %1003 = arith.addf %996, %1002 : vector<7x8x128xf32>
    %1004 = vector.extract_strided_slice %975 {offsets = [4, 0, 0], sizes = [7, 8, 128], strides = [1, 1, 1]} : vector<11x8x128xf32> to vector<7x8x128xf32>
    %1005 = vector.extract_strided_slice %0 {offsets = [0, 4, 0, 0], sizes = [1, 1, 8, 128], strides = [1, 1, 1, 1]} : vector<5x5x8x128xf32> to vector<1x1x8x128xf32>
    %1006 = vector.shape_cast %1005 : vector<1x1x8x128xf32> to vector<8x128xf32>
    %1007 = vector.shape_cast %1006 : vector<8x128xf32> to vector<1x8x128xf32>
    %1008 = vector.broadcast %1007 : vector<1x8x128xf32> to vector<7x8x128xf32>
    %1009 = arith.mulf %1004, %1008 : vector<7x8x128xf32>
    %1010 = arith.addf %1003, %1009 : vector<7x8x128xf32>
    %c0_167 = arith.constant 0 : index
    %c6_168 = arith.constant 6 : index
    %c0_169 = arith.constant 0 : index
    %c0_170 = arith.constant 0 : index
    %c0_171 = arith.constant 0 : index
    %1011 = vector.load %arg1[%c0_167, %c6_168, %c0_169, %c0_170, %c0_171] : memref<1x11x11x8x128xf32, #tpu.memory_space<vmem>>, vector<1x1x11x8x128xf32>
    %1012 = vector.shape_cast %1011 : vector<1x1x11x8x128xf32> to vector<11x8x128xf32>
    %1013 = vector.extract_strided_slice %1012 {offsets = [0, 0, 0], sizes = [7, 8, 128], strides = [1, 1, 1]} : vector<11x8x128xf32> to vector<7x8x128xf32>
    %1014 = vector.extract_strided_slice %0 {offsets = [1, 0, 0, 0], sizes = [1, 1, 8, 128], strides = [1, 1, 1, 1]} : vector<5x5x8x128xf32> to vector<1x1x8x128xf32>
    %1015 = vector.shape_cast %1014 : vector<1x1x8x128xf32> to vector<8x128xf32>
    %1016 = vector.shape_cast %1015 : vector<8x128xf32> to vector<1x8x128xf32>
    %1017 = vector.broadcast %1016 : vector<1x8x128xf32> to vector<7x8x128xf32>
    %1018 = arith.mulf %1013, %1017 : vector<7x8x128xf32>
    %1019 = arith.addf %1010, %1018 : vector<7x8x128xf32>
    %1020 = vector.extract_strided_slice %1012 {offsets = [1, 0, 0], sizes = [7, 8, 128], strides = [1, 1, 1]} : vector<11x8x128xf32> to vector<7x8x128xf32>
    %1021 = vector.extract_strided_slice %0 {offsets = [1, 1, 0, 0], sizes = [1, 1, 8, 128], strides = [1, 1, 1, 1]} : vector<5x5x8x128xf32> to vector<1x1x8x128xf32>
    %1022 = vector.shape_cast %1021 : vector<1x1x8x128xf32> to vector<8x128xf32>
    %1023 = vector.shape_cast %1022 : vector<8x128xf32> to vector<1x8x128xf32>
    %1024 = vector.broadcast %1023 : vector<1x8x128xf32> to vector<7x8x128xf32>
    %1025 = arith.mulf %1020, %1024 : vector<7x8x128xf32>
    %1026 = arith.addf %1019, %1025 : vector<7x8x128xf32>
    %1027 = vector.extract_strided_slice %1012 {offsets = [2, 0, 0], sizes = [7, 8, 128], strides = [1, 1, 1]} : vector<11x8x128xf32> to vector<7x8x128xf32>
    %1028 = vector.extract_strided_slice %0 {offsets = [1, 2, 0, 0], sizes = [1, 1, 8, 128], strides = [1, 1, 1, 1]} : vector<5x5x8x128xf32> to vector<1x1x8x128xf32>
    %1029 = vector.shape_cast %1028 : vector<1x1x8x128xf32> to vector<8x128xf32>
    %1030 = vector.shape_cast %1029 : vector<8x128xf32> to vector<1x8x128xf32>
    %1031 = vector.broadcast %1030 : vector<1x8x128xf32> to vector<7x8x128xf32>
    %1032 = arith.mulf %1027, %1031 : vector<7x8x128xf32>
    %1033 = arith.addf %1026, %1032 : vector<7x8x128xf32>
    %1034 = vector.extract_strided_slice %1012 {offsets = [3, 0, 0], sizes = [7, 8, 128], strides = [1, 1, 1]} : vector<11x8x128xf32> to vector<7x8x128xf32>
    %1035 = vector.extract_strided_slice %0 {offsets = [1, 3, 0, 0], sizes = [1, 1, 8, 128], strides = [1, 1, 1, 1]} : vector<5x5x8x128xf32> to vector<1x1x8x128xf32>
    %1036 = vector.shape_cast %1035 : vector<1x1x8x128xf32> to vector<8x128xf32>
    %1037 = vector.shape_cast %1036 : vector<8x128xf32> to vector<1x8x128xf32>
    %1038 = vector.broadcast %1037 : vector<1x8x128xf32> to vector<7x8x128xf32>
    %1039 = arith.mulf %1034, %1038 : vector<7x8x128xf32>
    %1040 = arith.addf %1033, %1039 : vector<7x8x128xf32>
    %1041 = vector.extract_strided_slice %1012 {offsets = [4, 0, 0], sizes = [7, 8, 128], strides = [1, 1, 1]} : vector<11x8x128xf32> to vector<7x8x128xf32>
    %1042 = vector.extract_strided_slice %0 {offsets = [1, 4, 0, 0], sizes = [1, 1, 8, 128], strides = [1, 1, 1, 1]} : vector<5x5x8x128xf32> to vector<1x1x8x128xf32>
    %1043 = vector.shape_cast %1042 : vector<1x1x8x128xf32> to vector<8x128xf32>
    %1044 = vector.shape_cast %1043 : vector<8x128xf32> to vector<1x8x128xf32>
    %1045 = vector.broadcast %1044 : vector<1x8x128xf32> to vector<7x8x128xf32>
    %1046 = arith.mulf %1041, %1045 : vector<7x8x128xf32>
    %1047 = arith.addf %1040, %1046 : vector<7x8x128xf32>
    %c0_172 = arith.constant 0 : index
    %c7_173 = arith.constant 7 : index
    %c0_174 = arith.constant 0 : index
    %c0_175 = arith.constant 0 : index
    %c0_176 = arith.constant 0 : index
    %1048 = vector.load %arg1[%c0_172, %c7_173, %c0_174, %c0_175, %c0_176] : memref<1x11x11x8x128xf32, #tpu.memory_space<vmem>>, vector<1x1x11x8x128xf32>
    %1049 = vector.shape_cast %1048 : vector<1x1x11x8x128xf32> to vector<11x8x128xf32>
    %1050 = vector.extract_strided_slice %1049 {offsets = [0, 0, 0], sizes = [7, 8, 128], strides = [1, 1, 1]} : vector<11x8x128xf32> to vector<7x8x128xf32>
    %1051 = vector.extract_strided_slice %0 {offsets = [2, 0, 0, 0], sizes = [1, 1, 8, 128], strides = [1, 1, 1, 1]} : vector<5x5x8x128xf32> to vector<1x1x8x128xf32>
    %1052 = vector.shape_cast %1051 : vector<1x1x8x128xf32> to vector<8x128xf32>
    %1053 = vector.shape_cast %1052 : vector<8x128xf32> to vector<1x8x128xf32>
    %1054 = vector.broadcast %1053 : vector<1x8x128xf32> to vector<7x8x128xf32>
    %1055 = arith.mulf %1050, %1054 : vector<7x8x128xf32>
    %1056 = arith.addf %1047, %1055 : vector<7x8x128xf32>
    %1057 = vector.extract_strided_slice %1049 {offsets = [1, 0, 0], sizes = [7, 8, 128], strides = [1, 1, 1]} : vector<11x8x128xf32> to vector<7x8x128xf32>
    %1058 = vector.extract_strided_slice %0 {offsets = [2, 1, 0, 0], sizes = [1, 1, 8, 128], strides = [1, 1, 1, 1]} : vector<5x5x8x128xf32> to vector<1x1x8x128xf32>
    %1059 = vector.shape_cast %1058 : vector<1x1x8x128xf32> to vector<8x128xf32>
    %1060 = vector.shape_cast %1059 : vector<8x128xf32> to vector<1x8x128xf32>
    %1061 = vector.broadcast %1060 : vector<1x8x128xf32> to vector<7x8x128xf32>
    %1062 = arith.mulf %1057, %1061 : vector<7x8x128xf32>
    %1063 = arith.addf %1056, %1062 : vector<7x8x128xf32>
    %1064 = vector.extract_strided_slice %1049 {offsets = [2, 0, 0], sizes = [7, 8, 128], strides = [1, 1, 1]} : vector<11x8x128xf32> to vector<7x8x128xf32>
    %1065 = vector.extract_strided_slice %0 {offsets = [2, 2, 0, 0], sizes = [1, 1, 8, 128], strides = [1, 1, 1, 1]} : vector<5x5x8x128xf32> to vector<1x1x8x128xf32>
    %1066 = vector.shape_cast %1065 : vector<1x1x8x128xf32> to vector<8x128xf32>
    %1067 = vector.shape_cast %1066 : vector<8x128xf32> to vector<1x8x128xf32>
    %1068 = vector.broadcast %1067 : vector<1x8x128xf32> to vector<7x8x128xf32>
    %1069 = arith.mulf %1064, %1068 : vector<7x8x128xf32>
    %1070 = arith.addf %1063, %1069 : vector<7x8x128xf32>
    %1071 = vector.extract_strided_slice %1049 {offsets = [3, 0, 0], sizes = [7, 8, 128], strides = [1, 1, 1]} : vector<11x8x128xf32> to vector<7x8x128xf32>
    %1072 = vector.extract_strided_slice %0 {offsets = [2, 3, 0, 0], sizes = [1, 1, 8, 128], strides = [1, 1, 1, 1]} : vector<5x5x8x128xf32> to vector<1x1x8x128xf32>
    %1073 = vector.shape_cast %1072 : vector<1x1x8x128xf32> to vector<8x128xf32>
    %1074 = vector.shape_cast %1073 : vector<8x128xf32> to vector<1x8x128xf32>
    %1075 = vector.broadcast %1074 : vector<1x8x128xf32> to vector<7x8x128xf32>
    %1076 = arith.mulf %1071, %1075 : vector<7x8x128xf32>
    %1077 = arith.addf %1070, %1076 : vector<7x8x128xf32>
    %1078 = vector.extract_strided_slice %1049 {offsets = [4, 0, 0], sizes = [7, 8, 128], strides = [1, 1, 1]} : vector<11x8x128xf32> to vector<7x8x128xf32>
    %1079 = vector.extract_strided_slice %0 {offsets = [2, 4, 0, 0], sizes = [1, 1, 8, 128], strides = [1, 1, 1, 1]} : vector<5x5x8x128xf32> to vector<1x1x8x128xf32>
    %1080 = vector.shape_cast %1079 : vector<1x1x8x128xf32> to vector<8x128xf32>
    %1081 = vector.shape_cast %1080 : vector<8x128xf32> to vector<1x8x128xf32>
    %1082 = vector.broadcast %1081 : vector<1x8x128xf32> to vector<7x8x128xf32>
    %1083 = arith.mulf %1078, %1082 : vector<7x8x128xf32>
    %1084 = arith.addf %1077, %1083 : vector<7x8x128xf32>
    %c0_177 = arith.constant 0 : index
    %c8_178 = arith.constant 8 : index
    %c0_179 = arith.constant 0 : index
    %c0_180 = arith.constant 0 : index
    %c0_181 = arith.constant 0 : index
    %1085 = vector.load %arg1[%c0_177, %c8_178, %c0_179, %c0_180, %c0_181] : memref<1x11x11x8x128xf32, #tpu.memory_space<vmem>>, vector<1x1x11x8x128xf32>
    %1086 = vector.shape_cast %1085 : vector<1x1x11x8x128xf32> to vector<11x8x128xf32>
    %1087 = vector.extract_strided_slice %1086 {offsets = [0, 0, 0], sizes = [7, 8, 128], strides = [1, 1, 1]} : vector<11x8x128xf32> to vector<7x8x128xf32>
    %1088 = vector.extract_strided_slice %0 {offsets = [3, 0, 0, 0], sizes = [1, 1, 8, 128], strides = [1, 1, 1, 1]} : vector<5x5x8x128xf32> to vector<1x1x8x128xf32>
    %1089 = vector.shape_cast %1088 : vector<1x1x8x128xf32> to vector<8x128xf32>
    %1090 = vector.shape_cast %1089 : vector<8x128xf32> to vector<1x8x128xf32>
    %1091 = vector.broadcast %1090 : vector<1x8x128xf32> to vector<7x8x128xf32>
    %1092 = arith.mulf %1087, %1091 : vector<7x8x128xf32>
    %1093 = arith.addf %1084, %1092 : vector<7x8x128xf32>
    %1094 = vector.extract_strided_slice %1086 {offsets = [1, 0, 0], sizes = [7, 8, 128], strides = [1, 1, 1]} : vector<11x8x128xf32> to vector<7x8x128xf32>
    %1095 = vector.extract_strided_slice %0 {offsets = [3, 1, 0, 0], sizes = [1, 1, 8, 128], strides = [1, 1, 1, 1]} : vector<5x5x8x128xf32> to vector<1x1x8x128xf32>
    %1096 = vector.shape_cast %1095 : vector<1x1x8x128xf32> to vector<8x128xf32>
    %1097 = vector.shape_cast %1096 : vector<8x128xf32> to vector<1x8x128xf32>
    %1098 = vector.broadcast %1097 : vector<1x8x128xf32> to vector<7x8x128xf32>
    %1099 = arith.mulf %1094, %1098 : vector<7x8x128xf32>
    %1100 = arith.addf %1093, %1099 : vector<7x8x128xf32>
    %1101 = vector.extract_strided_slice %1086 {offsets = [2, 0, 0], sizes = [7, 8, 128], strides = [1, 1, 1]} : vector<11x8x128xf32> to vector<7x8x128xf32>
    %1102 = vector.extract_strided_slice %0 {offsets = [3, 2, 0, 0], sizes = [1, 1, 8, 128], strides = [1, 1, 1, 1]} : vector<5x5x8x128xf32> to vector<1x1x8x128xf32>
    %1103 = vector.shape_cast %1102 : vector<1x1x8x128xf32> to vector<8x128xf32>
    %1104 = vector.shape_cast %1103 : vector<8x128xf32> to vector<1x8x128xf32>
    %1105 = vector.broadcast %1104 : vector<1x8x128xf32> to vector<7x8x128xf32>
    %1106 = arith.mulf %1101, %1105 : vector<7x8x128xf32>
    %1107 = arith.addf %1100, %1106 : vector<7x8x128xf32>
    %1108 = vector.extract_strided_slice %1086 {offsets = [3, 0, 0], sizes = [7, 8, 128], strides = [1, 1, 1]} : vector<11x8x128xf32> to vector<7x8x128xf32>
    %1109 = vector.extract_strided_slice %0 {offsets = [3, 3, 0, 0], sizes = [1, 1, 8, 128], strides = [1, 1, 1, 1]} : vector<5x5x8x128xf32> to vector<1x1x8x128xf32>
    %1110 = vector.shape_cast %1109 : vector<1x1x8x128xf32> to vector<8x128xf32>
    %1111 = vector.shape_cast %1110 : vector<8x128xf32> to vector<1x8x128xf32>
    %1112 = vector.broadcast %1111 : vector<1x8x128xf32> to vector<7x8x128xf32>
    %1113 = arith.mulf %1108, %1112 : vector<7x8x128xf32>
    %1114 = arith.addf %1107, %1113 : vector<7x8x128xf32>
    %1115 = vector.extract_strided_slice %1086 {offsets = [4, 0, 0], sizes = [7, 8, 128], strides = [1, 1, 1]} : vector<11x8x128xf32> to vector<7x8x128xf32>
    %1116 = vector.extract_strided_slice %0 {offsets = [3, 4, 0, 0], sizes = [1, 1, 8, 128], strides = [1, 1, 1, 1]} : vector<5x5x8x128xf32> to vector<1x1x8x128xf32>
    %1117 = vector.shape_cast %1116 : vector<1x1x8x128xf32> to vector<8x128xf32>
    %1118 = vector.shape_cast %1117 : vector<8x128xf32> to vector<1x8x128xf32>
    %1119 = vector.broadcast %1118 : vector<1x8x128xf32> to vector<7x8x128xf32>
    %1120 = arith.mulf %1115, %1119 : vector<7x8x128xf32>
    %1121 = arith.addf %1114, %1120 : vector<7x8x128xf32>
    %c0_182 = arith.constant 0 : index
    %c9 = arith.constant 9 : index
    %c0_183 = arith.constant 0 : index
    %c0_184 = arith.constant 0 : index
    %c0_185 = arith.constant 0 : index
    %1122 = vector.load %arg1[%c0_182, %c9, %c0_183, %c0_184, %c0_185] : memref<1x11x11x8x128xf32, #tpu.memory_space<vmem>>, vector<1x1x11x8x128xf32>
    %1123 = vector.shape_cast %1122 : vector<1x1x11x8x128xf32> to vector<11x8x128xf32>
    %1124 = vector.extract_strided_slice %1123 {offsets = [0, 0, 0], sizes = [7, 8, 128], strides = [1, 1, 1]} : vector<11x8x128xf32> to vector<7x8x128xf32>
    %1125 = vector.extract_strided_slice %0 {offsets = [4, 0, 0, 0], sizes = [1, 1, 8, 128], strides = [1, 1, 1, 1]} : vector<5x5x8x128xf32> to vector<1x1x8x128xf32>
    %1126 = vector.shape_cast %1125 : vector<1x1x8x128xf32> to vector<8x128xf32>
    %1127 = vector.shape_cast %1126 : vector<8x128xf32> to vector<1x8x128xf32>
    %1128 = vector.broadcast %1127 : vector<1x8x128xf32> to vector<7x8x128xf32>
    %1129 = arith.mulf %1124, %1128 : vector<7x8x128xf32>
    %1130 = arith.addf %1121, %1129 : vector<7x8x128xf32>
    %1131 = vector.extract_strided_slice %1123 {offsets = [1, 0, 0], sizes = [7, 8, 128], strides = [1, 1, 1]} : vector<11x8x128xf32> to vector<7x8x128xf32>
    %1132 = vector.extract_strided_slice %0 {offsets = [4, 1, 0, 0], sizes = [1, 1, 8, 128], strides = [1, 1, 1, 1]} : vector<5x5x8x128xf32> to vector<1x1x8x128xf32>
    %1133 = vector.shape_cast %1132 : vector<1x1x8x128xf32> to vector<8x128xf32>
    %1134 = vector.shape_cast %1133 : vector<8x128xf32> to vector<1x8x128xf32>
    %1135 = vector.broadcast %1134 : vector<1x8x128xf32> to vector<7x8x128xf32>
    %1136 = arith.mulf %1131, %1135 : vector<7x8x128xf32>
    %1137 = arith.addf %1130, %1136 : vector<7x8x128xf32>
    %1138 = vector.extract_strided_slice %1123 {offsets = [2, 0, 0], sizes = [7, 8, 128], strides = [1, 1, 1]} : vector<11x8x128xf32> to vector<7x8x128xf32>
    %1139 = vector.extract_strided_slice %0 {offsets = [4, 2, 0, 0], sizes = [1, 1, 8, 128], strides = [1, 1, 1, 1]} : vector<5x5x8x128xf32> to vector<1x1x8x128xf32>
    %1140 = vector.shape_cast %1139 : vector<1x1x8x128xf32> to vector<8x128xf32>
    %1141 = vector.shape_cast %1140 : vector<8x128xf32> to vector<1x8x128xf32>
    %1142 = vector.broadcast %1141 : vector<1x8x128xf32> to vector<7x8x128xf32>
    %1143 = arith.mulf %1138, %1142 : vector<7x8x128xf32>
    %1144 = arith.addf %1137, %1143 : vector<7x8x128xf32>
    %1145 = vector.extract_strided_slice %1123 {offsets = [3, 0, 0], sizes = [7, 8, 128], strides = [1, 1, 1]} : vector<11x8x128xf32> to vector<7x8x128xf32>
    %1146 = vector.extract_strided_slice %0 {offsets = [4, 3, 0, 0], sizes = [1, 1, 8, 128], strides = [1, 1, 1, 1]} : vector<5x5x8x128xf32> to vector<1x1x8x128xf32>
    %1147 = vector.shape_cast %1146 : vector<1x1x8x128xf32> to vector<8x128xf32>
    %1148 = vector.shape_cast %1147 : vector<8x128xf32> to vector<1x8x128xf32>
    %1149 = vector.broadcast %1148 : vector<1x8x128xf32> to vector<7x8x128xf32>
    %1150 = arith.mulf %1145, %1149 : vector<7x8x128xf32>
    %1151 = arith.addf %1144, %1150 : vector<7x8x128xf32>
    %1152 = vector.extract_strided_slice %1123 {offsets = [4, 0, 0], sizes = [7, 8, 128], strides = [1, 1, 1]} : vector<11x8x128xf32> to vector<7x8x128xf32>
    %1153 = vector.extract_strided_slice %0 {offsets = [4, 4, 0, 0], sizes = [1, 1, 8, 128], strides = [1, 1, 1, 1]} : vector<5x5x8x128xf32> to vector<1x1x8x128xf32>
    %1154 = vector.shape_cast %1153 : vector<1x1x8x128xf32> to vector<8x128xf32>
    %1155 = vector.shape_cast %1154 : vector<8x128xf32> to vector<1x8x128xf32>
    %1156 = vector.broadcast %1155 : vector<1x8x128xf32> to vector<7x8x128xf32>
    %1157 = arith.mulf %1152, %1156 : vector<7x8x128xf32>
    %1158 = arith.addf %1151, %1157 : vector<7x8x128xf32>
    %c0_186 = arith.constant 0 : index
    %c5_187 = arith.constant 5 : index
    %c0_188 = arith.constant 0 : index
    %c0_189 = arith.constant 0 : index
    %c0_190 = arith.constant 0 : index
    %1159 = vector.load %arg5[%c0_186, %c5_187, %c0_188, %c0_189, %c0_190] : memref<1x7x7x8x128xf32, #tpu.memory_space<vmem>>, vector<1x1x7x8x128xf32>
    %1160 = vector.shape_cast %1159 : vector<1x1x7x8x128xf32> to vector<7x8x128xf32>
    %1161 = vector.shape_cast %1158 : vector<7x8x128xf32> to vector<1x1x7x8x128xf32>
    tpu.vector_store %arg5[%c0_186, %c5_187, %c0_188, %c0_189, %c0_190], %1161 {strides = array<i32>} : memref<1x7x7x8x128xf32, #tpu.memory_space<vmem>>, vector<1x1x7x8x128xf32>,
    %cst_191 = arith.constant dense<0.000000e+00> : vector<8x128xf32>
    %1162 = vector.multi_reduction <add>, %1158, %cst_191 [0] : vector<7x8x128xf32> to vector<8x128xf32>
    %1163 = arith.addf %969, %1162 : vector<8x128xf32>
    %1164 = arith.mulf %1158, %1158 : vector<7x8x128xf32>
    %cst_192 = arith.constant dense<0.000000e+00> : vector<8x128xf32>
    %1165 = vector.multi_reduction <add>, %1164, %cst_192 [0] : vector<7x8x128xf32> to vector<8x128xf32>
    %1166 = arith.addf %972, %1165 : vector<8x128xf32>
    %cst_193 = arith.constant 0.000000e+00 : f32
    %1167 = vector.broadcast %cst_193 : f32 to vector<7x8x128xf32>
    %c0_194 = arith.constant 0 : index
    %c6_195 = arith.constant 6 : index
    %c0_196 = arith.constant 0 : index
    %c0_197 = arith.constant 0 : index
    %c0_198 = arith.constant 0 : index
    %1168 = vector.load %arg1[%c0_194, %c6_195, %c0_196, %c0_197, %c0_198] : memref<1x11x11x8x128xf32, #tpu.memory_space<vmem>>, vector<1x1x11x8x128xf32>
    %1169 = vector.shape_cast %1168 : vector<1x1x11x8x128xf32> to vector<11x8x128xf32>
    %1170 = vector.extract_strided_slice %1169 {offsets = [0, 0, 0], sizes = [7, 8, 128], strides = [1, 1, 1]} : vector<11x8x128xf32> to vector<7x8x128xf32>
    %1171 = vector.extract_strided_slice %0 {offsets = [0, 0, 0, 0], sizes = [1, 1, 8, 128], strides = [1, 1, 1, 1]} : vector<5x5x8x128xf32> to vector<1x1x8x128xf32>
    %1172 = vector.shape_cast %1171 : vector<1x1x8x128xf32> to vector<8x128xf32>
    %1173 = vector.shape_cast %1172 : vector<8x128xf32> to vector<1x8x128xf32>
    %1174 = vector.broadcast %1173 : vector<1x8x128xf32> to vector<7x8x128xf32>
    %1175 = arith.mulf %1170, %1174 : vector<7x8x128xf32>
    %1176 = arith.addf %1167, %1175 : vector<7x8x128xf32>
    %1177 = vector.extract_strided_slice %1169 {offsets = [1, 0, 0], sizes = [7, 8, 128], strides = [1, 1, 1]} : vector<11x8x128xf32> to vector<7x8x128xf32>
    %1178 = vector.extract_strided_slice %0 {offsets = [0, 1, 0, 0], sizes = [1, 1, 8, 128], strides = [1, 1, 1, 1]} : vector<5x5x8x128xf32> to vector<1x1x8x128xf32>
    %1179 = vector.shape_cast %1178 : vector<1x1x8x128xf32> to vector<8x128xf32>
    %1180 = vector.shape_cast %1179 : vector<8x128xf32> to vector<1x8x128xf32>
    %1181 = vector.broadcast %1180 : vector<1x8x128xf32> to vector<7x8x128xf32>
    %1182 = arith.mulf %1177, %1181 : vector<7x8x128xf32>
    %1183 = arith.addf %1176, %1182 : vector<7x8x128xf32>
    %1184 = vector.extract_strided_slice %1169 {offsets = [2, 0, 0], sizes = [7, 8, 128], strides = [1, 1, 1]} : vector<11x8x128xf32> to vector<7x8x128xf32>
    %1185 = vector.extract_strided_slice %0 {offsets = [0, 2, 0, 0], sizes = [1, 1, 8, 128], strides = [1, 1, 1, 1]} : vector<5x5x8x128xf32> to vector<1x1x8x128xf32>
    %1186 = vector.shape_cast %1185 : vector<1x1x8x128xf32> to vector<8x128xf32>
    %1187 = vector.shape_cast %1186 : vector<8x128xf32> to vector<1x8x128xf32>
    %1188 = vector.broadcast %1187 : vector<1x8x128xf32> to vector<7x8x128xf32>
    %1189 = arith.mulf %1184, %1188 : vector<7x8x128xf32>
    %1190 = arith.addf %1183, %1189 : vector<7x8x128xf32>
    %1191 = vector.extract_strided_slice %1169 {offsets = [3, 0, 0], sizes = [7, 8, 128], strides = [1, 1, 1]} : vector<11x8x128xf32> to vector<7x8x128xf32>
    %1192 = vector.extract_strided_slice %0 {offsets = [0, 3, 0, 0], sizes = [1, 1, 8, 128], strides = [1, 1, 1, 1]} : vector<5x5x8x128xf32> to vector<1x1x8x128xf32>
    %1193 = vector.shape_cast %1192 : vector<1x1x8x128xf32> to vector<8x128xf32>
    %1194 = vector.shape_cast %1193 : vector<8x128xf32> to vector<1x8x128xf32>
    %1195 = vector.broadcast %1194 : vector<1x8x128xf32> to vector<7x8x128xf32>
    %1196 = arith.mulf %1191, %1195 : vector<7x8x128xf32>
    %1197 = arith.addf %1190, %1196 : vector<7x8x128xf32>
    %1198 = vector.extract_strided_slice %1169 {offsets = [4, 0, 0], sizes = [7, 8, 128], strides = [1, 1, 1]} : vector<11x8x128xf32> to vector<7x8x128xf32>
    %1199 = vector.extract_strided_slice %0 {offsets = [0, 4, 0, 0], sizes = [1, 1, 8, 128], strides = [1, 1, 1, 1]} : vector<5x5x8x128xf32> to vector<1x1x8x128xf32>
    %1200 = vector.shape_cast %1199 : vector<1x1x8x128xf32> to vector<8x128xf32>
    %1201 = vector.shape_cast %1200 : vector<8x128xf32> to vector<1x8x128xf32>
    %1202 = vector.broadcast %1201 : vector<1x8x128xf32> to vector<7x8x128xf32>
    %1203 = arith.mulf %1198, %1202 : vector<7x8x128xf32>
    %1204 = arith.addf %1197, %1203 : vector<7x8x128xf32>
    %c0_199 = arith.constant 0 : index
    %c7_200 = arith.constant 7 : index
    %c0_201 = arith.constant 0 : index
    %c0_202 = arith.constant 0 : index
    %c0_203 = arith.constant 0 : index
    %1205 = vector.load %arg1[%c0_199, %c7_200, %c0_201, %c0_202, %c0_203] : memref<1x11x11x8x128xf32, #tpu.memory_space<vmem>>, vector<1x1x11x8x128xf32>
    %1206 = vector.shape_cast %1205 : vector<1x1x11x8x128xf32> to vector<11x8x128xf32>
    %1207 = vector.extract_strided_slice %1206 {offsets = [0, 0, 0], sizes = [7, 8, 128], strides = [1, 1, 1]} : vector<11x8x128xf32> to vector<7x8x128xf32>
    %1208 = vector.extract_strided_slice %0 {offsets = [1, 0, 0, 0], sizes = [1, 1, 8, 128], strides = [1, 1, 1, 1]} : vector<5x5x8x128xf32> to vector<1x1x8x128xf32>
    %1209 = vector.shape_cast %1208 : vector<1x1x8x128xf32> to vector<8x128xf32>
    %1210 = vector.shape_cast %1209 : vector<8x128xf32> to vector<1x8x128xf32>
    %1211 = vector.broadcast %1210 : vector<1x8x128xf32> to vector<7x8x128xf32>
    %1212 = arith.mulf %1207, %1211 : vector<7x8x128xf32>
    %1213 = arith.addf %1204, %1212 : vector<7x8x128xf32>
    %1214 = vector.extract_strided_slice %1206 {offsets = [1, 0, 0], sizes = [7, 8, 128], strides = [1, 1, 1]} : vector<11x8x128xf32> to vector<7x8x128xf32>
    %1215 = vector.extract_strided_slice %0 {offsets = [1, 1, 0, 0], sizes = [1, 1, 8, 128], strides = [1, 1, 1, 1]} : vector<5x5x8x128xf32> to vector<1x1x8x128xf32>
    %1216 = vector.shape_cast %1215 : vector<1x1x8x128xf32> to vector<8x128xf32>
    %1217 = vector.shape_cast %1216 : vector<8x128xf32> to vector<1x8x128xf32>
    %1218 = vector.broadcast %1217 : vector<1x8x128xf32> to vector<7x8x128xf32>
    %1219 = arith.mulf %1214, %1218 : vector<7x8x128xf32>
    %1220 = arith.addf %1213, %1219 : vector<7x8x128xf32>
    %1221 = vector.extract_strided_slice %1206 {offsets = [2, 0, 0], sizes = [7, 8, 128], strides = [1, 1, 1]} : vector<11x8x128xf32> to vector<7x8x128xf32>
    %1222 = vector.extract_strided_slice %0 {offsets = [1, 2, 0, 0], sizes = [1, 1, 8, 128], strides = [1, 1, 1, 1]} : vector<5x5x8x128xf32> to vector<1x1x8x128xf32>
    %1223 = vector.shape_cast %1222 : vector<1x1x8x128xf32> to vector<8x128xf32>
    %1224 = vector.shape_cast %1223 : vector<8x128xf32> to vector<1x8x128xf32>
    %1225 = vector.broadcast %1224 : vector<1x8x128xf32> to vector<7x8x128xf32>
    %1226 = arith.mulf %1221, %1225 : vector<7x8x128xf32>
    %1227 = arith.addf %1220, %1226 : vector<7x8x128xf32>
    %1228 = vector.extract_strided_slice %1206 {offsets = [3, 0, 0], sizes = [7, 8, 128], strides = [1, 1, 1]} : vector<11x8x128xf32> to vector<7x8x128xf32>
    %1229 = vector.extract_strided_slice %0 {offsets = [1, 3, 0, 0], sizes = [1, 1, 8, 128], strides = [1, 1, 1, 1]} : vector<5x5x8x128xf32> to vector<1x1x8x128xf32>
    %1230 = vector.shape_cast %1229 : vector<1x1x8x128xf32> to vector<8x128xf32>
    %1231 = vector.shape_cast %1230 : vector<8x128xf32> to vector<1x8x128xf32>
    %1232 = vector.broadcast %1231 : vector<1x8x128xf32> to vector<7x8x128xf32>
    %1233 = arith.mulf %1228, %1232 : vector<7x8x128xf32>
    %1234 = arith.addf %1227, %1233 : vector<7x8x128xf32>
    %1235 = vector.extract_strided_slice %1206 {offsets = [4, 0, 0], sizes = [7, 8, 128], strides = [1, 1, 1]} : vector<11x8x128xf32> to vector<7x8x128xf32>
    %1236 = vector.extract_strided_slice %0 {offsets = [1, 4, 0, 0], sizes = [1, 1, 8, 128], strides = [1, 1, 1, 1]} : vector<5x5x8x128xf32> to vector<1x1x8x128xf32>
    %1237 = vector.shape_cast %1236 : vector<1x1x8x128xf32> to vector<8x128xf32>
    %1238 = vector.shape_cast %1237 : vector<8x128xf32> to vector<1x8x128xf32>
    %1239 = vector.broadcast %1238 : vector<1x8x128xf32> to vector<7x8x128xf32>
    %1240 = arith.mulf %1235, %1239 : vector<7x8x128xf32>
    %1241 = arith.addf %1234, %1240 : vector<7x8x128xf32>
    %c0_204 = arith.constant 0 : index
    %c8_205 = arith.constant 8 : index
    %c0_206 = arith.constant 0 : index
    %c0_207 = arith.constant 0 : index
    %c0_208 = arith.constant 0 : index
    %1242 = vector.load %arg1[%c0_204, %c8_205, %c0_206, %c0_207, %c0_208] : memref<1x11x11x8x128xf32, #tpu.memory_space<vmem>>, vector<1x1x11x8x128xf32>
    %1243 = vector.shape_cast %1242 : vector<1x1x11x8x128xf32> to vector<11x8x128xf32>
    %1244 = vector.extract_strided_slice %1243 {offsets = [0, 0, 0], sizes = [7, 8, 128], strides = [1, 1, 1]} : vector<11x8x128xf32> to vector<7x8x128xf32>
    %1245 = vector.extract_strided_slice %0 {offsets = [2, 0, 0, 0], sizes = [1, 1, 8, 128], strides = [1, 1, 1, 1]} : vector<5x5x8x128xf32> to vector<1x1x8x128xf32>
    %1246 = vector.shape_cast %1245 : vector<1x1x8x128xf32> to vector<8x128xf32>
    %1247 = vector.shape_cast %1246 : vector<8x128xf32> to vector<1x8x128xf32>
    %1248 = vector.broadcast %1247 : vector<1x8x128xf32> to vector<7x8x128xf32>
    %1249 = arith.mulf %1244, %1248 : vector<7x8x128xf32>
    %1250 = arith.addf %1241, %1249 : vector<7x8x128xf32>
    %1251 = vector.extract_strided_slice %1243 {offsets = [1, 0, 0], sizes = [7, 8, 128], strides = [1, 1, 1]} : vector<11x8x128xf32> to vector<7x8x128xf32>
    %1252 = vector.extract_strided_slice %0 {offsets = [2, 1, 0, 0], sizes = [1, 1, 8, 128], strides = [1, 1, 1, 1]} : vector<5x5x8x128xf32> to vector<1x1x8x128xf32>
    %1253 = vector.shape_cast %1252 : vector<1x1x8x128xf32> to vector<8x128xf32>
    %1254 = vector.shape_cast %1253 : vector<8x128xf32> to vector<1x8x128xf32>
    %1255 = vector.broadcast %1254 : vector<1x8x128xf32> to vector<7x8x128xf32>
    %1256 = arith.mulf %1251, %1255 : vector<7x8x128xf32>
    %1257 = arith.addf %1250, %1256 : vector<7x8x128xf32>
    %1258 = vector.extract_strided_slice %1243 {offsets = [2, 0, 0], sizes = [7, 8, 128], strides = [1, 1, 1]} : vector<11x8x128xf32> to vector<7x8x128xf32>
    %1259 = vector.extract_strided_slice %0 {offsets = [2, 2, 0, 0], sizes = [1, 1, 8, 128], strides = [1, 1, 1, 1]} : vector<5x5x8x128xf32> to vector<1x1x8x128xf32>
    %1260 = vector.shape_cast %1259 : vector<1x1x8x128xf32> to vector<8x128xf32>
    %1261 = vector.shape_cast %1260 : vector<8x128xf32> to vector<1x8x128xf32>
    %1262 = vector.broadcast %1261 : vector<1x8x128xf32> to vector<7x8x128xf32>
    %1263 = arith.mulf %1258, %1262 : vector<7x8x128xf32>
    %1264 = arith.addf %1257, %1263 : vector<7x8x128xf32>
    %1265 = vector.extract_strided_slice %1243 {offsets = [3, 0, 0], sizes = [7, 8, 128], strides = [1, 1, 1]} : vector<11x8x128xf32> to vector<7x8x128xf32>
    %1266 = vector.extract_strided_slice %0 {offsets = [2, 3, 0, 0], sizes = [1, 1, 8, 128], strides = [1, 1, 1, 1]} : vector<5x5x8x128xf32> to vector<1x1x8x128xf32>
    %1267 = vector.shape_cast %1266 : vector<1x1x8x128xf32> to vector<8x128xf32>
    %1268 = vector.shape_cast %1267 : vector<8x128xf32> to vector<1x8x128xf32>
    %1269 = vector.broadcast %1268 : vector<1x8x128xf32> to vector<7x8x128xf32>
    %1270 = arith.mulf %1265, %1269 : vector<7x8x128xf32>
    %1271 = arith.addf %1264, %1270 : vector<7x8x128xf32>
    %1272 = vector.extract_strided_slice %1243 {offsets = [4, 0, 0], sizes = [7, 8, 128], strides = [1, 1, 1]} : vector<11x8x128xf32> to vector<7x8x128xf32>
    %1273 = vector.extract_strided_slice %0 {offsets = [2, 4, 0, 0], sizes = [1, 1, 8, 128], strides = [1, 1, 1, 1]} : vector<5x5x8x128xf32> to vector<1x1x8x128xf32>
    %1274 = vector.shape_cast %1273 : vector<1x1x8x128xf32> to vector<8x128xf32>
    %1275 = vector.shape_cast %1274 : vector<8x128xf32> to vector<1x8x128xf32>
    %1276 = vector.broadcast %1275 : vector<1x8x128xf32> to vector<7x8x128xf32>
    %1277 = arith.mulf %1272, %1276 : vector<7x8x128xf32>
    %1278 = arith.addf %1271, %1277 : vector<7x8x128xf32>
    %c0_209 = arith.constant 0 : index
    %c9_210 = arith.constant 9 : index
    %c0_211 = arith.constant 0 : index
    %c0_212 = arith.constant 0 : index
    %c0_213 = arith.constant 0 : index
    %1279 = vector.load %arg1[%c0_209, %c9_210, %c0_211, %c0_212, %c0_213] : memref<1x11x11x8x128xf32, #tpu.memory_space<vmem>>, vector<1x1x11x8x128xf32>
    %1280 = vector.shape_cast %1279 : vector<1x1x11x8x128xf32> to vector<11x8x128xf32>
    %1281 = vector.extract_strided_slice %1280 {offsets = [0, 0, 0], sizes = [7, 8, 128], strides = [1, 1, 1]} : vector<11x8x128xf32> to vector<7x8x128xf32>
    %1282 = vector.extract_strided_slice %0 {offsets = [3, 0, 0, 0], sizes = [1, 1, 8, 128], strides = [1, 1, 1, 1]} : vector<5x5x8x128xf32> to vector<1x1x8x128xf32>
    %1283 = vector.shape_cast %1282 : vector<1x1x8x128xf32> to vector<8x128xf32>
    %1284 = vector.shape_cast %1283 : vector<8x128xf32> to vector<1x8x128xf32>
    %1285 = vector.broadcast %1284 : vector<1x8x128xf32> to vector<7x8x128xf32>
    %1286 = arith.mulf %1281, %1285 : vector<7x8x128xf32>
    %1287 = arith.addf %1278, %1286 : vector<7x8x128xf32>
    %1288 = vector.extract_strided_slice %1280 {offsets = [1, 0, 0], sizes = [7, 8, 128], strides = [1, 1, 1]} : vector<11x8x128xf32> to vector<7x8x128xf32>
    %1289 = vector.extract_strided_slice %0 {offsets = [3, 1, 0, 0], sizes = [1, 1, 8, 128], strides = [1, 1, 1, 1]} : vector<5x5x8x128xf32> to vector<1x1x8x128xf32>
    %1290 = vector.shape_cast %1289 : vector<1x1x8x128xf32> to vector<8x128xf32>
    %1291 = vector.shape_cast %1290 : vector<8x128xf32> to vector<1x8x128xf32>
    %1292 = vector.broadcast %1291 : vector<1x8x128xf32> to vector<7x8x128xf32>
    %1293 = arith.mulf %1288, %1292 : vector<7x8x128xf32>
    %1294 = arith.addf %1287, %1293 : vector<7x8x128xf32>
    %1295 = vector.extract_strided_slice %1280 {offsets = [2, 0, 0], sizes = [7, 8, 128], strides = [1, 1, 1]} : vector<11x8x128xf32> to vector<7x8x128xf32>
    %1296 = vector.extract_strided_slice %0 {offsets = [3, 2, 0, 0], sizes = [1, 1, 8, 128], strides = [1, 1, 1, 1]} : vector<5x5x8x128xf32> to vector<1x1x8x128xf32>
    %1297 = vector.shape_cast %1296 : vector<1x1x8x128xf32> to vector<8x128xf32>
    %1298 = vector.shape_cast %1297 : vector<8x128xf32> to vector<1x8x128xf32>
    %1299 = vector.broadcast %1298 : vector<1x8x128xf32> to vector<7x8x128xf32>
    %1300 = arith.mulf %1295, %1299 : vector<7x8x128xf32>
    %1301 = arith.addf %1294, %1300 : vector<7x8x128xf32>
    %1302 = vector.extract_strided_slice %1280 {offsets = [3, 0, 0], sizes = [7, 8, 128], strides = [1, 1, 1]} : vector<11x8x128xf32> to vector<7x8x128xf32>
    %1303 = vector.extract_strided_slice %0 {offsets = [3, 3, 0, 0], sizes = [1, 1, 8, 128], strides = [1, 1, 1, 1]} : vector<5x5x8x128xf32> to vector<1x1x8x128xf32>
    %1304 = vector.shape_cast %1303 : vector<1x1x8x128xf32> to vector<8x128xf32>
    %1305 = vector.shape_cast %1304 : vector<8x128xf32> to vector<1x8x128xf32>
    %1306 = vector.broadcast %1305 : vector<1x8x128xf32> to vector<7x8x128xf32>
    %1307 = arith.mulf %1302, %1306 : vector<7x8x128xf32>
    %1308 = arith.addf %1301, %1307 : vector<7x8x128xf32>
    %1309 = vector.extract_strided_slice %1280 {offsets = [4, 0, 0], sizes = [7, 8, 128], strides = [1, 1, 1]} : vector<11x8x128xf32> to vector<7x8x128xf32>
    %1310 = vector.extract_strided_slice %0 {offsets = [3, 4, 0, 0], sizes = [1, 1, 8, 128], strides = [1, 1, 1, 1]} : vector<5x5x8x128xf32> to vector<1x1x8x128xf32>
    %1311 = vector.shape_cast %1310 : vector<1x1x8x128xf32> to vector<8x128xf32>
    %1312 = vector.shape_cast %1311 : vector<8x128xf32> to vector<1x8x128xf32>
    %1313 = vector.broadcast %1312 : vector<1x8x128xf32> to vector<7x8x128xf32>
    %1314 = arith.mulf %1309, %1313 : vector<7x8x128xf32>
    %1315 = arith.addf %1308, %1314 : vector<7x8x128xf32>
    %c0_214 = arith.constant 0 : index
    %c10 = arith.constant 10 : index
    %c0_215 = arith.constant 0 : index
    %c0_216 = arith.constant 0 : index
    %c0_217 = arith.constant 0 : index
    %1316 = vector.load %arg1[%c0_214, %c10, %c0_215, %c0_216, %c0_217] : memref<1x11x11x8x128xf32, #tpu.memory_space<vmem>>, vector<1x1x11x8x128xf32>
    %1317 = vector.shape_cast %1316 : vector<1x1x11x8x128xf32> to vector<11x8x128xf32>
    %1318 = vector.extract_strided_slice %1317 {offsets = [0, 0, 0], sizes = [7, 8, 128], strides = [1, 1, 1]} : vector<11x8x128xf32> to vector<7x8x128xf32>
    %1319 = vector.extract_strided_slice %0 {offsets = [4, 0, 0, 0], sizes = [1, 1, 8, 128], strides = [1, 1, 1, 1]} : vector<5x5x8x128xf32> to vector<1x1x8x128xf32>
    %1320 = vector.shape_cast %1319 : vector<1x1x8x128xf32> to vector<8x128xf32>
    %1321 = vector.shape_cast %1320 : vector<8x128xf32> to vector<1x8x128xf32>
    %1322 = vector.broadcast %1321 : vector<1x8x128xf32> to vector<7x8x128xf32>
    %1323 = arith.mulf %1318, %1322 : vector<7x8x128xf32>
    %1324 = arith.addf %1315, %1323 : vector<7x8x128xf32>
    %1325 = vector.extract_strided_slice %1317 {offsets = [1, 0, 0], sizes = [7, 8, 128], strides = [1, 1, 1]} : vector<11x8x128xf32> to vector<7x8x128xf32>
    %1326 = vector.extract_strided_slice %0 {offsets = [4, 1, 0, 0], sizes = [1, 1, 8, 128], strides = [1, 1, 1, 1]} : vector<5x5x8x128xf32> to vector<1x1x8x128xf32>
    %1327 = vector.shape_cast %1326 : vector<1x1x8x128xf32> to vector<8x128xf32>
    %1328 = vector.shape_cast %1327 : vector<8x128xf32> to vector<1x8x128xf32>
    %1329 = vector.broadcast %1328 : vector<1x8x128xf32> to vector<7x8x128xf32>
    %1330 = arith.mulf %1325, %1329 : vector<7x8x128xf32>
    %1331 = arith.addf %1324, %1330 : vector<7x8x128xf32>
    %1332 = vector.extract_strided_slice %1317 {offsets = [2, 0, 0], sizes = [7, 8, 128], strides = [1, 1, 1]} : vector<11x8x128xf32> to vector<7x8x128xf32>
    %1333 = vector.extract_strided_slice %0 {offsets = [4, 2, 0, 0], sizes = [1, 1, 8, 128], strides = [1, 1, 1, 1]} : vector<5x5x8x128xf32> to vector<1x1x8x128xf32>
    %1334 = vector.shape_cast %1333 : vector<1x1x8x128xf32> to vector<8x128xf32>
    %1335 = vector.shape_cast %1334 : vector<8x128xf32> to vector<1x8x128xf32>
    %1336 = vector.broadcast %1335 : vector<1x8x128xf32> to vector<7x8x128xf32>
    %1337 = arith.mulf %1332, %1336 : vector<7x8x128xf32>
    %1338 = arith.addf %1331, %1337 : vector<7x8x128xf32>
    %1339 = vector.extract_strided_slice %1317 {offsets = [3, 0, 0], sizes = [7, 8, 128], strides = [1, 1, 1]} : vector<11x8x128xf32> to vector<7x8x128xf32>
    %1340 = vector.extract_strided_slice %0 {offsets = [4, 3, 0, 0], sizes = [1, 1, 8, 128], strides = [1, 1, 1, 1]} : vector<5x5x8x128xf32> to vector<1x1x8x128xf32>
    %1341 = vector.shape_cast %1340 : vector<1x1x8x128xf32> to vector<8x128xf32>
    %1342 = vector.shape_cast %1341 : vector<8x128xf32> to vector<1x8x128xf32>
    %1343 = vector.broadcast %1342 : vector<1x8x128xf32> to vector<7x8x128xf32>
    %1344 = arith.mulf %1339, %1343 : vector<7x8x128xf32>
    %1345 = arith.addf %1338, %1344 : vector<7x8x128xf32>
    %1346 = vector.extract_strided_slice %1317 {offsets = [4, 0, 0], sizes = [7, 8, 128], strides = [1, 1, 1]} : vector<11x8x128xf32> to vector<7x8x128xf32>
    %1347 = vector.extract_strided_slice %0 {offsets = [4, 4, 0, 0], sizes = [1, 1, 8, 128], strides = [1, 1, 1, 1]} : vector<5x5x8x128xf32> to vector<1x1x8x128xf32>
    %1348 = vector.shape_cast %1347 : vector<1x1x8x128xf32> to vector<8x128xf32>
    %1349 = vector.shape_cast %1348 : vector<8x128xf32> to vector<1x8x128xf32>
    %1350 = vector.broadcast %1349 : vector<1x8x128xf32> to vector<7x8x128xf32>
    %1351 = arith.mulf %1346, %1350 : vector<7x8x128xf32>
    %1352 = arith.addf %1345, %1351 : vector<7x8x128xf32>
    %c0_218 = arith.constant 0 : index
    %c6_219 = arith.constant 6 : index
    %c0_220 = arith.constant 0 : index
    %c0_221 = arith.constant 0 : index
    %c0_222 = arith.constant 0 : index
    %1353 = vector.load %arg5[%c0_218, %c6_219, %c0_220, %c0_221, %c0_222] : memref<1x7x7x8x128xf32, #tpu.memory_space<vmem>>, vector<1x1x7x8x128xf32>
    %1354 = vector.shape_cast %1353 : vector<1x1x7x8x128xf32> to vector<7x8x128xf32>
    %1355 = vector.shape_cast %1352 : vector<7x8x128xf32> to vector<1x1x7x8x128xf32>
    tpu.vector_store %arg5[%c0_218, %c6_219, %c0_220, %c0_221, %c0_222], %1355 {strides = array<i32>} : memref<1x7x7x8x128xf32, #tpu.memory_space<vmem>>, vector<1x1x7x8x128xf32>,
    %cst_223 = arith.constant dense<0.000000e+00> : vector<8x128xf32>
    %1356 = vector.multi_reduction <add>, %1352, %cst_223 [0] : vector<7x8x128xf32> to vector<8x128xf32>
    %1357 = arith.addf %1163, %1356 : vector<8x128xf32>
    %1358 = arith.mulf %1352, %1352 : vector<7x8x128xf32>
    %cst_224 = arith.constant dense<0.000000e+00> : vector<8x128xf32>
    %1359 = vector.multi_reduction <add>, %1358, %cst_224 [0] : vector<7x8x128xf32> to vector<8x128xf32>
    %1360 = arith.addf %1166, %1359 : vector<8x128xf32>
    %cst_225 = arith.constant 0.0204081628 : f32
    %1361 = vector.broadcast %cst_225 : f32 to vector<8x128xf32>
    %1362 = arith.mulf %1357, %1361 : vector<8x128xf32>
    %cst_226 = arith.constant 0.0204081628 : f32
    %1363 = vector.broadcast %cst_226 : f32 to vector<8x128xf32>
    %1364 = arith.mulf %1360, %1363 : vector<8x128xf32>
    %1365 = arith.mulf %1362, %1362 : vector<8x128xf32>
    %1366 = arith.subf %1364, %1365 : vector<8x128xf32>
    %cst_227 = arith.constant 0.000000e+00 : f32
    %1367 = vector.broadcast %cst_227 : f32 to vector<8x128xf32>
    %1368 = arith.maximumf %1366, %1367 : vector<8x128xf32>
    %cst_228 = arith.constant 1.000000e-03 : f32
    %1369 = vector.broadcast %cst_228 : f32 to vector<8x128xf32>
    %1370 = arith.addf %1368, %1369 : vector<8x128xf32>
    %1371 = math.rsqrt %1370 : vector<8x128xf32>
    %c0_229 = arith.constant 0 : index
    %c0_230 = arith.constant 0 : index
    %1372 = vector.load %arg3[%c0_229, %c0_230] : memref<8x128xf32, #tpu.memory_space<vmem>>, vector<8x128xf32>
    %1373 = arith.mulf %1371, %1372 : vector<8x128xf32>
    %c0_231 = arith.constant 0 : index
    %c0_232 = arith.constant 0 : index
    %1374 = vector.load %arg4[%c0_231, %c0_232] : memref<8x128xf32, #tpu.memory_space<vmem>>, vector<8x128xf32>
    %1375 = arith.mulf %1362, %1373 : vector<8x128xf32>
    %1376 = arith.subf %1374, %1375 : vector<8x128xf32>
    %c0_233 = arith.constant 0 : index
    %c0_234 = arith.constant 0 : index
    %c0_235 = arith.constant 0 : index
    %c0_236 = arith.constant 0 : index
    %c0_237 = arith.constant 0 : index
    %1377 = vector.load %arg5[%c0_233, %c0_234, %c0_235, %c0_236, %c0_237] : memref<1x7x7x8x128xf32, #tpu.memory_space<vmem>>, vector<1x1x7x8x128xf32>
    %1378 = vector.shape_cast %1377 : vector<1x1x7x8x128xf32> to vector<7x8x128xf32>
    %1379 = vector.shape_cast %1373 : vector<8x128xf32> to vector<1x8x128xf32>
    %1380 = vector.broadcast %1379 : vector<1x8x128xf32> to vector<7x8x128xf32>
    %1381 = arith.mulf %1378, %1380 : vector<7x8x128xf32>
    %1382 = vector.shape_cast %1376 : vector<8x128xf32> to vector<1x8x128xf32>
    %1383 = vector.broadcast %1382 : vector<1x8x128xf32> to vector<7x8x128xf32>
    %1384 = arith.addf %1381, %1383 : vector<7x8x128xf32>
    %c0_238 = arith.constant 0 : index
    %c0_239 = arith.constant 0 : index
    %c0_240 = arith.constant 0 : index
    %c0_241 = arith.constant 0 : index
    %c0_242 = arith.constant 0 : index
    %1385 = vector.load %arg5[%c0_238, %c0_239, %c0_240, %c0_241, %c0_242] : memref<1x7x7x8x128xf32, #tpu.memory_space<vmem>>, vector<1x1x7x8x128xf32>
    %1386 = vector.shape_cast %1385 : vector<1x1x7x8x128xf32> to vector<7x8x128xf32>
    %1387 = vector.shape_cast %1384 : vector<7x8x128xf32> to vector<1x1x7x8x128xf32>
    tpu.vector_store %arg5[%c0_238, %c0_239, %c0_240, %c0_241, %c0_242], %1387 {strides = array<i32>} : memref<1x7x7x8x128xf32, #tpu.memory_space<vmem>>, vector<1x1x7x8x128xf32>,
    %c0_243 = arith.constant 0 : index
    %c1_244 = arith.constant 1 : index
    %c0_245 = arith.constant 0 : index
    %c0_246 = arith.constant 0 : index
    %c0_247 = arith.constant 0 : index
    %1388 = vector.load %arg5[%c0_243, %c1_244, %c0_245, %c0_246, %c0_247] : memref<1x7x7x8x128xf32, #tpu.memory_space<vmem>>, vector<1x1x7x8x128xf32>
    %1389 = vector.shape_cast %1388 : vector<1x1x7x8x128xf32> to vector<7x8x128xf32>
    %1390 = vector.shape_cast %1373 : vector<8x128xf32> to vector<1x8x128xf32>
    %1391 = vector.broadcast %1390 : vector<1x8x128xf32> to vector<7x8x128xf32>
    %1392 = arith.mulf %1389, %1391 : vector<7x8x128xf32>
    %1393 = vector.shape_cast %1376 : vector<8x128xf32> to vector<1x8x128xf32>
    %1394 = vector.broadcast %1393 : vector<1x8x128xf32> to vector<7x8x128xf32>
    %1395 = arith.addf %1392, %1394 : vector<7x8x128xf32>
    %c0_248 = arith.constant 0 : index
    %c1_249 = arith.constant 1 : index
    %c0_250 = arith.constant 0 : index
    %c0_251 = arith.constant 0 : index
    %c0_252 = arith.constant 0 : index
    %1396 = vector.load %arg5[%c0_248, %c1_249, %c0_250, %c0_251, %c0_252] : memref<1x7x7x8x128xf32, #tpu.memory_space<vmem>>, vector<1x1x7x8x128xf32>
    %1397 = vector.shape_cast %1396 : vector<1x1x7x8x128xf32> to vector<7x8x128xf32>
    %1398 = vector.shape_cast %1395 : vector<7x8x128xf32> to vector<1x1x7x8x128xf32>
    tpu.vector_store %arg5[%c0_248, %c1_249, %c0_250, %c0_251, %c0_252], %1398 {strides = array<i32>} : memref<1x7x7x8x128xf32, #tpu.memory_space<vmem>>, vector<1x1x7x8x128xf32>,
    %c0_253 = arith.constant 0 : index
    %c2_254 = arith.constant 2 : index
    %c0_255 = arith.constant 0 : index
    %c0_256 = arith.constant 0 : index
    %c0_257 = arith.constant 0 : index
    %1399 = vector.load %arg5[%c0_253, %c2_254, %c0_255, %c0_256, %c0_257] : memref<1x7x7x8x128xf32, #tpu.memory_space<vmem>>, vector<1x1x7x8x128xf32>
    %1400 = vector.shape_cast %1399 : vector<1x1x7x8x128xf32> to vector<7x8x128xf32>
    %1401 = vector.shape_cast %1373 : vector<8x128xf32> to vector<1x8x128xf32>
    %1402 = vector.broadcast %1401 : vector<1x8x128xf32> to vector<7x8x128xf32>
    %1403 = arith.mulf %1400, %1402 : vector<7x8x128xf32>
    %1404 = vector.shape_cast %1376 : vector<8x128xf32> to vector<1x8x128xf32>
    %1405 = vector.broadcast %1404 : vector<1x8x128xf32> to vector<7x8x128xf32>
    %1406 = arith.addf %1403, %1405 : vector<7x8x128xf32>
    %c0_258 = arith.constant 0 : index
    %c2_259 = arith.constant 2 : index
    %c0_260 = arith.constant 0 : index
    %c0_261 = arith.constant 0 : index
    %c0_262 = arith.constant 0 : index
    %1407 = vector.load %arg5[%c0_258, %c2_259, %c0_260, %c0_261, %c0_262] : memref<1x7x7x8x128xf32, #tpu.memory_space<vmem>>, vector<1x1x7x8x128xf32>
    %1408 = vector.shape_cast %1407 : vector<1x1x7x8x128xf32> to vector<7x8x128xf32>
    %1409 = vector.shape_cast %1406 : vector<7x8x128xf32> to vector<1x1x7x8x128xf32>
    tpu.vector_store %arg5[%c0_258, %c2_259, %c0_260, %c0_261, %c0_262], %1409 {strides = array<i32>} : memref<1x7x7x8x128xf32, #tpu.memory_space<vmem>>, vector<1x1x7x8x128xf32>,
    %c0_263 = arith.constant 0 : index
    %c3_264 = arith.constant 3 : index
    %c0_265 = arith.constant 0 : index
    %c0_266 = arith.constant 0 : index
    %c0_267 = arith.constant 0 : index
    %1410 = vector.load %arg5[%c0_263, %c3_264, %c0_265, %c0_266, %c0_267] : memref<1x7x7x8x128xf32, #tpu.memory_space<vmem>>, vector<1x1x7x8x128xf32>
    %1411 = vector.shape_cast %1410 : vector<1x1x7x8x128xf32> to vector<7x8x128xf32>
    %1412 = vector.shape_cast %1373 : vector<8x128xf32> to vector<1x8x128xf32>
    %1413 = vector.broadcast %1412 : vector<1x8x128xf32> to vector<7x8x128xf32>
    %1414 = arith.mulf %1411, %1413 : vector<7x8x128xf32>
    %1415 = vector.shape_cast %1376 : vector<8x128xf32> to vector<1x8x128xf32>
    %1416 = vector.broadcast %1415 : vector<1x8x128xf32> to vector<7x8x128xf32>
    %1417 = arith.addf %1414, %1416 : vector<7x8x128xf32>
    %c0_268 = arith.constant 0 : index
    %c3_269 = arith.constant 3 : index
    %c0_270 = arith.constant 0 : index
    %c0_271 = arith.constant 0 : index
    %c0_272 = arith.constant 0 : index
    %1418 = vector.load %arg5[%c0_268, %c3_269, %c0_270, %c0_271, %c0_272] : memref<1x7x7x8x128xf32, #tpu.memory_space<vmem>>, vector<1x1x7x8x128xf32>
    %1419 = vector.shape_cast %1418 : vector<1x1x7x8x128xf32> to vector<7x8x128xf32>
    %1420 = vector.shape_cast %1417 : vector<7x8x128xf32> to vector<1x1x7x8x128xf32>
    tpu.vector_store %arg5[%c0_268, %c3_269, %c0_270, %c0_271, %c0_272], %1420 {strides = array<i32>} : memref<1x7x7x8x128xf32, #tpu.memory_space<vmem>>, vector<1x1x7x8x128xf32>,
    %c0_273 = arith.constant 0 : index
    %c4_274 = arith.constant 4 : index
    %c0_275 = arith.constant 0 : index
    %c0_276 = arith.constant 0 : index
    %c0_277 = arith.constant 0 : index
    %1421 = vector.load %arg5[%c0_273, %c4_274, %c0_275, %c0_276, %c0_277] : memref<1x7x7x8x128xf32, #tpu.memory_space<vmem>>, vector<1x1x7x8x128xf32>
    %1422 = vector.shape_cast %1421 : vector<1x1x7x8x128xf32> to vector<7x8x128xf32>
    %1423 = vector.shape_cast %1373 : vector<8x128xf32> to vector<1x8x128xf32>
    %1424 = vector.broadcast %1423 : vector<1x8x128xf32> to vector<7x8x128xf32>
    %1425 = arith.mulf %1422, %1424 : vector<7x8x128xf32>
    %1426 = vector.shape_cast %1376 : vector<8x128xf32> to vector<1x8x128xf32>
    %1427 = vector.broadcast %1426 : vector<1x8x128xf32> to vector<7x8x128xf32>
    %1428 = arith.addf %1425, %1427 : vector<7x8x128xf32>
    %c0_278 = arith.constant 0 : index
    %c4_279 = arith.constant 4 : index
    %c0_280 = arith.constant 0 : index
    %c0_281 = arith.constant 0 : index
    %c0_282 = arith.constant 0 : index
    %1429 = vector.load %arg5[%c0_278, %c4_279, %c0_280, %c0_281, %c0_282] : memref<1x7x7x8x128xf32, #tpu.memory_space<vmem>>, vector<1x1x7x8x128xf32>
    %1430 = vector.shape_cast %1429 : vector<1x1x7x8x128xf32> to vector<7x8x128xf32>
    %1431 = vector.shape_cast %1428 : vector<7x8x128xf32> to vector<1x1x7x8x128xf32>
    tpu.vector_store %arg5[%c0_278, %c4_279, %c0_280, %c0_281, %c0_282], %1431 {strides = array<i32>} : memref<1x7x7x8x128xf32, #tpu.memory_space<vmem>>, vector<1x1x7x8x128xf32>,
    %c0_283 = arith.constant 0 : index
    %c5_284 = arith.constant 5 : index
    %c0_285 = arith.constant 0 : index
    %c0_286 = arith.constant 0 : index
    %c0_287 = arith.constant 0 : index
    %1432 = vector.load %arg5[%c0_283, %c5_284, %c0_285, %c0_286, %c0_287] : memref<1x7x7x8x128xf32, #tpu.memory_space<vmem>>, vector<1x1x7x8x128xf32>
    %1433 = vector.shape_cast %1432 : vector<1x1x7x8x128xf32> to vector<7x8x128xf32>
    %1434 = vector.shape_cast %1373 : vector<8x128xf32> to vector<1x8x128xf32>
    %1435 = vector.broadcast %1434 : vector<1x8x128xf32> to vector<7x8x128xf32>
    %1436 = arith.mulf %1433, %1435 : vector<7x8x128xf32>
    %1437 = vector.shape_cast %1376 : vector<8x128xf32> to vector<1x8x128xf32>
    %1438 = vector.broadcast %1437 : vector<1x8x128xf32> to vector<7x8x128xf32>
    %1439 = arith.addf %1436, %1438 : vector<7x8x128xf32>
    %c0_288 = arith.constant 0 : index
    %c5_289 = arith.constant 5 : index
    %c0_290 = arith.constant 0 : index
    %c0_291 = arith.constant 0 : index
    %c0_292 = arith.constant 0 : index
    %1440 = vector.load %arg5[%c0_288, %c5_289, %c0_290, %c0_291, %c0_292] : memref<1x7x7x8x128xf32, #tpu.memory_space<vmem>>, vector<1x1x7x8x128xf32>
    %1441 = vector.shape_cast %1440 : vector<1x1x7x8x128xf32> to vector<7x8x128xf32>
    %1442 = vector.shape_cast %1439 : vector<7x8x128xf32> to vector<1x1x7x8x128xf32>
    tpu.vector_store %arg5[%c0_288, %c5_289, %c0_290, %c0_291, %c0_292], %1442 {strides = array<i32>} : memref<1x7x7x8x128xf32, #tpu.memory_space<vmem>>, vector<1x1x7x8x128xf32>,
    %c0_293 = arith.constant 0 : index
    %c6_294 = arith.constant 6 : index
    %c0_295 = arith.constant 0 : index
    %c0_296 = arith.constant 0 : index
    %c0_297 = arith.constant 0 : index
    %1443 = vector.load %arg5[%c0_293, %c6_294, %c0_295, %c0_296, %c0_297] : memref<1x7x7x8x128xf32, #tpu.memory_space<vmem>>, vector<1x1x7x8x128xf32>
    %1444 = vector.shape_cast %1443 : vector<1x1x7x8x128xf32> to vector<7x8x128xf32>
    %1445 = vector.shape_cast %1373 : vector<8x128xf32> to vector<1x8x128xf32>
    %1446 = vector.broadcast %1445 : vector<1x8x128xf32> to vector<7x8x128xf32>
    %1447 = arith.mulf %1444, %1446 : vector<7x8x128xf32>
    %1448 = vector.shape_cast %1376 : vector<8x128xf32> to vector<1x8x128xf32>
    %1449 = vector.broadcast %1448 : vector<1x8x128xf32> to vector<7x8x128xf32>
    %1450 = arith.addf %1447, %1449 : vector<7x8x128xf32>
    %c0_298 = arith.constant 0 : index
    %c6_299 = arith.constant 6 : index
    %c0_300 = arith.constant 0 : index
    %c0_301 = arith.constant 0 : index
    %c0_302 = arith.constant 0 : index
    %1451 = vector.load %arg5[%c0_298, %c6_299, %c0_300, %c0_301, %c0_302] : memref<1x7x7x8x128xf32, #tpu.memory_space<vmem>>, vector<1x1x7x8x128xf32>
    %1452 = vector.shape_cast %1451 : vector<1x1x7x8x128xf32> to vector<7x8x128xf32>
    %1453 = vector.shape_cast %1450 : vector<7x8x128xf32> to vector<1x1x7x8x128xf32>
    tpu.vector_store %arg5[%c0_298, %c6_299, %c0_300, %c0_301, %c0_302], %1453 {strides = array<i32>} : memref<1x7x7x8x128xf32, #tpu.memory_space<vmem>>, vector<1x1x7x8x128xf32>,
    return
  }
  func.func @transform_0(%arg0: i32) -> (i32, i32, i32, i32, i32) {
    %c0_i32 = arith.constant 0 : i32
    %c0_i32_0 = arith.constant 0 : i32
    %c0_i32_1 = arith.constant 0 : i32
    %c0_i32_2 = arith.constant 0 : i32
    %c0_i32_3 = arith.constant 0 : i32
    return %c0_i32, %c0_i32_0, %c0_i32_1, %arg0, %c0_i32_2 : i32, i32, i32, i32, i32
  }
  func.func @transform_1(%arg0: i32) -> (i32, i32, i32, i32) {
    %c0_i32 = arith.constant 0 : i32
    %c0_i32_0 = arith.constant 0 : i32
    %c0_i32_1 = arith.constant 0 : i32
    %c0_i32_2 = arith.constant 0 : i32
    return %c0_i32, %c0_i32_0, %arg0, %c0_i32_1 : i32, i32, i32, i32
  }
  func.func @transform_2(%arg0: i32) -> (i32, i32) {
    %c0_i32 = arith.constant 0 : i32
    %c0_i32_0 = arith.constant 0 : i32
    return %arg0, %c0_i32 : i32, i32
  }
  func.func @transform_3(%arg0: i32) -> (i32, i32) {
    %c0_i32 = arith.constant 0 : i32
    %c0_i32_0 = arith.constant 0 : i32
    return %arg0, %c0_i32 : i32, i32
  }
  func.func @transform_4(%arg0: i32) -> (i32, i32, i32, i32, i32) {
    %c0_i32 = arith.constant 0 : i32
    %c0_i32_0 = arith.constant 0 : i32
    %c0_i32_1 = arith.constant 0 : i32
    %c0_i32_2 = arith.constant 0 : i32
    %c0_i32_3 = arith.constant 0 : i32
    return %c0_i32, %c0_i32_0, %c0_i32_1, %arg0, %c0_i32_2 : i32, i32, i32, i32, i32
  }
}

</mosaic_0001>

<llo_original>
// kernel: depthwise_conv_bn.1
$region0: #{depthwise_conv_bn.1}
  #allocation0 [shape = 'u32[]', space=smem, size = 0x4, offset = 0x4, fixed_abs, tag = 'smem constant byte address 0x4 - core index']
  #allocation1 [shape = 'u32[144,128]{1,0:T(1,128)}', space=vmem, size = 0x12000, scoped, tag = 'internal scratch']
  %s0 = inlined_call_operand.vmem [shape: f32[1,11,11,24,128], index: 0, kind: input, shape index: {}]
  %s1 = inlined_call_operand.vmem [shape: f32[5,5,24,128], index: 1, kind: input, shape index: {}]
  %s2 = inlined_call_operand.vmem [shape: f32[24,128], index: 2, kind: input, shape index: {}]
  %s3 = inlined_call_operand.vmem [shape: f32[24,128], index: 3, kind: input, shape index: {}]
  %s4 = inlined_call_operand.vmem [shape: f32[1,7,7,24,128], index: 4, kind: output, shape index: {}]
  %s5 = sld [smem:[#allocation0]]
  $region159: #{depthwise_conv_bn.1} parent=0
    _
  %s7 = ssub.s32 1, %s5
  %s8 = scalar_select 0, %s7, %s5
  $region1: #{depthwise_conv_bn.1} parent=0
    #allocation2 [shape = 'u8[991232]{0}', space=vmem, size = 0xf2000, scoped, tag = 'input window, operand 0']
    #allocation3 [shape = 'u8[204800]{0}', space=vmem, size = 0x32000, scoped, tag = 'input window, operand 1']
    #allocation4 [shape = 'u8[401408]{0}', space=vmem, size = 0x62000, scoped, tag = 'output window, operand 0']
    loop: start=0, step=1, limit=5
    $region2: #{depthwise_conv_bn.1} parent=1 // loop_pre_header
      _
    $region3: #{depthwise_conv_bn.1} parent=1 // loop_header
      %s10 = sphi 0, %s14
      %p11 = scmp.ge.s32.totalorder %s10, 5
      %s20 = sphi 0, %s22
      %s23 = sphi 0, %s20
      %s24 = sphi 0, %s23
      %s40 = sphi 0, %s24
      %s46 = sphi 0, %s48
      %s49 = sphi 0, %s46
      %s50 = sphi 0, %s49
      %s66 = sphi 0, %s50
      %s72 = sphi 0, %s74
      %s75 = sphi 0, %s72
      %s76 = sphi 0, %s75
      %s92 = sphi 0, %s76
      %s98 = sphi 0, %s100
      %s101 = sphi 0, %s98
      %s102 = sphi 0, %s101
      %s118 = sphi 0, %s102
      %s124 = sphi 0, %s126
      %s127 = sphi 0, %s124
      %s128 = sphi 0, %s127
      %s144 = sphi 0, %s128
    $region4: #{depthwise_conv_bn.1} parent=1 // loop_header_branch
      %13 = sbr.rel (%p11) target = $region8
    $region5: #{depthwise_conv_bn.1} parent=1 // loop_body
      %s15 = ssub.s32 %s10, 1
      %s16 = ssub.s32 %s10, 2
      %s17 = sadd.s32 %s10, 1
      %s18 = ssub.s32 %s10, %s17
      %p19 = scmp.eq.s32.totalorder %s18, 0
      %s21 = sadd.s32 %s20, 1
      %s22 = scalar_select %p19, %s20, %s21
      %p25 = pneg %p19
      %p26 = scmp.eq.s32.totalorder %s10, 2
      %p27 = por %p25, %p26
      %p28 = scmp.ne.s32.totalorder %s20, %s23
      %p29 = scmp.eq.s32.totalorder %s10, 0
      %p30 = por %p28, %p29
      %p31 = scmp.ne.s32.totalorder %s20, %s23
      %p32 = scmp.eq.s32.totalorder %s15, 2
      %p33 = por %p31, %p32
      %p34 = scmp.ne.s32.totalorder %s23, %s24
      %p35 = scmp.eq.s32.totalorder %s15, 0
      %p36 = por %p34, %p35
      %p37 = scmp.ne.s32.totalorder %s23, %s24
      %p38 = scmp.eq.s32.totalorder %s16, 2
      %p39 = por %p37, %p38
      %p41 = scmp.ne.s32.totalorder %s24, %s40
      %p42 = scmp.eq.s32.totalorder %s16, 0
      %p43 = por %p41, %p42
      %s44 = ssub.s32 %s10, %s17
      %p45 = scmp.eq.s32.totalorder %s44, 0
      %s47 = sadd.s32 %s46, 1
      %s48 = scalar_select %p45, %s46, %s47
      %p51 = pneg %p45
      %p52 = scmp.eq.s32.totalorder %s10, 2
      %p53 = por %p51, %p52
      %p54 = scmp.ne.s32.totalorder %s46, %s49
      %p55 = scmp.eq.s32.totalorder %s10, 0
      %p56 = por %p54, %p55
      %p57 = scmp.ne.s32.totalorder %s46, %s49
      %p58 = scmp.eq.s32.totalorder %s15, 2
      %p59 = por %p57, %p58
      %p60 = scmp.ne.s32.totalorder %s49, %s50
      %p61 = scmp.eq.s32.totalorder %s15, 0
      %p62 = por %p60, %p61
      %p63 = scmp.ne.s32.totalorder %s49, %s50
      %p64 = scmp.eq.s32.totalorder %s16, 2
      %p65 = por %p63, %p64
      %p67 = scmp.ne.s32.totalorder %s50, %s66
      %p68 = scmp.eq.s32.totalorder %s16, 0
      %p69 = por %p67, %p68
      %s70 = ssub.s32 %s10, %s17
      %p71 = scmp.eq.s32.totalorder %s70, 0
      %s73 = sadd.s32 %s72, 1
      %s74 = scalar_select %p71, %s72, %s73
      %p77 = pneg %p71
      %p78 = scmp.eq.s32.totalorder %s10, 2
      %p79 = por %p77, %p78
      %p80 = scmp.ne.s32.totalorder %s72, %s75
      %p81 = scmp.eq.s32.totalorder %s10, 0
      %p82 = por %p80, %p81
      %p83 = scmp.ne.s32.totalorder %s72, %s75
      %p84 = scmp.eq.s32.totalorder %s15, 2
      %p85 = por %p83, %p84
      %p86 = scmp.ne.s32.totalorder %s75, %s76
      %p87 = scmp.eq.s32.totalorder %s15, 0
      %p88 = por %p86, %p87
      %p89 = scmp.ne.s32.totalorder %s75, %s76
      %p90 = scmp.eq.s32.totalorder %s16, 2
      %p91 = por %p89, %p90
      %p93 = scmp.ne.s32.totalorder %s76, %s92
      %p94 = scmp.eq.s32.totalorder %s16, 0
      %p95 = por %p93, %p94
      %s96 = ssub.s32 %s10, %s17
      %p97 = scmp.eq.s32.totalorder %s96, 0
      %s99 = sadd.s32 %s98, 1
      %s100 = scalar_select %p97, %s98, %s99
      %p103 = pneg %p97
      %p104 = scmp.eq.s32.totalorder %s10, 2
      %p105 = por %p103, %p104
      %p106 = scmp.ne.s32.totalorder %s98, %s101
      %p107 = scmp.eq.s32.totalorder %s10, 0
      %p108 = por %p106, %p107
      %p109 = scmp.ne.s32.totalorder %s98, %s101
      %p110 = scmp.eq.s32.totalorder %s15, 2
      %p111 = por %p109, %p110
      %p112 = scmp.ne.s32.totalorder %s101, %s102
      %p113 = scmp.eq.s32.totalorder %s15, 0
      %p114 = por %p112, %p113
      %p115 = scmp.ne.s32.totalorder %s101, %s102
      %p116 = scmp.eq.s32.totalorder %s16, 2
      %p117 = por %p115, %p116
      %p119 = scmp.ne.s32.totalorder %s102, %s118
      %p120 = scmp.eq.s32.totalorder %s16, 0
      %p121 = por %p119, %p120
      %s122 = ssub.s32 %s10, %s17
      %p123 = scmp.eq.s32.totalorder %s122, 0
      %s125 = sadd.s32 %s124, 1
      %s126 = scalar_select %p123, %s124, %s125
      %p129 = pneg %p123
      %p130 = scmp.eq.s32.totalorder %s10, 2
      %p131 = por %p129, %p130
      %p132 = scmp.ne.s32.totalorder %s124, %s127
      %p133 = scmp.eq.s32.totalorder %s10, 0
      %p134 = por %p132, %p133
      %p135 = scmp.ne.s32.totalorder %s124, %s127
      %p136 = scmp.eq.s32.totalorder %s15, 2
      %p137 = por %p135, %p136
      %p138 = scmp.ne.s32.totalorder %s127, %s128
      %p139 = scmp.eq.s32.totalorder %s15, 0
      %p140 = por %p138, %p139
      %p141 = scmp.ne.s32.totalorder %s127, %s128
      %p142 = scmp.eq.s32.totalorder %s16, 2
      %p143 = por %p141, %p142
      %p145 = scmp.ne.s32.totalorder %s128, %s144
      %p146 = scmp.eq.s32.totalorder %s16, 0
      %p147 = por %p145, %p146
      %p148 = scmp.le.s32.totalorder 1, %s10
      %p149 = scmp.lt.s32.totalorder %s10, 4
      %p150 = pnand %p148, %p149
      %p151 = pneg %p150
      // Predicated region
      $region9: #{depthwise_conv_bn.1} parent=5 // pred_check
        _
      $region10: #{depthwise_conv_bn.1} parent=5 // pred_check_branch
        %153 = sbr.rel (%p150) target = $region12
      $region11: #{depthwise_conv_bn.1} parent=5 // pred_region
        %s154 = ssub.s32 %s10, 1
      $region12: #{depthwise_conv_bn.1} parent=5 // pred_fallthru
        _
      %p155 = scmp.lt.s32.totalorder %s10, 3
      // Predicated region
      $region13: #{depthwise_conv_bn.1} parent=5 // pred_check
        %p156 = pneg %p155
      $region14: #{depthwise_conv_bn.1} parent=5 // pred_check_branch
        %158 = sbr.rel (%p156) target = $region16
      $region15: #{depthwise_conv_bn.1} parent=5 // pred_region
        // Predicated region
        $region17: #{depthwise_conv_bn.1} parent=15 // pred_check
          %p159 = pneg %p30
        $region18: #{depthwise_conv_bn.1} parent=15 // pred_check_branch
          %161 = sbr.rel (%p159) target = $region20
        $region19: #{depthwise_conv_bn.1} parent=15 // pred_region
          %s162 = sand.u32 %s20, 1
          %s163 = sand.u32 %s20, 1
          %s164 = smul.addr %s163, 968
          %s165 = scalar_lea.vmem [#allocation2], %s164
          %s166 = smul.addr %s10, 8
          %s167 = scalar_lea.vmem %s0, %s166
          // Predicated region
          $region21: #{depthwise_conv_bn.1} parent=19 // pred_check
            _
          $region22: #{depthwise_conv_bn.1} parent=19 // pred_check_branch
            %169 = sbr.rel (0) target = $region24
          $region23: #{depthwise_conv_bn.1} parent=19 // pred_region
            // Predicated region
            $region25: #{depthwise_conv_bn.1} parent=23 // pred_check
              _
            $region26: #{depthwise_conv_bn.1} parent=23 // pred_check_branch
              %171 = sbr.rel (0) target = $region28
            $region27: #{depthwise_conv_bn.1} parent=23 // pred_region
              // Predicated region
              $region40: #{depthwise_conv_bn.1} parent=27 // pred_check
                _
              $region41: #{depthwise_conv_bn.1} parent=27 // pred_check_branch
                %426 = sbr.rel (0) target = $region43
              $region42: #{depthwise_conv_bn.1} parent=27 // pred_region
                loop: start=0, step=1, limit=1
                $region44: #{depthwise_conv_bn.1} parent=42 // loop_pre_header
                  _
                $region45: #{depthwise_conv_bn.1} parent=42 // loop_header
                  %s428 = sphi 0, %s432
                  %p429 = scmp.ge.s32.totalorder %s428, 1
                  %s433 = sphi %s167, %s167
                  %s434 = sphi %s165, %s165
                $region46: #{depthwise_conv_bn.1} parent=42 // loop_header_branch
                  %431 = sbr.rel (%p429) target = $region50
                $region47: #{depthwise_conv_bn.1} parent=42 // loop_body
                  %v435 = vld [vmem:[%s433] sm:$0xff]
                  %436 = vst [vmem:[%s434] sm:$0xff] %v435
                  %v437 = vld [vmem:[%s433 + $0x18] sm:$0xff]
                  %438 = vst [vmem:[%s434 + $0x8] sm:$0xff] %v437
                  %v439 = vld [vmem:[%s433 + $0x30] sm:$0xff]
                  %440 = vst [vmem:[%s434 + $0x10] sm:$0xff] %v439
                  %v441 = vld [vmem:[%s433 + $0x48] sm:$0xff]
                  %442 = vst [vmem:[%s434 + $0x18] sm:$0xff] %v441
                  %v443 = vld [vmem:[%s433 + $0x60] sm:$0xff]
                  %444 = vst [vmem:[%s434 + $0x20] sm:$0xff] %v443
                  %v445 = vld [vmem:[%s433 + $0x78] sm:$0xff]
                  %446 = vst [vmem:[%s434 + $0x28] sm:$0xff] %v445
                  %v447 = vld [vmem:[%s433 + $0x90] sm:$0xff]
                  %448 = vst [vmem:[%s434 + $0x30] sm:$0xff] %v447
                  %v449 = vld [vmem:[%s433 + $0xa8] sm:$0xff]
                  %450 = vst [vmem:[%s434 + $0x38] sm:$0xff] %v449
                  %v451 = vld [vmem:[%s433 + $0xc0] sm:$0xff]
                  %452 = vst [vmem:[%s434 + $0x40] sm:$0xff] %v451
                  %v453 = vld [vmem:[%s433 + $0xd8] sm:$0xff]
                  %454 = vst [vmem:[%s434 + $0x48] sm:$0xff] %v453
                  %v455 = vld [vmem:[%s433 + $0xf0] sm:$0xff]
                  %456 = vst [vmem:[%s434 + $0x50] sm:$0xff] %v455
                  %v457 = vld [vmem:[%s433 + $0x108] sm:$0xff]
                  %458 = vst [vmem:[%s434 + $0x58] sm:$0xff] %v457
                  %v459 = vld [vmem:[%s433 + $0x120] sm:$0xff]
                  %460 = vst [vmem:[%s434 + $0x60] sm:$0xff] %v459
                  %v461 = vld [vmem:[%s433 + $0x138] sm:$0xff]
                  %462 = vst [vmem:[%s434 + $0x68] sm:$0xff] %v461
                  %v463 = vld [vmem:[%s433 + $0x150] sm:$0xff]
                  %464 = vst [vmem:[%s434 + $0x70] sm:$0xff] %v463
                  %v465 = vld [vmem:[%s433 + $0x168] sm:$0xff]
                  %466 = vst [vmem:[%s434 + $0x78] sm:$0xff] %v465
                  %v467 = vld [vmem:[%s433 + $0x180] sm:$0xff]
                  %468 = vst [vmem:[%s434 + $0x80] sm:$0xff] %v467
                  %v469 = vld [vmem:[%s433 + $0x198] sm:$0xff]
                  %470 = vst [vmem:[%s434 + $0x88] sm:$0xff] %v469
                  %v471 = vld [vmem:[%s433 + $0x1b0] sm:$0xff]
                  %472 = vst [vmem:[%s434 + $0x90] sm:$0xff] %v471
                  %v473 = vld [vmem:[%s433 + $0x1c8] sm:$0xff]
                  %474 = vst [vmem:[%s434 + $0x98] sm:$0xff] %v473
                  %v475 = vld [vmem:[%s433 + $0x1e0] sm:$0xff]
                  %476 = vst [vmem:[%s434 + $0xa0] sm:$0xff] %v475
                  %v477 = vld [vmem:[%s433 + $0x1f8] sm:$0xff]
                  %478 = vst [vmem:[%s434 + $0xa8] sm:$0xff] %v477
                  %v479 = vld [vmem:[%s433 + $0x210] sm:$0xff]
                  %480 = vst [vmem:[%s434 + $0xb0] sm:$0xff] %v479
                  %v481 = vld [vmem:[%s433 + $0x228] sm:$0xff]
                  %482 = vst [vmem:[%s434 + $0xb8] sm:$0xff] %v481
                  %v483 = vld [vmem:[%s433 + $0x240] sm:$0xff]
                  %484 = vst [vmem:[%s434 + $0xc0] sm:$0xff] %v483
                  %v485 = vld [vmem:[%s433 + $0x258] sm:$0xff]
                  %486 = vst [vmem:[%s434 + $0xc8] sm:$0xff] %v485
                  %v487 = vld [vmem:[%s433 + $0x270] sm:$0xff]
                  %488 = vst [vmem:[%s434 + $0xd0] sm:$0xff] %v487
                  %v489 = vld [vmem:[%s433 + $0x288] sm:$0xff]
                  %490 = vst [vmem:[%s434 + $0xd8] sm:$0xff] %v489
                  %v491 = vld [vmem:[%s433 + $0x2a0] sm:$0xff]
                  %492 = vst [vmem:[%s434 + $0xe0] sm:$0xff] %v491
                  %v493 = vld [vmem:[%s433 + $0x2b8] sm:$0xff]
                  %494 = vst [vmem:[%s434 + $0xe8] sm:$0xff] %v493
                  %v495 = vld [vmem:[%s433 + $0x2d0] sm:$0xff]
                  %496 = vst [vmem:[%s434 + $0xf0] sm:$0xff] %v495
                  %v497 = vld [vmem:[%s433 + $0x2e8] sm:$0xff]
                  %498 = vst [vmem:[%s434 + $0xf8] sm:$0xff] %v497
                  %v499 = vld [vmem:[%s433 + $0x300] sm:$0xff]
                  %500 = vst [vmem:[%s434 + $0x100] sm:$0xff] %v499
                  %v501 = vld [vmem:[%s433 + $0x318] sm:$0xff]
                  %502 = vst [vmem:[%s434 + $0x108] sm:$0xff] %v501
                  %v503 = vld [vmem:[%s433 + $0x330] sm:$0xff]
                  %504 = vst [vmem:[%s434 + $0x110] sm:$0xff] %v503
                  %v505 = vld [vmem:[%s433 + $0x348] sm:$0xff]
                  %506 = vst [vmem:[%s434 + $0x118] sm:$0xff] %v505
                  %v507 = vld [vmem:[%s433 + $0x360] sm:$0xff]
                  %508 = vst [vmem:[%s434 + $0x120] sm:$0xff] %v507
                  %v509 = vld [vmem:[%s433 + $0x378] sm:$0xff]
                  %510 = vst [vmem:[%s434 + $0x128] sm:$0xff] %v509
                  %v511 = vld [vmem:[%s433 + $0x390] sm:$0xff]
                  %512 = vst [vmem:[%s434 + $0x130] sm:$0xff] %v511
                  %v513 = vld [vmem:[%s433 + $0x3a8] sm:$0xff]
                  %514 = vst [vmem:[%s434 + $0x138] sm:$0xff] %v513
                  %v515 = vld [vmem:[%s433 + $0x3c0] sm:$0xff]
                  %516 = vst [vmem:[%s434 + $0x140] sm:$0xff] %v515
                  %v517 = vld [vmem:[%s433 + $0x3d8] sm:$0xff]
                  %518 = vst [vmem:[%s434 + $0x148] sm:$0xff] %v517
                  %v519 = vld [vmem:[%s433 + $0x3f0] sm:$0xff]
                  %520 = vst [vmem:[%s434 + $0x150] sm:$0xff] %v519
                  %v521 = vld [vmem:[%s433 + $0x408] sm:$0xff]
                  %522 = vst [vmem:[%s434 + $0x158] sm:$0xff] %v521
                  %v523 = vld [vmem:[%s433 + $0x420] sm:$0xff]
                  %524 = vst [vmem:[%s434 + $0x160] sm:$0xff] %v523
                  %v525 = vld [vmem:[%s433 + $0x438] sm:$0xff]
                  %526 = vst [vmem:[%s434 + $0x168] sm:$0xff] %v525
                  %v527 = vld [vmem:[%s433 + $0x450] sm:$0xff]
                  %528 = vst [vmem:[%s434 + $0x170] sm:$0xff] %v527
                  %v529 = vld [vmem:[%s433 + $0x468] sm:$0xff]
                  %530 = vst [vmem:[%s434 + $0x178] sm:$0xff] %v529
                  %v531 = vld [vmem:[%s433 + $0x480] sm:$0xff]
                  %532 = vst [vmem:[%s434 + $0x180] sm:$0xff] %v531
                  %v533 = vld [vmem:[%s433 + $0x498] sm:$0xff]
                  %534 = vst [vmem:[%s434 + $0x188] sm:$0xff] %v533
                  %v535 = vld [vmem:[%s433 + $0x4b0] sm:$0xff]
                  %536 = vst [vmem:[%s434 + $0x190] sm:$0xff] %v535
                  %v537 = vld [vmem:[%s433 + $0x4c8] sm:$0xff]
                  %538 = vst [vmem:[%s434 + $0x198] sm:$0xff] %v537
                  %v539 = vld [vmem:[%s433 + $0x4e0] sm:$0xff]
                  %540 = vst [vmem:[%s434 + $0x1a0] sm:$0xff] %v539
                  %v541 = vld [vmem:[%s433 + $0x4f8] sm:$0xff]
                  %542 = vst [vmem:[%s434 + $0x1a8] sm:$0xff] %v541
                  %v543 = vld [vmem:[%s433 + $0x510] sm:$0xff]
                  %544 = vst [vmem:[%s434 + $0x1b0] sm:$0xff] %v543
                  %v545 = vld [vmem:[%s433 + $0x528] sm:$0xff]
                  %546 = vst [vmem:[%s434 + $0x1b8] sm:$0xff] %v545
                  %v547 = vld [vmem:[%s433 + $0x540] sm:$0xff]
                  %548 = vst [vmem:[%s434 + $0x1c0] sm:$0xff] %v547
                  %v549 = vld [vmem:[%s433 + $0x558] sm:$0xff]
                  %550 = vst [vmem:[%s434 + $0x1c8] sm:$0xff] %v549
                  %v551 = vld [vmem:[%s433 + $0x570] sm:$0xff]
                  %552 = vst [vmem:[%s434 + $0x1d0] sm:$0xff] %v551
                  %v553 = vld [vmem:[%s433 + $0x588] sm:$0xff]
                  %554 = vst [vmem:[%s434 + $0x1d8] sm:$0xff] %v553
                  %v555 = vld [vmem:[%s433 + $0x5a0] sm:$0xff]
                  %556 = vst [vmem:[%s434 + $0x1e0] sm:$0xff] %v555
                  %v557 = vld [vmem:[%s433 + $0x5b8] sm:$0xff]
                  %558 = vst [vmem:[%s434 + $0x1e8] sm:$0xff] %v557
                  %v559 = vld [vmem:[%s433 + $0x5d0] sm:$0xff]
                  %560 = vst [vmem:[%s434 + $0x1f0] sm:$0xff] %v559
                  %v561 = vld [vmem:[%s433 + $0x5e8] sm:$0xff]
                  %562 = vst [vmem:[%s434 + $0x1f8] sm:$0xff] %v561
                  %v563 = vld [vmem:[%s433 + $0x600] sm:$0xff]
                  %564 = vst [vmem:[%s434 + $0x200] sm:$0xff] %v563
                  %v565 = vld [vmem:[%s433 + $0x618] sm:$0xff]
                  %566 = vst [vmem:[%s434 + $0x208] sm:$0xff] %v565
                  %v567 = vld [vmem:[%s433 + $0x630] sm:$0xff]
                  %568 = vst [vmem:[%s434 + $0x210] sm:$0xff] %v567
                  %v569 = vld [vmem:[%s433 + $0x648] sm:$0xff]
                  %570 = vst [vmem:[%s434 + $0x218] sm:$0xff] %v569
                  %v571 = vld [vmem:[%s433 + $0x660] sm:$0xff]
                  %572 = vst [vmem:[%s434 + $0x220] sm:$0xff] %v571
                  %v573 = vld [vmem:[%s433 + $0x678] sm:$0xff]
                  %574 = vst [vmem:[%s434 + $0x228] sm:$0xff] %v573
                  %v575 = vld [vmem:[%s433 + $0x690] sm:$0xff]
                  %576 = vst [vmem:[%s434 + $0x230] sm:$0xff] %v575
                  %v577 = vld [vmem:[%s433 + $0x6a8] sm:$0xff]
                  %578 = vst [vmem:[%s434 + $0x238] sm:$0xff] %v577
                  %v579 = vld [vmem:[%s433 + $0x6c0] sm:$0xff]
                  %580 = vst [vmem:[%s434 + $0x240] sm:$0xff] %v579
                  %v581 = vld [vmem:[%s433 + $0x6d8] sm:$0xff]
                  %582 = vst [vmem:[%s434 + $0x248] sm:$0xff] %v581
                  %v583 = vld [vmem:[%s433 + $0x6f0] sm:$0xff]
                  %584 = vst [vmem:[%s434 + $0x250] sm:$0xff] %v583
                  %v585 = vld [vmem:[%s433 + $0x708] sm:$0xff]
                  %586 = vst [vmem:[%s434 + $0x258] sm:$0xff] %v585
                  %v587 = vld [vmem:[%s433 + $0x720] sm:$0xff]
                  %588 = vst [vmem:[%s434 + $0x260] sm:$0xff] %v587
                  %v589 = vld [vmem:[%s433 + $0x738] sm:$0xff]
                  %590 = vst [vmem:[%s434 + $0x268] sm:$0xff] %v589
                  %v591 = vld [vmem:[%s433 + $0x750] sm:$0xff]
                  %592 = vst [vmem:[%s434 + $0x270] sm:$0xff] %v591
                  %v593 = vld [vmem:[%s433 + $0x768] sm:$0xff]
                  %594 = vst [vmem:[%s434 + $0x278] sm:$0xff] %v593
                  %v595 = vld [vmem:[%s433 + $0x780] sm:$0xff]
                  %596 = vst [vmem:[%s434 + $0x280] sm:$0xff] %v595
                  %v597 = vld [vmem:[%s433 + $0x798] sm:$0xff]
                  %598 = vst [vmem:[%s434 + $0x288] sm:$0xff] %v597
                  %v599 = vld [vmem:[%s433 + $0x7b0] sm:$0xff]
                  %600 = vst [vmem:[%s434 + $0x290] sm:$0xff] %v599
                  %v601 = vld [vmem:[%s433 + $0x7c8] sm:$0xff]
                  %602 = vst [vmem:[%s434 + $0x298] sm:$0xff] %v601
                  %v603 = vld [vmem:[%s433 + $0x7e0] sm:$0xff]
                  %604 = vst [vmem:[%s434 + $0x2a0] sm:$0xff] %v603
                  %v605 = vld [vmem:[%s433 + $0x7f8] sm:$0xff]
                  %606 = vst [vmem:[%s434 + $0x2a8] sm:$0xff] %v605
                  %v607 = vld [vmem:[%s433 + $0x810] sm:$0xff]
                  %608 = vst [vmem:[%s434 + $0x2b0] sm:$0xff] %v607
                  %v609 = vld [vmem:[%s433 + $0x828] sm:$0xff]
                  %610 = vst [vmem:[%s434 + $0x2b8] sm:$0xff] %v609
                  %v611 = vld [vmem:[%s433 + $0x840] sm:$0xff]
                  %612 = vst [vmem:[%s434 + $0x2c0] sm:$0xff] %v611
                  %v613 = vld [vmem:[%s433 + $0x858] sm:$0xff]
                  %614 = vst [vmem:[%s434 + $0x2c8] sm:$0xff] %v613
                  %v615 = vld [vmem:[%s433 + $0x870] sm:$0xff]
                  %616 = vst [vmem:[%s434 + $0x2d0] sm:$0xff] %v615
                  %v617 = vld [vmem:[%s433 + $0x888] sm:$0xff]
                  %618 = vst [vmem:[%s434 + $0x2d8] sm:$0xff] %v617
                  %v619 = vld [vmem:[%s433 + $0x8a0] sm:$0xff]
                  %620 = vst [vmem:[%s434 + $0x2e0] sm:$0xff] %v619
                  %v621 = vld [vmem:[%s433 + $0x8b8] sm:$0xff]
                  %622 = vst [vmem:[%s434 + $0x2e8] sm:$0xff] %v621
                  %v623 = vld [vmem:[%s433 + $0x8d0] sm:$0xff]
                  %624 = vst [vmem:[%s434 + $0x2f0] sm:$0xff] %v623
                  %v625 = vld [vmem:[%s433 + $0x8e8] sm:$0xff]
                  %626 = vst [vmem:[%s434 + $0x2f8] sm:$0xff] %v625
                  %v627 = vld [vmem:[%s433 + $0x900] sm:$0xff]
                  %628 = vst [vmem:[%s434 + $0x300] sm:$0xff] %v627
                  %v629 = vld [vmem:[%s433 + $0x918] sm:$0xff]
                  %630 = vst [vmem:[%s434 + $0x308] sm:$0xff] %v629
                  %v631 = vld [vmem:[%s433 + $0x930] sm:$0xff]
                  %632 = vst [vmem:[%s434 + $0x310] sm:$0xff] %v631
                  %v633 = vld [vmem:[%s433 + $0x948] sm:$0xff]
                  %634 = vst [vmem:[%s434 + $0x318] sm:$0xff] %v633
                  %v635 = vld [vmem:[%s433 + $0x960] sm:$0xff]
                  %636 = vst [vmem:[%s434 + $0x320] sm:$0xff] %v635
                  %v637 = vld [vmem:[%s433 + $0x978] sm:$0xff]
                  %638 = vst [vmem:[%s434 + $0x328] sm:$0xff] %v637
                  %v639 = vld [vmem:[%s433 + $0x990] sm:$0xff]
                  %640 = vst [vmem:[%s434 + $0x330] sm:$0xff] %v639
                  %v641 = vld [vmem:[%s433 + $0x9a8] sm:$0xff]
                  %642 = vst [vmem:[%s434 + $0x338] sm:$0xff] %v641
                  %v643 = vld [vmem:[%s433 + $0x9c0] sm:$0xff]
                  %644 = vst [vmem:[%s434 + $0x340] sm:$0xff] %v643
                  %v645 = vld [vmem:[%s433 + $0x9d8] sm:$0xff]
                  %646 = vst [vmem:[%s434 + $0x348] sm:$0xff] %v645
                  %v647 = vld [vmem:[%s433 + $0x9f0] sm:$0xff]
                  %648 = vst [vmem:[%s434 + $0x350] sm:$0xff] %v647
                  %v649 = vld [vmem:[%s433 + $0xa08] sm:$0xff]
                  %650 = vst [vmem:[%s434 + $0x358] sm:$0xff] %v649
                  %v651 = vld [vmem:[%s433 + $0xa20] sm:$0xff]
                  %652 = vst [vmem:[%s434 + $0x360] sm:$0xff] %v651
                  %v653 = vld [vmem:[%s433 + $0xa38] sm:$0xff]
                  %654 = vst [vmem:[%s434 + $0x368] sm:$0xff] %v653
                  %v655 = vld [vmem:[%s433 + $0xa50] sm:$0xff]
                  %656 = vst [vmem:[%s434 + $0x370] sm:$0xff] %v655
                  %v657 = vld [vmem:[%s433 + $0xa68] sm:$0xff]
                  %658 = vst [vmem:[%s434 + $0x378] sm:$0xff] %v657
                  %v659 = vld [vmem:[%s433 + $0xa80] sm:$0xff]
                  %660 = vst [vmem:[%s434 + $0x380] sm:$0xff] %v659
                  %v661 = vld [vmem:[%s433 + $0xa98] sm:$0xff]
                  %662 = vst [vmem:[%s434 + $0x388] sm:$0xff] %v661
                  %v663 = vld [vmem:[%s433 + $0xab0] sm:$0xff]
                  %664 = vst [vmem:[%s434 + $0x390] sm:$0xff] %v663
                  %v665 = vld [vmem:[%s433 + $0xac8] sm:$0xff]
                  %666 = vst [vmem:[%s434 + $0x398] sm:$0xff] %v665
                  %v667 = vld [vmem:[%s433 + $0xae0] sm:$0xff]
                  %668 = vst [vmem:[%s434 + $0x3a0] sm:$0xff] %v667
                  %v669 = vld [vmem:[%s433 + $0xaf8] sm:$0xff]
                  %670 = vst [vmem:[%s434 + $0x3a8] sm:$0xff] %v669
                  %v671 = vld [vmem:[%s433 + $0xb10] sm:$0xff]
                  %672 = vst [vmem:[%s434 + $0x3b0] sm:$0xff] %v671
                  %v673 = vld [vmem:[%s433 + $0xb28] sm:$0xff]
                  %674 = vst [vmem:[%s434 + $0x3b8] sm:$0xff] %v673
                  %v675 = vld [vmem:[%s433 + $0xb40] sm:$0xff]
                  %676 = vst [vmem:[%s434 + $0x3c0] sm:$0xff] %v675
                $region48: #{depthwise_conv_bn.1} parent=42 // loop_footer
                  %s432 = sadd.s32 1, %s428
                $region49: #{depthwise_conv_bn.1} parent=42 // loop_footer_branch
                  %427 = sbr.rel target = $region45
                $region50: #{depthwise_conv_bn.1} parent=42 // loop_exit
                  _
              $region43: #{depthwise_conv_bn.1} parent=27 // pred_fallthru
                _
              // Predicated region
              $region51: #{depthwise_conv_bn.1} parent=27 // pred_check
                _
              $region52: #{depthwise_conv_bn.1} parent=27 // pred_check_branch
                %678 = sbr.rel target = $region54
              $region53: #{depthwise_conv_bn.1} parent=27 // pred_region
                _
              $region54: #{depthwise_conv_bn.1} parent=27 // pred_fallthru
                _
            $region28: #{depthwise_conv_bn.1} parent=23 // pred_fallthru
              _
            // Predicated region
            $region29: #{depthwise_conv_bn.1} parent=23 // pred_check
              _
            $region30: #{depthwise_conv_bn.1} parent=23 // pred_check_branch
              %173 = sbr.rel target = $region32
            $region31: #{depthwise_conv_bn.1} parent=23 // pred_region
              loop: start=0, step=1, limit=1
              $region33: #{depthwise_conv_bn.1} parent=31 // loop_pre_header
                _
              $region34: #{depthwise_conv_bn.1} parent=31 // loop_header
                %s176 = sphi 0, %s180
                %p177 = scmp.ge.s32.totalorder %s176, 1
                %s181 = sphi %s167, %s167
                %s182 = sphi %s165, %s165
              $region35: #{depthwise_conv_bn.1} parent=31 // loop_header_branch
                %179 = sbr.rel (%p177) target = $region39
              $region36: #{depthwise_conv_bn.1} parent=31 // loop_body
                %v183 = vld [vmem:[%s181] sm:$0xff]
                %184 = vst [vmem:[%s182] sm:$0xff] %v183
                %v185 = vld [vmem:[%s181 + $0x18] sm:$0xff]
                %186 = vst [vmem:[%s182 + $0x8] sm:$0xff] %v185
                %v187 = vld [vmem:[%s181 + $0x30] sm:$0xff]
                %188 = vst [vmem:[%s182 + $0x10] sm:$0xff] %v187
                %v189 = vld [vmem:[%s181 + $0x48] sm:$0xff]
                %190 = vst [vmem:[%s182 + $0x18] sm:$0xff] %v189
                %v191 = vld [vmem:[%s181 + $0x60] sm:$0xff]
                %192 = vst [vmem:[%s182 + $0x20] sm:$0xff] %v191
                %v193 = vld [vmem:[%s181 + $0x78] sm:$0xff]
                %194 = vst [vmem:[%s182 + $0x28] sm:$0xff] %v193
                %v195 = vld [vmem:[%s181 + $0x90] sm:$0xff]
                %196 = vst [vmem:[%s182 + $0x30] sm:$0xff] %v195
                %v197 = vld [vmem:[%s181 + $0xa8] sm:$0xff]
                %198 = vst [vmem:[%s182 + $0x38] sm:$0xff] %v197
                %v199 = vld [vmem:[%s181 + $0xc0] sm:$0xff]
                %200 = vst [vmem:[%s182 + $0x40] sm:$0xff] %v199
                %v201 = vld [vmem:[%s181 + $0xd8] sm:$0xff]
                %202 = vst [vmem:[%s182 + $0x48] sm:$0xff] %v201
                %v203 = vld [vmem:[%s181 + $0xf0] sm:$0xff]
                %204 = vst [vmem:[%s182 + $0x50] sm:$0xff] %v203
                %v205 = vld [vmem:[%s181 + $0x108] sm:$0xff]
                %206 = vst [vmem:[%s182 + $0x58] sm:$0xff] %v205
                %v207 = vld [vmem:[%s181 + $0x120] sm:$0xff]
                %208 = vst [vmem:[%s182 + $0x60] sm:$0xff] %v207
                %v209 = vld [vmem:[%s181 + $0x138] sm:$0xff]
                %210 = vst [vmem:[%s182 + $0x68] sm:$0xff] %v209
                %v211 = vld [vmem:[%s181 + $0x150] sm:$0xff]
                %212 = vst [vmem:[%s182 + $0x70] sm:$0xff] %v211
                %v213 = vld [vmem:[%s181 + $0x168] sm:$0xff]
                %214 = vst [vmem:[%s182 + $0x78] sm:$0xff] %v213
                %v215 = vld [vmem:[%s181 + $0x180] sm:$0xff]
                %216 = vst [vmem:[%s182 + $0x80] sm:$0xff] %v215
                %v217 = vld [vmem:[%s181 + $0x198] sm:$0xff]
                %218 = vst [vmem:[%s182 + $0x88] sm:$0xff] %v217
                %v219 = vld [vmem:[%s181 + $0x1b0] sm:$0xff]
                %220 = vst [vmem:[%s182 + $0x90] sm:$0xff] %v219
                %v221 = vld [vmem:[%s181 + $0x1c8] sm:$0xff]
                %222 = vst [vmem:[%s182 + $0x98] sm:$0xff] %v221
                %v223 = vld [vmem:[%s181 + $0x1e0] sm:$0xff]
                %224 = vst [vmem:[%s182 + $0xa0] sm:$0xff] %v223
                %v225 = vld [vmem:[%s181 + $0x1f8] sm:$0xff]
                %226 = vst [vmem:[%s182 + $0xa8] sm:$0xff] %v225
                %v227 = vld [vmem:[%s181 + $0x210] sm:$0xff]
                %228 = vst [vmem:[%s182 + $0xb0] sm:$0xff] %v227
                %v229 = vld [vmem:[%s181 + $0x228] sm:$0xff]
                %230 = vst [vmem:[%s182 + $0xb8] sm:$0xff] %v229
                %v231 = vld [vmem:[%s181 + $0x240] sm:$0xff]
                %232 = vst [vmem:[%s182 + $0xc0] sm:$0xff] %v231
                %v233 = vld [vmem:[%s181 + $0x258] sm:$0xff]
                %234 = vst [vmem:[%s182 + $0xc8] sm:$0xff] %v233
                %v235 = vld [vmem:[%s181 + $0x270] sm:$0xff]
                %236 = vst [vmem:[%s182 + $0xd0] sm:$0xff] %v235
                %v237 = vld [vmem:[%s181 + $0x288] sm:$0xff]
                %238 = vst [vmem:[%s182 + $0xd8] sm:$0xff] %v237
                %v239 = vld [vmem:[%s181 + $0x2a0] sm:$0xff]
                %240 = vst [vmem:[%s182 + $0xe0] sm:$0xff] %v239
                %v241 = vld [vmem:[%s181 + $0x2b8] sm:$0xff]
                %242 = vst [vmem:[%s182 + $0xe8] sm:$0xff] %v241
                %v243 = vld [vmem:[%s181 + $0x2d0] sm:$0xff]
                %244 = vst [vmem:[%s182 + $0xf0] sm:$0xff] %v243
                %v245 = vld [vmem:[%s181 + $0x2e8] sm:$0xff]
                %246 = vst [vmem:[%s182 + $0xf8] sm:$0xff] %v245
                %v247 = vld [vmem:[%s181 + $0x300] sm:$0xff]
                %248 = vst [vmem:[%s182 + $0x100] sm:$0xff] %v247
                %v249 = vld [vmem:[%s181 + $0x318] sm:$0xff]
                %250 = vst [vmem:[%s182 + $0x108] sm:$0xff] %v249
                %v251 = vld [vmem:[%s181 + $0x330] sm:$0xff]
                %252 = vst [vmem:[%s182 + $0x110] sm:$0xff] %v251
                %v253 = vld [vmem:[%s181 + $0x348] sm:$0xff]
                %254 = vst [vmem:[%s182 + $0x118] sm:$0xff] %v253
                %v255 = vld [vmem:[%s181 + $0x360] sm:$0xff]
                %256 = vst [vmem:[%s182 + $0x120] sm:$0xff] %v255
                %v257 = vld [vmem:[%s181 + $0x378] sm:$0xff]
                %258 = vst [vmem:[%s182 + $0x128] sm:$0xff] %v257
                %v259 = vld [vmem:[%s181 + $0x390] sm:$0xff]
                %260 = vst [vmem:[%s182 + $0x130] sm:$0xff] %v259
                %v261 = vld [vmem:[%s181 + $0x3a8] sm:$0xff]
                %262 = vst [vmem:[%s182 + $0x138] sm:$0xff] %v261
                %v263 = vld [vmem:[%s181 + $0x3c0] sm:$0xff]
                %264 = vst [vmem:[%s182 + $0x140] sm:$0xff] %v263
                %v265 = vld [vmem:[%s181 + $0x3d8] sm:$0xff]
                %266 = vst [vmem:[%s182 + $0x148] sm:$0xff] %v265
                %v267 = vld [vmem:[%s181 + $0x3f0] sm:$0xff]
                %268 = vst [vmem:[%s182 + $0x150] sm:$0xff] %v267
                %v269 = vld [vmem:[%s181 + $0x408] sm:$0xff]
                %270 = vst [vmem:[%s182 + $0x158] sm:$0xff] %v269
                %v271 = vld [vmem:[%s181 + $0x420] sm:$0xff]
                %272 = vst [vmem:[%s182 + $0x160] sm:$0xff] %v271
                %v273 = vld [vmem:[%s181 + $0x438] sm:$0xff]
                %274 = vst [vmem:[%s182 + $0x168] sm:$0xff] %v273
                %v275 = vld [vmem:[%s181 + $0x450] sm:$0xff]
                %276 = vst [vmem:[%s182 + $0x170] sm:$0xff] %v275
                %v277 = vld [vmem:[%s181 + $0x468] sm:$0xff]
                %278 = vst [vmem:[%s182 + $0x178] sm:$0xff] %v277
                %v279 = vld [vmem:[%s181 + $0x480] sm:$0xff]
                %280 = vst [vmem:[%s182 + $0x180] sm:$0xff] %v279
                %v281 = vld [vmem:[%s181 + $0x498] sm:$0xff]
                %282 = vst [vmem:[%s182 + $0x188] sm:$0xff] %v281
                %v283 = vld [vmem:[%s181 + $0x4b0] sm:$0xff]
                %284 = vst [vmem:[%s182 + $0x190] sm:$0xff] %v283
                %v285 = vld [vmem:[%s181 + $0x4c8] sm:$0xff]
                %286 = vst [vmem:[%s182 + $0x198] sm:$0xff] %v285
                %v287 = vld [vmem:[%s181 + $0x4e0] sm:$0xff]
                %288 = vst [vmem:[%s182 + $0x1a0] sm:$0xff] %v287
                %v289 = vld [vmem:[%s181 + $0x4f8] sm:$0xff]
                %290 = vst [vmem:[%s182 + $0x1a8] sm:$0xff] %v289
                %v291 = vld [vmem:[%s181 + $0x510] sm:$0xff]
                %292 = vst [vmem:[%s182 + $0x1b0] sm:$0xff] %v291
                %v293 = vld [vmem:[%s181 + $0x528] sm:$0xff]
                %294 = vst [vmem:[%s182 + $0x1b8] sm:$0xff] %v293
                %v295 = vld [vmem:[%s181 + $0x540] sm:$0xff]
                %296 = vst [vmem:[%s182 + $0x1c0] sm:$0xff] %v295
                %v297 = vld [vmem:[%s181 + $0x558] sm:$0xff]
                %298 = vst [vmem:[%s182 + $0x1c8] sm:$0xff] %v297
                %v299 = vld [vmem:[%s181 + $0x570] sm:$0xff]
                %300 = vst [vmem:[%s182 + $0x1d0] sm:$0xff] %v299
                %v301 = vld [vmem:[%s181 + $0x588] sm:$0xff]
                %302 = vst [vmem:[%s182 + $0x1d8] sm:$0xff] %v301
                %v303 = vld [vmem:[%s181 + $0x5a0] sm:$0xff]
                %304 = vst [vmem:[%s182 + $0x1e0] sm:$0xff] %v303
                %v305 = vld [vmem:[%s181 + $0x5b8] sm:$0xff]
                %306 = vst [vmem:[%s182 + $0x1e8] sm:$0xff] %v305
                %v307 = vld [vmem:[%s181 + $0x5d0] sm:$0xff]
                %308 = vst [vmem:[%s182 + $0x1f0] sm:$0xff] %v307
                %v309 = vld [vmem:[%s181 + $0x5e8] sm:$0xff]
                %310 = vst [vmem:[%s182 + $0x1f8] sm:$0xff] %v309
                %v311 = vld [vmem:[%s181 + $0x600] sm:$0xff]
                %312 = vst [vmem:[%s182 + $0x200] sm:$0xff] %v311
                %v313 = vld [vmem:[%s181 + $0x618] sm:$0xff]
                %314 = vst [vmem:[%s182 + $0x208] sm:$0xff] %v313
                %v315 = vld [vmem:[%s181 + $0x630] sm:$0xff]
                %316 = vst [vmem:[%s182 + $0x210] sm:$0xff] %v315
                %v317 = vld [vmem:[%s181 + $0x648] sm:$0xff]
                %318 = vst [vmem:[%s182 + $0x218] sm:$0xff] %v317
                %v319 = vld [vmem:[%s181 + $0x660] sm:$0xff]
                %320 = vst [vmem:[%s182 + $0x220] sm:$0xff] %v319
                %v321 = vld [vmem:[%s181 + $0x678] sm:$0xff]
                %322 = vst [vmem:[%s182 + $0x228] sm:$0xff] %v321
                %v323 = vld [vmem:[%s181 + $0x690] sm:$0xff]
                %324 = vst [vmem:[%s182 + $0x230] sm:$0xff] %v323
                %v325 = vld [vmem:[%s181 + $0x6a8] sm:$0xff]
                %326 = vst [vmem:[%s182 + $0x238] sm:$0xff] %v325
                %v327 = vld [vmem:[%s181 + $0x6c0] sm:$0xff]
                %328 = vst [vmem:[%s182 + $0x240] sm:$0xff] %v327
                %v329 = vld [vmem:[%s181 + $0x6d8] sm:$0xff]
                %330 = vst [vmem:[%s182 + $0x248] sm:$0xff] %v329
                %v331 = vld [vmem:[%s181 + $0x6f0] sm:$0xff]
                %332 = vst [vmem:[%s182 + $0x250] sm:$0xff] %v331
                %v333 = vld [vmem:[%s181 + $0x708] sm:$0xff]
                %334 = vst [vmem:[%s182 + $0x258] sm:$0xff] %v333
                %v335 = vld [vmem:[%s181 + $0x720] sm:$0xff]
                %336 = vst [vmem:[%s182 + $0x260] sm:$0xff] %v335
                %v337 = vld [vmem:[%s181 + $0x738] sm:$0xff]
                %338 = vst [vmem:[%s182 + $0x268] sm:$0xff] %v337
                %v339 = vld [vmem:[%s181 + $0x750] sm:$0xff]
                %340 = vst [vmem:[%s182 + $0x270] sm:$0xff] %v339
                %v341 = vld [vmem:[%s181 + $0x768] sm:$0xff]
                %342 = vst [vmem:[%s182 + $0x278] sm:$0xff] %v341
                %v343 = vld [vmem:[%s181 + $0x780] sm:$0xff]
                %344 = vst [vmem:[%s182 + $0x280] sm:$0xff] %v343
                %v345 = vld [vmem:[%s181 + $0x798] sm:$0xff]
                %346 = vst [vmem:[%s182 + $0x288] sm:$0xff] %v345
                %v347 = vld [vmem:[%s181 + $0x7b0] sm:$0xff]
                %348 = vst [vmem:[%s182 + $0x290] sm:$0xff] %v347
                %v349 = vld [vmem:[%s181 + $0x7c8] sm:$0xff]
                %350 = vst [vmem:[%s182 + $0x298] sm:$0xff] %v349
                %v351 = vld [vmem:[%s181 + $0x7e0] sm:$0xff]
                %352 = vst [vmem:[%s182 + $0x2a0] sm:$0xff] %v351
                %v353 = vld [vmem:[%s181 + $0x7f8] sm:$0xff]
                %354 = vst [vmem:[%s182 + $0x2a8] sm:$0xff] %v353
                %v355 = vld [vmem:[%s181 + $0x810] sm:$0xff]
                %356 = vst [vmem:[%s182 + $0x2b0] sm:$0xff] %v355
                %v357 = vld [vmem:[%s181 + $0x828] sm:$0xff]
                %358 = vst [vmem:[%s182 + $0x2b8] sm:$0xff] %v357
                %v359 = vld [vmem:[%s181 + $0x840] sm:$0xff]
                %360 = vst [vmem:[%s182 + $0x2c0] sm:$0xff] %v359
                %v361 = vld [vmem:[%s181 + $0x858] sm:$0xff]
                %362 = vst [vmem:[%s182 + $0x2c8] sm:$0xff] %v361
                %v363 = vld [vmem:[%s181 + $0x870] sm:$0xff]
                %364 = vst [vmem:[%s182 + $0x2d0] sm:$0xff] %v363
                %v365 = vld [vmem:[%s181 + $0x888] sm:$0xff]
                %366 = vst [vmem:[%s182 + $0x2d8] sm:$0xff] %v365
                %v367 = vld [vmem:[%s181 + $0x8a0] sm:$0xff]
                %368 = vst [vmem:[%s182 + $0x2e0] sm:$0xff] %v367
                %v369 = vld [vmem:[%s181 + $0x8b8] sm:$0xff]
                %370 = vst [vmem:[%s182 + $0x2e8] sm:$0xff] %v369
                %v371 = vld [vmem:[%s181 + $0x8d0] sm:$0xff]
                %372 = vst [vmem:[%s182 + $0x2f0] sm:$0xff] %v371
                %v373 = vld [vmem:[%s181 + $0x8e8] sm:$0xff]
                %374 = vst [vmem:[%s182 + $0x2f8] sm:$0xff] %v373
                %v375 = vld [vmem:[%s181 + $0x900] sm:$0xff]
                %376 = vst [vmem:[%s182 + $0x300] sm:$0xff] %v375
                %v377 = vld [vmem:[%s181 + $0x918] sm:$0xff]
                %378 = vst [vmem:[%s182 + $0x308] sm:$0xff] %v377
                %v379 = vld [vmem:[%s181 + $0x930] sm:$0xff]
                %380 = vst [vmem:[%s182 + $0x310] sm:$0xff] %v379
                %v381 = vld [vmem:[%s181 + $0x948] sm:$0xff]
                %382 = vst [vmem:[%s182 + $0x318] sm:$0xff] %v381
                %v383 = vld [vmem:[%s181 + $0x960] sm:$0xff]
                %384 = vst [vmem:[%s182 + $0x320] sm:$0xff] %v383
                %v385 = vld [vmem:[%s181 + $0x978] sm:$0xff]
                %386 = vst [vmem:[%s182 + $0x328] sm:$0xff] %v385
                %v387 = vld [vmem:[%s181 + $0x990] sm:$0xff]
                %388 = vst [vmem:[%s182 + $0x330] sm:$0xff] %v387
                %v389 = vld [vmem:[%s181 + $0x9a8] sm:$0xff]
                %390 = vst [vmem:[%s182 + $0x338] sm:$0xff] %v389
                %v391 = vld [vmem:[%s181 + $0x9c0] sm:$0xff]
                %392 = vst [vmem:[%s182 + $0x340] sm:$0xff] %v391
                %v393 = vld [vmem:[%s181 + $0x9d8] sm:$0xff]
                %394 = vst [vmem:[%s182 + $0x348] sm:$0xff] %v393
                %v395 = vld [vmem:[%s181 + $0x9f0] sm:$0xff]
                %396 = vst [vmem:[%s182 + $0x350] sm:$0xff] %v395
                %v397 = vld [vmem:[%s181 + $0xa08] sm:$0xff]
                %398 = vst [vmem:[%s182 + $0x358] sm:$0xff] %v397
                %v399 = vld [vmem:[%s181 + $0xa20] sm:$0xff]
                %400 = vst [vmem:[%s182 + $0x360] sm:$0xff] %v399
                %v401 = vld [vmem:[%s181 + $0xa38] sm:$0xff]
                %402 = vst [vmem:[%s182 + $0x368] sm:$0xff] %v401
                %v403 = vld [vmem:[%s181 + $0xa50] sm:$0xff]
                %404 = vst [vmem:[%s182 + $0x370] sm:$0xff] %v403
                %v405 = vld [vmem:[%s181 + $0xa68] sm:$0xff]
                %406 = vst [vmem:[%s182 + $0x378] sm:$0xff] %v405
                %v407 = vld [vmem:[%s181 + $0xa80] sm:$0xff]
                %408 = vst [vmem:[%s182 + $0x380] sm:$0xff] %v407
                %v409 = vld [vmem:[%s181 + $0xa98] sm:$0xff]
                %410 = vst [vmem:[%s182 + $0x388] sm:$0xff] %v409
                %v411 = vld [vmem:[%s181 + $0xab0] sm:$0xff]
                %412 = vst [vmem:[%s182 + $0x390] sm:$0xff] %v411
                %v413 = vld [vmem:[%s181 + $0xac8] sm:$0xff]
                %414 = vst [vmem:[%s182 + $0x398] sm:$0xff] %v413
                %v415 = vld [vmem:[%s181 + $0xae0] sm:$0xff]
                %416 = vst [vmem:[%s182 + $0x3a0] sm:$0xff] %v415
                %v417 = vld [vmem:[%s181 + $0xaf8] sm:$0xff]
                %418 = vst [vmem:[%s182 + $0x3a8] sm:$0xff] %v417
                %v419 = vld [vmem:[%s181 + $0xb10] sm:$0xff]
                %420 = vst [vmem:[%s182 + $0x3b0] sm:$0xff] %v419
                %v421 = vld [vmem:[%s181 + $0xb28] sm:$0xff]
                %422 = vst [vmem:[%s182 + $0x3b8] sm:$0xff] %v421
                %v423 = vld [vmem:[%s181 + $0xb40] sm:$0xff]
                %424 = vst [vmem:[%s182 + $0x3c0] sm:$0xff] %v423
              $region37: #{depthwise_conv_bn.1} parent=31 // loop_footer
                %s180 = sadd.s32 1, %s176
              $region38: #{depthwise_conv_bn.1} parent=31 // loop_footer_branch
                %175 = sbr.rel target = $region34
              $region39: #{depthwise_conv_bn.1} parent=31 // loop_exit
                _
            $region32: #{depthwise_conv_bn.1} parent=23 // pred_fallthru
              _
          $region24: #{depthwise_conv_bn.1} parent=19 // pred_fallthru
            _
          %679 = vnop
        $region20: #{depthwise_conv_bn.1} parent=15 // pred_fallthru
          _
        // Predicated region
        $region55: #{depthwise_conv_bn.1} parent=15 // pred_check
          %p680 = pneg %p56
        $region56: #{depthwise_conv_bn.1} parent=15 // pred_check_branch
          %682 = sbr.rel (%p680) target = $region58
        $region57: #{depthwise_conv_bn.1} parent=15 // pred_region
          %s683 = sand.u32 %s46, 1
          %s684 = sand.u32 %s46, 1
          %s685 = smul.addr %s684, 200
          %s686 = scalar_lea.vmem [#allocation3], %s685
          %s687 = smul.addr %s10, 8
          %s688 = scalar_lea.vmem %s1, %s687
          // Predicated region
          $region59: #{depthwise_conv_bn.1} parent=57 // pred_check
            _
          $region60: #{depthwise_conv_bn.1} parent=57 // pred_check_branch
            %690 = sbr.rel (0) target = $region62
          $region61: #{depthwise_conv_bn.1} parent=57 // pred_region
            // Predicated region
            $region63: #{depthwise_conv_bn.1} parent=61 // pred_check
              _
            $region64: #{depthwise_conv_bn.1} parent=61 // pred_check_branch
              %692 = sbr.rel (0) target = $region66
            $region65: #{depthwise_conv_bn.1} parent=61 // pred_region
              // Predicated region
              $region78: #{depthwise_conv_bn.1} parent=65 // pred_check
                _
              $region79: #{depthwise_conv_bn.1} parent=65 // pred_check_branch
                %755 = sbr.rel (0) target = $region81
              $region80: #{depthwise_conv_bn.1} parent=65 // pred_region
                loop: start=0, step=1, limit=1
                $region82: #{depthwise_conv_bn.1} parent=80 // loop_pre_header
                  _
                $region83: #{depthwise_conv_bn.1} parent=80 // loop_header
                  %s757 = sphi 0, %s761
                  %p758 = scmp.ge.s32.totalorder %s757, 1
                  %s762 = sphi %s688, %s688
                  %s763 = sphi %s686, %s686
                $region84: #{depthwise_conv_bn.1} parent=80 // loop_header_branch
                  %760 = sbr.rel (%p758) target = $region88
                $region85: #{depthwise_conv_bn.1} parent=80 // loop_body
                  %v764 = vld [vmem:[%s762] sm:$0xff]
                  %765 = vst [vmem:[%s763] sm:$0xff] %v764
                  %v766 = vld [vmem:[%s762 + $0x18] sm:$0xff]
                  %767 = vst [vmem:[%s763 + $0x8] sm:$0xff] %v766
                  %v768 = vld [vmem:[%s762 + $0x30] sm:$0xff]
                  %769 = vst [vmem:[%s763 + $0x10] sm:$0xff] %v768
                  %v770 = vld [vmem:[%s762 + $0x48] sm:$0xff]
                  %771 = vst [vmem:[%s763 + $0x18] sm:$0xff] %v770
                  %v772 = vld [vmem:[%s762 + $0x60] sm:$0xff]
                  %773 = vst [vmem:[%s763 + $0x20] sm:$0xff] %v772
                  %v774 = vld [vmem:[%s762 + $0x78] sm:$0xff]
                  %775 = vst [vmem:[%s763 + $0x28] sm:$0xff] %v774
                  %v776 = vld [vmem:[%s762 + $0x90] sm:$0xff]
                  %777 = vst [vmem:[%s763 + $0x30] sm:$0xff] %v776
                  %v778 = vld [vmem:[%s762 + $0xa8] sm:$0xff]
                  %779 = vst [vmem:[%s763 + $0x38] sm:$0xff] %v778
                  %v780 = vld [vmem:[%s762 + $0xc0] sm:$0xff]
                  %781 = vst [vmem:[%s763 + $0x40] sm:$0xff] %v780
                  %v782 = vld [vmem:[%s762 + $0xd8] sm:$0xff]
                  %783 = vst [vmem:[%s763 + $0x48] sm:$0xff] %v782
                  %v784 = vld [vmem:[%s762 + $0xf0] sm:$0xff]
                  %785 = vst [vmem:[%s763 + $0x50] sm:$0xff] %v784
                  %v786 = vld [vmem:[%s762 + $0x108] sm:$0xff]
                  %787 = vst [vmem:[%s763 + $0x58] sm:$0xff] %v786
                  %v788 = vld [vmem:[%s762 + $0x120] sm:$0xff]
                  %789 = vst [vmem:[%s763 + $0x60] sm:$0xff] %v788
                  %v790 = vld [vmem:[%s762 + $0x138] sm:$0xff]
                  %791 = vst [vmem:[%s763 + $0x68] sm:$0xff] %v790
                  %v792 = vld [vmem:[%s762 + $0x150] sm:$0xff]
                  %793 = vst [vmem:[%s763 + $0x70] sm:$0xff] %v792
                  %v794 = vld [vmem:[%s762 + $0x168] sm:$0xff]
                  %795 = vst [vmem:[%s763 + $0x78] sm:$0xff] %v794
                  %v796 = vld [vmem:[%s762 + $0x180] sm:$0xff]
                  %797 = vst [vmem:[%s763 + $0x80] sm:$0xff] %v796
                  %v798 = vld [vmem:[%s762 + $0x198] sm:$0xff]
                  %799 = vst [vmem:[%s763 + $0x88] sm:$0xff] %v798
                  %v800 = vld [vmem:[%s762 + $0x1b0] sm:$0xff]
                  %801 = vst [vmem:[%s763 + $0x90] sm:$0xff] %v800
                  %v802 = vld [vmem:[%s762 + $0x1c8] sm:$0xff]
                  %803 = vst [vmem:[%s763 + $0x98] sm:$0xff] %v802
                  %v804 = vld [vmem:[%s762 + $0x1e0] sm:$0xff]
                  %805 = vst [vmem:[%s763 + $0xa0] sm:$0xff] %v804
                  %v806 = vld [vmem:[%s762 + $0x1f8] sm:$0xff]
                  %807 = vst [vmem:[%s763 + $0xa8] sm:$0xff] %v806
                  %v808 = vld [vmem:[%s762 + $0x210] sm:$0xff]
                  %809 = vst [vmem:[%s763 + $0xb0] sm:$0xff] %v808
                  %v810 = vld [vmem:[%s762 + $0x228] sm:$0xff]
                  %811 = vst [vmem:[%s763 + $0xb8] sm:$0xff] %v810
                  %v812 = vld [vmem:[%s762 + $0x240] sm:$0xff]
                  %813 = vst [vmem:[%s763 + $0xc0] sm:$0xff] %v812
                $region86: #{depthwise_conv_bn.1} parent=80 // loop_footer
                  %s761 = sadd.s32 1, %s757
                $region87: #{depthwise_conv_bn.1} parent=80 // loop_footer_branch
                  %756 = sbr.rel target = $region83
                $region88: #{depthwise_conv_bn.1} parent=80 // loop_exit
                  _
              $region81: #{depthwise_conv_bn.1} parent=65 // pred_fallthru
                _
              // Predicated region
              $region89: #{depthwise_conv_bn.1} parent=65 // pred_check
                _
              $region90: #{depthwise_conv_bn.1} parent=65 // pred_check_branch
                %815 = sbr.rel target = $region92
              $region91: #{depthwise_conv_bn.1} parent=65 // pred_region
                _
              $region92: #{depthwise_conv_bn.1} parent=65 // pred_fallthru
                _
            $region66: #{depthwise_conv_bn.1} parent=61 // pred_fallthru
              _
            // Predicated region
            $region67: #{depthwise_conv_bn.1} parent=61 // pred_check
              _
            $region68: #{depthwise_conv_bn.1} parent=61 // pred_check_branch
              %694 = sbr.rel target = $region70
            $region69: #{depthwise_conv_bn.1} parent=61 // pred_region
              loop: start=0, step=1, limit=1
              $region71: #{depthwise_conv_bn.1} parent=69 // loop_pre_header
                _
              $region72: #{depthwise_conv_bn.1} parent=69 // loop_header
                %s697 = sphi 0, %s701
                %p698 = scmp.ge.s32.totalorder %s697, 1
                %s702 = sphi %s688, %s688
                %s703 = sphi %s686, %s686
              $region73: #{depthwise_conv_bn.1} parent=69 // loop_header_branch
                %700 = sbr.rel (%p698) target = $region77
              $region74: #{depthwise_conv_bn.1} parent=69 // loop_body
                %v704 = vld [vmem:[%s702] sm:$0xff]
                %705 = vst [vmem:[%s703] sm:$0xff] %v704
                %v706 = vld [vmem:[%s702 + $0x18] sm:$0xff]
                %707 = vst [vmem:[%s703 + $0x8] sm:$0xff] %v706
                %v708 = vld [vmem:[%s702 + $0x30] sm:$0xff]
                %709 = vst [vmem:[%s703 + $0x10] sm:$0xff] %v708
                %v710 = vld [vmem:[%s702 + $0x48] sm:$0xff]
                %711 = vst [vmem:[%s703 + $0x18] sm:$0xff] %v710
                %v712 = vld [vmem:[%s702 + $0x60] sm:$0xff]
                %713 = vst [vmem:[%s703 + $0x20] sm:$0xff] %v712
                %v714 = vld [vmem:[%s702 + $0x78] sm:$0xff]
                %715 = vst [vmem:[%s703 + $0x28] sm:$0xff] %v714
                %v716 = vld [vmem:[%s702 + $0x90] sm:$0xff]
                %717 = vst [vmem:[%s703 + $0x30] sm:$0xff] %v716
                %v718 = vld [vmem:[%s702 + $0xa8] sm:$0xff]
                %719 = vst [vmem:[%s703 + $0x38] sm:$0xff] %v718
                %v720 = vld [vmem:[%s702 + $0xc0] sm:$0xff]
                %721 = vst [vmem:[%s703 + $0x40] sm:$0xff] %v720
                %v722 = vld [vmem:[%s702 + $0xd8] sm:$0xff]
                %723 = vst [vmem:[%s703 + $0x48] sm:$0xff] %v722
                %v724 = vld [vmem:[%s702 + $0xf0] sm:$0xff]
                %725 = vst [vmem:[%s703 + $0x50] sm:$0xff] %v724
                %v726 = vld [vmem:[%s702 + $0x108] sm:$0xff]
                %727 = vst [vmem:[%s703 + $0x58] sm:$0xff] %v726
                %v728 = vld [vmem:[%s702 + $0x120] sm:$0xff]
                %729 = vst [vmem:[%s703 + $0x60] sm:$0xff] %v728
                %v730 = vld [vmem:[%s702 + $0x138] sm:$0xff]
                %731 = vst [vmem:[%s703 + $0x68] sm:$0xff] %v730
                %v732 = vld [vmem:[%s702 + $0x150] sm:$0xff]
                %733 = vst [vmem:[%s703 + $0x70] sm:$0xff] %v732
                %v734 = vld [vmem:[%s702 + $0x168] sm:$0xff]
                %735 = vst [vmem:[%s703 + $0x78] sm:$0xff] %v734
                %v736 = vld [vmem:[%s702 + $0x180] sm:$0xff]
                %737 = vst [vmem:[%s703 + $0x80] sm:$0xff] %v736
                %v738 = vld [vmem:[%s702 + $0x198] sm:$0xff]
                %739 = vst [vmem:[%s703 + $0x88] sm:$0xff] %v738
                %v740 = vld [vmem:[%s702 + $0x1b0] sm:$0xff]
                %741 = vst [vmem:[%s703 + $0x90] sm:$0xff] %v740
                %v742 = vld [vmem:[%s702 + $0x1c8] sm:$0xff]
                %743 = vst [vmem:[%s703 + $0x98] sm:$0xff] %v742
                %v744 = vld [vmem:[%s702 + $0x1e0] sm:$0xff]
                %745 = vst [vmem:[%s703 + $0xa0] sm:$0xff] %v744
                %v746 = vld [vmem:[%s702 + $0x1f8] sm:$0xff]
                %747 = vst [vmem:[%s703 + $0xa8] sm:$0xff] %v746
                %v748 = vld [vmem:[%s702 + $0x210] sm:$0xff]
                %749 = vst [vmem:[%s703 + $0xb0] sm:$0xff] %v748
                %v750 = vld [vmem:[%s702 + $0x228] sm:$0xff]
                %751 = vst [vmem:[%s703 + $0xb8] sm:$0xff] %v750
                %v752 = vld [vmem:[%s702 + $0x240] sm:$0xff]
                %753 = vst [vmem:[%s703 + $0xc0] sm:$0xff] %v752
              $region75: #{depthwise_conv_bn.1} parent=69 // loop_footer
                %s701 = sadd.s32 1, %s697
              $region76: #{depthwise_conv_bn.1} parent=69 // loop_footer_branch
                %696 = sbr.rel target = $region72
              $region77: #{depthwise_conv_bn.1} parent=69 // loop_exit
                _
            $region70: #{depthwise_conv_bn.1} parent=61 // pred_fallthru
              _
          $region62: #{depthwise_conv_bn.1} parent=57 // pred_fallthru
            _
          %816 = vnop
        $region58: #{depthwise_conv_bn.1} parent=15 // pred_fallthru
          _
        // Predicated region
        $region93: #{depthwise_conv_bn.1} parent=15 // pred_check
          %p817 = pneg %p82
        $region94: #{depthwise_conv_bn.1} parent=15 // pred_check_branch
          %819 = sbr.rel (%p817) target = $region96
        $region95: #{depthwise_conv_bn.1} parent=15 // pred_region
          %p820 = scmp.lt.s32.totalorder %s10, 2
          %s821 = scalar_select %p820, %s10, 2
          %s822 = smul.addr %s821, 8
          %s823 = scalar_lea.vmem %s2, %s822
        $region96: #{depthwise_conv_bn.1} parent=15 // pred_fallthru
          _
        // Predicated region
        $region97: #{depthwise_conv_bn.1} parent=15 // pred_check
          %p824 = pneg %p108
        $region98: #{depthwise_conv_bn.1} parent=15 // pred_check_branch
          %826 = sbr.rel (%p824) target = $region100
        $region99: #{depthwise_conv_bn.1} parent=15 // pred_region
          %p827 = scmp.lt.s32.totalorder %s10, 2
          %s828 = scalar_select %p827, %s10, 2
          %s829 = smul.addr %s828, 8
          %s830 = scalar_lea.vmem %s3, %s829
        $region100: #{depthwise_conv_bn.1} parent=15 // pred_fallthru
          _
      $region16: #{depthwise_conv_bn.1} parent=5 // pred_fallthru
        _
      %p831 = scmp.le.s32.totalorder 1, %s10
      %p832 = scmp.lt.s32.totalorder %s10, 4
      %p833 = pnand %p831, %p832
      %p834 = pneg %p833
      // Predicated region
      $region101: #{depthwise_conv_bn.1} parent=5 // pred_check
        _
      $region102: #{depthwise_conv_bn.1} parent=5 // pred_check_branch
        %836 = sbr.rel (%p833) target = $region104
      $region103: #{depthwise_conv_bn.1} parent=5 // pred_region
        %s837 = ssub.s32 %s10, 1
        %s838 = sand.u32 %s23, 1
        %s839 = sand.u32 %s23, 1
        %s840 = smul.addr %s839, 968
        %s841 = scalar_lea.vmem [#allocation2], %s840
        // Predicated region
        $region105: #{depthwise_conv_bn.1} parent=103 // pred_check
          %p842 = pneg %p36
        $region106: #{depthwise_conv_bn.1} parent=103 // pred_check_branch
          %844 = sbr.rel (%p842) target = $region108
        $region107: #{depthwise_conv_bn.1} parent=103 // pred_region
          _
        $region108: #{depthwise_conv_bn.1} parent=103 // pred_fallthru
          _
        %s845 = sand.u32 %s49, 1
        %s846 = sand.u32 %s49, 1
        %s847 = smul.addr %s846, 200
        %s848 = scalar_lea.vmem [#allocation3], %s847
        // Predicated region
        $region109: #{depthwise_conv_bn.1} parent=103 // pred_check
          %p849 = pneg %p62
        $region110: #{depthwise_conv_bn.1} parent=103 // pred_check_branch
          %851 = sbr.rel (%p849) target = $region112
        $region111: #{depthwise_conv_bn.1} parent=103 // pred_region
          _
        $region112: #{depthwise_conv_bn.1} parent=103 // pred_fallthru
          _
        %s852 = sand.u32 %s23, 1
        %s853 = sand.u32 %s23, 1
        %s854 = smul.addr %s853, 968
        %s855 = scalar_lea.vmem [#allocation2], %s854
        %p856 = pneg %p36
        %p857 = pneg %p33
        %s858 = sand.u32 %s49, 1
        %s859 = sand.u32 %s49, 1
        %s860 = smul.addr %s859, 200
        %s861 = scalar_lea.vmem [#allocation3], %s860
        %p862 = pneg %p62
        %p863 = pneg %p59
        %p864 = scmp.lt.s32.totalorder %s15, 2
        %s865 = scalar_select %p864, %s15, 2
        %s866 = smul.addr %s865, 8
        %s867 = scalar_lea.vmem %s2, %s866
        %p868 = pneg %p88
        %p869 = pneg %p85
        %p870 = scmp.lt.s32.totalorder %s15, 2
        %s871 = scalar_select %p870, %s15, 2
        %s872 = smul.addr %s871, 8
        %s873 = scalar_lea.vmem %s3, %s872
        %p874 = pneg %p114
        %p875 = pneg %p111
        %p876 = pneg %p140
        %p877 = pneg %p137
        %s878 = sand.u32 %s127, 1
        %s879 = sand.u32 %s127, 1
        %s880 = smul.addr %s879, 392
        %s881 = scalar_lea.vmem [#allocation4], %s880
        %p882 = scmp.lt.s32.totalorder %s15, 2
        %s883 = scalar_select %p882, %s15, 2
        %s884 = smul.addr %s883, 8
        %s885 = scalar_lea.vmem %s2, %s884
        %p886 = scmp.lt.s32.totalorder %s15, 2
        %s887 = scalar_select %p886, %s15, 2
        %s888 = smul.addr %s887, 8
        %s889 = scalar_lea.vmem %s3, %s888
        %v890 = vld [vmem:[%s848] sm:$0xff]
        %v891 = vld [vmem:[%s848 + $0x8] sm:$0xff]
        %v892 = vld [vmem:[%s848 + $0x10] sm:$0xff]
        %v893 = vld [vmem:[%s848 + $0x18] sm:$0xff]
        %v894 = vld [vmem:[%s848 + $0x20] sm:$0xff]
        %v895 = vld [vmem:[%s848 + $0x28] sm:$0xff]
        %v896 = vld [vmem:[%s848 + $0x30] sm:$0xff]
        %v897 = vld [vmem:[%s848 + $0x38] sm:$0xff]
        %v898 = vld [vmem:[%s848 + $0x40] sm:$0xff]
        %v899 = vld [vmem:[%s848 + $0x48] sm:$0xff]
        %v900 = vld [vmem:[%s848 + $0x50] sm:$0xff]
        %v901 = vld [vmem:[%s848 + $0x58] sm:$0xff]
        %v902 = vld [vmem:[%s848 + $0x60] sm:$0xff]
        %v903 = vld [vmem:[%s848 + $0x68] sm:$0xff]
        %v904 = vld [vmem:[%s848 + $0x70] sm:$0xff]
        %v905 = vld [vmem:[%s848 + $0x78] sm:$0xff]
        %v906 = vld [vmem:[%s848 + $0x80] sm:$0xff]
        %v907 = vld [vmem:[%s848 + $0x88] sm:$0xff]
        %v908 = vld [vmem:[%s848 + $0x90] sm:$0xff]
        %v909 = vld [vmem:[%s848 + $0x98] sm:$0xff]
        %v910 = vld [vmem:[%s848 + $0xa0] sm:$0xff]
        %v911 = vld [vmem:[%s848 + $0xa8] sm:$0xff]
        %v912 = vld [vmem:[%s848 + $0xb0] sm:$0xff]
        %v913 = vld [vmem:[%s848 + $0xb8] sm:$0xff]
        %v914 = vld [vmem:[%s848 + $0xc0] sm:$0xff]
        %v915 = vld [vmem:[%s841] sm:$0xff]
        %v916 = vld [vmem:[%s841 + $0x8] sm:$0xff]
        %v917 = vld [vmem:[%s841 + $0x10] sm:$0xff]
        %v918 = vld [vmem:[%s841 + $0x18] sm:$0xff]
        %v919 = vld [vmem:[%s841 + $0x20] sm:$0xff]
        %v920 = vld [vmem:[%s841 + $0x28] sm:$0xff]
        %v921 = vld [vmem:[%s841 + $0x30] sm:$0xff]
        %v922 = vld [vmem:[%s841 + $0x38] sm:$0xff]
        %v923 = vld [vmem:[%s841 + $0x40] sm:$0xff]
        %v924 = vld [vmem:[%s841 + $0x48] sm:$0xff]
        %v925 = vld [vmem:[%s841 + $0x50] sm:$0xff]
        %v926 = vmul.f32 %v915, %v890
        %v927 = vmul.f32 %v916, %v890
        %v928 = vmul.f32 %v917, %v890
        %v929 = vmul.f32 %v918, %v890
        %v930 = vmul.f32 %v919, %v890
        %v931 = vmul.f32 %v920, %v890
        %v932 = vmul.f32 %v921, %v890
        %v933 = vadd.f32 %v926, 0.0
        %v934 = vadd.f32 %v927, 0.0
        %v935 = vadd.f32 %v928, 0.0
        %v936 = vadd.f32 %v929, 0.0
        %v937 = vadd.f32 %v930, 0.0
        %v938 = vadd.f32 %v931, 0.0
        %v939 = vadd.f32 %v932, 0.0
        %v940 = vmul.f32 %v916, %v891
        %v941 = vmul.f32 %v917, %v891
        %v942 = vmul.f32 %v918, %v891
        %v943 = vmul.f32 %v919, %v891
        %v944 = vmul.f32 %v920, %v891
        %v945 = vmul.f32 %v921, %v891
        %v946 = vmul.f32 %v922, %v891
        %v947 = vadd.f32 %v933, %v940
        %v948 = vadd.f32 %v934, %v941
        %v949 = vadd.f32 %v935, %v942
        %v950 = vadd.f32 %v936, %v943
        %v951 = vadd.f32 %v937, %v944
        %v952 = vadd.f32 %v938, %v945
        %v953 = vadd.f32 %v939, %v946
        %v954 = vmul.f32 %v917, %v892
        %v955 = vmul.f32 %v918, %v892
        %v956 = vmul.f32 %v919, %v892
        %v957 = vmul.f32 %v920, %v892
        %v958 = vmul.f32 %v921, %v892
        %v959 = vmul.f32 %v922, %v892
        %v960 = vmul.f32 %v923, %v892
        %v961 = vadd.f32 %v947, %v954
        %v962 = vadd.f32 %v948, %v955
        %v963 = vadd.f32 %v949, %v956
        %v964 = vadd.f32 %v950, %v957
        %v965 = vadd.f32 %v951, %v958
        %v966 = vadd.f32 %v952, %v959
        %v967 = vadd.f32 %v953, %v960
        %v968 = vmul.f32 %v918, %v893
        %v969 = vmul.f32 %v919, %v893
        %v970 = vmul.f32 %v920, %v893
        %v971 = vmul.f32 %v921, %v893
        %v972 = vmul.f32 %v922, %v893
        %v973 = vmul.f32 %v923, %v893
        %v974 = vmul.f32 %v924, %v893
        %v975 = vadd.f32 %v961, %v968
        %v976 = vadd.f32 %v962, %v969
        %v977 = vadd.f32 %v963, %v970
        %v978 = vadd.f32 %v964, %v971
        %v979 = vadd.f32 %v965, %v972
        %v980 = vadd.f32 %v966, %v973
        %v981 = vadd.f32 %v967, %v974
        %v982 = vmul.f32 %v919, %v894
        %v983 = vmul.f32 %v920, %v894
        %v984 = vmul.f32 %v921, %v894
        %v985 = vmul.f32 %v922, %v894
        %v986 = vmul.f32 %v923, %v894
        %v987 = vmul.f32 %v924, %v894
        %v988 = vmul.f32 %v925, %v894
        %v989 = vadd.f32 %v975, %v982
        %v990 = vadd.f32 %v976, %v983
        %v991 = vadd.f32 %v977, %v984
        %v992 = vadd.f32 %v978, %v985
        %v993 = vadd.f32 %v979, %v986
        %v994 = vadd.f32 %v980, %v987
        %v995 = vadd.f32 %v981, %v988
        %s996 = scalar_lea.vmem %s841, 88 [#allocation2]
        %v997 = vld [vmem:[%s996] sm:$0xff]
        %v998 = vld [vmem:[%s996 + $0x8] sm:$0xff]
        %v999 = vld [vmem:[%s996 + $0x10] sm:$0xff]
        %v1000 = vld [vmem:[%s996 + $0x18] sm:$0xff]
        %v1001 = vld [vmem:[%s996 + $0x20] sm:$0xff]
        %v1002 = vld [vmem:[%s996 + $0x28] sm:$0xff]
        %v1003 = vld [vmem:[%s996 + $0x30] sm:$0xff]
        %v1004 = vld [vmem:[%s996 + $0x38] sm:$0xff]
        %v1005 = vld [vmem:[%s996 + $0x40] sm:$0xff]
        %v1006 = vld [vmem:[%s996 + $0x48] sm:$0xff]
        %v1007 = vld [vmem:[%s996 + $0x50] sm:$0xff]
        %v1008 = vmul.f32 %v997, %v895
        %v1009 = vmul.f32 %v998, %v895
        %v1010 = vmul.f32 %v999, %v895
        %v1011 = vmul.f32 %v1000, %v895
        %v1012 = vmul.f32 %v1001, %v895
        %v1013 = vmul.f32 %v1002, %v895
        %v1014 = vmul.f32 %v1003, %v895
        %v1015 = vadd.f32 %v989, %v1008
        %v1016 = vadd.f32 %v990, %v1009
        %v1017 = vadd.f32 %v991, %v1010
        %v1018 = vadd.f32 %v992, %v1011
        %v1019 = vadd.f32 %v993, %v1012
        %v1020 = vadd.f32 %v994, %v1013
        %v1021 = vadd.f32 %v995, %v1014
        %v1022 = vmul.f32 %v998, %v896
        %v1023 = vmul.f32 %v999, %v896
        %v1024 = vmul.f32 %v1000, %v896
        %v1025 = vmul.f32 %v1001, %v896
        %v1026 = vmul.f32 %v1002, %v896
        %v1027 = vmul.f32 %v1003, %v896
        %v1028 = vmul.f32 %v1004, %v896
        %v1029 = vadd.f32 %v1015, %v1022
        %v1030 = vadd.f32 %v1016, %v1023
        %v1031 = vadd.f32 %v1017, %v1024
        %v1032 = vadd.f32 %v1018, %v1025
        %v1033 = vadd.f32 %v1019, %v1026
        %v1034 = vadd.f32 %v1020, %v1027
        %v1035 = vadd.f32 %v1021, %v1028
        %v1036 = vmul.f32 %v999, %v897
        %v1037 = vmul.f32 %v1000, %v897
        %v1038 = vmul.f32 %v1001, %v897
        %v1039 = vmul.f32 %v1002, %v897
        %v1040 = vmul.f32 %v1003, %v897
        %v1041 = vmul.f32 %v1004, %v897
        %v1042 = vmul.f32 %v1005, %v897
        %v1043 = vadd.f32 %v1029, %v1036
        %v1044 = vadd.f32 %v1030, %v1037
        %v1045 = vadd.f32 %v1031, %v1038
        %v1046 = vadd.f32 %v1032, %v1039
        %v1047 = vadd.f32 %v1033, %v1040
        %v1048 = vadd.f32 %v1034, %v1041
        %v1049 = vadd.f32 %v1035, %v1042
        %v1050 = vmul.f32 %v1000, %v898
        %v1051 = vmul.f32 %v1001, %v898
        %v1052 = vmul.f32 %v1002, %v898
        %v1053 = vmul.f32 %v1003, %v898
        %v1054 = vmul.f32 %v1004, %v898
        %v1055 = vmul.f32 %v1005, %v898
        %v1056 = vmul.f32 %v1006, %v898
        %v1057 = vadd.f32 %v1043, %v1050
        %v1058 = vadd.f32 %v1044, %v1051
        %v1059 = vadd.f32 %v1045, %v1052
        %v1060 = vadd.f32 %v1046, %v1053
        %v1061 = vadd.f32 %v1047, %v1054
        %v1062 = vadd.f32 %v1048, %v1055
        %v1063 = vadd.f32 %v1049, %v1056
        %v1064 = vmul.f32 %v1001, %v899
        %v1065 = vmul.f32 %v1002, %v899
        %v1066 = vmul.f32 %v1003, %v899
        %v1067 = vmul.f32 %v1004, %v899
        %v1068 = vmul.f32 %v1005, %v899
        %v1069 = vmul.f32 %v1006, %v899
        %v1070 = vmul.f32 %v1007, %v899
        %v1071 = vadd.f32 %v1057, %v1064
        %v1072 = vadd.f32 %v1058, %v1065
        %v1073 = vadd.f32 %v1059, %v1066
        %v1074 = vadd.f32 %v1060, %v1067
        %v1075 = vadd.f32 %v1061, %v1068
        %v1076 = vadd.f32 %v1062, %v1069
        %v1077 = vadd.f32 %v1063, %v1070
        %s1078 = scalar_lea.vmem %s841, 176 [#allocation2]
        %v1079 = vld [vmem:[%s1078] sm:$0xff]
        %v1080 = vld [vmem:[%s1078 + $0x8] sm:$0xff]
        %v1081 = vld [vmem:[%s1078 + $0x10] sm:$0xff]
        %v1082 = vld [vmem:[%s1078 + $0x18] sm:$0xff]
        %v1083 = vld [vmem:[%s1078 + $0x20] sm:$0xff]
        %v1084 = vld [vmem:[%s1078 + $0x28] sm:$0xff]
        %v1085 = vld [vmem:[%s1078 + $0x30] sm:$0xff]
        %v1086 = vld [vmem:[%s1078 + $0x38] sm:$0xff]
        %v1087 = vld [vmem:[%s1078 + $0x40] sm:$0xff]
        %v1088 = vld [vmem:[%s1078 + $0x48] sm:$0xff]
        %v1089 = vld [vmem:[%s1078 + $0x50] sm:$0xff]
        %v1090 = vmul.f32 %v1079, %v900
        %v1091 = vmul.f32 %v1080, %v900
        %v1092 = vmul.f32 %v1081, %v900
        %v1093 = vmul.f32 %v1082, %v900
        %v1094 = vmul.f32 %v1083, %v900
        %v1095 = vmul.f32 %v1084, %v900
        %v1096 = vmul.f32 %v1085, %v900
        %v1097 = vadd.f32 %v1071, %v1090
        %v1098 = vadd.f32 %v1072, %v1091
        %v1099 = vadd.f32 %v1073, %v1092
        %v1100 = vadd.f32 %v1074, %v1093
        %v1101 = vadd.f32 %v1075, %v1094
        %v1102 = vadd.f32 %v1076, %v1095
        %v1103 = vadd.f32 %v1077, %v1096
        %v1104 = vmul.f32 %v1080, %v901
        %v1105 = vmul.f32 %v1081, %v901
        %v1106 = vmul.f32 %v1082, %v901
        %v1107 = vmul.f32 %v1083, %v901
        %v1108 = vmul.f32 %v1084, %v901
        %v1109 = vmul.f32 %v1085, %v901
        %v1110 = vmul.f32 %v1086, %v901
        %v1111 = vadd.f32 %v1097, %v1104
        %v1112 = vadd.f32 %v1098, %v1105
        %v1113 = vadd.f32 %v1099, %v1106
        %v1114 = vadd.f32 %v1100, %v1107
        %v1115 = vadd.f32 %v1101, %v1108
        %v1116 = vadd.f32 %v1102, %v1109
        %v1117 = vadd.f32 %v1103, %v1110
        %v1118 = vmul.f32 %v1081, %v902
        %v1119 = vmul.f32 %v1082, %v902
        %v1120 = vmul.f32 %v1083, %v902
        %v1121 = vmul.f32 %v1084, %v902
        %v1122 = vmul.f32 %v1085, %v902
        %v1123 = vmul.f32 %v1086, %v902
        %v1124 = vmul.f32 %v1087, %v902
        %v1125 = vadd.f32 %v1111, %v1118
        %v1126 = vadd.f32 %v1112, %v1119
        %v1127 = vadd.f32 %v1113, %v1120
        %v1128 = vadd.f32 %v1114, %v1121
        %v1129 = vadd.f32 %v1115, %v1122
        %v1130 = vadd.f32 %v1116, %v1123
        %v1131 = vadd.f32 %v1117, %v1124
        %v1132 = vmul.f32 %v1082, %v903
        %v1133 = vmul.f32 %v1083, %v903
        %v1134 = vmul.f32 %v1084, %v903
        %v1135 = vmul.f32 %v1085, %v903
        %v1136 = vmul.f32 %v1086, %v903
        %v1137 = vmul.f32 %v1087, %v903
        %v1138 = vmul.f32 %v1088, %v903
        %v1139 = vadd.f32 %v1125, %v1132
        %v1140 = vadd.f32 %v1126, %v1133
        %v1141 = vadd.f32 %v1127, %v1134
        %v1142 = vadd.f32 %v1128, %v1135
        %v1143 = vadd.f32 %v1129, %v1136
        %v1144 = vadd.f32 %v1130, %v1137
        %v1145 = vadd.f32 %v1131, %v1138
        %v1146 = vmul.f32 %v1083, %v904
        %v1147 = vmul.f32 %v1084, %v904
        %v1148 = vmul.f32 %v1085, %v904
        %v1149 = vmul.f32 %v1086, %v904
        %v1150 = vmul.f32 %v1087, %v904
        %v1151 = vmul.f32 %v1088, %v904
        %v1152 = vmul.f32 %v1089, %v904
        %v1153 = vadd.f32 %v1139, %v1146
        %v1154 = vadd.f32 %v1140, %v1147
        %v1155 = vadd.f32 %v1141, %v1148
        %v1156 = vadd.f32 %v1142, %v1149
        %v1157 = vadd.f32 %v1143, %v1150
        %v1158 = vadd.f32 %v1144, %v1151
        %v1159 = vadd.f32 %v1145, %v1152
        %s1160 = scalar_lea.vmem %s841, 264 [#allocation2]
        %v1161 = vld [vmem:[%s1160] sm:$0xff]
        %v1162 = vld [vmem:[%s1160 + $0x8] sm:$0xff]
        %v1163 = vld [vmem:[%s1160 + $0x10] sm:$0xff]
        %v1164 = vld [vmem:[%s1160 + $0x18] sm:$0xff]
        %v1165 = vld [vmem:[%s1160 + $0x20] sm:$0xff]
        %v1166 = vld [vmem:[%s1160 + $0x28] sm:$0xff]
        %v1167 = vld [vmem:[%s1160 + $0x30] sm:$0xff]
        %v1168 = vld [vmem:[%s1160 + $0x38] sm:$0xff]
        %v1169 = vld [vmem:[%s1160 + $0x40] sm:$0xff]
        %v1170 = vld [vmem:[%s1160 + $0x48] sm:$0xff]
        %v1171 = vld [vmem:[%s1160 + $0x50] sm:$0xff]
        %v1172 = vmul.f32 %v1161, %v905
        %v1173 = vmul.f32 %v1162, %v905
        %v1174 = vmul.f32 %v1163, %v905
        %v1175 = vmul.f32 %v1164, %v905
        %v1176 = vmul.f32 %v1165, %v905
        %v1177 = vmul.f32 %v1166, %v905
        %v1178 = vmul.f32 %v1167, %v905
        %v1179 = vadd.f32 %v1153, %v1172
        %v1180 = vadd.f32 %v1154, %v1173
        %v1181 = vadd.f32 %v1155, %v1174
        %v1182 = vadd.f32 %v1156, %v1175
        %v1183 = vadd.f32 %v1157, %v1176
        %v1184 = vadd.f32 %v1158, %v1177
        %v1185 = vadd.f32 %v1159, %v1178
        %v1186 = vmul.f32 %v1162, %v906
        %v1187 = vmul.f32 %v1163, %v906
        %v1188 = vmul.f32 %v1164, %v906
        %v1189 = vmul.f32 %v1165, %v906
        %v1190 = vmul.f32 %v1166, %v906
        %v1191 = vmul.f32 %v1167, %v906
        %v1192 = vmul.f32 %v1168, %v906
        %v1193 = vadd.f32 %v1179, %v1186
        %v1194 = vadd.f32 %v1180, %v1187
        %v1195 = vadd.f32 %v1181, %v1188
        %v1196 = vadd.f32 %v1182, %v1189
        %v1197 = vadd.f32 %v1183, %v1190
        %v1198 = vadd.f32 %v1184, %v1191
        %v1199 = vadd.f32 %v1185, %v1192
        %v1200 = vmul.f32 %v1163, %v907
        %v1201 = vmul.f32 %v1164, %v907
        %v1202 = vmul.f32 %v1165, %v907
        %v1203 = vmul.f32 %v1166, %v907
        %v1204 = vmul.f32 %v1167, %v907
        %v1205 = vmul.f32 %v1168, %v907
        %v1206 = vmul.f32 %v1169, %v907
        %v1207 = vadd.f32 %v1193, %v1200
        %v1208 = vadd.f32 %v1194, %v1201
        %v1209 = vadd.f32 %v1195, %v1202
        %v1210 = vadd.f32 %v1196, %v1203
        %v1211 = vadd.f32 %v1197, %v1204
        %v1212 = vadd.f32 %v1198, %v1205
        %v1213 = vadd.f32 %v1199, %v1206
        %v1214 = vmul.f32 %v1164, %v908
        %v1215 = vmul.f32 %v1165, %v908
        %v1216 = vmul.f32 %v1166, %v908
        %v1217 = vmul.f32 %v1167, %v908
        %v1218 = vmul.f32 %v1168, %v908
        %v1219 = vmul.f32 %v1169, %v908
        %v1220 = vmul.f32 %v1170, %v908
        %v1221 = vadd.f32 %v1207, %v1214
        %v1222 = vadd.f32 %v1208, %v1215
        %v1223 = vadd.f32 %v1209, %v1216
        %v1224 = vadd.f32 %v1210, %v1217
        %v1225 = vadd.f32 %v1211, %v1218
        %v1226 = vadd.f32 %v1212, %v1219
        %v1227 = vadd.f32 %v1213, %v1220
        %v1228 = vmul.f32 %v1165, %v909
        %v1229 = vmul.f32 %v1166, %v909
        %v1230 = vmul.f32 %v1167, %v909
        %v1231 = vmul.f32 %v1168, %v909
        %v1232 = vmul.f32 %v1169, %v909
        %v1233 = vmul.f32 %v1170, %v909
        %v1234 = vmul.f32 %v1171, %v909
        %v1235 = vadd.f32 %v1221, %v1228
        %v1236 = vadd.f32 %v1222, %v1229
        %v1237 = vadd.f32 %v1223, %v1230
        %v1238 = vadd.f32 %v1224, %v1231
        %v1239 = vadd.f32 %v1225, %v1232
        %v1240 = vadd.f32 %v1226, %v1233
        %v1241 = vadd.f32 %v1227, %v1234
        %s1242 = scalar_lea.vmem %s841, 352 [#allocation2]
        %v1243 = vld [vmem:[%s1242] sm:$0xff]
        %v1244 = vld [vmem:[%s1242 + $0x8] sm:$0xff]
        %v1245 = vld [vmem:[%s1242 + $0x10] sm:$0xff]
        %v1246 = vld [vmem:[%s1242 + $0x18] sm:$0xff]
        %v1247 = vld [vmem:[%s1242 + $0x20] sm:$0xff]
        %v1248 = vld [vmem:[%s1242 + $0x28] sm:$0xff]
        %v1249 = vld [vmem:[%s1242 + $0x30] sm:$0xff]
        %v1250 = vld [vmem:[%s1242 + $0x38] sm:$0xff]
        %v1251 = vld [vmem:[%s1242 + $0x40] sm:$0xff]
        %v1252 = vld [vmem:[%s1242 + $0x48] sm:$0xff]
        %v1253 = vld [vmem:[%s1242 + $0x50] sm:$0xff]
        %v1254 = vmul.f32 %v1243, %v910
        %v1255 = vmul.f32 %v1244, %v910
        %v1256 = vmul.f32 %v1245, %v910
        %v1257 = vmul.f32 %v1246, %v910
        %v1258 = vmul.f32 %v1247, %v910
        %v1259 = vmul.f32 %v1248, %v910
        %v1260 = vmul.f32 %v1249, %v910
        %v1261 = vadd.f32 %v1235, %v1254
        %v1262 = vadd.f32 %v1236, %v1255
        %v1263 = vadd.f32 %v1237, %v1256
        %v1264 = vadd.f32 %v1238, %v1257
        %v1265 = vadd.f32 %v1239, %v1258
        %v1266 = vadd.f32 %v1240, %v1259
        %v1267 = vadd.f32 %v1241, %v1260
        %v1268 = vmul.f32 %v1244, %v911
        %v1269 = vmul.f32 %v1245, %v911
        %v1270 = vmul.f32 %v1246, %v911
        %v1271 = vmul.f32 %v1247, %v911
        %v1272 = vmul.f32 %v1248, %v911
        %v1273 = vmul.f32 %v1249, %v911
        %v1274 = vmul.f32 %v1250, %v911
        %v1275 = vadd.f32 %v1261, %v1268
        %v1276 = vadd.f32 %v1262, %v1269
        %v1277 = vadd.f32 %v1263, %v1270
        %v1278 = vadd.f32 %v1264, %v1271
        %v1279 = vadd.f32 %v1265, %v1272
        %v1280 = vadd.f32 %v1266, %v1273
        %v1281 = vadd.f32 %v1267, %v1274
        %v1282 = vmul.f32 %v1245, %v912
        %v1283 = vmul.f32 %v1246, %v912
        %v1284 = vmul.f32 %v1247, %v912
        %v1285 = vmul.f32 %v1248, %v912
        %v1286 = vmul.f32 %v1249, %v912
        %v1287 = vmul.f32 %v1250, %v912
        %v1288 = vmul.f32 %v1251, %v912
        %v1289 = vadd.f32 %v1275, %v1282
        %v1290 = vadd.f32 %v1276, %v1283
        %v1291 = vadd.f32 %v1277, %v1284
        %v1292 = vadd.f32 %v1278, %v1285
        %v1293 = vadd.f32 %v1279, %v1286
        %v1294 = vadd.f32 %v1280, %v1287
        %v1295 = vadd.f32 %v1281, %v1288
        %v1296 = vmul.f32 %v1246, %v913
        %v1297 = vmul.f32 %v1247, %v913
        %v1298 = vmul.f32 %v1248, %v913
        %v1299 = vmul.f32 %v1249, %v913
        %v1300 = vmul.f32 %v1250, %v913
        %v1301 = vmul.f32 %v1251, %v913
        %v1302 = vmul.f32 %v1252, %v913
        %v1303 = vadd.f32 %v1289, %v1296
        %v1304 = vadd.f32 %v1290, %v1297
        %v1305 = vadd.f32 %v1291, %v1298
        %v1306 = vadd.f32 %v1292, %v1299
        %v1307 = vadd.f32 %v1293, %v1300
        %v1308 = vadd.f32 %v1294, %v1301
        %v1309 = vadd.f32 %v1295, %v1302
        %v1310 = vmul.f32 %v1247, %v914
        %v1311 = vmul.f32 %v1248, %v914
        %v1312 = vmul.f32 %v1249, %v914
        %v1313 = vmul.f32 %v1250, %v914
        %v1314 = vmul.f32 %v1251, %v914
        %v1315 = vmul.f32 %v1252, %v914
        %v1316 = vmul.f32 %v1253, %v914
        %v1317 = vadd.f32 %v1303, %v1310
        %v1318 = vadd.f32 %v1304, %v1311
        %v1319 = vadd.f32 %v1305, %v1312
        %v1320 = vadd.f32 %v1306, %v1313
        %v1321 = vadd.f32 %v1307, %v1314
        %v1322 = vadd.f32 %v1308, %v1315
        %v1323 = vadd.f32 %v1309, %v1316
        %1324 = vst [vmem:[%s881] sm:$0xff] %v1317
        %1325 = vst [vmem:[%s881 + $0x8] sm:$0xff] %v1318
        %1326 = vst [vmem:[%s881 + $0x10] sm:$0xff] %v1319
        %1327 = vst [vmem:[%s881 + $0x18] sm:$0xff] %v1320
        %1328 = vst [vmem:[%s881 + $0x20] sm:$0xff] %v1321
        %1329 = vst [vmem:[%s881 + $0x28] sm:$0xff] %v1322
        %1330 = vst [vmem:[%s881 + $0x30] sm:$0xff] %v1323
        %v1331 = vadd.f32 %v1317, %v1318
        %v1332 = vadd.f32 %v1331, %v1319
        %v1333 = vadd.f32 %v1332, %v1320
        %v1334 = vadd.f32 %v1333, %v1321
        %v1335 = vadd.f32 %v1334, %v1322
        %v1336 = vadd.f32 %v1335, %v1323
        %v1337 = vadd.f32 %v1336, 0.0
        %v1338 = vmul.f32 %v1317, %v1317
        %v1339 = vmul.f32 %v1318, %v1318
        %v1340 = vmul.f32 %v1319, %v1319
        %v1341 = vmul.f32 %v1320, %v1320
        %v1342 = vmul.f32 %v1321, %v1321
        %v1343 = vmul.f32 %v1322, %v1322
        %v1344 = vmul.f32 %v1323, %v1323
        %v1345 = vadd.f32 %v1338, %v1339
        %v1346 = vadd.f32 %v1345, %v1340
        %v1347 = vadd.f32 %v1346, %v1341
        %v1348 = vadd.f32 %v1347, %v1342
        %v1349 = vadd.f32 %v1348, %v1343
        %v1350 = vadd.f32 %v1349, %v1344
        %v1351 = vadd.f32 %v1350, 0.0
        %v1352 = vld [vmem:[%s996] sm:$0xff]
        %v1353 = vld [vmem:[%s996 + $0x8] sm:$0xff]
        %v1354 = vld [vmem:[%s996 + $0x10] sm:$0xff]
        %v1355 = vld [vmem:[%s996 + $0x18] sm:$0xff]
        %v1356 = vld [vmem:[%s996 + $0x20] sm:$0xff]
        %v1357 = vld [vmem:[%s996 + $0x28] sm:$0xff]
        %v1358 = vld [vmem:[%s996 + $0x30] sm:$0xff]
        %v1359 = vld [vmem:[%s996 + $0x38] sm:$0xff]
        %v1360 = vld [vmem:[%s996 + $0x40] sm:$0xff]
        %v1361 = vld [vmem:[%s996 + $0x48] sm:$0xff]
        %v1362 = vld [vmem:[%s996 + $0x50] sm:$0xff]
        %v1363 = vmul.f32 %v1352, %v890
        %v1364 = vmul.f32 %v1353, %v890
        %v1365 = vmul.f32 %v1354, %v890
        %v1366 = vmul.f32 %v1355, %v890
        %v1367 = vmul.f32 %v1356, %v890
        %v1368 = vmul.f32 %v1357, %v890
        %v1369 = vmul.f32 %v1358, %v890
        %v1370 = vadd.f32 %v1363, 0.0
        %v1371 = vadd.f32 %v1364, 0.0
        %v1372 = vadd.f32 %v1365, 0.0
        %v1373 = vadd.f32 %v1366, 0.0
        %v1374 = vadd.f32 %v1367, 0.0
        %v1375 = vadd.f32 %v1368, 0.0
        %v1376 = vadd.f32 %v1369, 0.0
        %v1377 = vmul.f32 %v1353, %v891
        %v1378 = vmul.f32 %v1354, %v891
        %v1379 = vmul.f32 %v1355, %v891
        %v1380 = vmul.f32 %v1356, %v891
        %v1381 = vmul.f32 %v1357, %v891
        %v1382 = vmul.f32 %v1358, %v891
        %v1383 = vmul.f32 %v1359, %v891
        %v1384 = vadd.f32 %v1370, %v1377
        %v1385 = vadd.f32 %v1371, %v1378
        %v1386 = vadd.f32 %v1372, %v1379
        %v1387 = vadd.f32 %v1373, %v1380
        %v1388 = vadd.f32 %v1374, %v1381
        %v1389 = vadd.f32 %v1375, %v1382
        %v1390 = vadd.f32 %v1376, %v1383
        %v1391 = vmul.f32 %v1354, %v892
        %v1392 = vmul.f32 %v1355, %v892
        %v1393 = vmul.f32 %v1356, %v892
        %v1394 = vmul.f32 %v1357, %v892
        %v1395 = vmul.f32 %v1358, %v892
        %v1396 = vmul.f32 %v1359, %v892
        %v1397 = vmul.f32 %v1360, %v892
        %v1398 = vadd.f32 %v1384, %v1391
        %v1399 = vadd.f32 %v1385, %v1392
        %v1400 = vadd.f32 %v1386, %v1393
        %v1401 = vadd.f32 %v1387, %v1394
        %v1402 = vadd.f32 %v1388, %v1395
        %v1403 = vadd.f32 %v1389, %v1396
        %v1404 = vadd.f32 %v1390, %v1397
        %v1405 = vmul.f32 %v1355, %v893
        %v1406 = vmul.f32 %v1356, %v893
        %v1407 = vmul.f32 %v1357, %v893
        %v1408 = vmul.f32 %v1358, %v893
        %v1409 = vmul.f32 %v1359, %v893
        %v1410 = vmul.f32 %v1360, %v893
        %v1411 = vmul.f32 %v1361, %v893
        %v1412 = vadd.f32 %v1398, %v1405
        %v1413 = vadd.f32 %v1399, %v1406
        %v1414 = vadd.f32 %v1400, %v1407
        %v1415 = vadd.f32 %v1401, %v1408
        %v1416 = vadd.f32 %v1402, %v1409
        %v1417 = vadd.f32 %v1403, %v1410
        %v1418 = vadd.f32 %v1404, %v1411
        %v1419 = vmul.f32 %v1356, %v894
        %v1420 = vmul.f32 %v1357, %v894
        %v1421 = vmul.f32 %v1358, %v894
        %v1422 = vmul.f32 %v1359, %v894
        %v1423 = vmul.f32 %v1360, %v894
        %v1424 = vmul.f32 %v1361, %v894
        %v1425 = vmul.f32 %v1362, %v894
        %v1426 = vadd.f32 %v1412, %v1419
        %v1427 = vadd.f32 %v1413, %v1420
        %v1428 = vadd.f32 %v1414, %v1421
        %v1429 = vadd.f32 %v1415, %v1422
        %v1430 = vadd.f32 %v1416, %v1423
        %v1431 = vadd.f32 %v1417, %v1424
        %v1432 = vadd.f32 %v1418, %v1425
        %v1433 = vld [vmem:[%s1078] sm:$0xff]
        %v1434 = vld [vmem:[%s1078 + $0x8] sm:$0xff]
        %v1435 = vld [vmem:[%s1078 + $0x10] sm:$0xff]
        %v1436 = vld [vmem:[%s1078 + $0x18] sm:$0xff]
        %v1437 = vld [vmem:[%s1078 + $0x20] sm:$0xff]
        %v1438 = vld [vmem:[%s1078 + $0x28] sm:$0xff]
        %v1439 = vld [vmem:[%s1078 + $0x30] sm:$0xff]
        %v1440 = vld [vmem:[%s1078 + $0x38] sm:$0xff]
        %v1441 = vld [vmem:[%s1078 + $0x40] sm:$0xff]
        %v1442 = vld [vmem:[%s1078 + $0x48] sm:$0xff]
        %v1443 = vld [vmem:[%s1078 + $0x50] sm:$0xff]
        %v1444 = vmul.f32 %v1433, %v895
        %v1445 = vmul.f32 %v1434, %v895
        %v1446 = vmul.f32 %v1435, %v895
        %v1447 = vmul.f32 %v1436, %v895
        %v1448 = vmul.f32 %v1437, %v895
        %v1449 = vmul.f32 %v1438, %v895
        %v1450 = vmul.f32 %v1439, %v895
        %v1451 = vadd.f32 %v1426, %v1444
        %v1452 = vadd.f32 %v1427, %v1445
        %v1453 = vadd.f32 %v1428, %v1446
        %v1454 = vadd.f32 %v1429, %v1447
        %v1455 = vadd.f32 %v1430, %v1448
        %v1456 = vadd.f32 %v1431, %v1449
        %v1457 = vadd.f32 %v1432, %v1450
        %v1458 = vmul.f32 %v1434, %v896
        %v1459 = vmul.f32 %v1435, %v896
        %v1460 = vmul.f32 %v1436, %v896
        %v1461 = vmul.f32 %v1437, %v896
        %v1462 = vmul.f32 %v1438, %v896
        %v1463 = vmul.f32 %v1439, %v896
        %v1464 = vmul.f32 %v1440, %v896
        %v1465 = vadd.f32 %v1451, %v1458
        %v1466 = vadd.f32 %v1452, %v1459
        %v1467 = vadd.f32 %v1453, %v1460
        %v1468 = vadd.f32 %v1454, %v1461
        %v1469 = vadd.f32 %v1455, %v1462
        %v1470 = vadd.f32 %v1456, %v1463
        %v1471 = vadd.f32 %v1457, %v1464
        %v1472 = vmul.f32 %v1435, %v897
        %v1473 = vmul.f32 %v1436, %v897
        %v1474 = vmul.f32 %v1437, %v897
        %v1475 = vmul.f32 %v1438, %v897
        %v1476 = vmul.f32 %v1439, %v897
        %v1477 = vmul.f32 %v1440, %v897
        %v1478 = vmul.f32 %v1441, %v897
        %v1479 = vadd.f32 %v1465, %v1472
        %v1480 = vadd.f32 %v1466, %v1473
        %v1481 = vadd.f32 %v1467, %v1474
        %v1482 = vadd.f32 %v1468, %v1475
        %v1483 = vadd.f32 %v1469, %v1476
        %v1484 = vadd.f32 %v1470, %v1477
        %v1485 = vadd.f32 %v1471, %v1478
        %v1486 = vmul.f32 %v1436, %v898
        %v1487 = vmul.f32 %v1437, %v898
        %v1488 = vmul.f32 %v1438, %v898
        %v1489 = vmul.f32 %v1439, %v898
        %v1490 = vmul.f32 %v1440, %v898
        %v1491 = vmul.f32 %v1441, %v898
        %v1492 = vmul.f32 %v1442, %v898
        %v1493 = vadd.f32 %v1479, %v1486
        %v1494 = vadd.f32 %v1480, %v1487
        %v1495 = vadd.f32 %v1481, %v1488
        %v1496 = vadd.f32 %v1482, %v1489
        %v1497 = vadd.f32 %v1483, %v1490
        %v1498 = vadd.f32 %v1484, %v1491
        %v1499 = vadd.f32 %v1485, %v1492
        %v1500 = vmul.f32 %v1437, %v899
        %v1501 = vmul.f32 %v1438, %v899
        %v1502 = vmul.f32 %v1439, %v899
        %v1503 = vmul.f32 %v1440, %v899
        %v1504 = vmul.f32 %v1441, %v899
        %v1505 = vmul.f32 %v1442, %v899
        %v1506 = vmul.f32 %v1443, %v899
        %v1507 = vadd.f32 %v1493, %v1500
        %v1508 = vadd.f32 %v1494, %v1501
        %v1509 = vadd.f32 %v1495, %v1502
        %v1510 = vadd.f32 %v1496, %v1503
        %v1511 = vadd.f32 %v1497, %v1504
        %v1512 = vadd.f32 %v1498, %v1505
        %v1513 = vadd.f32 %v1499, %v1506
        %v1514 = vld [vmem:[%s1160] sm:$0xff]
        %v1515 = vld [vmem:[%s1160 + $0x8] sm:$0xff]
        %v1516 = vld [vmem:[%s1160 + $0x10] sm:$0xff]
        %v1517 = vld [vmem:[%s1160 + $0x18] sm:$0xff]
        %v1518 = vld [vmem:[%s1160 + $0x20] sm:$0xff]
        %v1519 = vld [vmem:[%s1160 + $0x28] sm:$0xff]
        %v1520 = vld [vmem:[%s1160 + $0x30] sm:$0xff]
        %v1521 = vld [vmem:[%s1160 + $0x38] sm:$0xff]
        %v1522 = vld [vmem:[%s1160 + $0x40] sm:$0xff]
        %v1523 = vld [vmem:[%s1160 + $0x48] sm:$0xff]
        %v1524 = vld [vmem:[%s1160 + $0x50] sm:$0xff]
        %v1525 = vmul.f32 %v1514, %v900
        %v1526 = vmul.f32 %v1515, %v900
        %v1527 = vmul.f32 %v1516, %v900
        %v1528 = vmul.f32 %v1517, %v900
        %v1529 = vmul.f32 %v1518, %v900
        %v1530 = vmul.f32 %v1519, %v900
        %v1531 = vmul.f32 %v1520, %v900
        %v1532 = vadd.f32 %v1507, %v1525
        %v1533 = vadd.f32 %v1508, %v1526
        %v1534 = vadd.f32 %v1509, %v1527
        %v1535 = vadd.f32 %v1510, %v1528
        %v1536 = vadd.f32 %v1511, %v1529
        %v1537 = vadd.f32 %v1512, %v1530
        %v1538 = vadd.f32 %v1513, %v1531
        %v1539 = vmul.f32 %v1515, %v901
        %v1540 = vmul.f32 %v1516, %v901
        %v1541 = vmul.f32 %v1517, %v901
        %v1542 = vmul.f32 %v1518, %v901
        %v1543 = vmul.f32 %v1519, %v901
        %v1544 = vmul.f32 %v1520, %v901
        %v1545 = vmul.f32 %v1521, %v901
        %v1546 = vadd.f32 %v1532, %v1539
        %v1547 = vadd.f32 %v1533, %v1540
        %v1548 = vadd.f32 %v1534, %v1541
        %v1549 = vadd.f32 %v1535, %v1542
        %v1550 = vadd.f32 %v1536, %v1543
        %v1551 = vadd.f32 %v1537, %v1544
        %v1552 = vadd.f32 %v1538, %v1545
        %v1553 = vmul.f32 %v1516, %v902
        %v1554 = vmul.f32 %v1517, %v902
        %v1555 = vmul.f32 %v1518, %v902
        %v1556 = vmul.f32 %v1519, %v902
        %v1557 = vmul.f32 %v1520, %v902
        %v1558 = vmul.f32 %v1521, %v902
        %v1559 = vmul.f32 %v1522, %v902
        %v1560 = vadd.f32 %v1546, %v1553
        %v1561 = vadd.f32 %v1547, %v1554
        %v1562 = vadd.f32 %v1548, %v1555
        %v1563 = vadd.f32 %v1549, %v1556
        %v1564 = vadd.f32 %v1550, %v1557
        %v1565 = vadd.f32 %v1551, %v1558
        %v1566 = vadd.f32 %v1552, %v1559
        %v1567 = vmul.f32 %v1517, %v903
        %v1568 = vmul.f32 %v1518, %v903
        %v1569 = vmul.f32 %v1519, %v903
        %v1570 = vmul.f32 %v1520, %v903
        %v1571 = vmul.f32 %v1521, %v903
        %v1572 = vmul.f32 %v1522, %v903
        %v1573 = vmul.f32 %v1523, %v903
        %v1574 = vadd.f32 %v1560, %v1567
        %v1575 = vadd.f32 %v1561, %v1568
        %v1576 = vadd.f32 %v1562, %v1569
        %v1577 = vadd.f32 %v1563, %v1570
        %v1578 = vadd.f32 %v1564, %v1571
        %v1579 = vadd.f32 %v1565, %v1572
        %v1580 = vadd.f32 %v1566, %v1573
        %v1581 = vmul.f32 %v1518, %v904
        %v1582 = vmul.f32 %v1519, %v904
        %v1583 = vmul.f32 %v1520, %v904
        %v1584 = vmul.f32 %v1521, %v904
        %v1585 = vmul.f32 %v1522, %v904
        %v1586 = vmul.f32 %v1523, %v904
        %v1587 = vmul.f32 %v1524, %v904
        %v1588 = vadd.f32 %v1574, %v1581
        %v1589 = vadd.f32 %v1575, %v1582
        %v1590 = vadd.f32 %v1576, %v1583
        %v1591 = vadd.f32 %v1577, %v1584
        %v1592 = vadd.f32 %v1578, %v1585
        %v1593 = vadd.f32 %v1579, %v1586
        %v1594 = vadd.f32 %v1580, %v1587
        %v1595 = vld [vmem:[%s1242] sm:$0xff]
        %v1596 = vld [vmem:[%s1242 + $0x8] sm:$0xff]
        %v1597 = vld [vmem:[%s1242 + $0x10] sm:$0xff]
        %v1598 = vld [vmem:[%s1242 + $0x18] sm:$0xff]
        %v1599 = vld [vmem:[%s1242 + $0x20] sm:$0xff]
        %v1600 = vld [vmem:[%s1242 + $0x28] sm:$0xff]
        %v1601 = vld [vmem:[%s1242 + $0x30] sm:$0xff]
        %v1602 = vld [vmem:[%s1242 + $0x38] sm:$0xff]
        %v1603 = vld [vmem:[%s1242 + $0x40] sm:$0xff]
        %v1604 = vld [vmem:[%s1242 + $0x48] sm:$0xff]
        %v1605 = vld [vmem:[%s1242 + $0x50] sm:$0xff]
        %v1606 = vmul.f32 %v1595, %v905
        %v1607 = vmul.f32 %v1596, %v905
        %v1608 = vmul.f32 %v1597, %v905
        %v1609 = vmul.f32 %v1598, %v905
        %v1610 = vmul.f32 %v1599, %v905
        %v1611 = vmul.f32 %v1600, %v905
        %v1612 = vmul.f32 %v1601, %v905
        %v1613 = vadd.f32 %v1588, %v1606
        %v1614 = vadd.f32 %v1589, %v1607
        %v1615 = vadd.f32 %v1590, %v1608
        %v1616 = vadd.f32 %v1591, %v1609
        %v1617 = vadd.f32 %v1592, %v1610
        %v1618 = vadd.f32 %v1593, %v1611
        %v1619 = vadd.f32 %v1594, %v1612
        %v1620 = vmul.f32 %v1596, %v906
        %v1621 = vmul.f32 %v1597, %v906
        %v1622 = vmul.f32 %v1598, %v906
        %v1623 = vmul.f32 %v1599, %v906
        %v1624 = vmul.f32 %v1600, %v906
        %v1625 = vmul.f32 %v1601, %v906
        %v1626 = vmul.f32 %v1602, %v906
        %v1627 = vadd.f32 %v1613, %v1620
        %v1628 = vadd.f32 %v1614, %v1621
        %v1629 = vadd.f32 %v1615, %v1622
        %v1630 = vadd.f32 %v1616, %v1623
        %v1631 = vadd.f32 %v1617, %v1624
        %v1632 = vadd.f32 %v1618, %v1625
        %v1633 = vadd.f32 %v1619, %v1626
        %v1634 = vmul.f32 %v1597, %v907
        %v1635 = vmul.f32 %v1598, %v907
        %v1636 = vmul.f32 %v1599, %v907
        %v1637 = vmul.f32 %v1600, %v907
        %v1638 = vmul.f32 %v1601, %v907
        %v1639 = vmul.f32 %v1602, %v907
        %v1640 = vmul.f32 %v1603, %v907
        %v1641 = vadd.f32 %v1627, %v1634
        %v1642 = vadd.f32 %v1628, %v1635
        %v1643 = vadd.f32 %v1629, %v1636
        %v1644 = vadd.f32 %v1630, %v1637
        %v1645 = vadd.f32 %v1631, %v1638
        %v1646 = vadd.f32 %v1632, %v1639
        %v1647 = vadd.f32 %v1633, %v1640
        %v1648 = vmul.f32 %v1598, %v908
        %v1649 = vmul.f32 %v1599, %v908
        %v1650 = vmul.f32 %v1600, %v908
        %v1651 = vmul.f32 %v1601, %v908
        %v1652 = vmul.f32 %v1602, %v908
        %v1653 = vmul.f32 %v1603, %v908
        %v1654 = vmul.f32 %v1604, %v908
        %v1655 = vadd.f32 %v1641, %v1648
        %v1656 = vadd.f32 %v1642, %v1649
        %v1657 = vadd.f32 %v1643, %v1650
        %v1658 = vadd.f32 %v1644, %v1651
        %v1659 = vadd.f32 %v1645, %v1652
        %v1660 = vadd.f32 %v1646, %v1653
        %v1661 = vadd.f32 %v1647, %v1654
        %v1662 = vmul.f32 %v1599, %v909
        %v1663 = vmul.f32 %v1600, %v909
        %v1664 = vmul.f32 %v1601, %v909
        %v1665 = vmul.f32 %v1602, %v909
        %v1666 = vmul.f32 %v1603, %v909
        %v1667 = vmul.f32 %v1604, %v909
        %v1668 = vmul.f32 %v1605, %v909
        %v1669 = vadd.f32 %v1655, %v1662
        %v1670 = vadd.f32 %v1656, %v1663
        %v1671 = vadd.f32 %v1657, %v1664
        %v1672 = vadd.f32 %v1658, %v1665
        %v1673 = vadd.f32 %v1659, %v1666
        %v1674 = vadd.f32 %v1660, %v1667
        %v1675 = vadd.f32 %v1661, %v1668
        %s1676 = scalar_lea.vmem %s841, 440 [#allocation2]
        %v1677 = vld [vmem:[%s1676] sm:$0xff]
        %v1678 = vld [vmem:[%s1676 + $0x8] sm:$0xff]
        %v1679 = vld [vmem:[%s1676 + $0x10] sm:$0xff]
        %v1680 = vld [vmem:[%s1676 + $0x18] sm:$0xff]
        %v1681 = vld [vmem:[%s1676 + $0x20] sm:$0xff]
        %v1682 = vld [vmem:[%s1676 + $0x28] sm:$0xff]
        %v1683 = vld [vmem:[%s1676 + $0x30] sm:$0xff]
        %v1684 = vld [vmem:[%s1676 + $0x38] sm:$0xff]
        %v1685 = vld [vmem:[%s1676 + $0x40] sm:$0xff]
        %v1686 = vld [vmem:[%s1676 + $0x48] sm:$0xff]
        %v1687 = vld [vmem:[%s1676 + $0x50] sm:$0xff]
        %v1688 = vmul.f32 %v1677, %v910
        %v1689 = vmul.f32 %v1678, %v910
        %v1690 = vmul.f32 %v1679, %v910
        %v1691 = vmul.f32 %v1680, %v910
        %v1692 = vmul.f32 %v1681, %v910
        %v1693 = vmul.f32 %v1682, %v910
        %v1694 = vmul.f32 %v1683, %v910
        %v1695 = vadd.f32 %v1669, %v1688
        %v1696 = vadd.f32 %v1670, %v1689
        %v1697 = vadd.f32 %v1671, %v1690
        %v1698 = vadd.f32 %v1672, %v1691
        %v1699 = vadd.f32 %v1673, %v1692
        %v1700 = vadd.f32 %v1674, %v1693
        %v1701 = vadd.f32 %v1675, %v1694
        %v1702 = vmul.f32 %v1678, %v911
        %v1703 = vmul.f32 %v1679, %v911
        %v1704 = vmul.f32 %v1680, %v911
        %v1705 = vmul.f32 %v1681, %v911
        %v1706 = vmul.f32 %v1682, %v911
        %v1707 = vmul.f32 %v1683, %v911
        %v1708 = vmul.f32 %v1684, %v911
        %v1709 = vadd.f32 %v1695, %v1702
        %v1710 = vadd.f32 %v1696, %v1703
        %v1711 = vadd.f32 %v1697, %v1704
        %v1712 = vadd.f32 %v1698, %v1705
        %v1713 = vadd.f32 %v1699, %v1706
        %v1714 = vadd.f32 %v1700, %v1707
        %v1715 = vadd.f32 %v1701, %v1708
        %v1716 = vmul.f32 %v1679, %v912
        %v1717 = vmul.f32 %v1680, %v912
        %v1718 = vmul.f32 %v1681, %v912
        %v1719 = vmul.f32 %v1682, %v912
        %v1720 = vmul.f32 %v1683, %v912
        %v1721 = vmul.f32 %v1684, %v912
        %v1722 = vmul.f32 %v1685, %v912
        %v1723 = vadd.f32 %v1709, %v1716
        %v1724 = vadd.f32 %v1710, %v1717
        %v1725 = vadd.f32 %v1711, %v1718
        %v1726 = vadd.f32 %v1712, %v1719
        %v1727 = vadd.f32 %v1713, %v1720
        %v1728 = vadd.f32 %v1714, %v1721
        %v1729 = vadd.f32 %v1715, %v1722
        %v1730 = vmul.f32 %v1680, %v913
        %v1731 = vmul.f32 %v1681, %v913
        %v1732 = vmul.f32 %v1682, %v913
        %v1733 = vmul.f32 %v1683, %v913
        %v1734 = vmul.f32 %v1684, %v913
        %v1735 = vmul.f32 %v1685, %v913
        %v1736 = vmul.f32 %v1686, %v913
        %v1737 = vadd.f32 %v1723, %v1730
        %v1738 = vadd.f32 %v1724, %v1731
        %v1739 = vadd.f32 %v1725, %v1732
        %v1740 = vadd.f32 %v1726, %v1733
        %v1741 = vadd.f32 %v1727, %v1734
        %v1742 = vadd.f32 %v1728, %v1735
        %v1743 = vadd.f32 %v1729, %v1736
        %v1744 = vmul.f32 %v1681, %v914
        %v1745 = vmul.f32 %v1682, %v914
        %v1746 = vmul.f32 %v1683, %v914
        %v1747 = vmul.f32 %v1684, %v914
        %v1748 = vmul.f32 %v1685, %v914
        %v1749 = vmul.f32 %v1686, %v914
        %v1750 = vmul.f32 %v1687, %v914
        %v1751 = vadd.f32 %v1737, %v1744
        %v1752 = vadd.f32 %v1738, %v1745
        %v1753 = vadd.f32 %v1739, %v1746
        %v1754 = vadd.f32 %v1740, %v1747
        %v1755 = vadd.f32 %v1741, %v1748
        %v1756 = vadd.f32 %v1742, %v1749
        %v1757 = vadd.f32 %v1743, %v1750
        %s1758 = scalar_lea.vmem %s881, 56 [#allocation4]
        %1759 = vst [vmem:[%s1758] sm:$0xff] %v1751
        %1760 = vst [vmem:[%s1758 + $0x8] sm:$0xff] %v1752
        %1761 = vst [vmem:[%s1758 + $0x10] sm:$0xff] %v1753
        %1762 = vst [vmem:[%s1758 + $0x18] sm:$0xff] %v1754
        %1763 = vst [vmem:[%s1758 + $0x20] sm:$0xff] %v1755
        %1764 = vst [vmem:[%s1758 + $0x28] sm:$0xff] %v1756
        %1765 = vst [vmem:[%s1758 + $0x30] sm:$0xff] %v1757
        %v1766 = vadd.f32 %v1751, %v1752
        %v1767 = vadd.f32 %v1766, %v1753
        %v1768 = vadd.f32 %v1767, %v1754
        %v1769 = vadd.f32 %v1768, %v1755
        %v1770 = vadd.f32 %v1769, %v1756
        %v1771 = vadd.f32 %v1770, %v1757
        %v1772 = vadd.f32 %v1337, %v1771
        %v1773 = vmul.f32 %v1751, %v1751
        %v1774 = vmul.f32 %v1752, %v1752
        %v1775 = vmul.f32 %v1753, %v1753
        %v1776 = vmul.f32 %v1754, %v1754
        %v1777 = vmul.f32 %v1755, %v1755
        %v1778 = vmul.f32 %v1756, %v1756
        %v1779 = vmul.f32 %v1757, %v1757
        %v1780 = vadd.f32 %v1773, %v1774
        %v1781 = vadd.f32 %v1780, %v1775
        %v1782 = vadd.f32 %v1781, %v1776
        %v1783 = vadd.f32 %v1782, %v1777
        %v1784 = vadd.f32 %v1783, %v1778
        %v1785 = vadd.f32 %v1784, %v1779
        %v1786 = vadd.f32 %v1351, %v1785
        %v1787 = vld [vmem:[%s1078] sm:$0xff]
        %v1788 = vld [vmem:[%s1078 + $0x8] sm:$0xff]
        %v1789 = vld [vmem:[%s1078 + $0x10] sm:$0xff]
        %v1790 = vld [vmem:[%s1078 + $0x18] sm:$0xff]
        %v1791 = vld [vmem:[%s1078 + $0x20] sm:$0xff]
        %v1792 = vld [vmem:[%s1078 + $0x28] sm:$0xff]
        %v1793 = vld [vmem:[%s1078 + $0x30] sm:$0xff]
        %v1794 = vld [vmem:[%s1078 + $0x38] sm:$0xff]
        %v1795 = vld [vmem:[%s1078 + $0x40] sm:$0xff]
        %v1796 = vld [vmem:[%s1078 + $0x48] sm:$0xff]
        %v1797 = vld [vmem:[%s1078 + $0x50] sm:$0xff]
        %v1798 = vmul.f32 %v1787, %v890
        %v1799 = vmul.f32 %v1788, %v890
        %v1800 = vmul.f32 %v1789, %v890
        %v1801 = vmul.f32 %v1790, %v890
        %v1802 = vmul.f32 %v1791, %v890
        %v1803 = vmul.f32 %v1792, %v890
        %v1804 = vmul.f32 %v1793, %v890
        %v1805 = vadd.f32 %v1798, 0.0
        %v1806 = vadd.f32 %v1799, 0.0
        %v1807 = vadd.f32 %v1800, 0.0
        %v1808 = vadd.f32 %v1801, 0.0
        %v1809 = vadd.f32 %v1802, 0.0
        %v1810 = vadd.f32 %v1803, 0.0
        %v1811 = vadd.f32 %v1804, 0.0
        %v1812 = vmul.f32 %v1788, %v891
        %v1813 = vmul.f32 %v1789, %v891
        %v1814 = vmul.f32 %v1790, %v891
        %v1815 = vmul.f32 %v1791, %v891
        %v1816 = vmul.f32 %v1792, %v891
        %v1817 = vmul.f32 %v1793, %v891
        %v1818 = vmul.f32 %v1794, %v891
        %v1819 = vadd.f32 %v1805, %v1812
        %v1820 = vadd.f32 %v1806, %v1813
        %v1821 = vadd.f32 %v1807, %v1814
        %v1822 = vadd.f32 %v1808, %v1815
        %v1823 = vadd.f32 %v1809, %v1816
        %v1824 = vadd.f32 %v1810, %v1817
        %v1825 = vadd.f32 %v1811, %v1818
        %v1826 = vmul.f32 %v1789, %v892
        %v1827 = vmul.f32 %v1790, %v892
        %v1828 = vmul.f32 %v1791, %v892
        %v1829 = vmul.f32 %v1792, %v892
        %v1830 = vmul.f32 %v1793, %v892
        %v1831 = vmul.f32 %v1794, %v892
        %v1832 = vmul.f32 %v1795, %v892
        %v1833 = vadd.f32 %v1819, %v1826
        %v1834 = vadd.f32 %v1820, %v1827
        %v1835 = vadd.f32 %v1821, %v1828
        %v1836 = vadd.f32 %v1822, %v1829
        %v1837 = vadd.f32 %v1823, %v1830
        %v1838 = vadd.f32 %v1824, %v1831
        %v1839 = vadd.f32 %v1825, %v1832
        %v1840 = vmul.f32 %v1790, %v893
        %v1841 = vmul.f32 %v1791, %v893
        %v1842 = vmul.f32 %v1792, %v893
        %v1843 = vmul.f32 %v1793, %v893
        %v1844 = vmul.f32 %v1794, %v893
        %v1845 = vmul.f32 %v1795, %v893
        %v1846 = vmul.f32 %v1796, %v893
        %v1847 = vadd.f32 %v1833, %v1840
        %v1848 = vadd.f32 %v1834, %v1841
        %v1849 = vadd.f32 %v1835, %v1842
        %v1850 = vadd.f32 %v1836, %v1843
        %v1851 = vadd.f32 %v1837, %v1844
        %v1852 = vadd.f32 %v1838, %v1845
        %v1853 = vadd.f32 %v1839, %v1846
        %v1854 = vmul.f32 %v1791, %v894
        %v1855 = vmul.f32 %v1792, %v894
        %v1856 = vmul.f32 %v1793, %v894
        %v1857 = vmul.f32 %v1794, %v894
        %v1858 = vmul.f32 %v1795, %v894
        %v1859 = vmul.f32 %v1796, %v894
        %v1860 = vmul.f32 %v1797, %v894
        %v1861 = vadd.f32 %v1847, %v1854
        %v1862 = vadd.f32 %v1848, %v1855
        %v1863 = vadd.f32 %v1849, %v1856
        %v1864 = vadd.f32 %v1850, %v1857
        %v1865 = vadd.f32 %v1851, %v1858
        %v1866 = vadd.f32 %v1852, %v1859
        %v1867 = vadd.f32 %v1853, %v1860
        %v1868 = vld [vmem:[%s1160] sm:$0xff]
        %v1869 = vld [vmem:[%s1160 + $0x8] sm:$0xff]
        %v1870 = vld [vmem:[%s1160 + $0x10] sm:$0xff]
        %v1871 = vld [vmem:[%s1160 + $0x18] sm:$0xff]
        %v1872 = vld [vmem:[%s1160 + $0x20] sm:$0xff]
        %v1873 = vld [vmem:[%s1160 + $0x28] sm:$0xff]
        %v1874 = vld [vmem:[%s1160 + $0x30] sm:$0xff]
        %v1875 = vld [vmem:[%s1160 + $0x38] sm:$0xff]
        %v1876 = vld [vmem:[%s1160 + $0x40] sm:$0xff]
        %v1877 = vld [vmem:[%s1160 + $0x48] sm:$0xff]
        %v1878 = vld [vmem:[%s1160 + $0x50] sm:$0xff]
        %v1879 = vmul.f32 %v1868, %v895
        %v1880 = vmul.f32 %v1869, %v895
        %v1881 = vmul.f32 %v1870, %v895
        %v1882 = vmul.f32 %v1871, %v895
        %v1883 = vmul.f32 %v1872, %v895
        %v1884 = vmul.f32 %v1873, %v895
        %v1885 = vmul.f32 %v1874, %v895
        %v1886 = vadd.f32 %v1861, %v1879
        %v1887 = vadd.f32 %v1862, %v1880
        %v1888 = vadd.f32 %v1863, %v1881
        %v1889 = vadd.f32 %v1864, %v1882
        %v1890 = vadd.f32 %v1865, %v1883
        %v1891 = vadd.f32 %v1866, %v1884
        %v1892 = vadd.f32 %v1867, %v1885
        %v1893 = vmul.f32 %v1869, %v896
        %v1894 = vmul.f32 %v1870, %v896
        %v1895 = vmul.f32 %v1871, %v896
        %v1896 = vmul.f32 %v1872, %v896
        %v1897 = vmul.f32 %v1873, %v896
        %v1898 = vmul.f32 %v1874, %v896
        %v1899 = vmul.f32 %v1875, %v896
        %v1900 = vadd.f32 %v1886, %v1893
        %v1901 = vadd.f32 %v1887, %v1894
        %v1902 = vadd.f32 %v1888, %v1895
        %v1903 = vadd.f32 %v1889, %v1896
        %v1904 = vadd.f32 %v1890, %v1897
        %v1905 = vadd.f32 %v1891, %v1898
        %v1906 = vadd.f32 %v1892, %v1899
        %v1907 = vmul.f32 %v1870, %v897
        %v1908 = vmul.f32 %v1871, %v897
        %v1909 = vmul.f32 %v1872, %v897
        %v1910 = vmul.f32 %v1873, %v897
        %v1911 = vmul.f32 %v1874, %v897
        %v1912 = vmul.f32 %v1875, %v897
        %v1913 = vmul.f32 %v1876, %v897
        %v1914 = vadd.f32 %v1900, %v1907
        %v1915 = vadd.f32 %v1901, %v1908
        %v1916 = vadd.f32 %v1902, %v1909
        %v1917 = vadd.f32 %v1903, %v1910
        %v1918 = vadd.f32 %v1904, %v1911
        %v1919 = vadd.f32 %v1905, %v1912
        %v1920 = vadd.f32 %v1906, %v1913
        %v1921 = vmul.f32 %v1871, %v898
        %v1922 = vmul.f32 %v1872, %v898
        %v1923 = vmul.f32 %v1873, %v898
        %v1924 = vmul.f32 %v1874, %v898
        %v1925 = vmul.f32 %v1875, %v898
        %v1926 = vmul.f32 %v1876, %v898
        %v1927 = vmul.f32 %v1877, %v898
        %v1928 = vadd.f32 %v1914, %v1921
        %v1929 = vadd.f32 %v1915, %v1922
        %v1930 = vadd.f32 %v1916, %v1923
        %v1931 = vadd.f32 %v1917, %v1924
        %v1932 = vadd.f32 %v1918, %v1925
        %v1933 = vadd.f32 %v1919, %v1926
        %v1934 = vadd.f32 %v1920, %v1927
        %v1935 = vmul.f32 %v1872, %v899
        %v1936 = vmul.f32 %v1873, %v899
        %v1937 = vmul.f32 %v1874, %v899
        %v1938 = vmul.f32 %v1875, %v899
        %v1939 = vmul.f32 %v1876, %v899
        %v1940 = vmul.f32 %v1877, %v899
        %v1941 = vmul.f32 %v1878, %v899
        %v1942 = vadd.f32 %v1928, %v1935
        %v1943 = vadd.f32 %v1929, %v1936
        %v1944 = vadd.f32 %v1930, %v1937
        %v1945 = vadd.f32 %v1931, %v1938
        %v1946 = vadd.f32 %v1932, %v1939
        %v1947 = vadd.f32 %v1933, %v1940
        %v1948 = vadd.f32 %v1934, %v1941
        %v1949 = vld [vmem:[%s1242] sm:$0xff]
        %v1950 = vld [vmem:[%s1242 + $0x8] sm:$0xff]
        %v1951 = vld [vmem:[%s1242 + $0x10] sm:$0xff]
        %v1952 = vld [vmem:[%s1242 + $0x18] sm:$0xff]
        %v1953 = vld [vmem:[%s1242 + $0x20] sm:$0xff]
        %v1954 = vld [vmem:[%s1242 + $0x28] sm:$0xff]
        %v1955 = vld [vmem:[%s1242 + $0x30] sm:$0xff]
        %v1956 = vld [vmem:[%s1242 + $0x38] sm:$0xff]
        %v1957 = vld [vmem:[%s1242 + $0x40] sm:$0xff]
        %v1958 = vld [vmem:[%s1242 + $0x48] sm:$0xff]
        %v1959 = vld [vmem:[%s1242 + $0x50] sm:$0xff]
        %v1960 = vmul.f32 %v1949, %v900
        %v1961 = vmul.f32 %v1950, %v900
        %v1962 = vmul.f32 %v1951, %v900
        %v1963 = vmul.f32 %v1952, %v900
        %v1964 = vmul.f32 %v1953, %v900
        %v1965 = vmul.f32 %v1954, %v900
        %v1966 = vmul.f32 %v1955, %v900
        %v1967 = vadd.f32 %v1942, %v1960
        %v1968 = vadd.f32 %v1943, %v1961
        %v1969 = vadd.f32 %v1944, %v1962
        %v1970 = vadd.f32 %v1945, %v1963
        %v1971 = vadd.f32 %v1946, %v1964
        %v1972 = vadd.f32 %v1947, %v1965
        %v1973 = vadd.f32 %v1948, %v1966
        %v1974 = vmul.f32 %v1950, %v901
        %v1975 = vmul.f32 %v1951, %v901
        %v1976 = vmul.f32 %v1952, %v901
        %v1977 = vmul.f32 %v1953, %v901
        %v1978 = vmul.f32 %v1954, %v901
        %v1979 = vmul.f32 %v1955, %v901
        %v1980 = vmul.f32 %v1956, %v901
        %v1981 = vadd.f32 %v1967, %v1974
        %v1982 = vadd.f32 %v1968, %v1975
        %v1983 = vadd.f32 %v1969, %v1976
        %v1984 = vadd.f32 %v1970, %v1977
        %v1985 = vadd.f32 %v1971, %v1978
        %v1986 = vadd.f32 %v1972, %v1979
        %v1987 = vadd.f32 %v1973, %v1980
        %v1988 = vmul.f32 %v1951, %v902
        %v1989 = vmul.f32 %v1952, %v902
        %v1990 = vmul.f32 %v1953, %v902
        %v1991 = vmul.f32 %v1954, %v902
        %v1992 = vmul.f32 %v1955, %v902
        %v1993 = vmul.f32 %v1956, %v902
        %v1994 = vmul.f32 %v1957, %v902
        %v1995 = vadd.f32 %v1981, %v1988
        %v1996 = vadd.f32 %v1982, %v1989
        %v1997 = vadd.f32 %v1983, %v1990
        %v1998 = vadd.f32 %v1984, %v1991
        %v1999 = vadd.f32 %v1985, %v1992
        %v2000 = vadd.f32 %v1986, %v1993
        %v2001 = vadd.f32 %v1987, %v1994
        %v2002 = vmul.f32 %v1952, %v903
        %v2003 = vmul.f32 %v1953, %v903
        %v2004 = vmul.f32 %v1954, %v903
        %v2005 = vmul.f32 %v1955, %v903
        %v2006 = vmul.f32 %v1956, %v903
        %v2007 = vmul.f32 %v1957, %v903
        %v2008 = vmul.f32 %v1958, %v903
        %v2009 = vadd.f32 %v1995, %v2002
        %v2010 = vadd.f32 %v1996, %v2003
        %v2011 = vadd.f32 %v1997, %v2004
        %v2012 = vadd.f32 %v1998, %v2005
        %v2013 = vadd.f32 %v1999, %v2006
        %v2014 = vadd.f32 %v2000, %v2007
        %v2015 = vadd.f32 %v2001, %v2008
        %v2016 = vmul.f32 %v1953, %v904
        %v2017 = vmul.f32 %v1954, %v904
        %v2018 = vmul.f32 %v1955, %v904
        %v2019 = vmul.f32 %v1956, %v904
        %v2020 = vmul.f32 %v1957, %v904
        %v2021 = vmul.f32 %v1958, %v904
        %v2022 = vmul.f32 %v1959, %v904
        %v2023 = vadd.f32 %v2009, %v2016
        %v2024 = vadd.f32 %v2010, %v2017
        %v2025 = vadd.f32 %v2011, %v2018
        %v2026 = vadd.f32 %v2012, %v2019
        %v2027 = vadd.f32 %v2013, %v2020
        %v2028 = vadd.f32 %v2014, %v2021
        %v2029 = vadd.f32 %v2015, %v2022
        %v2030 = vld [vmem:[%s1676] sm:$0xff]
        %v2031 = vld [vmem:[%s1676 + $0x8] sm:$0xff]
        %v2032 = vld [vmem:[%s1676 + $0x10] sm:$0xff]
        %v2033 = vld [vmem:[%s1676 + $0x18] sm:$0xff]
        %v2034 = vld [vmem:[%s1676 + $0x20] sm:$0xff]
        %v2035 = vld [vmem:[%s1676 + $0x28] sm:$0xff]
        %v2036 = vld [vmem:[%s1676 + $0x30] sm:$0xff]
        %v2037 = vld [vmem:[%s1676 + $0x38] sm:$0xff]
        %v2038 = vld [vmem:[%s1676 + $0x40] sm:$0xff]
        %v2039 = vld [vmem:[%s1676 + $0x48] sm:$0xff]
        %v2040 = vld [vmem:[%s1676 + $0x50] sm:$0xff]
        %v2041 = vmul.f32 %v2030, %v905
        %v2042 = vmul.f32 %v2031, %v905
        %v2043 = vmul.f32 %v2032, %v905
        %v2044 = vmul.f32 %v2033, %v905
        %v2045 = vmul.f32 %v2034, %v905
        %v2046 = vmul.f32 %v2035, %v905
        %v2047 = vmul.f32 %v2036, %v905
        %v2048 = vadd.f32 %v2023, %v2041
        %v2049 = vadd.f32 %v2024, %v2042
        %v2050 = vadd.f32 %v2025, %v2043
        %v2051 = vadd.f32 %v2026, %v2044
        %v2052 = vadd.f32 %v2027, %v2045
        %v2053 = vadd.f32 %v2028, %v2046
        %v2054 = vadd.f32 %v2029, %v2047
        %v2055 = vmul.f32 %v2031, %v906
        %v2056 = vmul.f32 %v2032, %v906
        %v2057 = vmul.f32 %v2033, %v906
        %v2058 = vmul.f32 %v2034, %v906
        %v2059 = vmul.f32 %v2035, %v906
        %v2060 = vmul.f32 %v2036, %v906
        %v2061 = vmul.f32 %v2037, %v906
        %v2062 = vadd.f32 %v2048, %v2055
        %v2063 = vadd.f32 %v2049, %v2056
        %v2064 = vadd.f32 %v2050, %v2057
        %v2065 = vadd.f32 %v2051, %v2058
        %v2066 = vadd.f32 %v2052, %v2059
        %v2067 = vadd.f32 %v2053, %v2060
        %v2068 = vadd.f32 %v2054, %v2061
        %v2069 = vmul.f32 %v2032, %v907
        %v2070 = vmul.f32 %v2033, %v907
        %v2071 = vmul.f32 %v2034, %v907
        %v2072 = vmul.f32 %v2035, %v907
        %v2073 = vmul.f32 %v2036, %v907
        %v2074 = vmul.f32 %v2037, %v907
        %v2075 = vmul.f32 %v2038, %v907
        %v2076 = vadd.f32 %v2062, %v2069
        %v2077 = vadd.f32 %v2063, %v2070
        %v2078 = vadd.f32 %v2064, %v2071
        %v2079 = vadd.f32 %v2065, %v2072
        %v2080 = vadd.f32 %v2066, %v2073
        %v2081 = vadd.f32 %v2067, %v2074
        %v2082 = vadd.f32 %v2068, %v2075
        %v2083 = vmul.f32 %v2033, %v908
        %v2084 = vmul.f32 %v2034, %v908
        %v2085 = vmul.f32 %v2035, %v908
        %v2086 = vmul.f32 %v2036, %v908
        %v2087 = vmul.f32 %v2037, %v908
        %v2088 = vmul.f32 %v2038, %v908
        %v2089 = vmul.f32 %v2039, %v908
        %v2090 = vadd.f32 %v2076, %v2083
        %v2091 = vadd.f32 %v2077, %v2084
        %v2092 = vadd.f32 %v2078, %v2085
        %v2093 = vadd.f32 %v2079, %v2086
        %v2094 = vadd.f32 %v2080, %v2087
        %v2095 = vadd.f32 %v2081, %v2088
        %v2096 = vadd.f32 %v2082, %v2089
        %v2097 = vmul.f32 %v2034, %v909
        %v2098 = vmul.f32 %v2035, %v909
        %v2099 = vmul.f32 %v2036, %v909
        %v2100 = vmul.f32 %v2037, %v909
        %v2101 = vmul.f32 %v2038, %v909
        %v2102 = vmul.f32 %v2039, %v909
        %v2103 = vmul.f32 %v2040, %v909
        %v2104 = vadd.f32 %v2090, %v2097
        %v2105 = vadd.f32 %v2091, %v2098
        %v2106 = vadd.f32 %v2092, %v2099
        %v2107 = vadd.f32 %v2093, %v2100
        %v2108 = vadd.f32 %v2094, %v2101
        %v2109 = vadd.f32 %v2095, %v2102
        %v2110 = vadd.f32 %v2096, %v2103
        %s2111 = scalar_lea.vmem %s841, 528 [#allocation2]
        %v2112 = vld [vmem:[%s2111] sm:$0xff]
        %v2113 = vld [vmem:[%s2111 + $0x8] sm:$0xff]
        %v2114 = vld [vmem:[%s2111 + $0x10] sm:$0xff]
        %v2115 = vld [vmem:[%s2111 + $0x18] sm:$0xff]
        %v2116 = vld [vmem:[%s2111 + $0x20] sm:$0xff]
        %v2117 = vld [vmem:[%s2111 + $0x28] sm:$0xff]
        %v2118 = vld [vmem:[%s2111 + $0x30] sm:$0xff]
        %v2119 = vld [vmem:[%s2111 + $0x38] sm:$0xff]
        %v2120 = vld [vmem:[%s2111 + $0x40] sm:$0xff]
        %v2121 = vld [vmem:[%s2111 + $0x48] sm:$0xff]
        %v2122 = vld [vmem:[%s2111 + $0x50] sm:$0xff]
        %v2123 = vmul.f32 %v2112, %v910
        %v2124 = vmul.f32 %v2113, %v910
        %v2125 = vmul.f32 %v2114, %v910
        %v2126 = vmul.f32 %v2115, %v910
        %v2127 = vmul.f32 %v2116, %v910
        %v2128 = vmul.f32 %v2117, %v910
        %v2129 = vmul.f32 %v2118, %v910
        %v2130 = vadd.f32 %v2104, %v2123
        %v2131 = vadd.f32 %v2105, %v2124
        %v2132 = vadd.f32 %v2106, %v2125
        %v2133 = vadd.f32 %v2107, %v2126
        %v2134 = vadd.f32 %v2108, %v2127
        %v2135 = vadd.f32 %v2109, %v2128
        %v2136 = vadd.f32 %v2110, %v2129
        %v2137 = vmul.f32 %v2113, %v911
        %v2138 = vmul.f32 %v2114, %v911
        %v2139 = vmul.f32 %v2115, %v911
        %v2140 = vmul.f32 %v2116, %v911
        %v2141 = vmul.f32 %v2117, %v911
        %v2142 = vmul.f32 %v2118, %v911
        %v2143 = vmul.f32 %v2119, %v911
        %v2144 = vadd.f32 %v2130, %v2137
        %v2145 = vadd.f32 %v2131, %v2138
        %v2146 = vadd.f32 %v2132, %v2139
        %v2147 = vadd.f32 %v2133, %v2140
        %v2148 = vadd.f32 %v2134, %v2141
        %v2149 = vadd.f32 %v2135, %v2142
        %v2150 = vadd.f32 %v2136, %v2143
        %v2151 = vmul.f32 %v2114, %v912
        %v2152 = vmul.f32 %v2115, %v912
        %v2153 = vmul.f32 %v2116, %v912
        %v2154 = vmul.f32 %v2117, %v912
        %v2155 = vmul.f32 %v2118, %v912
        %v2156 = vmul.f32 %v2119, %v912
        %v2157 = vmul.f32 %v2120, %v912
        %v2158 = vadd.f32 %v2144, %v2151
        %v2159 = vadd.f32 %v2145, %v2152
        %v2160 = vadd.f32 %v2146, %v2153
        %v2161 = vadd.f32 %v2147, %v2154
        %v2162 = vadd.f32 %v2148, %v2155
        %v2163 = vadd.f32 %v2149, %v2156
        %v2164 = vadd.f32 %v2150, %v2157
        %v2165 = vmul.f32 %v2115, %v913
        %v2166 = vmul.f32 %v2116, %v913
        %v2167 = vmul.f32 %v2117, %v913
        %v2168 = vmul.f32 %v2118, %v913
        %v2169 = vmul.f32 %v2119, %v913
        %v2170 = vmul.f32 %v2120, %v913
        %v2171 = vmul.f32 %v2121, %v913
        %v2172 = vadd.f32 %v2158, %v2165
        %v2173 = vadd.f32 %v2159, %v2166
        %v2174 = vadd.f32 %v2160, %v2167
        %v2175 = vadd.f32 %v2161, %v2168
        %v2176 = vadd.f32 %v2162, %v2169
        %v2177 = vadd.f32 %v2163, %v2170
        %v2178 = vadd.f32 %v2164, %v2171
        %v2179 = vmul.f32 %v2116, %v914
        %v2180 = vmul.f32 %v2117, %v914
        %v2181 = vmul.f32 %v2118, %v914
        %v2182 = vmul.f32 %v2119, %v914
        %v2183 = vmul.f32 %v2120, %v914
        %v2184 = vmul.f32 %v2121, %v914
        %v2185 = vmul.f32 %v2122, %v914
        %v2186 = vadd.f32 %v2172, %v2179
        %v2187 = vadd.f32 %v2173, %v2180
        %v2188 = vadd.f32 %v2174, %v2181
        %v2189 = vadd.f32 %v2175, %v2182
        %v2190 = vadd.f32 %v2176, %v2183
        %v2191 = vadd.f32 %v2177, %v2184
        %v2192 = vadd.f32 %v2178, %v2185
        %s2193 = scalar_lea.vmem %s881, 112 [#allocation4]
        %2194 = vst [vmem:[%s2193] sm:$0xff] %v2186
        %2195 = vst [vmem:[%s2193 + $0x8] sm:$0xff] %v2187
        %2196 = vst [vmem:[%s2193 + $0x10] sm:$0xff] %v2188
        %2197 = vst [vmem:[%s2193 + $0x18] sm:$0xff] %v2189
        %2198 = vst [vmem:[%s2193 + $0x20] sm:$0xff] %v2190
        %2199 = vst [vmem:[%s2193 + $0x28] sm:$0xff] %v2191
        %2200 = vst [vmem:[%s2193 + $0x30] sm:$0xff] %v2192
        %v2201 = vadd.f32 %v2186, %v2187
        %v2202 = vadd.f32 %v2201, %v2188
        %v2203 = vadd.f32 %v2202, %v2189
        %v2204 = vadd.f32 %v2203, %v2190
        %v2205 = vadd.f32 %v2204, %v2191
        %v2206 = vadd.f32 %v2205, %v2192
        %v2207 = vadd.f32 %v1772, %v2206
        %v2208 = vmul.f32 %v2186, %v2186
        %v2209 = vmul.f32 %v2187, %v2187
        %v2210 = vmul.f32 %v2188, %v2188
        %v2211 = vmul.f32 %v2189, %v2189
        %v2212 = vmul.f32 %v2190, %v2190
        %v2213 = vmul.f32 %v2191, %v2191
        %v2214 = vmul.f32 %v2192, %v2192
        %v2215 = vadd.f32 %v2208, %v2209
        %v2216 = vadd.f32 %v2215, %v2210
        %v2217 = vadd.f32 %v2216, %v2211
        %v2218 = vadd.f32 %v2217, %v2212
        %v2219 = vadd.f32 %v2218, %v2213
        %v2220 = vadd.f32 %v2219, %v2214
        %v2221 = vadd.f32 %v1786, %v2220
        %v2222 = vld [vmem:[%s1160] sm:$0xff]
        %v2223 = vld [vmem:[%s1160 + $0x8] sm:$0xff]
        %v2224 = vld [vmem:[%s1160 + $0x10] sm:$0xff]
        %v2225 = vld [vmem:[%s1160 + $0x18] sm:$0xff]
        %v2226 = vld [vmem:[%s1160 + $0x20] sm:$0xff]
        %v2227 = vld [vmem:[%s1160 + $0x28] sm:$0xff]
        %v2228 = vld [vmem:[%s1160 + $0x30] sm:$0xff]
        %v2229 = vld [vmem:[%s1160 + $0x38] sm:$0xff]
        %v2230 = vld [vmem:[%s1160 + $0x40] sm:$0xff]
        %v2231 = vld [vmem:[%s1160 + $0x48] sm:$0xff]
        %v2232 = vld [vmem:[%s1160 + $0x50] sm:$0xff]
        %v2233 = vmul.f32 %v2222, %v890
        %v2234 = vmul.f32 %v2223, %v890
        %v2235 = vmul.f32 %v2224, %v890
        %v2236 = vmul.f32 %v2225, %v890
        %v2237 = vmul.f32 %v2226, %v890
        %v2238 = vmul.f32 %v2227, %v890
        %v2239 = vmul.f32 %v2228, %v890
        %v2240 = vadd.f32 %v2233, 0.0
        %v2241 = vadd.f32 %v2234, 0.0
        %v2242 = vadd.f32 %v2235, 0.0
        %v2243 = vadd.f32 %v2236, 0.0
        %v2244 = vadd.f32 %v2237, 0.0
        %v2245 = vadd.f32 %v2238, 0.0
        %v2246 = vadd.f32 %v2239, 0.0
        %v2247 = vmul.f32 %v2223, %v891
        %v2248 = vmul.f32 %v2224, %v891
        %v2249 = vmul.f32 %v2225, %v891
        %v2250 = vmul.f32 %v2226, %v891
        %v2251 = vmul.f32 %v2227, %v891
        %v2252 = vmul.f32 %v2228, %v891
        %v2253 = vmul.f32 %v2229, %v891
        %v2254 = vadd.f32 %v2240, %v2247
        %v2255 = vadd.f32 %v2241, %v2248
        %v2256 = vadd.f32 %v2242, %v2249
        %v2257 = vadd.f32 %v2243, %v2250
        %v2258 = vadd.f32 %v2244, %v2251
        %v2259 = vadd.f32 %v2245, %v2252
        %v2260 = vadd.f32 %v2246, %v2253
        %v2261 = vmul.f32 %v2224, %v892
        %v2262 = vmul.f32 %v2225, %v892
        %v2263 = vmul.f32 %v2226, %v892
        %v2264 = vmul.f32 %v2227, %v892
        %v2265 = vmul.f32 %v2228, %v892
        %v2266 = vmul.f32 %v2229, %v892
        %v2267 = vmul.f32 %v2230, %v892
        %v2268 = vadd.f32 %v2254, %v2261
        %v2269 = vadd.f32 %v2255, %v2262
        %v2270 = vadd.f32 %v2256, %v2263
        %v2271 = vadd.f32 %v2257, %v2264
        %v2272 = vadd.f32 %v2258, %v2265
        %v2273 = vadd.f32 %v2259, %v2266
        %v2274 = vadd.f32 %v2260, %v2267
        %v2275 = vmul.f32 %v2225, %v893
        %v2276 = vmul.f32 %v2226, %v893
        %v2277 = vmul.f32 %v2227, %v893
        %v2278 = vmul.f32 %v2228, %v893
        %v2279 = vmul.f32 %v2229, %v893
        %v2280 = vmul.f32 %v2230, %v893
        %v2281 = vmul.f32 %v2231, %v893
        %v2282 = vadd.f32 %v2268, %v2275
        %v2283 = vadd.f32 %v2269, %v2276
        %v2284 = vadd.f32 %v2270, %v2277
        %v2285 = vadd.f32 %v2271, %v2278
        %v2286 = vadd.f32 %v2272, %v2279
        %v2287 = vadd.f32 %v2273, %v2280
        %v2288 = vadd.f32 %v2274, %v2281
        %v2289 = vmul.f32 %v2226, %v894
        %v2290 = vmul.f32 %v2227, %v894
        %v2291 = vmul.f32 %v2228, %v894
        %v2292 = vmul.f32 %v2229, %v894
        %v2293 = vmul.f32 %v2230, %v894
        %v2294 = vmul.f32 %v2231, %v894
        %v2295 = vmul.f32 %v2232, %v894
        %v2296 = vadd.f32 %v2282, %v2289
        %v2297 = vadd.f32 %v2283, %v2290
        %v2298 = vadd.f32 %v2284, %v2291
        %v2299 = vadd.f32 %v2285, %v2292
        %v2300 = vadd.f32 %v2286, %v2293
        %v2301 = vadd.f32 %v2287, %v2294
        %v2302 = vadd.f32 %v2288, %v2295
        %v2303 = vld [vmem:[%s1242] sm:$0xff]
        %v2304 = vld [vmem:[%s1242 + $0x8] sm:$0xff]
        %v2305 = vld [vmem:[%s1242 + $0x10] sm:$0xff]
        %v2306 = vld [vmem:[%s1242 + $0x18] sm:$0xff]
        %v2307 = vld [vmem:[%s1242 + $0x20] sm:$0xff]
        %v2308 = vld [vmem:[%s1242 + $0x28] sm:$0xff]
        %v2309 = vld [vmem:[%s1242 + $0x30] sm:$0xff]
        %v2310 = vld [vmem:[%s1242 + $0x38] sm:$0xff]
        %v2311 = vld [vmem:[%s1242 + $0x40] sm:$0xff]
        %v2312 = vld [vmem:[%s1242 + $0x48] sm:$0xff]
        %v2313 = vld [vmem:[%s1242 + $0x50] sm:$0xff]
        %v2314 = vmul.f32 %v2303, %v895
        %v2315 = vmul.f32 %v2304, %v895
        %v2316 = vmul.f32 %v2305, %v895
        %v2317 = vmul.f32 %v2306, %v895
        %v2318 = vmul.f32 %v2307, %v895
        %v2319 = vmul.f32 %v2308, %v895
        %v2320 = vmul.f32 %v2309, %v895
        %v2321 = vadd.f32 %v2296, %v2314
        %v2322 = vadd.f32 %v2297, %v2315
        %v2323 = vadd.f32 %v2298, %v2316
        %v2324 = vadd.f32 %v2299, %v2317
        %v2325 = vadd.f32 %v2300, %v2318
        %v2326 = vadd.f32 %v2301, %v2319
        %v2327 = vadd.f32 %v2302, %v2320
        %v2328 = vmul.f32 %v2304, %v896
        %v2329 = vmul.f32 %v2305, %v896
        %v2330 = vmul.f32 %v2306, %v896
        %v2331 = vmul.f32 %v2307, %v896
        %v2332 = vmul.f32 %v2308, %v896
        %v2333 = vmul.f32 %v2309, %v896
        %v2334 = vmul.f32 %v2310, %v896
        %v2335 = vadd.f32 %v2321, %v2328
        %v2336 = vadd.f32 %v2322, %v2329
        %v2337 = vadd.f32 %v2323, %v2330
        %v2338 = vadd.f32 %v2324, %v2331
        %v2339 = vadd.f32 %v2325, %v2332
        %v2340 = vadd.f32 %v2326, %v2333
        %v2341 = vadd.f32 %v2327, %v2334
        %v2342 = vmul.f32 %v2305, %v897
        %v2343 = vmul.f32 %v2306, %v897
        %v2344 = vmul.f32 %v2307, %v897
        %v2345 = vmul.f32 %v2308, %v897
        %v2346 = vmul.f32 %v2309, %v897
        %v2347 = vmul.f32 %v2310, %v897
        %v2348 = vmul.f32 %v2311, %v897
        %v2349 = vadd.f32 %v2335, %v2342
        %v2350 = vadd.f32 %v2336, %v2343
        %v2351 = vadd.f32 %v2337, %v2344
        %v2352 = vadd.f32 %v2338, %v2345
        %v2353 = vadd.f32 %v2339, %v2346
        %v2354 = vadd.f32 %v2340, %v2347
        %v2355 = vadd.f32 %v2341, %v2348
        %v2356 = vmul.f32 %v2306, %v898
        %v2357 = vmul.f32 %v2307, %v898
        %v2358 = vmul.f32 %v2308, %v898
        %v2359 = vmul.f32 %v2309, %v898
        %v2360 = vmul.f32 %v2310, %v898
        %v2361 = vmul.f32 %v2311, %v898
        %v2362 = vmul.f32 %v2312, %v898
        %v2363 = vadd.f32 %v2349, %v2356
        %v2364 = vadd.f32 %v2350, %v2357
        %v2365 = vadd.f32 %v2351, %v2358
        %v2366 = vadd.f32 %v2352, %v2359
        %v2367 = vadd.f32 %v2353, %v2360
        %v2368 = vadd.f32 %v2354, %v2361
        %v2369 = vadd.f32 %v2355, %v2362
        %v2370 = vmul.f32 %v2307, %v899
        %v2371 = vmul.f32 %v2308, %v899
        %v2372 = vmul.f32 %v2309, %v899
        %v2373 = vmul.f32 %v2310, %v899
        %v2374 = vmul.f32 %v2311, %v899
        %v2375 = vmul.f32 %v2312, %v899
        %v2376 = vmul.f32 %v2313, %v899
        %v2377 = vadd.f32 %v2363, %v2370
        %v2378 = vadd.f32 %v2364, %v2371
        %v2379 = vadd.f32 %v2365, %v2372
        %v2380 = vadd.f32 %v2366, %v2373
        %v2381 = vadd.f32 %v2367, %v2374
        %v2382 = vadd.f32 %v2368, %v2375
        %v2383 = vadd.f32 %v2369, %v2376
        %v2384 = vld [vmem:[%s1676] sm:$0xff]
        %v2385 = vld [vmem:[%s1676 + $0x8] sm:$0xff]
        %v2386 = vld [vmem:[%s1676 + $0x10] sm:$0xff]
        %v2387 = vld [vmem:[%s1676 + $0x18] sm:$0xff]
        %v2388 = vld [vmem:[%s1676 + $0x20] sm:$0xff]
        %v2389 = vld [vmem:[%s1676 + $0x28] sm:$0xff]
        %v2390 = vld [vmem:[%s1676 + $0x30] sm:$0xff]
        %v2391 = vld [vmem:[%s1676 + $0x38] sm:$0xff]
        %v2392 = vld [vmem:[%s1676 + $0x40] sm:$0xff]
        %v2393 = vld [vmem:[%s1676 + $0x48] sm:$0xff]
        %v2394 = vld [vmem:[%s1676 + $0x50] sm:$0xff]
        %v2395 = vmul.f32 %v2384, %v900
        %v2396 = vmul.f32 %v2385, %v900
        %v2397 = vmul.f32 %v2386, %v900
        %v2398 = vmul.f32 %v2387, %v900
        %v2399 = vmul.f32 %v2388, %v900
        %v2400 = vmul.f32 %v2389, %v900
        %v2401 = vmul.f32 %v2390, %v900
        %v2402 = vadd.f32 %v2377, %v2395
        %v2403 = vadd.f32 %v2378, %v2396
        %v2404 = vadd.f32 %v2379, %v2397
        %v2405 = vadd.f32 %v2380, %v2398
        %v2406 = vadd.f32 %v2381, %v2399
        %v2407 = vadd.f32 %v2382, %v2400
        %v2408 = vadd.f32 %v2383, %v2401
        %v2409 = vmul.f32 %v2385, %v901
        %v2410 = vmul.f32 %v2386, %v901
        %v2411 = vmul.f32 %v2387, %v901
        %v2412 = vmul.f32 %v2388, %v901
        %v2413 = vmul.f32 %v2389, %v901
        %v2414 = vmul.f32 %v2390, %v901
        %v2415 = vmul.f32 %v2391, %v901
        %v2416 = vadd.f32 %v2402, %v2409
        %v2417 = vadd.f32 %v2403, %v2410
        %v2418 = vadd.f32 %v2404, %v2411
        %v2419 = vadd.f32 %v2405, %v2412
        %v2420 = vadd.f32 %v2406, %v2413
        %v2421 = vadd.f32 %v2407, %v2414
        %v2422 = vadd.f32 %v2408, %v2415
        %v2423 = vmul.f32 %v2386, %v902
        %v2424 = vmul.f32 %v2387, %v902
        %v2425 = vmul.f32 %v2388, %v902
        %v2426 = vmul.f32 %v2389, %v902
        %v2427 = vmul.f32 %v2390, %v902
        %v2428 = vmul.f32 %v2391, %v902
        %v2429 = vmul.f32 %v2392, %v902
        %v2430 = vadd.f32 %v2416, %v2423
        %v2431 = vadd.f32 %v2417, %v2424
        %v2432 = vadd.f32 %v2418, %v2425
        %v2433 = vadd.f32 %v2419, %v2426
        %v2434 = vadd.f32 %v2420, %v2427
        %v2435 = vadd.f32 %v2421, %v2428
        %v2436 = vadd.f32 %v2422, %v2429
        %v2437 = vmul.f32 %v2387, %v903
        %v2438 = vmul.f32 %v2388, %v903
        %v2439 = vmul.f32 %v2389, %v903
        %v2440 = vmul.f32 %v2390, %v903
        %v2441 = vmul.f32 %v2391, %v903
        %v2442 = vmul.f32 %v2392, %v903
        %v2443 = vmul.f32 %v2393, %v903
        %v2444 = vadd.f32 %v2430, %v2437
        %v2445 = vadd.f32 %v2431, %v2438
        %v2446 = vadd.f32 %v2432, %v2439
        %v2447 = vadd.f32 %v2433, %v2440
        %v2448 = vadd.f32 %v2434, %v2441
        %v2449 = vadd.f32 %v2435, %v2442
        %v2450 = vadd.f32 %v2436, %v2443
        %v2451 = vmul.f32 %v2388, %v904
        %v2452 = vmul.f32 %v2389, %v904
        %v2453 = vmul.f32 %v2390, %v904
        %v2454 = vmul.f32 %v2391, %v904
        %v2455 = vmul.f32 %v2392, %v904
        %v2456 = vmul.f32 %v2393, %v904
        %v2457 = vmul.f32 %v2394, %v904
        %v2458 = vadd.f32 %v2444, %v2451
        %v2459 = vadd.f32 %v2445, %v2452
        %v2460 = vadd.f32 %v2446, %v2453
        %v2461 = vadd.f32 %v2447, %v2454
        %v2462 = vadd.f32 %v2448, %v2455
        %v2463 = vadd.f32 %v2449, %v2456
        %v2464 = vadd.f32 %v2450, %v2457
        %v2465 = vld [vmem:[%s2111] sm:$0xff]
        %v2466 = vld [vmem:[%s2111 + $0x8] sm:$0xff]
        %v2467 = vld [vmem:[%s2111 + $0x10] sm:$0xff]
        %v2468 = vld [vmem:[%s2111 + $0x18] sm:$0xff]
        %v2469 = vld [vmem:[%s2111 + $0x20] sm:$0xff]
        %v2470 = vld [vmem:[%s2111 + $0x28] sm:$0xff]
        %v2471 = vld [vmem:[%s2111 + $0x30] sm:$0xff]
        %v2472 = vld [vmem:[%s2111 + $0x38] sm:$0xff]
        %v2473 = vld [vmem:[%s2111 + $0x40] sm:$0xff]
        %v2474 = vld [vmem:[%s2111 + $0x48] sm:$0xff]
        %v2475 = vld [vmem:[%s2111 + $0x50] sm:$0xff]
        %v2476 = vmul.f32 %v2465, %v905
        %v2477 = vmul.f32 %v2466, %v905
        %v2478 = vmul.f32 %v2467, %v905
        %v2479 = vmul.f32 %v2468, %v905
        %v2480 = vmul.f32 %v2469, %v905
        %v2481 = vmul.f32 %v2470, %v905
        %v2482 = vmul.f32 %v2471, %v905
        %v2483 = vadd.f32 %v2458, %v2476
        %v2484 = vadd.f32 %v2459, %v2477
        %v2485 = vadd.f32 %v2460, %v2478
        %v2486 = vadd.f32 %v2461, %v2479
        %v2487 = vadd.f32 %v2462, %v2480
        %v2488 = vadd.f32 %v2463, %v2481
        %v2489 = vadd.f32 %v2464, %v2482
        %v2490 = vmul.f32 %v2466, %v906
        %v2491 = vmul.f32 %v2467, %v906
        %v2492 = vmul.f32 %v2468, %v906
        %v2493 = vmul.f32 %v2469, %v906
        %v2494 = vmul.f32 %v2470, %v906
        %v2495 = vmul.f32 %v2471, %v906
        %v2496 = vmul.f32 %v2472, %v906
        %v2497 = vadd.f32 %v2483, %v2490
        %v2498 = vadd.f32 %v2484, %v2491
        %v2499 = vadd.f32 %v2485, %v2492
        %v2500 = vadd.f32 %v2486, %v2493
        %v2501 = vadd.f32 %v2487, %v2494
        %v2502 = vadd.f32 %v2488, %v2495
        %v2503 = vadd.f32 %v2489, %v2496
        %v2504 = vmul.f32 %v2467, %v907
        %v2505 = vmul.f32 %v2468, %v907
        %v2506 = vmul.f32 %v2469, %v907
        %v2507 = vmul.f32 %v2470, %v907
        %v2508 = vmul.f32 %v2471, %v907
        %v2509 = vmul.f32 %v2472, %v907
        %v2510 = vmul.f32 %v2473, %v907
        %v2511 = vadd.f32 %v2497, %v2504
        %v2512 = vadd.f32 %v2498, %v2505
        %v2513 = vadd.f32 %v2499, %v2506
        %v2514 = vadd.f32 %v2500, %v2507
        %v2515 = vadd.f32 %v2501, %v2508
        %v2516 = vadd.f32 %v2502, %v2509
        %v2517 = vadd.f32 %v2503, %v2510
        %v2518 = vmul.f32 %v2468, %v908
        %v2519 = vmul.f32 %v2469, %v908
        %v2520 = vmul.f32 %v2470, %v908
        %v2521 = vmul.f32 %v2471, %v908
        %v2522 = vmul.f32 %v2472, %v908
        %v2523 = vmul.f32 %v2473, %v908
        %v2524 = vmul.f32 %v2474, %v908
        %v2525 = vadd.f32 %v2511, %v2518
        %v2526 = vadd.f32 %v2512, %v2519
        %v2527 = vadd.f32 %v2513, %v2520
        %v2528 = vadd.f32 %v2514, %v2521
        %v2529 = vadd.f32 %v2515, %v2522
        %v2530 = vadd.f32 %v2516, %v2523
        %v2531 = vadd.f32 %v2517, %v2524
        %v2532 = vmul.f32 %v2469, %v909
        %v2533 = vmul.f32 %v2470, %v909
        %v2534 = vmul.f32 %v2471, %v909
        %v2535 = vmul.f32 %v2472, %v909
        %v2536 = vmul.f32 %v2473, %v909
        %v2537 = vmul.f32 %v2474, %v909
        %v2538 = vmul.f32 %v2475, %v909
        %v2539 = vadd.f32 %v2525, %v2532
        %v2540 = vadd.f32 %v2526, %v2533
        %v2541 = vadd.f32 %v2527, %v2534
        %v2542 = vadd.f32 %v2528, %v2535
        %v2543 = vadd.f32 %v2529, %v2536
        %v2544 = vadd.f32 %v2530, %v2537
        %v2545 = vadd.f32 %v2531, %v2538
        %s2546 = scalar_lea.vmem %s841, 616 [#allocation2]
        %v2547 = vld [vmem:[%s2546] sm:$0xff]
        %v2548 = vld [vmem:[%s2546 + $0x8] sm:$0xff]
        %v2549 = vld [vmem:[%s2546 + $0x10] sm:$0xff]
        %v2550 = vld [vmem:[%s2546 + $0x18] sm:$0xff]
        %v2551 = vld [vmem:[%s2546 + $0x20] sm:$0xff]
        %v2552 = vld [vmem:[%s2546 + $0x28] sm:$0xff]
        %v2553 = vld [vmem:[%s2546 + $0x30] sm:$0xff]
        %v2554 = vld [vmem:[%s2546 + $0x38] sm:$0xff]
        %v2555 = vld [vmem:[%s2546 + $0x40] sm:$0xff]
        %v2556 = vld [vmem:[%s2546 + $0x48] sm:$0xff]
        %v2557 = vld [vmem:[%s2546 + $0x50] sm:$0xff]
        %v2558 = vmul.f32 %v2547, %v910
        %v2559 = vmul.f32 %v2548, %v910
        %v2560 = vmul.f32 %v2549, %v910
        %v2561 = vmul.f32 %v2550, %v910
        %v2562 = vmul.f32 %v2551, %v910
        %v2563 = vmul.f32 %v2552, %v910
        %v2564 = vmul.f32 %v2553, %v910
        %v2565 = vadd.f32 %v2539, %v2558
        %v2566 = vadd.f32 %v2540, %v2559
        %v2567 = vadd.f32 %v2541, %v2560
        %v2568 = vadd.f32 %v2542, %v2561
        %v2569 = vadd.f32 %v2543, %v2562
        %v2570 = vadd.f32 %v2544, %v2563
        %v2571 = vadd.f32 %v2545, %v2564
        %v2572 = vmul.f32 %v2548, %v911
        %v2573 = vmul.f32 %v2549, %v911
        %v2574 = vmul.f32 %v2550, %v911
        %v2575 = vmul.f32 %v2551, %v911
        %v2576 = vmul.f32 %v2552, %v911
        %v2577 = vmul.f32 %v2553, %v911
        %v2578 = vmul.f32 %v2554, %v911
        %v2579 = vadd.f32 %v2565, %v2572
        %v2580 = vadd.f32 %v2566, %v2573
        %v2581 = vadd.f32 %v2567, %v2574
        %v2582 = vadd.f32 %v2568, %v2575
        %v2583 = vadd.f32 %v2569, %v2576
        %v2584 = vadd.f32 %v2570, %v2577
        %v2585 = vadd.f32 %v2571, %v2578
        %v2586 = vmul.f32 %v2549, %v912
        %v2587 = vmul.f32 %v2550, %v912
        %v2588 = vmul.f32 %v2551, %v912
        %v2589 = vmul.f32 %v2552, %v912
        %v2590 = vmul.f32 %v2553, %v912
        %v2591 = vmul.f32 %v2554, %v912
        %v2592 = vmul.f32 %v2555, %v912
        %v2593 = vadd.f32 %v2579, %v2586
        %v2594 = vadd.f32 %v2580, %v2587
        %v2595 = vadd.f32 %v2581, %v2588
        %v2596 = vadd.f32 %v2582, %v2589
        %v2597 = vadd.f32 %v2583, %v2590
        %v2598 = vadd.f32 %v2584, %v2591
        %v2599 = vadd.f32 %v2585, %v2592
        %v2600 = vmul.f32 %v2550, %v913
        %v2601 = vmul.f32 %v2551, %v913
        %v2602 = vmul.f32 %v2552, %v913
        %v2603 = vmul.f32 %v2553, %v913
        %v2604 = vmul.f32 %v2554, %v913
        %v2605 = vmul.f32 %v2555, %v913
        %v2606 = vmul.f32 %v2556, %v913
        %v2607 = vadd.f32 %v2593, %v2600
        %v2608 = vadd.f32 %v2594, %v2601
        %v2609 = vadd.f32 %v2595, %v2602
        %v2610 = vadd.f32 %v2596, %v2603
        %v2611 = vadd.f32 %v2597, %v2604
        %v2612 = vadd.f32 %v2598, %v2605
        %v2613 = vadd.f32 %v2599, %v2606
        %v2614 = vmul.f32 %v2551, %v914
        %v2615 = vmul.f32 %v2552, %v914
        %v2616 = vmul.f32 %v2553, %v914
        %v2617 = vmul.f32 %v2554, %v914
        %v2618 = vmul.f32 %v2555, %v914
        %v2619 = vmul.f32 %v2556, %v914
        %v2620 = vmul.f32 %v2557, %v914
        %v2621 = vadd.f32 %v2607, %v2614
        %v2622 = vadd.f32 %v2608, %v2615
        %v2623 = vadd.f32 %v2609, %v2616
        %v2624 = vadd.f32 %v2610, %v2617
        %v2625 = vadd.f32 %v2611, %v2618
        %v2626 = vadd.f32 %v2612, %v2619
        %v2627 = vadd.f32 %v2613, %v2620
        %s2628 = scalar_lea.vmem %s881, 168 [#allocation4]
        %2629 = vst [vmem:[%s2628] sm:$0xff] %v2621
        %2630 = vst [vmem:[%s2628 + $0x8] sm:$0xff] %v2622
        %2631 = vst [vmem:[%s2628 + $0x10] sm:$0xff] %v2623
        %2632 = vst [vmem:[%s2628 + $0x18] sm:$0xff] %v2624
        %2633 = vst [vmem:[%s2628 + $0x20] sm:$0xff] %v2625
        %2634 = vst [vmem:[%s2628 + $0x28] sm:$0xff] %v2626
        %2635 = vst [vmem:[%s2628 + $0x30] sm:$0xff] %v2627
        %v2636 = vadd.f32 %v2621, %v2622
        %v2637 = vadd.f32 %v2636, %v2623
        %v2638 = vadd.f32 %v2637, %v2624
        %v2639 = vadd.f32 %v2638, %v2625
        %v2640 = vadd.f32 %v2639, %v2626
        %v2641 = vadd.f32 %v2640, %v2627
        %v2642 = vadd.f32 %v2207, %v2641
        %v2643 = vmul.f32 %v2621, %v2621
        %v2644 = vmul.f32 %v2622, %v2622
        %v2645 = vmul.f32 %v2623, %v2623
        %v2646 = vmul.f32 %v2624, %v2624
        %v2647 = vmul.f32 %v2625, %v2625
        %v2648 = vmul.f32 %v2626, %v2626
        %v2649 = vmul.f32 %v2627, %v2627
        %v2650 = vadd.f32 %v2643, %v2644
        %v2651 = vadd.f32 %v2650, %v2645
        %v2652 = vadd.f32 %v2651, %v2646
        %v2653 = vadd.f32 %v2652, %v2647
        %v2654 = vadd.f32 %v2653, %v2648
        %v2655 = vadd.f32 %v2654, %v2649
        %v2656 = vadd.f32 %v2221, %v2655
        %v2657 = vld [vmem:[%s1242] sm:$0xff]
        %v2658 = vld [vmem:[%s1242 + $0x8] sm:$0xff]
        %v2659 = vld [vmem:[%s1242 + $0x10] sm:$0xff]
        %v2660 = vld [vmem:[%s1242 + $0x18] sm:$0xff]
        %v2661 = vld [vmem:[%s1242 + $0x20] sm:$0xff]
        %v2662 = vld [vmem:[%s1242 + $0x28] sm:$0xff]
        %v2663 = vld [vmem:[%s1242 + $0x30] sm:$0xff]
        %v2664 = vld [vmem:[%s1242 + $0x38] sm:$0xff]
        %v2665 = vld [vmem:[%s1242 + $0x40] sm:$0xff]
        %v2666 = vld [vmem:[%s1242 + $0x48] sm:$0xff]
        %v2667 = vld [vmem:[%s1242 + $0x50] sm:$0xff]
        %v2668 = vmul.f32 %v2657, %v890
        %v2669 = vmul.f32 %v2658, %v890
        %v2670 = vmul.f32 %v2659, %v890
        %v2671 = vmul.f32 %v2660, %v890
        %v2672 = vmul.f32 %v2661, %v890
        %v2673 = vmul.f32 %v2662, %v890
        %v2674 = vmul.f32 %v2663, %v890
        %v2675 = vadd.f32 %v2668, 0.0
        %v2676 = vadd.f32 %v2669, 0.0
        %v2677 = vadd.f32 %v2670, 0.0
        %v2678 = vadd.f32 %v2671, 0.0
        %v2679 = vadd.f32 %v2672, 0.0
        %v2680 = vadd.f32 %v2673, 0.0
        %v2681 = vadd.f32 %v2674, 0.0
        %v2682 = vmul.f32 %v2658, %v891
        %v2683 = vmul.f32 %v2659, %v891
        %v2684 = vmul.f32 %v2660, %v891
        %v2685 = vmul.f32 %v2661, %v891
        %v2686 = vmul.f32 %v2662, %v891
        %v2687 = vmul.f32 %v2663, %v891
        %v2688 = vmul.f32 %v2664, %v891
        %v2689 = vadd.f32 %v2675, %v2682
        %v2690 = vadd.f32 %v2676, %v2683
        %v2691 = vadd.f32 %v2677, %v2684
        %v2692 = vadd.f32 %v2678, %v2685
        %v2693 = vadd.f32 %v2679, %v2686
        %v2694 = vadd.f32 %v2680, %v2687
        %v2695 = vadd.f32 %v2681, %v2688
        %v2696 = vmul.f32 %v2659, %v892
        %v2697 = vmul.f32 %v2660, %v892
        %v2698 = vmul.f32 %v2661, %v892
        %v2699 = vmul.f32 %v2662, %v892
        %v2700 = vmul.f32 %v2663, %v892
        %v2701 = vmul.f32 %v2664, %v892
        %v2702 = vmul.f32 %v2665, %v892
        %v2703 = vadd.f32 %v2689, %v2696
        %v2704 = vadd.f32 %v2690, %v2697
        %v2705 = vadd.f32 %v2691, %v2698
        %v2706 = vadd.f32 %v2692, %v2699
        %v2707 = vadd.f32 %v2693, %v2700
        %v2708 = vadd.f32 %v2694, %v2701
        %v2709 = vadd.f32 %v2695, %v2702
        %v2710 = vmul.f32 %v2660, %v893
        %v2711 = vmul.f32 %v2661, %v893
        %v2712 = vmul.f32 %v2662, %v893
        %v2713 = vmul.f32 %v2663, %v893
        %v2714 = vmul.f32 %v2664, %v893
        %v2715 = vmul.f32 %v2665, %v893
        %v2716 = vmul.f32 %v2666, %v893
        %v2717 = vadd.f32 %v2703, %v2710
        %v2718 = vadd.f32 %v2704, %v2711
        %v2719 = vadd.f32 %v2705, %v2712
        %v2720 = vadd.f32 %v2706, %v2713
        %v2721 = vadd.f32 %v2707, %v2714
        %v2722 = vadd.f32 %v2708, %v2715
        %v2723 = vadd.f32 %v2709, %v2716
        %v2724 = vmul.f32 %v2661, %v894
        %v2725 = vmul.f32 %v2662, %v894
        %v2726 = vmul.f32 %v2663, %v894
        %v2727 = vmul.f32 %v2664, %v894
        %v2728 = vmul.f32 %v2665, %v894
        %v2729 = vmul.f32 %v2666, %v894
        %v2730 = vmul.f32 %v2667, %v894
        %v2731 = vadd.f32 %v2717, %v2724
        %v2732 = vadd.f32 %v2718, %v2725
        %v2733 = vadd.f32 %v2719, %v2726
        %v2734 = vadd.f32 %v2720, %v2727
        %v2735 = vadd.f32 %v2721, %v2728
        %v2736 = vadd.f32 %v2722, %v2729
        %v2737 = vadd.f32 %v2723, %v2730
        %v2738 = vld [vmem:[%s1676] sm:$0xff]
        %v2739 = vld [vmem:[%s1676 + $0x8] sm:$0xff]
        %v2740 = vld [vmem:[%s1676 + $0x10] sm:$0xff]
        %v2741 = vld [vmem:[%s1676 + $0x18] sm:$0xff]
        %v2742 = vld [vmem:[%s1676 + $0x20] sm:$0xff]
        %v2743 = vld [vmem:[%s1676 + $0x28] sm:$0xff]
        %v2744 = vld [vmem:[%s1676 + $0x30] sm:$0xff]
        %v2745 = vld [vmem:[%s1676 + $0x38] sm:$0xff]
        %v2746 = vld [vmem:[%s1676 + $0x40] sm:$0xff]
        %v2747 = vld [vmem:[%s1676 + $0x48] sm:$0xff]
        %v2748 = vld [vmem:[%s1676 + $0x50] sm:$0xff]
        %v2749 = vmul.f32 %v2738, %v895
        %v2750 = vmul.f32 %v2739, %v895
        %v2751 = vmul.f32 %v2740, %v895
        %v2752 = vmul.f32 %v2741, %v895
        %v2753 = vmul.f32 %v2742, %v895
        %v2754 = vmul.f32 %v2743, %v895
        %v2755 = vmul.f32 %v2744, %v895
        %v2756 = vadd.f32 %v2731, %v2749
        %v2757 = vadd.f32 %v2732, %v2750
        %v2758 = vadd.f32 %v2733, %v2751
        %v2759 = vadd.f32 %v2734, %v2752
        %v2760 = vadd.f32 %v2735, %v2753
        %v2761 = vadd.f32 %v2736, %v2754
        %v2762 = vadd.f32 %v2737, %v2755
        %v2763 = vmul.f32 %v2739, %v896
        %v2764 = vmul.f32 %v2740, %v896
        %v2765 = vmul.f32 %v2741, %v896
        %v2766 = vmul.f32 %v2742, %v896
        %v2767 = vmul.f32 %v2743, %v896
        %v2768 = vmul.f32 %v2744, %v896
        %v2769 = vmul.f32 %v2745, %v896
        %v2770 = vadd.f32 %v2756, %v2763
        %v2771 = vadd.f32 %v2757, %v2764
        %v2772 = vadd.f32 %v2758, %v2765
        %v2773 = vadd.f32 %v2759, %v2766
        %v2774 = vadd.f32 %v2760, %v2767
        %v2775 = vadd.f32 %v2761, %v2768
        %v2776 = vadd.f32 %v2762, %v2769
        %v2777 = vmul.f32 %v2740, %v897
        %v2778 = vmul.f32 %v2741, %v897
        %v2779 = vmul.f32 %v2742, %v897
        %v2780 = vmul.f32 %v2743, %v897
        %v2781 = vmul.f32 %v2744, %v897
        %v2782 = vmul.f32 %v2745, %v897
        %v2783 = vmul.f32 %v2746, %v897
        %v2784 = vadd.f32 %v2770, %v2777
        %v2785 = vadd.f32 %v2771, %v2778
        %v2786 = vadd.f32 %v2772, %v2779
        %v2787 = vadd.f32 %v2773, %v2780
        %v2788 = vadd.f32 %v2774, %v2781
        %v2789 = vadd.f32 %v2775, %v2782
        %v2790 = vadd.f32 %v2776, %v2783
        %v2791 = vmul.f32 %v2741, %v898
        %v2792 = vmul.f32 %v2742, %v898
        %v2793 = vmul.f32 %v2743, %v898
        %v2794 = vmul.f32 %v2744, %v898
        %v2795 = vmul.f32 %v2745, %v898
        %v2796 = vmul.f32 %v2746, %v898
        %v2797 = vmul.f32 %v2747, %v898
        %v2798 = vadd.f32 %v2784, %v2791
        %v2799 = vadd.f32 %v2785, %v2792
        %v2800 = vadd.f32 %v2786, %v2793
        %v2801 = vadd.f32 %v2787, %v2794
        %v2802 = vadd.f32 %v2788, %v2795
        %v2803 = vadd.f32 %v2789, %v2796
        %v2804 = vadd.f32 %v2790, %v2797
        %v2805 = vmul.f32 %v2742, %v899
        %v2806 = vmul.f32 %v2743, %v899
        %v2807 = vmul.f32 %v2744, %v899
        %v2808 = vmul.f32 %v2745, %v899
        %v2809 = vmul.f32 %v2746, %v899
        %v2810 = vmul.f32 %v2747, %v899
        %v2811 = vmul.f32 %v2748, %v899
        %v2812 = vadd.f32 %v2798, %v2805
        %v2813 = vadd.f32 %v2799, %v2806
        %v2814 = vadd.f32 %v2800, %v2807
        %v2815 = vadd.f32 %v2801, %v2808
        %v2816 = vadd.f32 %v2802, %v2809
        %v2817 = vadd.f32 %v2803, %v2810
        %v2818 = vadd.f32 %v2804, %v2811
        %v2819 = vld [vmem:[%s2111] sm:$0xff]
        %v2820 = vld [vmem:[%s2111 + $0x8] sm:$0xff]
        %v2821 = vld [vmem:[%s2111 + $0x10] sm:$0xff]
        %v2822 = vld [vmem:[%s2111 + $0x18] sm:$0xff]
        %v2823 = vld [vmem:[%s2111 + $0x20] sm:$0xff]
        %v2824 = vld [vmem:[%s2111 + $0x28] sm:$0xff]
        %v2825 = vld [vmem:[%s2111 + $0x30] sm:$0xff]
        %v2826 = vld [vmem:[%s2111 + $0x38] sm:$0xff]
        %v2827 = vld [vmem:[%s2111 + $0x40] sm:$0xff]
        %v2828 = vld [vmem:[%s2111 + $0x48] sm:$0xff]
        %v2829 = vld [vmem:[%s2111 + $0x50] sm:$0xff]
        %v2830 = vmul.f32 %v2819, %v900
        %v2831 = vmul.f32 %v2820, %v900
        %v2832 = vmul.f32 %v2821, %v900
        %v2833 = vmul.f32 %v2822, %v900
        %v2834 = vmul.f32 %v2823, %v900
        %v2835 = vmul.f32 %v2824, %v900
        %v2836 = vmul.f32 %v2825, %v900
        %v2837 = vadd.f32 %v2812, %v2830
        %v2838 = vadd.f32 %v2813, %v2831
        %v2839 = vadd.f32 %v2814, %v2832
        %v2840 = vadd.f32 %v2815, %v2833
        %v2841 = vadd.f32 %v2816, %v2834
        %v2842 = vadd.f32 %v2817, %v2835
        %v2843 = vadd.f32 %v2818, %v2836
        %v2844 = vmul.f32 %v2820, %v901
        %v2845 = vmul.f32 %v2821, %v901
        %v2846 = vmul.f32 %v2822, %v901
        %v2847 = vmul.f32 %v2823, %v901
        %v2848 = vmul.f32 %v2824, %v901
        %v2849 = vmul.f32 %v2825, %v901
        %v2850 = vmul.f32 %v2826, %v901
        %v2851 = vadd.f32 %v2837, %v2844
        %v2852 = vadd.f32 %v2838, %v2845
        %v2853 = vadd.f32 %v2839, %v2846
        %v2854 = vadd.f32 %v2840, %v2847
        %v2855 = vadd.f32 %v2841, %v2848
        %v2856 = vadd.f32 %v2842, %v2849
        %v2857 = vadd.f32 %v2843, %v2850
        %v2858 = vmul.f32 %v2821, %v902
        %v2859 = vmul.f32 %v2822, %v902
        %v2860 = vmul.f32 %v2823, %v902
        %v2861 = vmul.f32 %v2824, %v902
        %v2862 = vmul.f32 %v2825, %v902
        %v2863 = vmul.f32 %v2826, %v902
        %v2864 = vmul.f32 %v2827, %v902
        %v2865 = vadd.f32 %v2851, %v2858
        %v2866 = vadd.f32 %v2852, %v2859
        %v2867 = vadd.f32 %v2853, %v2860
        %v2868 = vadd.f32 %v2854, %v2861
        %v2869 = vadd.f32 %v2855, %v2862
        %v2870 = vadd.f32 %v2856, %v2863
        %v2871 = vadd.f32 %v2857, %v2864
        %v2872 = vmul.f32 %v2822, %v903
        %v2873 = vmul.f32 %v2823, %v903
        %v2874 = vmul.f32 %v2824, %v903
        %v2875 = vmul.f32 %v2825, %v903
        %v2876 = vmul.f32 %v2826, %v903
        %v2877 = vmul.f32 %v2827, %v903
        %v2878 = vmul.f32 %v2828, %v903
        %v2879 = vadd.f32 %v2865, %v2872
        %v2880 = vadd.f32 %v2866, %v2873
        %v2881 = vadd.f32 %v2867, %v2874
        %v2882 = vadd.f32 %v2868, %v2875
        %v2883 = vadd.f32 %v2869, %v2876
        %v2884 = vadd.f32 %v2870, %v2877
        %v2885 = vadd.f32 %v2871, %v2878
        %v2886 = vmul.f32 %v2823, %v904
        %v2887 = vmul.f32 %v2824, %v904
        %v2888 = vmul.f32 %v2825, %v904
        %v2889 = vmul.f32 %v2826, %v904
        %v2890 = vmul.f32 %v2827, %v904
        %v2891 = vmul.f32 %v2828, %v904
        %v2892 = vmul.f32 %v2829, %v904
        %v2893 = vadd.f32 %v2879, %v2886
        %v2894 = vadd.f32 %v2880, %v2887
        %v2895 = vadd.f32 %v2881, %v2888
        %v2896 = vadd.f32 %v2882, %v2889
        %v2897 = vadd.f32 %v2883, %v2890
        %v2898 = vadd.f32 %v2884, %v2891
        %v2899 = vadd.f32 %v2885, %v2892
        %v2900 = vld [vmem:[%s2546] sm:$0xff]
        %v2901 = vld [vmem:[%s2546 + $0x8] sm:$0xff]
        %v2902 = vld [vmem:[%s2546 + $0x10] sm:$0xff]
        %v2903 = vld [vmem:[%s2546 + $0x18] sm:$0xff]
        %v2904 = vld [vmem:[%s2546 + $0x20] sm:$0xff]
        %v2905 = vld [vmem:[%s2546 + $0x28] sm:$0xff]
        %v2906 = vld [vmem:[%s2546 + $0x30] sm:$0xff]
        %v2907 = vld [vmem:[%s2546 + $0x38] sm:$0xff]
        %v2908 = vld [vmem:[%s2546 + $0x40] sm:$0xff]
        %v2909 = vld [vmem:[%s2546 + $0x48] sm:$0xff]
        %v2910 = vld [vmem:[%s2546 + $0x50] sm:$0xff]
        %v2911 = vmul.f32 %v2900, %v905
        %v2912 = vmul.f32 %v2901, %v905
        %v2913 = vmul.f32 %v2902, %v905
        %v2914 = vmul.f32 %v2903, %v905
        %v2915 = vmul.f32 %v2904, %v905
        %v2916 = vmul.f32 %v2905, %v905
        %v2917 = vmul.f32 %v2906, %v905
        %v2918 = vadd.f32 %v2893, %v2911
        %v2919 = vadd.f32 %v2894, %v2912
        %v2920 = vadd.f32 %v2895, %v2913
        %v2921 = vadd.f32 %v2896, %v2914
        %v2922 = vadd.f32 %v2897, %v2915
        %v2923 = vadd.f32 %v2898, %v2916
        %v2924 = vadd.f32 %v2899, %v2917
        %v2925 = vmul.f32 %v2901, %v906
        %v2926 = vmul.f32 %v2902, %v906
        %v2927 = vmul.f32 %v2903, %v906
        %v2928 = vmul.f32 %v2904, %v906
        %v2929 = vmul.f32 %v2905, %v906
        %v2930 = vmul.f32 %v2906, %v906
        %v2931 = vmul.f32 %v2907, %v906
        %v2932 = vadd.f32 %v2918, %v2925
        %v2933 = vadd.f32 %v2919, %v2926
        %v2934 = vadd.f32 %v2920, %v2927
        %v2935 = vadd.f32 %v2921, %v2928
        %v2936 = vadd.f32 %v2922, %v2929
        %v2937 = vadd.f32 %v2923, %v2930
        %v2938 = vadd.f32 %v2924, %v2931
        %v2939 = vmul.f32 %v2902, %v907
        %v2940 = vmul.f32 %v2903, %v907
        %v2941 = vmul.f32 %v2904, %v907
        %v2942 = vmul.f32 %v2905, %v907
        %v2943 = vmul.f32 %v2906, %v907
        %v2944 = vmul.f32 %v2907, %v907
        %v2945 = vmul.f32 %v2908, %v907
        %v2946 = vadd.f32 %v2932, %v2939
        %v2947 = vadd.f32 %v2933, %v2940
        %v2948 = vadd.f32 %v2934, %v2941
        %v2949 = vadd.f32 %v2935, %v2942
        %v2950 = vadd.f32 %v2936, %v2943
        %v2951 = vadd.f32 %v2937, %v2944
        %v2952 = vadd.f32 %v2938, %v2945
        %v2953 = vmul.f32 %v2903, %v908
        %v2954 = vmul.f32 %v2904, %v908
        %v2955 = vmul.f32 %v2905, %v908
        %v2956 = vmul.f32 %v2906, %v908
        %v2957 = vmul.f32 %v2907, %v908
        %v2958 = vmul.f32 %v2908, %v908
        %v2959 = vmul.f32 %v2909, %v908
        %v2960 = vadd.f32 %v2946, %v2953
        %v2961 = vadd.f32 %v2947, %v2954
        %v2962 = vadd.f32 %v2948, %v2955
        %v2963 = vadd.f32 %v2949, %v2956
        %v2964 = vadd.f32 %v2950, %v2957
        %v2965 = vadd.f32 %v2951, %v2958
        %v2966 = vadd.f32 %v2952, %v2959
        %v2967 = vmul.f32 %v2904, %v909
        %v2968 = vmul.f32 %v2905, %v909
        %v2969 = vmul.f32 %v2906, %v909
        %v2970 = vmul.f32 %v2907, %v909
        %v2971 = vmul.f32 %v2908, %v909
        %v2972 = vmul.f32 %v2909, %v909
        %v2973 = vmul.f32 %v2910, %v909
        %v2974 = vadd.f32 %v2960, %v2967
        %v2975 = vadd.f32 %v2961, %v2968
        %v2976 = vadd.f32 %v2962, %v2969
        %v2977 = vadd.f32 %v2963, %v2970
        %v2978 = vadd.f32 %v2964, %v2971
        %v2979 = vadd.f32 %v2965, %v2972
        %v2980 = vadd.f32 %v2966, %v2973
        %s2981 = scalar_lea.vmem %s841, 704 [#allocation2]
        %v2982 = vld [vmem:[%s2981] sm:$0xff]
        %v2983 = vld [vmem:[%s2981 + $0x8] sm:$0xff]
        %v2984 = vld [vmem:[%s2981 + $0x10] sm:$0xff]
        %v2985 = vld [vmem:[%s2981 + $0x18] sm:$0xff]
        %v2986 = vld [vmem:[%s2981 + $0x20] sm:$0xff]
        %v2987 = vld [vmem:[%s2981 + $0x28] sm:$0xff]
        %v2988 = vld [vmem:[%s2981 + $0x30] sm:$0xff]
        %v2989 = vld [vmem:[%s2981 + $0x38] sm:$0xff]
        %v2990 = vld [vmem:[%s2981 + $0x40] sm:$0xff]
        %v2991 = vld [vmem:[%s2981 + $0x48] sm:$0xff]
        %v2992 = vld [vmem:[%s2981 + $0x50] sm:$0xff]
        %v2993 = vmul.f32 %v2982, %v910
        %v2994 = vmul.f32 %v2983, %v910
        %v2995 = vmul.f32 %v2984, %v910
        %v2996 = vmul.f32 %v2985, %v910
        %v2997 = vmul.f32 %v2986, %v910
        %v2998 = vmul.f32 %v2987, %v910
        %v2999 = vmul.f32 %v2988, %v910
        %v3000 = vadd.f32 %v2974, %v2993
        %v3001 = vadd.f32 %v2975, %v2994
        %v3002 = vadd.f32 %v2976, %v2995
        %v3003 = vadd.f32 %v2977, %v2996
        %v3004 = vadd.f32 %v2978, %v2997
        %v3005 = vadd.f32 %v2979, %v2998
        %v3006 = vadd.f32 %v2980, %v2999
        %v3007 = vmul.f32 %v2983, %v911
        %v3008 = vmul.f32 %v2984, %v911
        %v3009 = vmul.f32 %v2985, %v911
        %v3010 = vmul.f32 %v2986, %v911
        %v3011 = vmul.f32 %v2987, %v911
        %v3012 = vmul.f32 %v2988, %v911
        %v3013 = vmul.f32 %v2989, %v911
        %v3014 = vadd.f32 %v3000, %v3007
        %v3015 = vadd.f32 %v3001, %v3008
        %v3016 = vadd.f32 %v3002, %v3009
        %v3017 = vadd.f32 %v3003, %v3010
        %v3018 = vadd.f32 %v3004, %v3011
        %v3019 = vadd.f32 %v3005, %v3012
        %v3020 = vadd.f32 %v3006, %v3013
        %v3021 = vmul.f32 %v2984, %v912
        %v3022 = vmul.f32 %v2985, %v912
        %v3023 = vmul.f32 %v2986, %v912
        %v3024 = vmul.f32 %v2987, %v912
        %v3025 = vmul.f32 %v2988, %v912
        %v3026 = vmul.f32 %v2989, %v912
        %v3027 = vmul.f32 %v2990, %v912
        %v3028 = vadd.f32 %v3014, %v3021
        %v3029 = vadd.f32 %v3015, %v3022
        %v3030 = vadd.f32 %v3016, %v3023
        %v3031 = vadd.f32 %v3017, %v3024
        %v3032 = vadd.f32 %v3018, %v3025
        %v3033 = vadd.f32 %v3019, %v3026
        %v3034 = vadd.f32 %v3020, %v3027
        %v3035 = vmul.f32 %v2985, %v913
        %v3036 = vmul.f32 %v2986, %v913
        %v3037 = vmul.f32 %v2987, %v913
        %v3038 = vmul.f32 %v2988, %v913
        %v3039 = vmul.f32 %v2989, %v913
        %v3040 = vmul.f32 %v2990, %v913
        %v3041 = vmul.f32 %v2991, %v913
        %v3042 = vadd.f32 %v3028, %v3035
        %v3043 = vadd.f32 %v3029, %v3036
        %v3044 = vadd.f32 %v3030, %v3037
        %v3045 = vadd.f32 %v3031, %v3038
        %v3046 = vadd.f32 %v3032, %v3039
        %v3047 = vadd.f32 %v3033, %v3040
        %v3048 = vadd.f32 %v3034, %v3041
        %v3049 = vmul.f32 %v2986, %v914
        %v3050 = vmul.f32 %v2987, %v914
        %v3051 = vmul.f32 %v2988, %v914
        %v3052 = vmul.f32 %v2989, %v914
        %v3053 = vmul.f32 %v2990, %v914
        %v3054 = vmul.f32 %v2991, %v914
        %v3055 = vmul.f32 %v2992, %v914
        %v3056 = vadd.f32 %v3042, %v3049
        %v3057 = vadd.f32 %v3043, %v3050
        %v3058 = vadd.f32 %v3044, %v3051
        %v3059 = vadd.f32 %v3045, %v3052
        %v3060 = vadd.f32 %v3046, %v3053
        %v3061 = vadd.f32 %v3047, %v3054
        %v3062 = vadd.f32 %v3048, %v3055
        %s3063 = scalar_lea.vmem %s881, 224 [#allocation4]
        %3064 = vst [vmem:[%s3063] sm:$0xff] %v3056
        %3065 = vst [vmem:[%s3063 + $0x8] sm:$0xff] %v3057
        %3066 = vst [vmem:[%s3063 + $0x10] sm:$0xff] %v3058
        %3067 = vst [vmem:[%s3063 + $0x18] sm:$0xff] %v3059
        %3068 = vst [vmem:[%s3063 + $0x20] sm:$0xff] %v3060
        %3069 = vst [vmem:[%s3063 + $0x28] sm:$0xff] %v3061
        %3070 = vst [vmem:[%s3063 + $0x30] sm:$0xff] %v3062
        %v3071 = vadd.f32 %v3056, %v3057
        %v3072 = vadd.f32 %v3071, %v3058
        %v3073 = vadd.f32 %v3072, %v3059
        %v3074 = vadd.f32 %v3073, %v3060
        %v3075 = vadd.f32 %v3074, %v3061
        %v3076 = vadd.f32 %v3075, %v3062
        %v3077 = vadd.f32 %v2642, %v3076
        %v3078 = vmul.f32 %v3056, %v3056
        %v3079 = vmul.f32 %v3057, %v3057
        %v3080 = vmul.f32 %v3058, %v3058
        %v3081 = vmul.f32 %v3059, %v3059
        %v3082 = vmul.f32 %v3060, %v3060
        %v3083 = vmul.f32 %v3061, %v3061
        %v3084 = vmul.f32 %v3062, %v3062
        %v3085 = vadd.f32 %v3078, %v3079
        %v3086 = vadd.f32 %v3085, %v3080
        %v3087 = vadd.f32 %v3086, %v3081
        %v3088 = vadd.f32 %v3087, %v3082
        %v3089 = vadd.f32 %v3088, %v3083
        %v3090 = vadd.f32 %v3089, %v3084
        %v3091 = vadd.f32 %v2656, %v3090
        %v3092 = vld [vmem:[%s1676] sm:$0xff]
        %v3093 = vld [vmem:[%s1676 + $0x8] sm:$0xff]
        %v3094 = vld [vmem:[%s1676 + $0x10] sm:$0xff]
        %v3095 = vld [vmem:[%s1676 + $0x18] sm:$0xff]
        %v3096 = vld [vmem:[%s1676 + $0x20] sm:$0xff]
        %v3097 = vld [vmem:[%s1676 + $0x28] sm:$0xff]
        %v3098 = vld [vmem:[%s1676 + $0x30] sm:$0xff]
        %v3099 = vld [vmem:[%s1676 + $0x38] sm:$0xff]
        %v3100 = vld [vmem:[%s1676 + $0x40] sm:$0xff]
        %v3101 = vld [vmem:[%s1676 + $0x48] sm:$0xff]
        %v3102 = vld [vmem:[%s1676 + $0x50] sm:$0xff]
        %v3103 = vmul.f32 %v3092, %v890
        %v3104 = vmul.f32 %v3093, %v890
        %v3105 = vmul.f32 %v3094, %v890
        %v3106 = vmul.f32 %v3095, %v890
        %v3107 = vmul.f32 %v3096, %v890
        %v3108 = vmul.f32 %v3097, %v890
        %v3109 = vmul.f32 %v3098, %v890
        %v3110 = vadd.f32 %v3103, 0.0
        %v3111 = vadd.f32 %v3104, 0.0
        %v3112 = vadd.f32 %v3105, 0.0
        %v3113 = vadd.f32 %v3106, 0.0
        %v3114 = vadd.f32 %v3107, 0.0
        %v3115 = vadd.f32 %v3108, 0.0
        %v3116 = vadd.f32 %v3109, 0.0
        %v3117 = vmul.f32 %v3093, %v891
        %v3118 = vmul.f32 %v3094, %v891
        %v3119 = vmul.f32 %v3095, %v891
        %v3120 = vmul.f32 %v3096, %v891
        %v3121 = vmul.f32 %v3097, %v891
        %v3122 = vmul.f32 %v3098, %v891
        %v3123 = vmul.f32 %v3099, %v891
        %v3124 = vadd.f32 %v3110, %v3117
        %v3125 = vadd.f32 %v3111, %v3118
        %v3126 = vadd.f32 %v3112, %v3119
        %v3127 = vadd.f32 %v3113, %v3120
        %v3128 = vadd.f32 %v3114, %v3121
        %v3129 = vadd.f32 %v3115, %v3122
        %v3130 = vadd.f32 %v3116, %v3123
        %v3131 = vmul.f32 %v3094, %v892
        %v3132 = vmul.f32 %v3095, %v892
        %v3133 = vmul.f32 %v3096, %v892
        %v3134 = vmul.f32 %v3097, %v892
        %v3135 = vmul.f32 %v3098, %v892
        %v3136 = vmul.f32 %v3099, %v892
        %v3137 = vmul.f32 %v3100, %v892
        %v3138 = vadd.f32 %v3124, %v3131
        %v3139 = vadd.f32 %v3125, %v3132
        %v3140 = vadd.f32 %v3126, %v3133
        %v3141 = vadd.f32 %v3127, %v3134
        %v3142 = vadd.f32 %v3128, %v3135
        %v3143 = vadd.f32 %v3129, %v3136
        %v3144 = vadd.f32 %v3130, %v3137
        %v3145 = vmul.f32 %v3095, %v893
        %v3146 = vmul.f32 %v3096, %v893
        %v3147 = vmul.f32 %v3097, %v893
        %v3148 = vmul.f32 %v3098, %v893
        %v3149 = vmul.f32 %v3099, %v893
        %v3150 = vmul.f32 %v3100, %v893
        %v3151 = vmul.f32 %v3101, %v893
        %v3152 = vadd.f32 %v3138, %v3145
        %v3153 = vadd.f32 %v3139, %v3146
        %v3154 = vadd.f32 %v3140, %v3147
        %v3155 = vadd.f32 %v3141, %v3148
        %v3156 = vadd.f32 %v3142, %v3149
        %v3157 = vadd.f32 %v3143, %v3150
        %v3158 = vadd.f32 %v3144, %v3151
        %v3159 = vmul.f32 %v3096, %v894
        %v3160 = vmul.f32 %v3097, %v894
        %v3161 = vmul.f32 %v3098, %v894
        %v3162 = vmul.f32 %v3099, %v894
        %v3163 = vmul.f32 %v3100, %v894
        %v3164 = vmul.f32 %v3101, %v894
        %v3165 = vmul.f32 %v3102, %v894
        %v3166 = vadd.f32 %v3152, %v3159
        %v3167 = vadd.f32 %v3153, %v3160
        %v3168 = vadd.f32 %v3154, %v3161
        %v3169 = vadd.f32 %v3155, %v3162
        %v3170 = vadd.f32 %v3156, %v3163
        %v3171 = vadd.f32 %v3157, %v3164
        %v3172 = vadd.f32 %v3158, %v3165
        %v3173 = vld [vmem:[%s2111] sm:$0xff]
        %v3174 = vld [vmem:[%s2111 + $0x8] sm:$0xff]
        %v3175 = vld [vmem:[%s2111 + $0x10] sm:$0xff]
        %v3176 = vld [vmem:[%s2111 + $0x18] sm:$0xff]
        %v3177 = vld [vmem:[%s2111 + $0x20] sm:$0xff]
        %v3178 = vld [vmem:[%s2111 + $0x28] sm:$0xff]
        %v3179 = vld [vmem:[%s2111 + $0x30] sm:$0xff]
        %v3180 = vld [vmem:[%s2111 + $0x38] sm:$0xff]
        %v3181 = vld [vmem:[%s2111 + $0x40] sm:$0xff]
        %v3182 = vld [vmem:[%s2111 + $0x48] sm:$0xff]
        %v3183 = vld [vmem:[%s2111 + $0x50] sm:$0xff]
        %v3184 = vmul.f32 %v3173, %v895
        %v3185 = vmul.f32 %v3174, %v895
        %v3186 = vmul.f32 %v3175, %v895
        %v3187 = vmul.f32 %v3176, %v895
        %v3188 = vmul.f32 %v3177, %v895
        %v3189 = vmul.f32 %v3178, %v895
        %v3190 = vmul.f32 %v3179, %v895
        %v3191 = vadd.f32 %v3166, %v3184
        %v3192 = vadd.f32 %v3167, %v3185
        %v3193 = vadd.f32 %v3168, %v3186
        %v3194 = vadd.f32 %v3169, %v3187
        %v3195 = vadd.f32 %v3170, %v3188
        %v3196 = vadd.f32 %v3171, %v3189
        %v3197 = vadd.f32 %v3172, %v3190
        %v3198 = vmul.f32 %v3174, %v896
        %v3199 = vmul.f32 %v3175, %v896
        %v3200 = vmul.f32 %v3176, %v896
        %v3201 = vmul.f32 %v3177, %v896
        %v3202 = vmul.f32 %v3178, %v896
        %v3203 = vmul.f32 %v3179, %v896
        %v3204 = vmul.f32 %v3180, %v896
        %v3205 = vadd.f32 %v3191, %v3198
        %v3206 = vadd.f32 %v3192, %v3199
        %v3207 = vadd.f32 %v3193, %v3200
        %v3208 = vadd.f32 %v3194, %v3201
        %v3209 = vadd.f32 %v3195, %v3202
        %v3210 = vadd.f32 %v3196, %v3203
        %v3211 = vadd.f32 %v3197, %v3204
        %v3212 = vmul.f32 %v3175, %v897
        %v3213 = vmul.f32 %v3176, %v897
        %v3214 = vmul.f32 %v3177, %v897
        %v3215 = vmul.f32 %v3178, %v897
        %v3216 = vmul.f32 %v3179, %v897
        %v3217 = vmul.f32 %v3180, %v897
        %v3218 = vmul.f32 %v3181, %v897
        %v3219 = vadd.f32 %v3205, %v3212
        %v3220 = vadd.f32 %v3206, %v3213
        %v3221 = vadd.f32 %v3207, %v3214
        %v3222 = vadd.f32 %v3208, %v3215
        %v3223 = vadd.f32 %v3209, %v3216
        %v3224 = vadd.f32 %v3210, %v3217
        %v3225 = vadd.f32 %v3211, %v3218
        %v3226 = vmul.f32 %v3176, %v898
        %v3227 = vmul.f32 %v3177, %v898
        %v3228 = vmul.f32 %v3178, %v898
        %v3229 = vmul.f32 %v3179, %v898
        %v3230 = vmul.f32 %v3180, %v898
        %v3231 = vmul.f32 %v3181, %v898
        %v3232 = vmul.f32 %v3182, %v898
        %v3233 = vadd.f32 %v3219, %v3226
        %v3234 = vadd.f32 %v3220, %v3227
        %v3235 = vadd.f32 %v3221, %v3228
        %v3236 = vadd.f32 %v3222, %v3229
        %v3237 = vadd.f32 %v3223, %v3230
        %v3238 = vadd.f32 %v3224, %v3231
        %v3239 = vadd.f32 %v3225, %v3232
        %v3240 = vmul.f32 %v3177, %v899
        %v3241 = vmul.f32 %v3178, %v899
        %v3242 = vmul.f32 %v3179, %v899
        %v3243 = vmul.f32 %v3180, %v899
        %v3244 = vmul.f32 %v3181, %v899
        %v3245 = vmul.f32 %v3182, %v899
        %v3246 = vmul.f32 %v3183, %v899
        %v3247 = vadd.f32 %v3233, %v3240
        %v3248 = vadd.f32 %v3234, %v3241
        %v3249 = vadd.f32 %v3235, %v3242
        %v3250 = vadd.f32 %v3236, %v3243
        %v3251 = vadd.f32 %v3237, %v3244
        %v3252 = vadd.f32 %v3238, %v3245
        %v3253 = vadd.f32 %v3239, %v3246
        %v3254 = vld [vmem:[%s2546] sm:$0xff]
        %v3255 = vld [vmem:[%s2546 + $0x8] sm:$0xff]
        %v3256 = vld [vmem:[%s2546 + $0x10] sm:$0xff]
        %v3257 = vld [vmem:[%s2546 + $0x18] sm:$0xff]
        %v3258 = vld [vmem:[%s2546 + $0x20] sm:$0xff]
        %v3259 = vld [vmem:[%s2546 + $0x28] sm:$0xff]
        %v3260 = vld [vmem:[%s2546 + $0x30] sm:$0xff]
        %v3261 = vld [vmem:[%s2546 + $0x38] sm:$0xff]
        %v3262 = vld [vmem:[%s2546 + $0x40] sm:$0xff]
        %v3263 = vld [vmem:[%s2546 + $0x48] sm:$0xff]
        %v3264 = vld [vmem:[%s2546 + $0x50] sm:$0xff]
        %v3265 = vmul.f32 %v3254, %v900
        %v3266 = vmul.f32 %v3255, %v900
        %v3267 = vmul.f32 %v3256, %v900
        %v3268 = vmul.f32 %v3257, %v900
        %v3269 = vmul.f32 %v3258, %v900
        %v3270 = vmul.f32 %v3259, %v900
        %v3271 = vmul.f32 %v3260, %v900
        %v3272 = vadd.f32 %v3247, %v3265
        %v3273 = vadd.f32 %v3248, %v3266
        %v3274 = vadd.f32 %v3249, %v3267
        %v3275 = vadd.f32 %v3250, %v3268
        %v3276 = vadd.f32 %v3251, %v3269
        %v3277 = vadd.f32 %v3252, %v3270
        %v3278 = vadd.f32 %v3253, %v3271
        %v3279 = vmul.f32 %v3255, %v901
        %v3280 = vmul.f32 %v3256, %v901
        %v3281 = vmul.f32 %v3257, %v901
        %v3282 = vmul.f32 %v3258, %v901
        %v3283 = vmul.f32 %v3259, %v901
        %v3284 = vmul.f32 %v3260, %v901
        %v3285 = vmul.f32 %v3261, %v901
        %v3286 = vadd.f32 %v3272, %v3279
        %v3287 = vadd.f32 %v3273, %v3280
        %v3288 = vadd.f32 %v3274, %v3281
        %v3289 = vadd.f32 %v3275, %v3282
        %v3290 = vadd.f32 %v3276, %v3283
        %v3291 = vadd.f32 %v3277, %v3284
        %v3292 = vadd.f32 %v3278, %v3285
        %v3293 = vmul.f32 %v3256, %v902
        %v3294 = vmul.f32 %v3257, %v902
        %v3295 = vmul.f32 %v3258, %v902
        %v3296 = vmul.f32 %v3259, %v902
        %v3297 = vmul.f32 %v3260, %v902
        %v3298 = vmul.f32 %v3261, %v902
        %v3299 = vmul.f32 %v3262, %v902
        %v3300 = vadd.f32 %v3286, %v3293
        %v3301 = vadd.f32 %v3287, %v3294
        %v3302 = vadd.f32 %v3288, %v3295
        %v3303 = vadd.f32 %v3289, %v3296
        %v3304 = vadd.f32 %v3290, %v3297
        %v3305 = vadd.f32 %v3291, %v3298
        %v3306 = vadd.f32 %v3292, %v3299
        %v3307 = vmul.f32 %v3257, %v903
        %v3308 = vmul.f32 %v3258, %v903
        %v3309 = vmul.f32 %v3259, %v903
        %v3310 = vmul.f32 %v3260, %v903
        %v3311 = vmul.f32 %v3261, %v903
        %v3312 = vmul.f32 %v3262, %v903
        %v3313 = vmul.f32 %v3263, %v903
        %v3314 = vadd.f32 %v3300, %v3307
        %v3315 = vadd.f32 %v3301, %v3308
        %v3316 = vadd.f32 %v3302, %v3309
        %v3317 = vadd.f32 %v3303, %v3310
        %v3318 = vadd.f32 %v3304, %v3311
        %v3319 = vadd.f32 %v3305, %v3312
        %v3320 = vadd.f32 %v3306, %v3313
        %v3321 = vmul.f32 %v3258, %v904
        %v3322 = vmul.f32 %v3259, %v904
        %v3323 = vmul.f32 %v3260, %v904
        %v3324 = vmul.f32 %v3261, %v904
        %v3325 = vmul.f32 %v3262, %v904
        %v3326 = vmul.f32 %v3263, %v904
        %v3327 = vmul.f32 %v3264, %v904
        %v3328 = vadd.f32 %v3314, %v3321
        %v3329 = vadd.f32 %v3315, %v3322
        %v3330 = vadd.f32 %v3316, %v3323
        %v3331 = vadd.f32 %v3317, %v3324
        %v3332 = vadd.f32 %v3318, %v3325
        %v3333 = vadd.f32 %v3319, %v3326
        %v3334 = vadd.f32 %v3320, %v3327
        %v3335 = vld [vmem:[%s2981] sm:$0xff]
        %v3336 = vld [vmem:[%s2981 + $0x8] sm:$0xff]
        %v3337 = vld [vmem:[%s2981 + $0x10] sm:$0xff]
        %v3338 = vld [vmem:[%s2981 + $0x18] sm:$0xff]
        %v3339 = vld [vmem:[%s2981 + $0x20] sm:$0xff]
        %v3340 = vld [vmem:[%s2981 + $0x28] sm:$0xff]
        %v3341 = vld [vmem:[%s2981 + $0x30] sm:$0xff]
        %v3342 = vld [vmem:[%s2981 + $0x38] sm:$0xff]
        %v3343 = vld [vmem:[%s2981 + $0x40] sm:$0xff]
        %v3344 = vld [vmem:[%s2981 + $0x48] sm:$0xff]
        %v3345 = vld [vmem:[%s2981 + $0x50] sm:$0xff]
        %v3346 = vmul.f32 %v3335, %v905
        %v3347 = vmul.f32 %v3336, %v905
        %v3348 = vmul.f32 %v3337, %v905
        %v3349 = vmul.f32 %v3338, %v905
        %v3350 = vmul.f32 %v3339, %v905
        %v3351 = vmul.f32 %v3340, %v905
        %v3352 = vmul.f32 %v3341, %v905
        %v3353 = vadd.f32 %v3328, %v3346
        %v3354 = vadd.f32 %v3329, %v3347
        %v3355 = vadd.f32 %v3330, %v3348
        %v3356 = vadd.f32 %v3331, %v3349
        %v3357 = vadd.f32 %v3332, %v3350
        %v3358 = vadd.f32 %v3333, %v3351
        %v3359 = vadd.f32 %v3334, %v3352
        %v3360 = vmul.f32 %v3336, %v906
        %v3361 = vmul.f32 %v3337, %v906
        %v3362 = vmul.f32 %v3338, %v906
        %v3363 = vmul.f32 %v3339, %v906
        %v3364 = vmul.f32 %v3340, %v906
        %v3365 = vmul.f32 %v3341, %v906
        %v3366 = vmul.f32 %v3342, %v906
        %v3367 = vadd.f32 %v3353, %v3360
        %v3368 = vadd.f32 %v3354, %v3361
        %v3369 = vadd.f32 %v3355, %v3362
        %v3370 = vadd.f32 %v3356, %v3363
        %v3371 = vadd.f32 %v3357, %v3364
        %v3372 = vadd.f32 %v3358, %v3365
        %v3373 = vadd.f32 %v3359, %v3366
        %v3374 = vmul.f32 %v3337, %v907
        %v3375 = vmul.f32 %v3338, %v907
        %v3376 = vmul.f32 %v3339, %v907
        %v3377 = vmul.f32 %v3340, %v907
        %v3378 = vmul.f32 %v3341, %v907
        %v3379 = vmul.f32 %v3342, %v907
        %v3380 = vmul.f32 %v3343, %v907
        %v3381 = vadd.f32 %v3367, %v3374
        %v3382 = vadd.f32 %v3368, %v3375
        %v3383 = vadd.f32 %v3369, %v3376
        %v3384 = vadd.f32 %v3370, %v3377
        %v3385 = vadd.f32 %v3371, %v3378
        %v3386 = vadd.f32 %v3372, %v3379
        %v3387 = vadd.f32 %v3373, %v3380
        %v3388 = vmul.f32 %v3338, %v908
        %v3389 = vmul.f32 %v3339, %v908
        %v3390 = vmul.f32 %v3340, %v908
        %v3391 = vmul.f32 %v3341, %v908
        %v3392 = vmul.f32 %v3342, %v908
        %v3393 = vmul.f32 %v3343, %v908
        %v3394 = vmul.f32 %v3344, %v908
        %v3395 = vadd.f32 %v3381, %v3388
        %v3396 = vadd.f32 %v3382, %v3389
        %v3397 = vadd.f32 %v3383, %v3390
        %v3398 = vadd.f32 %v3384, %v3391
        %v3399 = vadd.f32 %v3385, %v3392
        %v3400 = vadd.f32 %v3386, %v3393
        %v3401 = vadd.f32 %v3387, %v3394
        %v3402 = vmul.f32 %v3339, %v909
        %v3403 = vmul.f32 %v3340, %v909
        %v3404 = vmul.f32 %v3341, %v909
        %v3405 = vmul.f32 %v3342, %v909
        %v3406 = vmul.f32 %v3343, %v909
        %v3407 = vmul.f32 %v3344, %v909
        %v3408 = vmul.f32 %v3345, %v909
        %v3409 = vadd.f32 %v3395, %v3402
        %v3410 = vadd.f32 %v3396, %v3403
        %v3411 = vadd.f32 %v3397, %v3404
        %v3412 = vadd.f32 %v3398, %v3405
        %v3413 = vadd.f32 %v3399, %v3406
        %v3414 = vadd.f32 %v3400, %v3407
        %v3415 = vadd.f32 %v3401, %v3408
        %s3416 = scalar_lea.vmem %s841, 792 [#allocation2]
        %v3417 = vld [vmem:[%s3416] sm:$0xff]
        %v3418 = vld [vmem:[%s3416 + $0x8] sm:$0xff]
        %v3419 = vld [vmem:[%s3416 + $0x10] sm:$0xff]
        %v3420 = vld [vmem:[%s3416 + $0x18] sm:$0xff]
        %v3421 = vld [vmem:[%s3416 + $0x20] sm:$0xff]
        %v3422 = vld [vmem:[%s3416 + $0x28] sm:$0xff]
        %v3423 = vld [vmem:[%s3416 + $0x30] sm:$0xff]
        %v3424 = vld [vmem:[%s3416 + $0x38] sm:$0xff]
        %v3425 = vld [vmem:[%s3416 + $0x40] sm:$0xff]
        %v3426 = vld [vmem:[%s3416 + $0x48] sm:$0xff]
        %v3427 = vld [vmem:[%s3416 + $0x50] sm:$0xff]
        %v3428 = vmul.f32 %v3417, %v910
        %v3429 = vmul.f32 %v3418, %v910
        %v3430 = vmul.f32 %v3419, %v910
        %v3431 = vmul.f32 %v3420, %v910
        %v3432 = vmul.f32 %v3421, %v910
        %v3433 = vmul.f32 %v3422, %v910
        %v3434 = vmul.f32 %v3423, %v910
        %v3435 = vadd.f32 %v3409, %v3428
        %v3436 = vadd.f32 %v3410, %v3429
        %v3437 = vadd.f32 %v3411, %v3430
        %v3438 = vadd.f32 %v3412, %v3431
        %v3439 = vadd.f32 %v3413, %v3432
        %v3440 = vadd.f32 %v3414, %v3433
        %v3441 = vadd.f32 %v3415, %v3434
        %v3442 = vmul.f32 %v3418, %v911
        %v3443 = vmul.f32 %v3419, %v911
        %v3444 = vmul.f32 %v3420, %v911
        %v3445 = vmul.f32 %v3421, %v911
        %v3446 = vmul.f32 %v3422, %v911
        %v3447 = vmul.f32 %v3423, %v911
        %v3448 = vmul.f32 %v3424, %v911
        %v3449 = vadd.f32 %v3435, %v3442
        %v3450 = vadd.f32 %v3436, %v3443
        %v3451 = vadd.f32 %v3437, %v3444
        %v3452 = vadd.f32 %v3438, %v3445
        %v3453 = vadd.f32 %v3439, %v3446
        %v3454 = vadd.f32 %v3440, %v3447
        %v3455 = vadd.f32 %v3441, %v3448
        %v3456 = vmul.f32 %v3419, %v912
        %v3457 = vmul.f32 %v3420, %v912
        %v3458 = vmul.f32 %v3421, %v912
        %v3459 = vmul.f32 %v3422, %v912
        %v3460 = vmul.f32 %v3423, %v912
        %v3461 = vmul.f32 %v3424, %v912
        %v3462 = vmul.f32 %v3425, %v912
        %v3463 = vadd.f32 %v3449, %v3456
        %v3464 = vadd.f32 %v3450, %v3457
        %v3465 = vadd.f32 %v3451, %v3458
        %v3466 = vadd.f32 %v3452, %v3459
        %v3467 = vadd.f32 %v3453, %v3460
        %v3468 = vadd.f32 %v3454, %v3461
        %v3469 = vadd.f32 %v3455, %v3462
        %v3470 = vmul.f32 %v3420, %v913
        %v3471 = vmul.f32 %v3421, %v913
        %v3472 = vmul.f32 %v3422, %v913
        %v3473 = vmul.f32 %v3423, %v913
        %v3474 = vmul.f32 %v3424, %v913
        %v3475 = vmul.f32 %v3425, %v913
        %v3476 = vmul.f32 %v3426, %v913
        %v3477 = vadd.f32 %v3463, %v3470
        %v3478 = vadd.f32 %v3464, %v3471
        %v3479 = vadd.f32 %v3465, %v3472
        %v3480 = vadd.f32 %v3466, %v3473
        %v3481 = vadd.f32 %v3467, %v3474
        %v3482 = vadd.f32 %v3468, %v3475
        %v3483 = vadd.f32 %v3469, %v3476
        %v3484 = vmul.f32 %v3421, %v914
        %v3485 = vmul.f32 %v3422, %v914
        %v3486 = vmul.f32 %v3423, %v914
        %v3487 = vmul.f32 %v3424, %v914
        %v3488 = vmul.f32 %v3425, %v914
        %v3489 = vmul.f32 %v3426, %v914
        %v3490 = vmul.f32 %v3427, %v914
        %v3491 = vadd.f32 %v3477, %v3484
        %v3492 = vadd.f32 %v3478, %v3485
        %v3493 = vadd.f32 %v3479, %v3486
        %v3494 = vadd.f32 %v3480, %v3487
        %v3495 = vadd.f32 %v3481, %v3488
        %v3496 = vadd.f32 %v3482, %v3489
        %v3497 = vadd.f32 %v3483, %v3490
        %s3498 = scalar_lea.vmem %s881, 280 [#allocation4]
        %3499 = vst [vmem:[%s3498] sm:$0xff] %v3491
        %3500 = vst [vmem:[%s3498 + $0x8] sm:$0xff] %v3492
        %3501 = vst [vmem:[%s3498 + $0x10] sm:$0xff] %v3493
        %3502 = vst [vmem:[%s3498 + $0x18] sm:$0xff] %v3494
        %3503 = vst [vmem:[%s3498 + $0x20] sm:$0xff] %v3495
        %3504 = vst [vmem:[%s3498 + $0x28] sm:$0xff] %v3496
        %3505 = vst [vmem:[%s3498 + $0x30] sm:$0xff] %v3497
        %v3506 = vadd.f32 %v3491, %v3492
        %v3507 = vadd.f32 %v3506, %v3493
        %v3508 = vadd.f32 %v3507, %v3494
        %v3509 = vadd.f32 %v3508, %v3495
        %v3510 = vadd.f32 %v3509, %v3496
        %v3511 = vadd.f32 %v3510, %v3497
        %v3512 = vadd.f32 %v3077, %v3511
        %v3513 = vmul.f32 %v3491, %v3491
        %v3514 = vmul.f32 %v3492, %v3492
        %v3515 = vmul.f32 %v3493, %v3493
        %v3516 = vmul.f32 %v3494, %v3494
        %v3517 = vmul.f32 %v3495, %v3495
        %v3518 = vmul.f32 %v3496, %v3496
        %v3519 = vmul.f32 %v3497, %v3497
        %v3520 = vadd.f32 %v3513, %v3514
        %v3521 = vadd.f32 %v3520, %v3515
        %v3522 = vadd.f32 %v3521, %v3516
        %v3523 = vadd.f32 %v3522, %v3517
        %v3524 = vadd.f32 %v3523, %v3518
        %v3525 = vadd.f32 %v3524, %v3519
        %v3526 = vadd.f32 %v3091, %v3525
        %v3527 = vld [vmem:[%s2111] sm:$0xff]
        %v3528 = vld [vmem:[%s2111 + $0x8] sm:$0xff]
        %v3529 = vld [vmem:[%s2111 + $0x10] sm:$0xff]
        %v3530 = vld [vmem:[%s2111 + $0x18] sm:$0xff]
        %v3531 = vld [vmem:[%s2111 + $0x20] sm:$0xff]
        %v3532 = vld [vmem:[%s2111 + $0x28] sm:$0xff]
        %v3533 = vld [vmem:[%s2111 + $0x30] sm:$0xff]
        %v3534 = vld [vmem:[%s2111 + $0x38] sm:$0xff]
        %v3535 = vld [vmem:[%s2111 + $0x40] sm:$0xff]
        %v3536 = vld [vmem:[%s2111 + $0x48] sm:$0xff]
        %v3537 = vld [vmem:[%s2111 + $0x50] sm:$0xff]
        %v3538 = vmul.f32 %v3527, %v890
        %v3539 = vmul.f32 %v3528, %v890
        %v3540 = vmul.f32 %v3529, %v890
        %v3541 = vmul.f32 %v3530, %v890
        %v3542 = vmul.f32 %v3531, %v890
        %v3543 = vmul.f32 %v3532, %v890
        %v3544 = vmul.f32 %v3533, %v890
        %v3545 = vadd.f32 %v3538, 0.0
        %v3546 = vadd.f32 %v3539, 0.0
        %v3547 = vadd.f32 %v3540, 0.0
        %v3548 = vadd.f32 %v3541, 0.0
        %v3549 = vadd.f32 %v3542, 0.0
        %v3550 = vadd.f32 %v3543, 0.0
        %v3551 = vadd.f32 %v3544, 0.0
        %v3552 = vmul.f32 %v3528, %v891
        %v3553 = vmul.f32 %v3529, %v891
        %v3554 = vmul.f32 %v3530, %v891
        %v3555 = vmul.f32 %v3531, %v891
        %v3556 = vmul.f32 %v3532, %v891
        %v3557 = vmul.f32 %v3533, %v891
        %v3558 = vmul.f32 %v3534, %v891
        %v3559 = vadd.f32 %v3545, %v3552
        %v3560 = vadd.f32 %v3546, %v3553
        %v3561 = vadd.f32 %v3547, %v3554
        %v3562 = vadd.f32 %v3548, %v3555
        %v3563 = vadd.f32 %v3549, %v3556
        %v3564 = vadd.f32 %v3550, %v3557
        %v3565 = vadd.f32 %v3551, %v3558
        %v3566 = vmul.f32 %v3529, %v892
        %v3567 = vmul.f32 %v3530, %v892
        %v3568 = vmul.f32 %v3531, %v892
        %v3569 = vmul.f32 %v3532, %v892
        %v3570 = vmul.f32 %v3533, %v892
        %v3571 = vmul.f32 %v3534, %v892
        %v3572 = vmul.f32 %v3535, %v892
        %v3573 = vadd.f32 %v3559, %v3566
        %v3574 = vadd.f32 %v3560, %v3567
        %v3575 = vadd.f32 %v3561, %v3568
        %v3576 = vadd.f32 %v3562, %v3569
        %v3577 = vadd.f32 %v3563, %v3570
        %v3578 = vadd.f32 %v3564, %v3571
        %v3579 = vadd.f32 %v3565, %v3572
        %v3580 = vmul.f32 %v3530, %v893
        %v3581 = vmul.f32 %v3531, %v893
        %v3582 = vmul.f32 %v3532, %v893
        %v3583 = vmul.f32 %v3533, %v893
        %v3584 = vmul.f32 %v3534, %v893
        %v3585 = vmul.f32 %v3535, %v893
        %v3586 = vmul.f32 %v3536, %v893
        %v3587 = vadd.f32 %v3573, %v3580
        %v3588 = vadd.f32 %v3574, %v3581
        %v3589 = vadd.f32 %v3575, %v3582
        %v3590 = vadd.f32 %v3576, %v3583
        %v3591 = vadd.f32 %v3577, %v3584
        %v3592 = vadd.f32 %v3578, %v3585
        %v3593 = vadd.f32 %v3579, %v3586
        %v3594 = vmul.f32 %v3531, %v894
        %v3595 = vmul.f32 %v3532, %v894
        %v3596 = vmul.f32 %v3533, %v894
        %v3597 = vmul.f32 %v3534, %v894
        %v3598 = vmul.f32 %v3535, %v894
        %v3599 = vmul.f32 %v3536, %v894
        %v3600 = vmul.f32 %v3537, %v894
        %v3601 = vadd.f32 %v3587, %v3594
        %v3602 = vadd.f32 %v3588, %v3595
        %v3603 = vadd.f32 %v3589, %v3596
        %v3604 = vadd.f32 %v3590, %v3597
        %v3605 = vadd.f32 %v3591, %v3598
        %v3606 = vadd.f32 %v3592, %v3599
        %v3607 = vadd.f32 %v3593, %v3600
        %v3608 = vld [vmem:[%s2546] sm:$0xff]
        %v3609 = vld [vmem:[%s2546 + $0x8] sm:$0xff]
        %v3610 = vld [vmem:[%s2546 + $0x10] sm:$0xff]
        %v3611 = vld [vmem:[%s2546 + $0x18] sm:$0xff]
        %v3612 = vld [vmem:[%s2546 + $0x20] sm:$0xff]
        %v3613 = vld [vmem:[%s2546 + $0x28] sm:$0xff]
        %v3614 = vld [vmem:[%s2546 + $0x30] sm:$0xff]
        %v3615 = vld [vmem:[%s2546 + $0x38] sm:$0xff]
        %v3616 = vld [vmem:[%s2546 + $0x40] sm:$0xff]
        %v3617 = vld [vmem:[%s2546 + $0x48] sm:$0xff]
        %v3618 = vld [vmem:[%s2546 + $0x50] sm:$0xff]
        %v3619 = vmul.f32 %v3608, %v895
        %v3620 = vmul.f32 %v3609, %v895
        %v3621 = vmul.f32 %v3610, %v895
        %v3622 = vmul.f32 %v3611, %v895
        %v3623 = vmul.f32 %v3612, %v895
        %v3624 = vmul.f32 %v3613, %v895
        %v3625 = vmul.f32 %v3614, %v895
        %v3626 = vadd.f32 %v3601, %v3619
        %v3627 = vadd.f32 %v3602, %v3620
        %v3628 = vadd.f32 %v3603, %v3621
        %v3629 = vadd.f32 %v3604, %v3622
        %v3630 = vadd.f32 %v3605, %v3623
        %v3631 = vadd.f32 %v3606, %v3624
        %v3632 = vadd.f32 %v3607, %v3625
        %v3633 = vmul.f32 %v3609, %v896
        %v3634 = vmul.f32 %v3610, %v896
        %v3635 = vmul.f32 %v3611, %v896
        %v3636 = vmul.f32 %v3612, %v896
        %v3637 = vmul.f32 %v3613, %v896
        %v3638 = vmul.f32 %v3614, %v896
        %v3639 = vmul.f32 %v3615, %v896
        %v3640 = vadd.f32 %v3626, %v3633
        %v3641 = vadd.f32 %v3627, %v3634
        %v3642 = vadd.f32 %v3628, %v3635
        %v3643 = vadd.f32 %v3629, %v3636
        %v3644 = vadd.f32 %v3630, %v3637
        %v3645 = vadd.f32 %v3631, %v3638
        %v3646 = vadd.f32 %v3632, %v3639
        %v3647 = vmul.f32 %v3610, %v897
        %v3648 = vmul.f32 %v3611, %v897
        %v3649 = vmul.f32 %v3612, %v897
        %v3650 = vmul.f32 %v3613, %v897
        %v3651 = vmul.f32 %v3614, %v897
        %v3652 = vmul.f32 %v3615, %v897
        %v3653 = vmul.f32 %v3616, %v897
        %v3654 = vadd.f32 %v3640, %v3647
        %v3655 = vadd.f32 %v3641, %v3648
        %v3656 = vadd.f32 %v3642, %v3649
        %v3657 = vadd.f32 %v3643, %v3650
        %v3658 = vadd.f32 %v3644, %v3651
        %v3659 = vadd.f32 %v3645, %v3652
        %v3660 = vadd.f32 %v3646, %v3653
        %v3661 = vmul.f32 %v3611, %v898
        %v3662 = vmul.f32 %v3612, %v898
        %v3663 = vmul.f32 %v3613, %v898
        %v3664 = vmul.f32 %v3614, %v898
        %v3665 = vmul.f32 %v3615, %v898
        %v3666 = vmul.f32 %v3616, %v898
        %v3667 = vmul.f32 %v3617, %v898
        %v3668 = vadd.f32 %v3654, %v3661
        %v3669 = vadd.f32 %v3655, %v3662
        %v3670 = vadd.f32 %v3656, %v3663
        %v3671 = vadd.f32 %v3657, %v3664
        %v3672 = vadd.f32 %v3658, %v3665
        %v3673 = vadd.f32 %v3659, %v3666
        %v3674 = vadd.f32 %v3660, %v3667
        %v3675 = vmul.f32 %v3612, %v899
        %v3676 = vmul.f32 %v3613, %v899
        %v3677 = vmul.f32 %v3614, %v899
        %v3678 = vmul.f32 %v3615, %v899
        %v3679 = vmul.f32 %v3616, %v899
        %v3680 = vmul.f32 %v3617, %v899
        %v3681 = vmul.f32 %v3618, %v899
        %v3682 = vadd.f32 %v3668, %v3675
        %v3683 = vadd.f32 %v3669, %v3676
        %v3684 = vadd.f32 %v3670, %v3677
        %v3685 = vadd.f32 %v3671, %v3678
        %v3686 = vadd.f32 %v3672, %v3679
        %v3687 = vadd.f32 %v3673, %v3680
        %v3688 = vadd.f32 %v3674, %v3681
        %v3689 = vld [vmem:[%s2981] sm:$0xff]
        %v3690 = vld [vmem:[%s2981 + $0x8] sm:$0xff]
        %v3691 = vld [vmem:[%s2981 + $0x10] sm:$0xff]
        %v3692 = vld [vmem:[%s2981 + $0x18] sm:$0xff]
        %v3693 = vld [vmem:[%s2981 + $0x20] sm:$0xff]
        %v3694 = vld [vmem:[%s2981 + $0x28] sm:$0xff]
        %v3695 = vld [vmem:[%s2981 + $0x30] sm:$0xff]
        %v3696 = vld [vmem:[%s2981 + $0x38] sm:$0xff]
        %v3697 = vld [vmem:[%s2981 + $0x40] sm:$0xff]
        %v3698 = vld [vmem:[%s2981 + $0x48] sm:$0xff]
        %v3699 = vld [vmem:[%s2981 + $0x50] sm:$0xff]
        %v3700 = vmul.f32 %v3689, %v900
        %v3701 = vmul.f32 %v3690, %v900
        %v3702 = vmul.f32 %v3691, %v900
        %v3703 = vmul.f32 %v3692, %v900
        %v3704 = vmul.f32 %v3693, %v900
        %v3705 = vmul.f32 %v3694, %v900
        %v3706 = vmul.f32 %v3695, %v900
        %v3707 = vadd.f32 %v3682, %v3700
        %v3708 = vadd.f32 %v3683, %v3701
        %v3709 = vadd.f32 %v3684, %v3702
        %v3710 = vadd.f32 %v3685, %v3703
        %v3711 = vadd.f32 %v3686, %v3704
        %v3712 = vadd.f32 %v3687, %v3705
        %v3713 = vadd.f32 %v3688, %v3706
        %v3714 = vmul.f32 %v3690, %v901
        %v3715 = vmul.f32 %v3691, %v901
        %v3716 = vmul.f32 %v3692, %v901
        %v3717 = vmul.f32 %v3693, %v901
        %v3718 = vmul.f32 %v3694, %v901
        %v3719 = vmul.f32 %v3695, %v901
        %v3720 = vmul.f32 %v3696, %v901
        %v3721 = vadd.f32 %v3707, %v3714
        %v3722 = vadd.f32 %v3708, %v3715
        %v3723 = vadd.f32 %v3709, %v3716
        %v3724 = vadd.f32 %v3710, %v3717
        %v3725 = vadd.f32 %v3711, %v3718
        %v3726 = vadd.f32 %v3712, %v3719
        %v3727 = vadd.f32 %v3713, %v3720
        %v3728 = vmul.f32 %v3691, %v902
        %v3729 = vmul.f32 %v3692, %v902
        %v3730 = vmul.f32 %v3693, %v902
        %v3731 = vmul.f32 %v3694, %v902
        %v3732 = vmul.f32 %v3695, %v902
        %v3733 = vmul.f32 %v3696, %v902
        %v3734 = vmul.f32 %v3697, %v902
        %v3735 = vadd.f32 %v3721, %v3728
        %v3736 = vadd.f32 %v3722, %v3729
        %v3737 = vadd.f32 %v3723, %v3730
        %v3738 = vadd.f32 %v3724, %v3731
        %v3739 = vadd.f32 %v3725, %v3732
        %v3740 = vadd.f32 %v3726, %v3733
        %v3741 = vadd.f32 %v3727, %v3734
        %v3742 = vmul.f32 %v3692, %v903
        %v3743 = vmul.f32 %v3693, %v903
        %v3744 = vmul.f32 %v3694, %v903
        %v3745 = vmul.f32 %v3695, %v903
        %v3746 = vmul.f32 %v3696, %v903
        %v3747 = vmul.f32 %v3697, %v903
        %v3748 = vmul.f32 %v3698, %v903
        %v3749 = vadd.f32 %v3735, %v3742
        %v3750 = vadd.f32 %v3736, %v3743
        %v3751 = vadd.f32 %v3737, %v3744
        %v3752 = vadd.f32 %v3738, %v3745
        %v3753 = vadd.f32 %v3739, %v3746
        %v3754 = vadd.f32 %v3740, %v3747
        %v3755 = vadd.f32 %v3741, %v3748
        %v3756 = vmul.f32 %v3693, %v904
        %v3757 = vmul.f32 %v3694, %v904
        %v3758 = vmul.f32 %v3695, %v904
        %v3759 = vmul.f32 %v3696, %v904
        %v3760 = vmul.f32 %v3697, %v904
        %v3761 = vmul.f32 %v3698, %v904
        %v3762 = vmul.f32 %v3699, %v904
        %v3763 = vadd.f32 %v3749, %v3756
        %v3764 = vadd.f32 %v3750, %v3757
        %v3765 = vadd.f32 %v3751, %v3758
        %v3766 = vadd.f32 %v3752, %v3759
        %v3767 = vadd.f32 %v3753, %v3760
        %v3768 = vadd.f32 %v3754, %v3761
        %v3769 = vadd.f32 %v3755, %v3762
        %v3770 = vld [vmem:[%s3416] sm:$0xff]
        %v3771 = vld [vmem:[%s3416 + $0x8] sm:$0xff]
        %v3772 = vld [vmem:[%s3416 + $0x10] sm:$0xff]
        %v3773 = vld [vmem:[%s3416 + $0x18] sm:$0xff]
        %v3774 = vld [vmem:[%s3416 + $0x20] sm:$0xff]
        %v3775 = vld [vmem:[%s3416 + $0x28] sm:$0xff]
        %v3776 = vld [vmem:[%s3416 + $0x30] sm:$0xff]
        %v3777 = vld [vmem:[%s3416 + $0x38] sm:$0xff]
        %v3778 = vld [vmem:[%s3416 + $0x40] sm:$0xff]
        %v3779 = vld [vmem:[%s3416 + $0x48] sm:$0xff]
        %v3780 = vld [vmem:[%s3416 + $0x50] sm:$0xff]
        %v3781 = vmul.f32 %v3770, %v905
        %v3782 = vmul.f32 %v3771, %v905
        %v3783 = vmul.f32 %v3772, %v905
        %v3784 = vmul.f32 %v3773, %v905
        %v3785 = vmul.f32 %v3774, %v905
        %v3786 = vmul.f32 %v3775, %v905
        %v3787 = vmul.f32 %v3776, %v905
        %v3788 = vadd.f32 %v3763, %v3781
        %v3789 = vadd.f32 %v3764, %v3782
        %v3790 = vadd.f32 %v3765, %v3783
        %v3791 = vadd.f32 %v3766, %v3784
        %v3792 = vadd.f32 %v3767, %v3785
        %v3793 = vadd.f32 %v3768, %v3786
        %v3794 = vadd.f32 %v3769, %v3787
        %v3795 = vmul.f32 %v3771, %v906
        %v3796 = vmul.f32 %v3772, %v906
        %v3797 = vmul.f32 %v3773, %v906
        %v3798 = vmul.f32 %v3774, %v906
        %v3799 = vmul.f32 %v3775, %v906
        %v3800 = vmul.f32 %v3776, %v906
        %v3801 = vmul.f32 %v3777, %v906
        %v3802 = vadd.f32 %v3788, %v3795
        %v3803 = vadd.f32 %v3789, %v3796
        %v3804 = vadd.f32 %v3790, %v3797
        %v3805 = vadd.f32 %v3791, %v3798
        %v3806 = vadd.f32 %v3792, %v3799
        %v3807 = vadd.f32 %v3793, %v3800
        %v3808 = vadd.f32 %v3794, %v3801
        %v3809 = vmul.f32 %v3772, %v907
        %v3810 = vmul.f32 %v3773, %v907
        %v3811 = vmul.f32 %v3774, %v907
        %v3812 = vmul.f32 %v3775, %v907
        %v3813 = vmul.f32 %v3776, %v907
        %v3814 = vmul.f32 %v3777, %v907
        %v3815 = vmul.f32 %v3778, %v907
        %v3816 = vadd.f32 %v3802, %v3809
        %v3817 = vadd.f32 %v3803, %v3810
        %v3818 = vadd.f32 %v3804, %v3811
        %v3819 = vadd.f32 %v3805, %v3812
        %v3820 = vadd.f32 %v3806, %v3813
        %v3821 = vadd.f32 %v3807, %v3814
        %v3822 = vadd.f32 %v3808, %v3815
        %v3823 = vmul.f32 %v3773, %v908
        %v3824 = vmul.f32 %v3774, %v908
        %v3825 = vmul.f32 %v3775, %v908
        %v3826 = vmul.f32 %v3776, %v908
        %v3827 = vmul.f32 %v3777, %v908
        %v3828 = vmul.f32 %v3778, %v908
        %v3829 = vmul.f32 %v3779, %v908
        %v3830 = vadd.f32 %v3816, %v3823
        %v3831 = vadd.f32 %v3817, %v3824
        %v3832 = vadd.f32 %v3818, %v3825
        %v3833 = vadd.f32 %v3819, %v3826
        %v3834 = vadd.f32 %v3820, %v3827
        %v3835 = vadd.f32 %v3821, %v3828
        %v3836 = vadd.f32 %v3822, %v3829
        %v3837 = vmul.f32 %v3774, %v909
        %v3838 = vmul.f32 %v3775, %v909
        %v3839 = vmul.f32 %v3776, %v909
        %v3840 = vmul.f32 %v3777, %v909
        %v3841 = vmul.f32 %v3778, %v909
        %v3842 = vmul.f32 %v3779, %v909
        %v3843 = vmul.f32 %v3780, %v909
        %v3844 = vadd.f32 %v3830, %v3837
        %v3845 = vadd.f32 %v3831, %v3838
        %v3846 = vadd.f32 %v3832, %v3839
        %v3847 = vadd.f32 %v3833, %v3840
        %v3848 = vadd.f32 %v3834, %v3841
        %v3849 = vadd.f32 %v3835, %v3842
        %v3850 = vadd.f32 %v3836, %v3843
        %s3851 = scalar_lea.vmem %s841, 880 [#allocation2]
        %v3852 = vld [vmem:[%s3851] sm:$0xff]
        %v3853 = vld [vmem:[%s3851 + $0x8] sm:$0xff]
        %v3854 = vld [vmem:[%s3851 + $0x10] sm:$0xff]
        %v3855 = vld [vmem:[%s3851 + $0x18] sm:$0xff]
        %v3856 = vld [vmem:[%s3851 + $0x20] sm:$0xff]
        %v3857 = vld [vmem:[%s3851 + $0x28] sm:$0xff]
        %v3858 = vld [vmem:[%s3851 + $0x30] sm:$0xff]
        %v3859 = vld [vmem:[%s3851 + $0x38] sm:$0xff]
        %v3860 = vld [vmem:[%s3851 + $0x40] sm:$0xff]
        %v3861 = vld [vmem:[%s3851 + $0x48] sm:$0xff]
        %v3862 = vld [vmem:[%s3851 + $0x50] sm:$0xff]
        %v3863 = vmul.f32 %v3852, %v910
        %v3864 = vmul.f32 %v3853, %v910
        %v3865 = vmul.f32 %v3854, %v910
        %v3866 = vmul.f32 %v3855, %v910
        %v3867 = vmul.f32 %v3856, %v910
        %v3868 = vmul.f32 %v3857, %v910
        %v3869 = vmul.f32 %v3858, %v910
        %v3870 = vadd.f32 %v3844, %v3863
        %v3871 = vadd.f32 %v3845, %v3864
        %v3872 = vadd.f32 %v3846, %v3865
        %v3873 = vadd.f32 %v3847, %v3866
        %v3874 = vadd.f32 %v3848, %v3867
        %v3875 = vadd.f32 %v3849, %v3868
        %v3876 = vadd.f32 %v3850, %v3869
        %v3877 = vmul.f32 %v3853, %v911
        %v3878 = vmul.f32 %v3854, %v911
        %v3879 = vmul.f32 %v3855, %v911
        %v3880 = vmul.f32 %v3856, %v911
        %v3881 = vmul.f32 %v3857, %v911
        %v3882 = vmul.f32 %v3858, %v911
        %v3883 = vmul.f32 %v3859, %v911
        %v3884 = vadd.f32 %v3870, %v3877
        %v3885 = vadd.f32 %v3871, %v3878
        %v3886 = vadd.f32 %v3872, %v3879
        %v3887 = vadd.f32 %v3873, %v3880
        %v3888 = vadd.f32 %v3874, %v3881
        %v3889 = vadd.f32 %v3875, %v3882
        %v3890 = vadd.f32 %v3876, %v3883
        %v3891 = vmul.f32 %v3854, %v912
        %v3892 = vmul.f32 %v3855, %v912
        %v3893 = vmul.f32 %v3856, %v912
        %v3894 = vmul.f32 %v3857, %v912
        %v3895 = vmul.f32 %v3858, %v912
        %v3896 = vmul.f32 %v3859, %v912
        %v3897 = vmul.f32 %v3860, %v912
        %v3898 = vadd.f32 %v3884, %v3891
        %v3899 = vadd.f32 %v3885, %v3892
        %v3900 = vadd.f32 %v3886, %v3893
        %v3901 = vadd.f32 %v3887, %v3894
        %v3902 = vadd.f32 %v3888, %v3895
        %v3903 = vadd.f32 %v3889, %v3896
        %v3904 = vadd.f32 %v3890, %v3897
        %v3905 = vmul.f32 %v3855, %v913
        %v3906 = vmul.f32 %v3856, %v913
        %v3907 = vmul.f32 %v3857, %v913
        %v3908 = vmul.f32 %v3858, %v913
        %v3909 = vmul.f32 %v3859, %v913
        %v3910 = vmul.f32 %v3860, %v913
        %v3911 = vmul.f32 %v3861, %v913
        %v3912 = vadd.f32 %v3898, %v3905
        %v3913 = vadd.f32 %v3899, %v3906
        %v3914 = vadd.f32 %v3900, %v3907
        %v3915 = vadd.f32 %v3901, %v3908
        %v3916 = vadd.f32 %v3902, %v3909
        %v3917 = vadd.f32 %v3903, %v3910
        %v3918 = vadd.f32 %v3904, %v3911
        %v3919 = vmul.f32 %v3856, %v914
        %v3920 = vmul.f32 %v3857, %v914
        %v3921 = vmul.f32 %v3858, %v914
        %v3922 = vmul.f32 %v3859, %v914
        %v3923 = vmul.f32 %v3860, %v914
        %v3924 = vmul.f32 %v3861, %v914
        %v3925 = vmul.f32 %v3862, %v914
        %v3926 = vadd.f32 %v3912, %v3919
        %v3927 = vadd.f32 %v3913, %v3920
        %v3928 = vadd.f32 %v3914, %v3921
        %v3929 = vadd.f32 %v3915, %v3922
        %v3930 = vadd.f32 %v3916, %v3923
        %v3931 = vadd.f32 %v3917, %v3924
        %v3932 = vadd.f32 %v3918, %v3925
        %s3933 = scalar_lea.vmem %s881, 336 [#allocation4]
        %3934 = vst [vmem:[%s3933] sm:$0xff] %v3926
        %3935 = vst [vmem:[%s3933 + $0x8] sm:$0xff] %v3927
        %3936 = vst [vmem:[%s3933 + $0x10] sm:$0xff] %v3928
        %3937 = vst [vmem:[%s3933 + $0x18] sm:$0xff] %v3929
        %3938 = vst [vmem:[%s3933 + $0x20] sm:$0xff] %v3930
        %3939 = vst [vmem:[%s3933 + $0x28] sm:$0xff] %v3931
        %3940 = vst [vmem:[%s3933 + $0x30] sm:$0xff] %v3932
        %v3941 = vadd.f32 %v3926, %v3927
        %v3942 = vadd.f32 %v3941, %v3928
        %v3943 = vadd.f32 %v3942, %v3929
        %v3944 = vadd.f32 %v3943, %v3930
        %v3945 = vadd.f32 %v3944, %v3931
        %v3946 = vadd.f32 %v3945, %v3932
        %v3947 = vadd.f32 %v3512, %v3946
        %v3948 = vmul.f32 %v3926, %v3926
        %v3949 = vmul.f32 %v3927, %v3927
        %v3950 = vmul.f32 %v3928, %v3928
        %v3951 = vmul.f32 %v3929, %v3929
        %v3952 = vmul.f32 %v3930, %v3930
        %v3953 = vmul.f32 %v3931, %v3931
        %v3954 = vmul.f32 %v3932, %v3932
        %v3955 = vadd.f32 %v3948, %v3949
        %v3956 = vadd.f32 %v3955, %v3950
        %v3957 = vadd.f32 %v3956, %v3951
        %v3958 = vadd.f32 %v3957, %v3952
        %v3959 = vadd.f32 %v3958, %v3953
        %v3960 = vadd.f32 %v3959, %v3954
        %v3961 = vadd.f32 %v3526, %v3960
        %v3962 = vmul.f32 %v3947, 0.020408163
        %v3963 = vmul.f32 %v3961, 0.020408163
        %v3964 = vmul.f32 %v3962, %v3962
        %v3965 = vsub.f32 %v3963, %v3964
        %v3966 = vmax.f32 %v3965, 0.0
        %v3967 = vadd.f32 %v3966, 0.001
        %v3968 = vrsqrt.pop %v3967
        %v3969 = vld [vmem:[%s885] sm:$0xff]
        %v3970 = vmul.f32 %v3968, %v3969
        %v3971 = vld [vmem:[%s889] sm:$0xff]
        %v3972 = vmul.f32 %v3962, %v3970
        %v3973 = vsub.f32 %v3971, %v3972
        %v3974 = vld [vmem:[%s881] sm:$0xff]
        %v3975 = vld [vmem:[%s881 + $0x8] sm:$0xff]
        %v3976 = vld [vmem:[%s881 + $0x10] sm:$0xff]
        %v3977 = vld [vmem:[%s881 + $0x18] sm:$0xff]
        %v3978 = vld [vmem:[%s881 + $0x20] sm:$0xff]
        %v3979 = vld [vmem:[%s881 + $0x28] sm:$0xff]
        %v3980 = vld [vmem:[%s881 + $0x30] sm:$0xff]
        %v3981 = vmul.f32 %v3974, %v3970
        %v3982 = vmul.f32 %v3975, %v3970
        %v3983 = vmul.f32 %v3976, %v3970
        %v3984 = vmul.f32 %v3977, %v3970
        %v3985 = vmul.f32 %v3978, %v3970
        %v3986 = vmul.f32 %v3979, %v3970
        %v3987 = vmul.f32 %v3980, %v3970
        %v3988 = vadd.f32 %v3981, %v3973
        %v3989 = vadd.f32 %v3982, %v3973
        %v3990 = vadd.f32 %v3983, %v3973
        %v3991 = vadd.f32 %v3984, %v3973
        %v3992 = vadd.f32 %v3985, %v3973
        %v3993 = vadd.f32 %v3986, %v3973
        %v3994 = vadd.f32 %v3987, %v3973
        %3995 = vst [vmem:[%s881] sm:$0xff] %v3988
        %3996 = vst [vmem:[%s881 + $0x8] sm:$0xff] %v3989
        %3997 = vst [vmem:[%s881 + $0x10] sm:$0xff] %v3990
        %3998 = vst [vmem:[%s881 + $0x18] sm:$0xff] %v3991
        %3999 = vst [vmem:[%s881 + $0x20] sm:$0xff] %v3992
        %4000 = vst [vmem:[%s881 + $0x28] sm:$0xff] %v3993
        %4001 = vst [vmem:[%s881 + $0x30] sm:$0xff] %v3994
        %v4002 = vld [vmem:[%s1758] sm:$0xff]
        %v4003 = vld [vmem:[%s1758 + $0x8] sm:$0xff]
        %v4004 = vld [vmem:[%s1758 + $0x10] sm:$0xff]
        %v4005 = vld [vmem:[%s1758 + $0x18] sm:$0xff]
        %v4006 = vld [vmem:[%s1758 + $0x20] sm:$0xff]
        %v4007 = vld [vmem:[%s1758 + $0x28] sm:$0xff]
        %v4008 = vld [vmem:[%s1758 + $0x30] sm:$0xff]
        %v4009 = vmul.f32 %v4002, %v3970
        %v4010 = vmul.f32 %v4003, %v3970
        %v4011 = vmul.f32 %v4004, %v3970
        %v4012 = vmul.f32 %v4005, %v3970
        %v4013 = vmul.f32 %v4006, %v3970
        %v4014 = vmul.f32 %v4007, %v3970
        %v4015 = vmul.f32 %v4008, %v3970
        %v4016 = vadd.f32 %v4009, %v3973
        %v4017 = vadd.f32 %v4010, %v3973
        %v4018 = vadd.f32 %v4011, %v3973
        %v4019 = vadd.f32 %v4012, %v3973
        %v4020 = vadd.f32 %v4013, %v3973
        %v4021 = vadd.f32 %v4014, %v3973
        %v4022 = vadd.f32 %v4015, %v3973
        %4023 = vst [vmem:[%s1758] sm:$0xff] %v4016
        %4024 = vst [vmem:[%s1758 + $0x8] sm:$0xff] %v4017
        %4025 = vst [vmem:[%s1758 + $0x10] sm:$0xff] %v4018
        %4026 = vst [vmem:[%s1758 + $0x18] sm:$0xff] %v4019
        %4027 = vst [vmem:[%s1758 + $0x20] sm:$0xff] %v4020
        %4028 = vst [vmem:[%s1758 + $0x28] sm:$0xff] %v4021
        %4029 = vst [vmem:[%s1758 + $0x30] sm:$0xff] %v4022
        %v4030 = vld [vmem:[%s2193] sm:$0xff]
        %v4031 = vld [vmem:[%s2193 + $0x8] sm:$0xff]
        %v4032 = vld [vmem:[%s2193 + $0x10] sm:$0xff]
        %v4033 = vld [vmem:[%s2193 + $0x18] sm:$0xff]
        %v4034 = vld [vmem:[%s2193 + $0x20] sm:$0xff]
        %v4035 = vld [vmem:[%s2193 + $0x28] sm:$0xff]
        %v4036 = vld [vmem:[%s2193 + $0x30] sm:$0xff]
        %v4037 = vmul.f32 %v4030, %v3970
        %v4038 = vmul.f32 %v4031, %v3970
        %v4039 = vmul.f32 %v4032, %v3970
        %v4040 = vmul.f32 %v4033, %v3970
        %v4041 = vmul.f32 %v4034, %v3970
        %v4042 = vmul.f32 %v4035, %v3970
        %v4043 = vmul.f32 %v4036, %v3970
        %v4044 = vadd.f32 %v4037, %v3973
        %v4045 = vadd.f32 %v4038, %v3973
        %v4046 = vadd.f32 %v4039, %v3973
        %v4047 = vadd.f32 %v4040, %v3973
        %v4048 = vadd.f32 %v4041, %v3973
        %v4049 = vadd.f32 %v4042, %v3973
        %v4050 = vadd.f32 %v4043, %v3973
        %4051 = vst [vmem:[%s2193] sm:$0xff] %v4044
        %4052 = vst [vmem:[%s2193 + $0x8] sm:$0xff] %v4045
        %4053 = vst [vmem:[%s2193 + $0x10] sm:$0xff] %v4046
        %4054 = vst [vmem:[%s2193 + $0x18] sm:$0xff] %v4047
        %4055 = vst [vmem:[%s2193 + $0x20] sm:$0xff] %v4048
        %4056 = vst [vmem:[%s2193 + $0x28] sm:$0xff] %v4049
        %4057 = vst [vmem:[%s2193 + $0x30] sm:$0xff] %v4050
        %v4058 = vld [vmem:[%s2628] sm:$0xff]
        %v4059 = vld [vmem:[%s2628 + $0x8] sm:$0xff]
        %v4060 = vld [vmem:[%s2628 + $0x10] sm:$0xff]
        %v4061 = vld [vmem:[%s2628 + $0x18] sm:$0xff]
        %v4062 = vld [vmem:[%s2628 + $0x20] sm:$0xff]
        %v4063 = vld [vmem:[%s2628 + $0x28] sm:$0xff]
        %v4064 = vld [vmem:[%s2628 + $0x30] sm:$0xff]
        %v4065 = vmul.f32 %v4058, %v3970
        %v4066 = vmul.f32 %v4059, %v3970
        %v4067 = vmul.f32 %v4060, %v3970
        %v4068 = vmul.f32 %v4061, %v3970
        %v4069 = vmul.f32 %v4062, %v3970
        %v4070 = vmul.f32 %v4063, %v3970
        %v4071 = vmul.f32 %v4064, %v3970
        %v4072 = vadd.f32 %v4065, %v3973
        %v4073 = vadd.f32 %v4066, %v3973
        %v4074 = vadd.f32 %v4067, %v3973
        %v4075 = vadd.f32 %v4068, %v3973
        %v4076 = vadd.f32 %v4069, %v3973
        %v4077 = vadd.f32 %v4070, %v3973
        %v4078 = vadd.f32 %v4071, %v3973
        %4079 = vst [vmem:[%s2628] sm:$0xff] %v4072
        %4080 = vst [vmem:[%s2628 + $0x8] sm:$0xff] %v4073
        %4081 = vst [vmem:[%s2628 + $0x10] sm:$0xff] %v4074
        %4082 = vst [vmem:[%s2628 + $0x18] sm:$0xff] %v4075
        %4083 = vst [vmem:[%s2628 + $0x20] sm:$0xff] %v4076
        %4084 = vst [vmem:[%s2628 + $0x28] sm:$0xff] %v4077
        %4085 = vst [vmem:[%s2628 + $0x30] sm:$0xff] %v4078
        %v4086 = vld [vmem:[%s3063] sm:$0xff]
        %v4087 = vld [vmem:[%s3063 + $0x8] sm:$0xff]
        %v4088 = vld [vmem:[%s3063 + $0x10] sm:$0xff]
        %v4089 = vld [vmem:[%s3063 + $0x18] sm:$0xff]
        %v4090 = vld [vmem:[%s3063 + $0x20] sm:$0xff]
        %v4091 = vld [vmem:[%s3063 + $0x28] sm:$0xff]
        %v4092 = vld [vmem:[%s3063 + $0x30] sm:$0xff]
        %v4093 = vmul.f32 %v4086, %v3970
        %v4094 = vmul.f32 %v4087, %v3970
        %v4095 = vmul.f32 %v4088, %v3970
        %v4096 = vmul.f32 %v4089, %v3970
        %v4097 = vmul.f32 %v4090, %v3970
        %v4098 = vmul.f32 %v4091, %v3970
        %v4099 = vmul.f32 %v4092, %v3970
        %v4100 = vadd.f32 %v4093, %v3973
        %v4101 = vadd.f32 %v4094, %v3973
        %v4102 = vadd.f32 %v4095, %v3973
        %v4103 = vadd.f32 %v4096, %v3973
        %v4104 = vadd.f32 %v4097, %v3973
        %v4105 = vadd.f32 %v4098, %v3973
        %v4106 = vadd.f32 %v4099, %v3973
        %4107 = vst [vmem:[%s3063] sm:$0xff] %v4100
        %4108 = vst [vmem:[%s3063 + $0x8] sm:$0xff] %v4101
        %4109 = vst [vmem:[%s3063 + $0x10] sm:$0xff] %v4102
        %4110 = vst [vmem:[%s3063 + $0x18] sm:$0xff] %v4103
        %4111 = vst [vmem:[%s3063 + $0x20] sm:$0xff] %v4104
        %4112 = vst [vmem:[%s3063 + $0x28] sm:$0xff] %v4105
        %4113 = vst [vmem:[%s3063 + $0x30] sm:$0xff] %v4106
        %v4114 = vld [vmem:[%s3498] sm:$0xff]
        %v4115 = vld [vmem:[%s3498 + $0x8] sm:$0xff]
        %v4116 = vld [vmem:[%s3498 + $0x10] sm:$0xff]
        %v4117 = vld [vmem:[%s3498 + $0x18] sm:$0xff]
        %v4118 = vld [vmem:[%s3498 + $0x20] sm:$0xff]
        %v4119 = vld [vmem:[%s3498 + $0x28] sm:$0xff]
        %v4120 = vld [vmem:[%s3498 + $0x30] sm:$0xff]
        %v4121 = vmul.f32 %v4114, %v3970
        %v4122 = vmul.f32 %v4115, %v3970
        %v4123 = vmul.f32 %v4116, %v3970
        %v4124 = vmul.f32 %v4117, %v3970
        %v4125 = vmul.f32 %v4118, %v3970
        %v4126 = vmul.f32 %v4119, %v3970
        %v4127 = vmul.f32 %v4120, %v3970
        %v4128 = vadd.f32 %v4121, %v3973
        %v4129 = vadd.f32 %v4122, %v3973
        %v4130 = vadd.f32 %v4123, %v3973
        %v4131 = vadd.f32 %v4124, %v3973
        %v4132 = vadd.f32 %v4125, %v3973
        %v4133 = vadd.f32 %v4126, %v3973
        %v4134 = vadd.f32 %v4127, %v3973
        %4135 = vst [vmem:[%s3498] sm:$0xff] %v4128
        %4136 = vst [vmem:[%s3498 + $0x8] sm:$0xff] %v4129
        %4137 = vst [vmem:[%s3498 + $0x10] sm:$0xff] %v4130
        %4138 = vst [vmem:[%s3498 + $0x18] sm:$0xff] %v4131
        %4139 = vst [vmem:[%s3498 + $0x20] sm:$0xff] %v4132
        %4140 = vst [vmem:[%s3498 + $0x28] sm:$0xff] %v4133
        %4141 = vst [vmem:[%s3498 + $0x30] sm:$0xff] %v4134
        %v4142 = vld [vmem:[%s3933] sm:$0xff]
        %v4143 = vld [vmem:[%s3933 + $0x8] sm:$0xff]
        %v4144 = vld [vmem:[%s3933 + $0x10] sm:$0xff]
        %v4145 = vld [vmem:[%s3933 + $0x18] sm:$0xff]
        %v4146 = vld [vmem:[%s3933 + $0x20] sm:$0xff]
        %v4147 = vld [vmem:[%s3933 + $0x28] sm:$0xff]
        %v4148 = vld [vmem:[%s3933 + $0x30] sm:$0xff]
        %v4149 = vmul.f32 %v4142, %v3970
        %v4150 = vmul.f32 %v4143, %v3970
        %v4151 = vmul.f32 %v4144, %v3970
        %v4152 = vmul.f32 %v4145, %v3970
        %v4153 = vmul.f32 %v4146, %v3970
        %v4154 = vmul.f32 %v4147, %v3970
        %v4155 = vmul.f32 %v4148, %v3970
        %v4156 = vadd.f32 %v4149, %v3973
        %v4157 = vadd.f32 %v4150, %v3973
        %v4158 = vadd.f32 %v4151, %v3973
        %v4159 = vadd.f32 %v4152, %v3973
        %v4160 = vadd.f32 %v4153, %v3973
        %v4161 = vadd.f32 %v4154, %v3973
        %v4162 = vadd.f32 %v4155, %v3973
        %4163 = vst [vmem:[%s3933] sm:$0xff] %v4156
        %4164 = vst [vmem:[%s3933 + $0x8] sm:$0xff] %v4157
        %4165 = vst [vmem:[%s3933 + $0x10] sm:$0xff] %v4158
        %4166 = vst [vmem:[%s3933 + $0x18] sm:$0xff] %v4159
        %4167 = vst [vmem:[%s3933 + $0x20] sm:$0xff] %v4160
        %4168 = vst [vmem:[%s3933 + $0x28] sm:$0xff] %v4161
        %4169 = vst [vmem:[%s3933 + $0x30] sm:$0xff] %v4162
        %s4170 = sand.u32 %s127, 1
        %s4171 = sand.u32 %s127, 1
        %s4172 = smul.addr %s4171, 392
        %s4173 = scalar_lea.vmem [#allocation4], %s4172
        // Predicated region
        $region113: #{depthwise_conv_bn.1} parent=103 // pred_check
          %p4174 = pneg %p137
        $region114: #{depthwise_conv_bn.1} parent=103 // pred_check_branch
          %4176 = sbr.rel (%p4174) target = $region116
        $region115: #{depthwise_conv_bn.1} parent=103 // pred_region
          %s4177 = smul.addr %s15, 8
          %s4178 = scalar_lea.vmem %s4, %s4177
          // Predicated region
          $region117: #{depthwise_conv_bn.1} parent=115 // pred_check
            _
          $region118: #{depthwise_conv_bn.1} parent=115 // pred_check_branch
            %4180 = sbr.rel (0) target = $region120
          $region119: #{depthwise_conv_bn.1} parent=115 // pred_region
            // Predicated region
            $region121: #{depthwise_conv_bn.1} parent=119 // pred_check
              _
            $region122: #{depthwise_conv_bn.1} parent=119 // pred_check_branch
              %4182 = sbr.rel (0) target = $region124
            $region123: #{depthwise_conv_bn.1} parent=119 // pred_region
              // Predicated region
              $region136: #{depthwise_conv_bn.1} parent=123 // pred_check
                _
              $region137: #{depthwise_conv_bn.1} parent=123 // pred_check_branch
                %4293 = sbr.rel (0) target = $region139
              $region138: #{depthwise_conv_bn.1} parent=123 // pred_region
                loop: start=0, step=1, limit=1
                $region140: #{depthwise_conv_bn.1} parent=138 // loop_pre_header
                  _
                $region141: #{depthwise_conv_bn.1} parent=138 // loop_header
                  %s4295 = sphi 0, %s4299
                  %p4296 = scmp.ge.s32.totalorder %s4295, 1
                  %s4300 = sphi %s4173, %s4173
                  %s4301 = sphi %s4178, %s4178
                $region142: #{depthwise_conv_bn.1} parent=138 // loop_header_branch
                  %4298 = sbr.rel (%p4296) target = $region146
                $region143: #{depthwise_conv_bn.1} parent=138 // loop_body
                  %v4302 = vld [vmem:[%s4300] sm:$0xff]
                  %4303 = vst [vmem:[%s4301] sm:$0xff] %v4302
                  %v4304 = vld [vmem:[%s4300 + $0x8] sm:$0xff]
                  %4305 = vst [vmem:[%s4301 + $0x18] sm:$0xff] %v4304
                  %v4306 = vld [vmem:[%s4300 + $0x10] sm:$0xff]
                  %4307 = vst [vmem:[%s4301 + $0x30] sm:$0xff] %v4306
                  %v4308 = vld [vmem:[%s4300 + $0x18] sm:$0xff]
                  %4309 = vst [vmem:[%s4301 + $0x48] sm:$0xff] %v4308
                  %v4310 = vld [vmem:[%s4300 + $0x20] sm:$0xff]
                  %4311 = vst [vmem:[%s4301 + $0x60] sm:$0xff] %v4310
                  %v4312 = vld [vmem:[%s4300 + $0x28] sm:$0xff]
                  %4313 = vst [vmem:[%s4301 + $0x78] sm:$0xff] %v4312
                  %v4314 = vld [vmem:[%s4300 + $0x30] sm:$0xff]
                  %4315 = vst [vmem:[%s4301 + $0x90] sm:$0xff] %v4314
                  %v4316 = vld [vmem:[%s4300 + $0x38] sm:$0xff]
                  %4317 = vst [vmem:[%s4301 + $0xa8] sm:$0xff] %v4316
                  %v4318 = vld [vmem:[%s4300 + $0x40] sm:$0xff]
                  %4319 = vst [vmem:[%s4301 + $0xc0] sm:$0xff] %v4318
                  %v4320 = vld [vmem:[%s4300 + $0x48] sm:$0xff]
                  %4321 = vst [vmem:[%s4301 + $0xd8] sm:$0xff] %v4320
                  %v4322 = vld [vmem:[%s4300 + $0x50] sm:$0xff]
                  %4323 = vst [vmem:[%s4301 + $0xf0] sm:$0xff] %v4322
                  %v4324 = vld [vmem:[%s4300 + $0x58] sm:$0xff]
                  %4325 = vst [vmem:[%s4301 + $0x108] sm:$0xff] %v4324
                  %v4326 = vld [vmem:[%s4300 + $0x60] sm:$0xff]
                  %4327 = vst [vmem:[%s4301 + $0x120] sm:$0xff] %v4326
                  %v4328 = vld [vmem:[%s4300 + $0x68] sm:$0xff]
                  %4329 = vst [vmem:[%s4301 + $0x138] sm:$0xff] %v4328
                  %v4330 = vld [vmem:[%s4300 + $0x70] sm:$0xff]
                  %4331 = vst [vmem:[%s4301 + $0x150] sm:$0xff] %v4330
                  %v4332 = vld [vmem:[%s4300 + $0x78] sm:$0xff]
                  %4333 = vst [vmem:[%s4301 + $0x168] sm:$0xff] %v4332
                  %v4334 = vld [vmem:[%s4300 + $0x80] sm:$0xff]
                  %4335 = vst [vmem:[%s4301 + $0x180] sm:$0xff] %v4334
                  %v4336 = vld [vmem:[%s4300 + $0x88] sm:$0xff]
                  %4337 = vst [vmem:[%s4301 + $0x198] sm:$0xff] %v4336
                  %v4338 = vld [vmem:[%s4300 + $0x90] sm:$0xff]
                  %4339 = vst [vmem:[%s4301 + $0x1b0] sm:$0xff] %v4338
                  %v4340 = vld [vmem:[%s4300 + $0x98] sm:$0xff]
                  %4341 = vst [vmem:[%s4301 + $0x1c8] sm:$0xff] %v4340
                  %v4342 = vld [vmem:[%s4300 + $0xa0] sm:$0xff]
                  %4343 = vst [vmem:[%s4301 + $0x1e0] sm:$0xff] %v4342
                  %v4344 = vld [vmem:[%s4300 + $0xa8] sm:$0xff]
                  %4345 = vst [vmem:[%s4301 + $0x1f8] sm:$0xff] %v4344
                  %v4346 = vld [vmem:[%s4300 + $0xb0] sm:$0xff]
                  %4347 = vst [vmem:[%s4301 + $0x210] sm:$0xff] %v4346
                  %v4348 = vld [vmem:[%s4300 + $0xb8] sm:$0xff]
                  %4349 = vst [vmem:[%s4301 + $0x228] sm:$0xff] %v4348
                  %v4350 = vld [vmem:[%s4300 + $0xc0] sm:$0xff]
                  %4351 = vst [vmem:[%s4301 + $0x240] sm:$0xff] %v4350
                  %v4352 = vld [vmem:[%s4300 + $0xc8] sm:$0xff]
                  %4353 = vst [vmem:[%s4301 + $0x258] sm:$0xff] %v4352
                  %v4354 = vld [vmem:[%s4300 + $0xd0] sm:$0xff]
                  %4355 = vst [vmem:[%s4301 + $0x270] sm:$0xff] %v4354
                  %v4356 = vld [vmem:[%s4300 + $0xd8] sm:$0xff]
                  %4357 = vst [vmem:[%s4301 + $0x288] sm:$0xff] %v4356
                  %v4358 = vld [vmem:[%s4300 + $0xe0] sm:$0xff]
                  %4359 = vst [vmem:[%s4301 + $0x2a0] sm:$0xff] %v4358
                  %v4360 = vld [vmem:[%s4300 + $0xe8] sm:$0xff]
                  %4361 = vst [vmem:[%s4301 + $0x2b8] sm:$0xff] %v4360
                  %v4362 = vld [vmem:[%s4300 + $0xf0] sm:$0xff]
                  %4363 = vst [vmem:[%s4301 + $0x2d0] sm:$0xff] %v4362
                  %v4364 = vld [vmem:[%s4300 + $0xf8] sm:$0xff]
                  %4365 = vst [vmem:[%s4301 + $0x2e8] sm:$0xff] %v4364
                  %v4366 = vld [vmem:[%s4300 + $0x100] sm:$0xff]
                  %4367 = vst [vmem:[%s4301 + $0x300] sm:$0xff] %v4366
                  %v4368 = vld [vmem:[%s4300 + $0x108] sm:$0xff]
                  %4369 = vst [vmem:[%s4301 + $0x318] sm:$0xff] %v4368
                  %v4370 = vld [vmem:[%s4300 + $0x110] sm:$0xff]
                  %4371 = vst [vmem:[%s4301 + $0x330] sm:$0xff] %v4370
                  %v4372 = vld [vmem:[%s4300 + $0x118] sm:$0xff]
                  %4373 = vst [vmem:[%s4301 + $0x348] sm:$0xff] %v4372
                  %v4374 = vld [vmem:[%s4300 + $0x120] sm:$0xff]
                  %4375 = vst [vmem:[%s4301 + $0x360] sm:$0xff] %v4374
                  %v4376 = vld [vmem:[%s4300 + $0x128] sm:$0xff]
                  %4377 = vst [vmem:[%s4301 + $0x378] sm:$0xff] %v4376
                  %v4378 = vld [vmem:[%s4300 + $0x130] sm:$0xff]
                  %4379 = vst [vmem:[%s4301 + $0x390] sm:$0xff] %v4378
                  %v4380 = vld [vmem:[%s4300 + $0x138] sm:$0xff]
                  %4381 = vst [vmem:[%s4301 + $0x3a8] sm:$0xff] %v4380
                  %v4382 = vld [vmem:[%s4300 + $0x140] sm:$0xff]
                  %4383 = vst [vmem:[%s4301 + $0x3c0] sm:$0xff] %v4382
                  %v4384 = vld [vmem:[%s4300 + $0x148] sm:$0xff]
                  %4385 = vst [vmem:[%s4301 + $0x3d8] sm:$0xff] %v4384
                  %v4386 = vld [vmem:[%s4300 + $0x150] sm:$0xff]
                  %4387 = vst [vmem:[%s4301 + $0x3f0] sm:$0xff] %v4386
                  %v4388 = vld [vmem:[%s4300 + $0x158] sm:$0xff]
                  %4389 = vst [vmem:[%s4301 + $0x408] sm:$0xff] %v4388
                  %v4390 = vld [vmem:[%s4300 + $0x160] sm:$0xff]
                  %4391 = vst [vmem:[%s4301 + $0x420] sm:$0xff] %v4390
                  %v4392 = vld [vmem:[%s4300 + $0x168] sm:$0xff]
                  %4393 = vst [vmem:[%s4301 + $0x438] sm:$0xff] %v4392
                  %v4394 = vld [vmem:[%s4300 + $0x170] sm:$0xff]
                  %4395 = vst [vmem:[%s4301 + $0x450] sm:$0xff] %v4394
                  %v4396 = vld [vmem:[%s4300 + $0x178] sm:$0xff]
                  %4397 = vst [vmem:[%s4301 + $0x468] sm:$0xff] %v4396
                  %v4398 = vld [vmem:[%s4300 + $0x180] sm:$0xff]
                  %4399 = vst [vmem:[%s4301 + $0x480] sm:$0xff] %v4398
                $region144: #{depthwise_conv_bn.1} parent=138 // loop_footer
                  %s4299 = sadd.s32 1, %s4295
                $region145: #{depthwise_conv_bn.1} parent=138 // loop_footer_branch
                  %4294 = sbr.rel target = $region141
                $region146: #{depthwise_conv_bn.1} parent=138 // loop_exit
                  _
              $region139: #{depthwise_conv_bn.1} parent=123 // pred_fallthru
                _
              // Predicated region
              $region147: #{depthwise_conv_bn.1} parent=123 // pred_check
                _
              $region148: #{depthwise_conv_bn.1} parent=123 // pred_check_branch
                %4401 = sbr.rel target = $region150
              $region149: #{depthwise_conv_bn.1} parent=123 // pred_region
                _
              $region150: #{depthwise_conv_bn.1} parent=123 // pred_fallthru
                _
            $region124: #{depthwise_conv_bn.1} parent=119 // pred_fallthru
              _
            // Predicated region
            $region125: #{depthwise_conv_bn.1} parent=119 // pred_check
              _
            $region126: #{depthwise_conv_bn.1} parent=119 // pred_check_branch
              %4184 = sbr.rel target = $region128
            $region127: #{depthwise_conv_bn.1} parent=119 // pred_region
              loop: start=0, step=1, limit=1
              $region129: #{depthwise_conv_bn.1} parent=127 // loop_pre_header
                _
              $region130: #{depthwise_conv_bn.1} parent=127 // loop_header
                %s4187 = sphi 0, %s4191
                %p4188 = scmp.ge.s32.totalorder %s4187, 1
                %s4192 = sphi %s4173, %s4173
                %s4193 = sphi %s4178, %s4178
              $region131: #{depthwise_conv_bn.1} parent=127 // loop_header_branch
                %4190 = sbr.rel (%p4188) target = $region135
              $region132: #{depthwise_conv_bn.1} parent=127 // loop_body
                %v4194 = vld [vmem:[%s4192] sm:$0xff]
                %4195 = vst [vmem:[%s4193] sm:$0xff] %v4194
                %v4196 = vld [vmem:[%s4192 + $0x8] sm:$0xff]
                %4197 = vst [vmem:[%s4193 + $0x18] sm:$0xff] %v4196
                %v4198 = vld [vmem:[%s4192 + $0x10] sm:$0xff]
                %4199 = vst [vmem:[%s4193 + $0x30] sm:$0xff] %v4198
                %v4200 = vld [vmem:[%s4192 + $0x18] sm:$0xff]
                %4201 = vst [vmem:[%s4193 + $0x48] sm:$0xff] %v4200
                %v4202 = vld [vmem:[%s4192 + $0x20] sm:$0xff]
                %4203 = vst [vmem:[%s4193 + $0x60] sm:$0xff] %v4202
                %v4204 = vld [vmem:[%s4192 + $0x28] sm:$0xff]
                %4205 = vst [vmem:[%s4193 + $0x78] sm:$0xff] %v4204
                %v4206 = vld [vmem:[%s4192 + $0x30] sm:$0xff]
                %4207 = vst [vmem:[%s4193 + $0x90] sm:$0xff] %v4206
                %v4208 = vld [vmem:[%s4192 + $0x38] sm:$0xff]
                %4209 = vst [vmem:[%s4193 + $0xa8] sm:$0xff] %v4208
                %v4210 = vld [vmem:[%s4192 + $0x40] sm:$0xff]
                %4211 = vst [vmem:[%s4193 + $0xc0] sm:$0xff] %v4210
                %v4212 = vld [vmem:[%s4192 + $0x48] sm:$0xff]
                %4213 = vst [vmem:[%s4193 + $0xd8] sm:$0xff] %v4212
                %v4214 = vld [vmem:[%s4192 + $0x50] sm:$0xff]
                %4215 = vst [vmem:[%s4193 + $0xf0] sm:$0xff] %v4214
                %v4216 = vld [vmem:[%s4192 + $0x58] sm:$0xff]
                %4217 = vst [vmem:[%s4193 + $0x108] sm:$0xff] %v4216
                %v4218 = vld [vmem:[%s4192 + $0x60] sm:$0xff]
                %4219 = vst [vmem:[%s4193 + $0x120] sm:$0xff] %v4218
                %v4220 = vld [vmem:[%s4192 + $0x68] sm:$0xff]
                %4221 = vst [vmem:[%s4193 + $0x138] sm:$0xff] %v4220
                %v4222 = vld [vmem:[%s4192 + $0x70] sm:$0xff]
                %4223 = vst [vmem:[%s4193 + $0x150] sm:$0xff] %v4222
                %v4224 = vld [vmem:[%s4192 + $0x78] sm:$0xff]
                %4225 = vst [vmem:[%s4193 + $0x168] sm:$0xff] %v4224
                %v4226 = vld [vmem:[%s4192 + $0x80] sm:$0xff]
                %4227 = vst [vmem:[%s4193 + $0x180] sm:$0xff] %v4226
                %v4228 = vld [vmem:[%s4192 + $0x88] sm:$0xff]
                %4229 = vst [vmem:[%s4193 + $0x198] sm:$0xff] %v4228
                %v4230 = vld [vmem:[%s4192 + $0x90] sm:$0xff]
                %4231 = vst [vmem:[%s4193 + $0x1b0] sm:$0xff] %v4230
                %v4232 = vld [vmem:[%s4192 + $0x98] sm:$0xff]
                %4233 = vst [vmem:[%s4193 + $0x1c8] sm:$0xff] %v4232
                %v4234 = vld [vmem:[%s4192 + $0xa0] sm:$0xff]
                %4235 = vst [vmem:[%s4193 + $0x1e0] sm:$0xff] %v4234
                %v4236 = vld [vmem:[%s4192 + $0xa8] sm:$0xff]
                %4237 = vst [vmem:[%s4193 + $0x1f8] sm:$0xff] %v4236
                %v4238 = vld [vmem:[%s4192 + $0xb0] sm:$0xff]
                %4239 = vst [vmem:[%s4193 + $0x210] sm:$0xff] %v4238
                %v4240 = vld [vmem:[%s4192 + $0xb8] sm:$0xff]
                %4241 = vst [vmem:[%s4193 + $0x228] sm:$0xff] %v4240
                %v4242 = vld [vmem:[%s4192 + $0xc0] sm:$0xff]
                %4243 = vst [vmem:[%s4193 + $0x240] sm:$0xff] %v4242
                %v4244 = vld [vmem:[%s4192 + $0xc8] sm:$0xff]
                %4245 = vst [vmem:[%s4193 + $0x258] sm:$0xff] %v4244
                %v4246 = vld [vmem:[%s4192 + $0xd0] sm:$0xff]
                %4247 = vst [vmem:[%s4193 + $0x270] sm:$0xff] %v4246
                %v4248 = vld [vmem:[%s4192 + $0xd8] sm:$0xff]
                %4249 = vst [vmem:[%s4193 + $0x288] sm:$0xff] %v4248
                %v4250 = vld [vmem:[%s4192 + $0xe0] sm:$0xff]
                %4251 = vst [vmem:[%s4193 + $0x2a0] sm:$0xff] %v4250
                %v4252 = vld [vmem:[%s4192 + $0xe8] sm:$0xff]
                %4253 = vst [vmem:[%s4193 + $0x2b8] sm:$0xff] %v4252
                %v4254 = vld [vmem:[%s4192 + $0xf0] sm:$0xff]
                %4255 = vst [vmem:[%s4193 + $0x2d0] sm:$0xff] %v4254
                %v4256 = vld [vmem:[%s4192 + $0xf8] sm:$0xff]
                %4257 = vst [vmem:[%s4193 + $0x2e8] sm:$0xff] %v4256
                %v4258 = vld [vmem:[%s4192 + $0x100] sm:$0xff]
                %4259 = vst [vmem:[%s4193 + $0x300] sm:$0xff] %v4258
                %v4260 = vld [vmem:[%s4192 + $0x108] sm:$0xff]
                %4261 = vst [vmem:[%s4193 + $0x318] sm:$0xff] %v4260
                %v4262 = vld [vmem:[%s4192 + $0x110] sm:$0xff]
                %4263 = vst [vmem:[%s4193 + $0x330] sm:$0xff] %v4262
                %v4264 = vld [vmem:[%s4192 + $0x118] sm:$0xff]
                %4265 = vst [vmem:[%s4193 + $0x348] sm:$0xff] %v4264
                %v4266 = vld [vmem:[%s4192 + $0x120] sm:$0xff]
                %4267 = vst [vmem:[%s4193 + $0x360] sm:$0xff] %v4266
                %v4268 = vld [vmem:[%s4192 + $0x128] sm:$0xff]
                %4269 = vst [vmem:[%s4193 + $0x378] sm:$0xff] %v4268
                %v4270 = vld [vmem:[%s4192 + $0x130] sm:$0xff]
                %4271 = vst [vmem:[%s4193 + $0x390] sm:$0xff] %v4270
                %v4272 = vld [vmem:[%s4192 + $0x138] sm:$0xff]
                %4273 = vst [vmem:[%s4193 + $0x3a8] sm:$0xff] %v4272
                %v4274 = vld [vmem:[%s4192 + $0x140] sm:$0xff]
                %4275 = vst [vmem:[%s4193 + $0x3c0] sm:$0xff] %v4274
                %v4276 = vld [vmem:[%s4192 + $0x148] sm:$0xff]
                %4277 = vst [vmem:[%s4193 + $0x3d8] sm:$0xff] %v4276
                %v4278 = vld [vmem:[%s4192 + $0x150] sm:$0xff]
                %4279 = vst [vmem:[%s4193 + $0x3f0] sm:$0xff] %v4278
                %v4280 = vld [vmem:[%s4192 + $0x158] sm:$0xff]
                %4281 = vst [vmem:[%s4193 + $0x408] sm:$0xff] %v4280
                %v4282 = vld [vmem:[%s4192 + $0x160] sm:$0xff]
                %4283 = vst [vmem:[%s4193 + $0x420] sm:$0xff] %v4282
                %v4284 = vld [vmem:[%s4192 + $0x168] sm:$0xff]
                %4285 = vst [vmem:[%s4193 + $0x438] sm:$0xff] %v4284
                %v4286 = vld [vmem:[%s4192 + $0x170] sm:$0xff]
                %4287 = vst [vmem:[%s4193 + $0x450] sm:$0xff] %v4286
                %v4288 = vld [vmem:[%s4192 + $0x178] sm:$0xff]
                %4289 = vst [vmem:[%s4193 + $0x468] sm:$0xff] %v4288
                %v4290 = vld [vmem:[%s4192 + $0x180] sm:$0xff]
                %4291 = vst [vmem:[%s4193 + $0x480] sm:$0xff] %v4290
              $region133: #{depthwise_conv_bn.1} parent=127 // loop_footer
                %s4191 = sadd.s32 1, %s4187
              $region134: #{depthwise_conv_bn.1} parent=127 // loop_footer_branch
                %4186 = sbr.rel target = $region130
              $region135: #{depthwise_conv_bn.1} parent=127 // loop_exit
                _
            $region128: #{depthwise_conv_bn.1} parent=119 // pred_fallthru
              _
          $region120: #{depthwise_conv_bn.1} parent=115 // pred_fallthru
            _
          %4402 = vnop
        $region116: #{depthwise_conv_bn.1} parent=103 // pred_fallthru
          _
      $region104: #{depthwise_conv_bn.1} parent=5 // pred_fallthru
        _
      %p4403 = scmp.le.s32.totalorder 2, %s10
      // Predicated region
      $region151: #{depthwise_conv_bn.1} parent=5 // pred_check
        %p4404 = pneg %p4403
      $region152: #{depthwise_conv_bn.1} parent=5 // pred_check_branch
        %4406 = sbr.rel (%p4404) target = $region154
      $region153: #{depthwise_conv_bn.1} parent=5 // pred_region
        %s4407 = ssub.s32 %s10, 2
        // Predicated region
        $region155: #{depthwise_conv_bn.1} parent=153 // pred_check
          %p4408 = pneg %p143
        $region156: #{depthwise_conv_bn.1} parent=153 // pred_check_branch
          %4410 = sbr.rel (%p4408) target = $region158
        $region157: #{depthwise_conv_bn.1} parent=153 // pred_region
          %s4411 = sand.u32 %s128, 1
          %s4412 = sand.u32 %s128, 1
          %s4413 = smul.addr %s4412, 392
          %s4414 = scalar_lea.vmem [#allocation4], %s4413
        $region158: #{depthwise_conv_bn.1} parent=153 // pred_fallthru
          _
      $region154: #{depthwise_conv_bn.1} parent=5 // pred_fallthru
        _
    $region6: #{depthwise_conv_bn.1} parent=1 // loop_footer
      %s14 = sadd.s32 1, %s10
    $region7: #{depthwise_conv_bn.1} parent=1 // loop_footer_branch
      %9 = sbr.rel target = $region3
    $region8: #{depthwise_conv_bn.1} parent=1 // loop_exit
      _

</llo_original>
